<compile_context>
chip_gen: v5e
topology: v5e:2x2
jax: 0.10.0
libtpu: 0.0.40
codegen_flags: <defaults>
</compile_context>

<pallas_src>
import functools

import jax
import jax.numpy as jnp
from jax.experimental import pallas as pl
from jax.experimental.pallas import tpu as pltpu

NEG_BIG = -1e9     # additive mask value (reference only)
NEG_INIT = -1e30   # initial running max (finite -> no inf-inf NaN risk)


def _round_up(a, b):
    return (a + b - 1) // b * b


def _node_tiling(n):
    """(n_pad, dst_tile, src_tile)."""
    if n <= 256:
        n_pad = _round_up(n, 128)
        return n_pad, n_pad, n_pad          # single tile == full padded array
    n_pad = _round_up(n, 256)
    return n_pad, 256, 128                  # tq=256 dst rows, tk=128 src cols


def _feat_tiling(f_in):
    """(f_pad, k_tile): wide feature dims get 512-wide K tiles (zero-padding is harmless)."""
    if f_in <= 512:
        f_pad = _round_up(f_in, 128)
        return f_pad, f_pad
    f_pad = _round_up(f_in, 512)
    return f_pad, 512


def _block_diag_att(att, hc_pad):
    """[H, C] attention vector -> block-diagonal [hc_pad, H] matrix so that
    (x @ W) @ A yields all per-head attention coefficients in one MXU matmul."""
    h, c = att.shape
    eye = jnp.eye(h, dtype=att.dtype)
    a = (att[:, :, None] * eye[:, None, :]).reshape(h * c, h)
    return jnp.pad(a, ((0, hc_pad - h * c), (0, 0)))


# ---------------------------------------------------------------------------
# Kernel 1: K-tiled projection  xp = x @ W  (+ fused attention coefficients)
# ---------------------------------------------------------------------------
def _proj_kernel(x_ref, w_ref, asrc_ref, adst_ref,
                 xp_ref, alpha_src_ref, alpha_dst_ref, acc_ref):
    k = pl.program_id(1)

    @pl.when(k == 0)
    def _():
        acc_ref[...] = jnp.zeros(acc_ref.shape, jnp.float32)

    # bf16 x bf16 -> f32 accumulate (MXU-native on v5e/v6e/v7x).
    acc_ref[...] += jnp.dot(x_ref[...], w_ref[...],
                            preferred_element_type=jnp.float32)

    @pl.when(k == pl.num_programs(1) - 1)
    def _():
        acc = acc_ref[...]
        xp_ref[...] = acc.astype(xp_ref.dtype)          # bf16 copy for aggregation
        alpha_src_ref[...] = jnp.dot(acc, asrc_ref[...],
                                     preferred_element_type=jnp.float32)
        alpha_dst_ref[...] = jnp.dot(acc, adst_ref[...],
                                     preferred_element_type=jnp.float32)


# ---------------------------------------------------------------------------
# Kernel 2: masked softmax attention + aggregation (online softmax over src tiles,
#           block-sparse tile skip via scalar-prefetched occupancy map)
# ---------------------------------------------------------------------------
def _attn_kernel(counts_ref, a_dst_ref, a_src_ref, adj_ref, xp_ref, bias_ref,
                 out_ref, m_ref, l_ref, acc_ref,
                 *, heads, out_ch, tile_k, concat, activation, out_real, out_pad):
    i = pl.program_id(0)
    j = pl.program_id(1)

    @pl.when(j == 0)
    def _():
        m_ref[...] = jnp.full(m_ref.shape, NEG_INIT, jnp.float32)
        l_ref[...] = jnp.zeros(l_ref.shape, jnp.float32)
        acc_ref[...] = jnp.zeros(acc_ref.shape, jnp.float32)

    # Skip all compute for src tiles that contain no edges into this dst tile.
    @pl.when(counts_ref[i, j] > 0)
    def _():
        c = out_ch
        src0 = pl.multiple_of(j * tile_k, tile_k)
        a_dst = a_dst_ref[...]                                    # [tq, H]  f32
        a_src = a_src_ref[:, pl.ds(src0, tile_k)]                 # [H, tk]  f32
        adj_t = adj_ref[...]                                      # [tq, tk] bf16
        xp_t = xp_ref[pl.ds(src0, tile_k), :]                     # [tk, HCp] bf16
        m_prev = m_ref[...]                                       # [tq, H]
        l_prev = l_ref[...]

        m_cols, l_cols, acc_cols = [], [], []
        for h in range(heads):            # static unroll; one [tq, tk] tile live at a time
            z = a_dst[:, h:h + 1] + a_src[h:h + 1, :]             # [tq, tk]
            e = jnp.maximum(z, 0.2 * z)                           # LeakyReLU(0.2)
            m_p = m_prev[:, h:h + 1]
            m_n = jnp.maximum(m_p, jnp.max(e, axis=1, keepdims=True))
            corr = jnp.exp(m_p - m_n)
            # Multiplicative mask: exact zeros off-edge.  Using the unmasked running max as
            # the softmax shift is valid (the exp(-m) factor cancels in acc / l).
            p = jnp.exp(e - m_n) * adj_t                          # [tq, tk] f32
            l_cols.append(corr * l_prev[:, h:h + 1]
                          + jnp.sum(p, axis=1, keepdims=True))
            m_cols.append(m_n)
            agg = jnp.dot(p.astype(jnp.bfloat16), xp_t[:, h * c:(h + 1) * c],
                          preferred_element_type=jnp.float32)     # [tq, C]
            acc_cols.append(corr * acc_ref[:, h * c:(h + 1) * c] + agg)

        # Lane-dense batched scratch updates: one store per array per grid step.
        m_ref[...] = jnp.concatenate(m_cols, axis=1)
        l_ref[...] = jnp.concatenate(l_cols, axis=1)
        acc_ref[...] = jnp.concatenate(acc_cols, axis=1)

    @pl.when(j == pl.num_programs(1) - 1)
    def _():
        c = out_ch
        inv = pl.reciprocal(l_ref[...], approx=True)              # [tq, H]  (EUP slot)
        outs = [acc_ref[:, h * c:(h + 1) * c] * inv[:, h:h + 1] for h in range(heads)]
        if concat:
            o = jnp.concatenate(outs, axis=1)                     # [tq, H*C]
        else:
            o = outs[0]
            for t in outs[1:]:
                o = o + t
            o = o * (1.0 / heads)                                 # mean over heads
        o = o + bias_ref[...]

        if activation == "elu":
            o = jnp.where(o > 0, o, jnp.exp(o) - 1.0)
        elif activation == "log_softmax":
            mx = jnp.max(o, axis=1, keepdims=True)
            sh = o - mx
            o = sh - jnp.log(jnp.sum(jnp.exp(sh), axis=1, keepdims=True))

        pad = out_pad - out_real
        if pad:                                                   # lane-dense (128) store
            o = jnp.concatenate([o, jnp.zeros((o.shape[0], pad), o.dtype)], axis=1)
        out_ref[...] = o.astype(out_ref.dtype)


# ---------------------------------------------------------------------------
# Layer wrapper
# ---------------------------------------------------------------------------
def gat_conv(x, w, att_src, att_dst, adj_p, counts, bias,
             *, n_pad, tile_q, tile_k, concat, activation):
    """One GATConv layer (+ fused ELU / log_softmax epilogue)."""
    n, f_in = x.shape
    heads, out_ch = att_src.shape
    hc = heads * out_ch
    hc_pad = _round_up(hc, 128)
    f_pad, kt = _feat_tiling(f_in)
    out_real = hc if concat else out_ch
    out_pad = _round_up(out_real, 128)
    nq = n_pad // tile_q
    nk = n_pad // tile_k
    nkf = f_pad // kt

    # bf16 inputs halve the dominant HBM read of the projection (accumulation stays f32).
    x_p = jnp.pad(x, ((0, n_pad - n), (0, f_pad - f_in))).astype(jnp.bfloat16)
    w_p = jnp.pad(w, ((0, f_pad - f_in), (0, hc_pad - hc))).astype(jnp.bfloat16)
    a_src_bd = _block_diag_att(att_src.astype(jnp.float32), hc_pad)
    a_dst_bd = _block_diag_att(att_dst.astype(jnp.float32), hc_pad)
    bias2d = bias.reshape(1, -1).astype(jnp.float32)

    # ---- projection + attention coefficients (K-tiled accumulation) -------
    xp, alpha_src, alpha_dst = pl.pallas_call(
        _proj_kernel,
        grid=(nq, nkf),
        in_specs=[
            pl.BlockSpec((tile_q, kt), lambda i, k: (i, k)),        # x (bf16)
            pl.BlockSpec((kt, hc_pad), lambda i, k: (k, 0)),        # W (bf16)
            pl.BlockSpec((hc_pad, heads), lambda i, k: (0, 0)),     # block-diag att_src
            pl.BlockSpec((hc_pad, heads), lambda i, k: (0, 0)),     # block-diag att_dst
        ],
        out_specs=(
            pl.BlockSpec((tile_q, hc_pad), lambda i, k: (i, 0)),    # xp (bf16)
            pl.BlockSpec((tile_q, heads), lambda i, k: (i, 0)),     # alpha_src
            pl.BlockSpec((tile_q, heads), lambda i, k: (i, 0)),     # alpha_dst
        ),
        out_shape=(
            jax.ShapeDtypeStruct((n_pad, hc_pad), jnp.bfloat16),
            jax.ShapeDtypeStruct((n_pad, heads), jnp.float32),
            jax.ShapeDtypeStruct((n_pad, heads), jnp.float32),
        ),
        scratch_shapes=[pltpu.VMEM((tile_q, hc_pad), jnp.float32)],
        compiler_params=pltpu.CompilerParams(
            dimension_semantics=("parallel", "arbitrary")),
    )(x_p, w_p, a_src_bd, a_dst_bd)

    alpha_src_t = alpha_src.T                                       # [H, n_pad]

    # ---- tiled masked softmax + aggregation (online softmax, tile-skip) ---
    kern = functools.partial(_attn_kernel, heads=heads, out_ch=out_ch, tile_k=tile_k,
                             concat=concat, activation=activation,
                             out_real=out_real, out_pad=out_pad)

    def adj_map(i, j, counts_ref):
        # Empty src tiles alias column 0 so consecutive empty tiles dedup their DMA.
        return (i, jnp.where(counts_ref[i, j] > 0, j, 0))

    out_p = pl.pallas_call(
        kern,
        grid_spec=pltpu.PrefetchScalarGridSpec(
            num_scalar_prefetch=1,
            grid=(nq, nk),
            in_specs=[
                pl.BlockSpec((tile_q, heads), lambda i, j, c: (i, 0)),   # alpha_dst (dst tile)
                pl.BlockSpec((heads, n_pad), lambda i, j, c: (0, 0)),    # alpha_src^T, resident
                pl.BlockSpec((tile_q, tile_k), adj_map),                 # adj tile (bf16)
                pl.BlockSpec((n_pad, hc_pad), lambda i, j, c: (0, 0)),   # xp (bf16), resident
                pl.BlockSpec((1, out_real), lambda i, j, c: (0, 0)),     # bias
            ],
            out_specs=pl.BlockSpec((tile_q, out_pad), lambda i, j, c: (i, 0)),
            scratch_shapes=[
                pltpu.VMEM((tile_q, heads), jnp.float32),                # running max  (lane-dense)
                pltpu.VMEM((tile_q, heads), jnp.float32),                # running sum  (lane-dense)
                pltpu.VMEM((tile_q, hc), jnp.float32),                   # accumulators (lane-dense)
            ]),
        out_shape=jax.ShapeDtypeStruct((n_pad, out_pad), jnp.float32),
        compiler_params=pltpu.CompilerParams(
            dimension_semantics=("parallel", "arbitrary")),
    )(counts, alpha_dst, alpha_src_t, adj_p, xp, bias2d)

    return out_p[:n, :out_real]


def gat_forward(x, adj, params):
    """Eval-mode 2-layer GAT: conv1 (8 heads, concat) + ELU, conv2 (1 head) + log_softmax."""
    n = x.shape[0]
    n_pad, tile_q, tile_k = _node_tiling(n)
    adj_p = jnp.pad(adj, ((0, n_pad - n), (0, n_pad - n))).astype(jnp.bfloat16)

    # Per-tile occupancy map for the block-sparse skip (shared by both layers).
    nq, nk = n_pad // tile_q, n_pad // tile_k
    counts = (adj_p.reshape(nq, tile_q, nk, tile_k).max(axis=(1, 3)) > 0).astype(jnp.int32)

    # F.dropout(x, 0.6, training=False) -> identity in eval mode.
    h = gat_conv(x, params["w1"], params["att_src1"], params["att_dst1"], adj_p, counts,
                 params["bias1"], n_pad=n_pad, tile_q=tile_q, tile_k=tile_k,
                 concat=True, activation="elu")
    # F.dropout(h, 0.6, training=False) -> identity in eval mode.
    out = gat_conv(h, params["w2"], params["att_src2"], params["att_dst2"], adj_p, counts,
                   params["bias2"], n_pad=n_pad, tile_q=tile_q, tile_k=tile_k,
                   concat=False, activation="log_softmax")
    return out


# ---------------------------------------------------------------------------
# Pure-JAX reference (for correctness checking only)
# ---------------------------------------------------------------------------
def _gat_conv_ref(x, w, att_src, att_dst, adj, bias, concat):
    heads, out_ch = att_src.shape
    n = x.shape[0]
    xp = (x @ w).reshape(n, heads, out_ch)
    a_src = jnp.einsum("nhc,hc->nh", xp, att_src)
    a_dst = jnp.einsum("nhc,hc->nh", xp, att_dst)
    z = a_dst[:, None, :] + a_src[None, :, :]          # [dst, src, H]
    z = jnp.where(z > 0, z, 0.2 * z)
    z = jnp.where(adj[:, :, None] > 0, z, NEG_BIG)
    p = jax.nn.softmax(z, axis=1)
    out = jnp.einsum("ijh,jhc->ihc", p, xp)
    out = out.reshape(n, heads * out_ch) if concat else jnp.mean(out, axis=1)
    return out + bias


def gat_forward_ref(x, adj, params):
    h = jax.nn.elu(_gat_conv_ref(x, params["w1"], params["att_src1"],
                                 params["att_dst1"], adj, params["bias1"], True))
    o = _gat_conv_ref(h, params["w2"], params["att_src2"],
                      params["att_dst2"], adj, params["bias2"], False)
    return jax.nn.log_softmax(o, axis=1)


def glorot(key, shape):
    fan_in, fan_out = shape[-2], shape[-1]
    limit = (6.0 / (fan_in + fan_out)) ** 0.5
    return jax.random.uniform(key, shape, jnp.float32, -limit, limit)


def _bf16r(a):
    # Round to bf16-representable values so the kernel's bf16 input cast is lossless
    # (Citeseer's real features are 0/1 and thus bf16-exact anyway).
    return a.astype(jnp.bfloat16).astype(jnp.float32)


if __name__ == "__main__":
    # Small synthetic stand-in for Citeseer: 32 nodes, 32 features, 6 classes.
    N, F_IN, HIDDEN, HEADS, NUM_CLASSES, E = 32, 32, 8, 8, 6, 96

    key = jax.random.PRNGKey(0)
    kx, ke1, ke2, kw1, ks1, kd1, kw2, ks2, kd2 = jax.random.split(key, 9)

    x = _bf16r(jax.random.normal(kx, (N, F_IN), jnp.float32))

    # edge_index (COO): row 0 = source, row 1 = destination
    src = jax.random.randint(ke1, (E,), 0, N)
    dst = jax.random.randint(ke2, (E,), 0, N)
    adj = jnp.zeros((N, N), jnp.float32).at[dst, src].set(1.0)
    adj = adj.at[jnp.arange(N), jnp.arange(N)].set(1.0)   # GATConv add_self_loops=True

    params = {
        # conv1: GATConv(F_IN, 8, heads=8)
        "w1": _bf16r(glorot(kw1, (F_IN, HEADS * HIDDEN))),
        "att_src1": glorot(ks1, (HEADS, HIDDEN)),
        "att_dst1": glorot(kd1, (HEADS, HIDDEN)),
        "bias1": jnp.zeros((HEADS * HIDDEN,), jnp.float32),
        # conv2: GATConv(64, NUM_CLASSES, heads=1, concat=False)
        "w2": _bf16r(glorot(kw2, (HEADS * HIDDEN, NUM_CLASSES))),
        "att_src2": glorot(ks2, (1, NUM_CLASSES)),
        "att_dst2": glorot(kd2, (1, NUM_CLASSES)),
        "bias2": jnp.zeros((NUM_CLASSES,), jnp.float32),
    }

    out = jax.jit(gat_forward)(x, adj, params)
    jax.block_until_ready(out)
    assert out.shape == (N, NUM_CLASSES)

    # log-softmax rows sum to 1 in probability space
    assert jnp.allclose(jnp.sum(jnp.exp(out), axis=1), 1.0, atol=1e-3)

    # matches the pure-f32 reference up to bf16 aggregation / approx-reciprocal error
    ref = gat_forward_ref(x, adj, params)
    assert jnp.allclose(out, ref, atol=1e-1), float(jnp.max(jnp.abs(out - ref)))

    print("KERNEL_OK")
</pallas_src>

<mosaic_0001>
module attributes {stable_mosaic.version = 11 : i64} {
  func.func @_proj_kernel(%arg0: i32, %arg1: i32, %arg2: memref<128x128xbf16, #tpu.memory_space<vmem>>, %arg3: memref<128x128xbf16, #tpu.memory_space<vmem>>, %arg4: memref<128x8xf32, #tpu.memory_space<vmem>>, %arg5: memref<128x8xf32, #tpu.memory_space<vmem>>, %arg6: memref<128x128xbf16, #tpu.memory_space<vmem>>, %arg7: memref<128x8xf32, #tpu.memory_space<vmem>>, %arg8: memref<128x8xf32, #tpu.memory_space<vmem>>, %arg9: memref<128x128xf32, #tpu.memory_space<vmem>>) attributes {dimension_semantics = [#tpu.dimension_semantics<parallel>, #tpu.dimension_semantics<arbitrary>], iteration_bounds = array<i64: 1, 1>, scalar_prefetch = 0 : i64, scratch_operands = 1 : i64, tpu.core_type = #tpu.core_type<tc>, window_params = [{transform_indices = @transform_0, window_bounds = array<i64: 128, 128>}, {transform_indices = @transform_1, window_bounds = array<i64: 128, 128>}, {pipeline_mode = #tpu.pipeline_mode<synchronous>, transform_indices = @transform_2, window_bounds = array<i64: 128, 8>}, {pipeline_mode = #tpu.pipeline_mode<synchronous>, transform_indices = @transform_3, window_bounds = array<i64: 128, 8>}, {transform_indices = @transform_4, window_bounds = array<i64: 128, 128>}, {transform_indices = @transform_5, window_bounds = array<i64: 128, 8>}, {transform_indices = @transform_6, window_bounds = array<i64: 128, 8>}]} {
    %c0_i32 = arith.constant 0 : i32
    %0 = arith.cmpi eq, %arg1, %c0_i32 : i32
    %1 = arith.extui %0 : i1 to i32
    %c0_i32_0 = arith.constant 0 : i32
    %2 = arith.cmpi ne, %1, %c0_i32_0 : i32
    scf.if %2 {
      %cst_10 = arith.constant 0.000000e+00 : f32
      %12 = vector.broadcast %cst_10 : f32 to vector<128x128xf32>
      %c0_11 = arith.constant 0 : index
      %c0_12 = arith.constant 0 : index
      %13 = vector.load %arg9[%c0_11, %c0_12] : memref<128x128xf32, #tpu.memory_space<vmem>>, vector<128x128xf32>
      tpu.vector_store %arg9[%c0_11, %c0_12], %12 {strides = array<i32>} : memref<128x128xf32, #tpu.memory_space<vmem>>, vector<128x128xf32>,
    } else {
    }
    %c0 = arith.constant 0 : index
    %c0_1 = arith.constant 0 : index
    %3 = vector.load %arg9[%c0, %c0_1] : memref<128x128xf32, #tpu.memory_space<vmem>>, vector<128x128xf32>
    %c0_2 = arith.constant 0 : index
    %c0_3 = arith.constant 0 : index
    %4 = vector.load %arg2[%c0_2, %c0_3] : memref<128x128xbf16, #tpu.memory_space<vmem>>, vector<128x128xbf16>
    %c0_4 = arith.constant 0 : index
    %c0_5 = arith.constant 0 : index
    %5 = vector.load %arg3[%c0_4, %c0_5] : memref<128x128xbf16, #tpu.memory_space<vmem>>, vector<128x128xbf16>
    %cst = arith.constant dense<0.000000e+00> : vector<128x128xf32>
    %6 = tpu.matmul %4, %5, %cst {dimension_numbers = #tpu.dot_dimension_numbers<[1], [0], [0], [1], [0, 0, 1, 1], [], []>} : vector<128x128xbf16>, vector<128x128xbf16>, vector<128x128xf32> -> vector<128x128xf32>
    %7 = arith.addf %3, %6 : vector<128x128xf32>
    %c0_6 = arith.constant 0 : index
    %c0_7 = arith.constant 0 : index
    %8 = vector.load %arg9[%c0_6, %c0_7] : memref<128x128xf32, #tpu.memory_space<vmem>>, vector<128x128xf32>
    tpu.vector_store %arg9[%c0_6, %c0_7], %7 {strides = array<i32>} : memref<128x128xf32, #tpu.memory_space<vmem>>, vector<128x128xf32>,
    %c0_i32_8 = arith.constant 0 : i32
    %9 = arith.cmpi eq, %arg1, %c0_i32_8 : i32
    %10 = arith.extui %9 : i1 to i32
    %c0_i32_9 = arith.constant 0 : i32
    %11 = arith.cmpi ne, %10, %c0_i32_9 : i32
    scf.if %11 {
      %c0_10 = arith.constant 0 : index
      %c0_11 = arith.constant 0 : index
      %12 = vector.load %arg9[%c0_10, %c0_11] : memref<128x128xf32, #tpu.memory_space<vmem>>, vector<128x128xf32>
      %13 = arith.truncf %12 : vector<128x128xf32> to vector<128x128xbf16>
      %c0_12 = arith.constant 0 : index
      %c0_13 = arith.constant 0 : index
      %14 = vector.load %arg6[%c0_12, %c0_13] : memref<128x128xbf16, #tpu.memory_space<vmem>>, vector<128x128xbf16>
      tpu.vector_store %arg6[%c0_12, %c0_13], %13 {strides = array<i32>} : memref<128x128xbf16, #tpu.memory_space<vmem>>, vector<128x128xbf16>,
      %c0_14 = arith.constant 0 : index
      %c0_15 = arith.constant 0 : index
      %15 = vector.load %arg4[%c0_14, %c0_15] : memref<128x8xf32, #tpu.memory_space<vmem>>, vector<128x8xf32>
      %cst_16 = arith.constant dense<0.000000e+00> : vector<128x8xf32>
      %16 = tpu.matmul %12, %15, %cst_16 {dimension_numbers = #tpu.dot_dimension_numbers<[1], [0], [0], [1], [0, 0, 1, 1], [], []>} : vector<128x128xf32>, vector<128x8xf32>, vector<128x8xf32> -> vector<128x8xf32>
      %c0_17 = arith.constant 0 : index
      %c0_18 = arith.constant 0 : index
      %17 = vector.load %arg7[%c0_17, %c0_18] : memref<128x8xf32, #tpu.memory_space<vmem>>, vector<128x8xf32>
      tpu.vector_store %arg7[%c0_17, %c0_18], %16 {strides = array<i32>} : memref<128x8xf32, #tpu.memory_space<vmem>>, vector<128x8xf32>,
      %c0_19 = arith.constant 0 : index
      %c0_20 = arith.constant 0 : index
      %18 = vector.load %arg5[%c0_19, %c0_20] : memref<128x8xf32, #tpu.memory_space<vmem>>, vector<128x8xf32>
      %cst_21 = arith.constant dense<0.000000e+00> : vector<128x8xf32>
      %19 = tpu.matmul %12, %18, %cst_21 {dimension_numbers = #tpu.dot_dimension_numbers<[1], [0], [0], [1], [0, 0, 1, 1], [], []>} : vector<128x128xf32>, vector<128x8xf32>, vector<128x8xf32> -> vector<128x8xf32>
      %c0_22 = arith.constant 0 : index
      %c0_23 = arith.constant 0 : index
      %20 = vector.load %arg8[%c0_22, %c0_23] : memref<128x8xf32, #tpu.memory_space<vmem>>, vector<128x8xf32>
      tpu.vector_store %arg8[%c0_22, %c0_23], %19 {strides = array<i32>} : memref<128x8xf32, #tpu.memory_space<vmem>>, vector<128x8xf32>,
    } else {
    }
    return
  }
  func.func @transform_0(%arg0: i32, %arg1: i32) -> (i32, i32) {
    %c0_i32 = arith.constant 0 : i32
    return %arg0, %arg1 : i32, i32
  }
  func.func @transform_1(%arg0: i32, %arg1: i32) -> (i32, i32) {
    %c0_i32 = arith.constant 0 : i32
    %c0_i32_0 = arith.constant 0 : i32
    return %arg1, %c0_i32 : i32, i32
  }
  func.func @transform_2(%arg0: i32, %arg1: i32) -> (i32, i32) {
    %c0_i32 = arith.constant 0 : i32
    %c0_i32_0 = arith.constant 0 : i32
    %c0_i32_1 = arith.constant 0 : i32
    return %c0_i32, %c0_i32_0 : i32, i32
  }
  func.func @transform_3(%arg0: i32, %arg1: i32) -> (i32, i32) {
    %c0_i32 = arith.constant 0 : i32
    %c0_i32_0 = arith.constant 0 : i32
    %c0_i32_1 = arith.constant 0 : i32
    return %c0_i32, %c0_i32_0 : i32, i32
  }
  func.func @transform_4(%arg0: i32, %arg1: i32) -> (i32, i32) {
    %c0_i32 = arith.constant 0 : i32
    %c0_i32_0 = arith.constant 0 : i32
    return %arg0, %c0_i32 : i32, i32
  }
  func.func @transform_5(%arg0: i32, %arg1: i32) -> (i32, i32) {
    %c0_i32 = arith.constant 0 : i32
    %c0_i32_0 = arith.constant 0 : i32
    return %arg0, %c0_i32 : i32, i32
  }
  func.func @transform_6(%arg0: i32, %arg1: i32) -> (i32, i32) {
    %c0_i32 = arith.constant 0 : i32
    %c0_i32_0 = arith.constant 0 : i32
    return %arg0, %c0_i32 : i32, i32
  }
}

module attributes {stable_mosaic.version = 11 : i64} {
  func.func @_attn_kernel(%arg0: i32, %arg1: i32, %arg2: memref<1x1xi32, #tpu.memory_space<smem>>, %arg3: memref<128x8xf32, #tpu.memory_space<vmem>>, %arg4: memref<8x128xf32, #tpu.memory_space<vmem>>, %arg5: memref<128x128xbf16, #tpu.memory_space<vmem>>, %arg6: memref<128x128xbf16, #tpu.memory_space<vmem>>, %arg7: memref<1x64xf32, #tpu.memory_space<vmem>>, %arg8: memref<128x128xf32, #tpu.memory_space<vmem>>, %arg9: memref<128x8xf32, #tpu.memory_space<vmem>>, %arg10: memref<128x8xf32, #tpu.memory_space<vmem>>, %arg11: memref<128x64xf32, #tpu.memory_space<vmem>>) attributes {dimension_semantics = [#tpu.dimension_semantics<parallel>, #tpu.dimension_semantics<arbitrary>], iteration_bounds = array<i64: 1, 1>, scalar_prefetch = 1 : i64, scratch_operands = 3 : i64, tpu.core_type = #tpu.core_type<tc>, window_params = [{transform_indices = @transform_0, window_bounds = array<i64: 128, 8>}, {pipeline_mode = #tpu.pipeline_mode<synchronous>, transform_indices = @transform_1, window_bounds = array<i64: 8, 128>}, {transform_indices = @transform_2, window_bounds = array<i64: 128, 128>}, {pipeline_mode = #tpu.pipeline_mode<synchronous>, transform_indices = @transform_3, window_bounds = array<i64: 128, 128>}, {pipeline_mode = #tpu.pipeline_mode<synchronous>, transform_indices = @transform_4, window_bounds = array<i64: 1, 64>}, {transform_indices = @transform_5, window_bounds = array<i64: 128, 128>}]} {
    %c0_i32 = arith.constant 0 : i32
    %0 = arith.cmpi eq, %arg1, %c0_i32 : i32
    %1 = arith.extui %0 : i1 to i32
    %c0_i32_0 = arith.constant 0 : i32
    %2 = arith.cmpi ne, %1, %c0_i32_0 : i32
    scf.if %2 {
      %cst = arith.constant -1.000000e+30 : f32
      %12 = vector.broadcast %cst : f32 to vector<128x8xf32>
      %c0 = arith.constant 0 : index
      %c0_5 = arith.constant 0 : index
      %13 = vector.load %arg9[%c0, %c0_5] : memref<128x8xf32, #tpu.memory_space<vmem>>, vector<128x8xf32>
      tpu.vector_store %arg9[%c0, %c0_5], %12 {strides = array<i32>} : memref<128x8xf32, #tpu.memory_space<vmem>>, vector<128x8xf32>,
      %cst_6 = arith.constant 0.000000e+00 : f32
      %14 = vector.broadcast %cst_6 : f32 to vector<128x8xf32>
      %c0_7 = arith.constant 0 : index
      %c0_8 = arith.constant 0 : index
      %15 = vector.load %arg10[%c0_7, %c0_8] : memref<128x8xf32, #tpu.memory_space<vmem>>, vector<128x8xf32>
      tpu.vector_store %arg10[%c0_7, %c0_8], %14 {strides = array<i32>} : memref<128x8xf32, #tpu.memory_space<vmem>>, vector<128x8xf32>,
      %cst_9 = arith.constant 0.000000e+00 : f32
      %16 = vector.broadcast %cst_9 : f32 to vector<128x64xf32>
      %c0_10 = arith.constant 0 : index
      %c0_11 = arith.constant 0 : index
      %17 = vector.load %arg11[%c0_10, %c0_11] : memref<128x64xf32, #tpu.memory_space<vmem>>, vector<128x64xf32>
      tpu.vector_store %arg11[%c0_10, %c0_11], %16 {strides = array<i32>} : memref<128x64xf32, #tpu.memory_space<vmem>>, vector<128x64xf32>,
    } else {
    }
    %3 = arith.index_cast %arg0 : i32 to index
    %4 = arith.index_cast %arg1 : i32 to index
    %5 = memref.load %arg2[%3, %4] : memref<1x1xi32, #tpu.memory_space<smem>>
    %c0_i32_1 = arith.constant 0 : i32
    %6 = arith.cmpi sgt, %5, %c0_i32_1 : i32
    %7 = arith.extui %6 : i1 to i32
    %c0_i32_2 = arith.constant 0 : i32
    %8 = arith.cmpi ne, %7, %c0_i32_2 : i32
    scf.if %8 {
      %c128_i32 = arith.constant 128 : i32
      %12 = arith.muli %arg1, %c128_i32 : i32
      %13 = tpu.assume_multiple %12, 128 : i32
      %c0 = arith.constant 0 : index
      %c0_5 = arith.constant 0 : index
      %14 = vector.load %arg3[%c0, %c0_5] : memref<128x8xf32, #tpu.memory_space<vmem>>, vector<128x8xf32>
      %c0_6 = arith.constant 0 : index
      %15 = arith.index_cast %13 : i32 to index
      %16 = vector.load %arg4[%c0_6, %15] : memref<8x128xf32, #tpu.memory_space<vmem>>, vector<8x128xf32>
      %c0_7 = arith.constant 0 : index
      %c0_8 = arith.constant 0 : index
      %17 = vector.load %arg5[%c0_7, %c0_8] : memref<128x128xbf16, #tpu.memory_space<vmem>>, vector<128x128xbf16>
      %18 = arith.index_cast %13 : i32 to index
      %c0_9 = arith.constant 0 : index
      %19 = vector.load %arg6[%18, %c0_9] : memref<128x128xbf16, #tpu.memory_space<vmem>>, vector<128x128xbf16>
      %c0_10 = arith.constant 0 : index
      %c0_11 = arith.constant 0 : index
      %20 = vector.load %arg9[%c0_10, %c0_11] : memref<128x8xf32, #tpu.memory_space<vmem>>, vector<128x8xf32>
      %c0_12 = arith.constant 0 : index
      %c0_13 = arith.constant 0 : index
      %21 = vector.load %arg10[%c0_12, %c0_13] : memref<128x8xf32, #tpu.memory_space<vmem>>, vector<128x8xf32>
      %22 = vector.extract_strided_slice %14 {offsets = [0, 0], sizes = [128, 1], strides = [1, 1]} : vector<128x8xf32> to vector<128x1xf32>
      %23 = vector.extract_strided_slice %16 {offsets = [0, 0], sizes = [1, 128], strides = [1, 1]} : vector<8x128xf32> to vector<1x128xf32>
      %24 = vector.broadcast %22 : vector<128x1xf32> to vector<128x128xf32>
      %25 = vector.broadcast %23 : vector<1x128xf32> to vector<128x128xf32>
      %26 = arith.addf %24, %25 : vector<128x128xf32>
      %cst = arith.constant 2.000000e-01 : f32
      %27 = vector.broadcast %cst : f32 to vector<128x128xf32>
      %28 = arith.mulf %27, %26 : vector<128x128xf32>
      %29 = arith.maximumf %26, %28 : vector<128x128xf32>
      %30 = vector.extract_strided_slice %20 {offsets = [0, 0], sizes = [128, 1], strides = [1, 1]} : vector<128x8xf32> to vector<128x1xf32>
      %cst_14 = arith.constant dense<0xFF800000> : vector<128xf32>
      %31 = vector.multi_reduction <maximumf>, %29, %cst_14 [1] : vector<128x128xf32> to vector<128xf32>
      %32 = vector.shape_cast %31 : vector<128xf32> to vector<128x1xf32>
      %33 = arith.maximumf %30, %32 : vector<128x1xf32>
      %34 = arith.subf %30, %33 : vector<128x1xf32>
      %35 = math.exp %34 : vector<128x1xf32>
      %36 = vector.broadcast %33 : vector<128x1xf32> to vector<128x128xf32>
      %37 = arith.subf %29, %36 : vector<128x128xf32>
      %38 = math.exp %37 : vector<128x128xf32>
      %39 = arith.extf %17 : vector<128x128xbf16> to vector<128x128xf32>
      %40 = arith.mulf %38, %39 : vector<128x128xf32>
      %41 = vector.extract_strided_slice %21 {offsets = [0, 0], sizes = [128, 1], strides = [1, 1]} : vector<128x8xf32> to vector<128x1xf32>
      %42 = arith.mulf %35, %41 : vector<128x1xf32>
      %cst_15 = arith.constant dense<0.000000e+00> : vector<128xf32>
      %43 = vector.multi_reduction <add>, %40, %cst_15 [1] : vector<128x128xf32> to vector<128xf32>
      %44 = vector.shape_cast %43 : vector<128xf32> to vector<128x1xf32>
      %45 = arith.addf %42, %44 : vector<128x1xf32>
      %46 = arith.truncf %40 : vector<128x128xf32> to vector<128x128xbf16>
      %47 = vector.extract_strided_slice %19 {offsets = [0, 0], sizes = [128, 8], strides = [1, 1]} : vector<128x128xbf16> to vector<128x8xbf16>
      %cst_16 = arith.constant dense<0.000000e+00> : vector<128x8xf32>
      %48 = tpu.matmul %46, %47, %cst_16 {dimension_numbers = #tpu.dot_dimension_numbers<[1], [0], [0], [1], [0, 0, 1, 1], [], []>} : vector<128x128xbf16>, vector<128x8xbf16>, vector<128x8xf32> -> vector<128x8xf32>
      %c0_17 = arith.constant 0 : index
      %c0_18 = arith.constant 0 : index
      %49 = vector.load %arg11[%c0_17, %c0_18] : memref<128x64xf32, #tpu.memory_space<vmem>>, vector<128x8xf32>
      %50 = vector.broadcast %35 : vector<128x1xf32> to vector<128x8xf32>
      %51 = arith.mulf %50, %49 : vector<128x8xf32>
      %52 = arith.addf %51, %48 : vector<128x8xf32>
      %53 = vector.extract_strided_slice %14 {offsets = [0, 1], sizes = [128, 1], strides = [1, 1]} : vector<128x8xf32> to vector<128x1xf32>
      %54 = vector.extract_strided_slice %16 {offsets = [1, 0], sizes = [1, 128], strides = [1, 1]} : vector<8x128xf32> to vector<1x128xf32>
      %55 = vector.broadcast %53 : vector<128x1xf32> to vector<128x128xf32>
      %56 = vector.broadcast %54 : vector<1x128xf32> to vector<128x128xf32>
      %57 = arith.addf %55, %56 : vector<128x128xf32>
      %cst_19 = arith.constant 2.000000e-01 : f32
      %58 = vector.broadcast %cst_19 : f32 to vector<128x128xf32>
      %59 = arith.mulf %58, %57 : vector<128x128xf32>
      %60 = arith.maximumf %57, %59 : vector<128x128xf32>
      %61 = vector.extract_strided_slice %20 {offsets = [0, 1], sizes = [128, 1], strides = [1, 1]} : vector<128x8xf32> to vector<128x1xf32>
      %cst_20 = arith.constant dense<0xFF800000> : vector<128xf32>
      %62 = vector.multi_reduction <maximumf>, %60, %cst_20 [1] : vector<128x128xf32> to vector<128xf32>
      %63 = vector.shape_cast %62 : vector<128xf32> to vector<128x1xf32>
      %64 = arith.maximumf %61, %63 : vector<128x1xf32>
      %65 = arith.subf %61, %64 : vector<128x1xf32>
      %66 = math.exp %65 : vector<128x1xf32>
      %67 = vector.broadcast %64 : vector<128x1xf32> to vector<128x128xf32>
      %68 = arith.subf %60, %67 : vector<128x128xf32>
      %69 = math.exp %68 : vector<128x128xf32>
      %70 = arith.extf %17 : vector<128x128xbf16> to vector<128x128xf32>
      %71 = arith.mulf %69, %70 : vector<128x128xf32>
      %72 = vector.extract_strided_slice %21 {offsets = [0, 1], sizes = [128, 1], strides = [1, 1]} : vector<128x8xf32> to vector<128x1xf32>
      %73 = arith.mulf %66, %72 : vector<128x1xf32>
      %cst_21 = arith.constant dense<0.000000e+00> : vector<128xf32>
      %74 = vector.multi_reduction <add>, %71, %cst_21 [1] : vector<128x128xf32> to vector<128xf32>
      %75 = vector.shape_cast %74 : vector<128xf32> to vector<128x1xf32>
      %76 = arith.addf %73, %75 : vector<128x1xf32>
      %77 = arith.truncf %71 : vector<128x128xf32> to vector<128x128xbf16>
      %78 = vector.extract_strided_slice %19 {offsets = [0, 8], sizes = [128, 8], strides = [1, 1]} : vector<128x128xbf16> to vector<128x8xbf16>
      %cst_22 = arith.constant dense<0.000000e+00> : vector<128x8xf32>
      %79 = tpu.matmul %77, %78, %cst_22 {dimension_numbers = #tpu.dot_dimension_numbers<[1], [0], [0], [1], [0, 0, 1, 1], [], []>} : vector<128x128xbf16>, vector<128x8xbf16>, vector<128x8xf32> -> vector<128x8xf32>
      %c0_23 = arith.constant 0 : index
      %c8 = arith.constant 8 : index
      %80 = vector.load %arg11[%c0_23, %c8] : memref<128x64xf32, #tpu.memory_space<vmem>>, vector<128x8xf32>
      %81 = vector.broadcast %66 : vector<128x1xf32> to vector<128x8xf32>
      %82 = arith.mulf %81, %80 : vector<128x8xf32>
      %83 = arith.addf %82, %79 : vector<128x8xf32>
      %84 = vector.extract_strided_slice %14 {offsets = [0, 2], sizes = [128, 1], strides = [1, 1]} : vector<128x8xf32> to vector<128x1xf32>
      %85 = vector.extract_strided_slice %16 {offsets = [2, 0], sizes = [1, 128], strides = [1, 1]} : vector<8x128xf32> to vector<1x128xf32>
      %86 = vector.broadcast %84 : vector<128x1xf32> to vector<128x128xf32>
      %87 = vector.broadcast %85 : vector<1x128xf32> to vector<128x128xf32>
      %88 = arith.addf %86, %87 : vector<128x128xf32>
      %cst_24 = arith.constant 2.000000e-01 : f32
      %89 = vector.broadcast %cst_24 : f32 to vector<128x128xf32>
      %90 = arith.mulf %89, %88 : vector<128x128xf32>
      %91 = arith.maximumf %88, %90 : vector<128x128xf32>
      %92 = vector.extract_strided_slice %20 {offsets = [0, 2], sizes = [128, 1], strides = [1, 1]} : vector<128x8xf32> to vector<128x1xf32>
      %cst_25 = arith.constant dense<0xFF800000> : vector<128xf32>
      %93 = vector.multi_reduction <maximumf>, %91, %cst_25 [1] : vector<128x128xf32> to vector<128xf32>
      %94 = vector.shape_cast %93 : vector<128xf32> to vector<128x1xf32>
      %95 = arith.maximumf %92, %94 : vector<128x1xf32>
      %96 = arith.subf %92, %95 : vector<128x1xf32>
      %97 = math.exp %96 : vector<128x1xf32>
      %98 = vector.broadcast %95 : vector<128x1xf32> to vector<128x128xf32>
      %99 = arith.subf %91, %98 : vector<128x128xf32>
      %100 = math.exp %99 : vector<128x128xf32>
      %101 = arith.extf %17 : vector<128x128xbf16> to vector<128x128xf32>
      %102 = arith.mulf %100, %101 : vector<128x128xf32>
      %103 = vector.extract_strided_slice %21 {offsets = [0, 2], sizes = [128, 1], strides = [1, 1]} : vector<128x8xf32> to vector<128x1xf32>
      %104 = arith.mulf %97, %103 : vector<128x1xf32>
      %cst_26 = arith.constant dense<0.000000e+00> : vector<128xf32>
      %105 = vector.multi_reduction <add>, %102, %cst_26 [1] : vector<128x128xf32> to vector<128xf32>
      %106 = vector.shape_cast %105 : vector<128xf32> to vector<128x1xf32>
      %107 = arith.addf %104, %106 : vector<128x1xf32>
      %108 = arith.truncf %102 : vector<128x128xf32> to vector<128x128xbf16>
      %109 = vector.extract_strided_slice %19 {offsets = [0, 16], sizes = [128, 8], strides = [1, 1]} : vector<128x128xbf16> to vector<128x8xbf16>
      %cst_27 = arith.constant dense<0.000000e+00> : vector<128x8xf32>
      %110 = tpu.matmul %108, %109, %cst_27 {dimension_numbers = #tpu.dot_dimension_numbers<[1], [0], [0], [1], [0, 0, 1, 1], [], []>} : vector<128x128xbf16>, vector<128x8xbf16>, vector<128x8xf32> -> vector<128x8xf32>
      %c0_28 = arith.constant 0 : index
      %c16 = arith.constant 16 : index
      %111 = vector.load %arg11[%c0_28, %c16] : memref<128x64xf32, #tpu.memory_space<vmem>>, vector<128x8xf32>
      %112 = vector.broadcast %97 : vector<128x1xf32> to vector<128x8xf32>
      %113 = arith.mulf %112, %111 : vector<128x8xf32>
      %114 = arith.addf %113, %110 : vector<128x8xf32>
      %115 = vector.extract_strided_slice %14 {offsets = [0, 3], sizes = [128, 1], strides = [1, 1]} : vector<128x8xf32> to vector<128x1xf32>
      %116 = vector.extract_strided_slice %16 {offsets = [3, 0], sizes = [1, 128], strides = [1, 1]} : vector<8x128xf32> to vector<1x128xf32>
      %117 = vector.broadcast %115 : vector<128x1xf32> to vector<128x128xf32>
      %118 = vector.broadcast %116 : vector<1x128xf32> to vector<128x128xf32>
      %119 = arith.addf %117, %118 : vector<128x128xf32>
      %cst_29 = arith.constant 2.000000e-01 : f32
      %120 = vector.broadcast %cst_29 : f32 to vector<128x128xf32>
      %121 = arith.mulf %120, %119 : vector<128x128xf32>
      %122 = arith.maximumf %119, %121 : vector<128x128xf32>
      %123 = vector.extract_strided_slice %20 {offsets = [0, 3], sizes = [128, 1], strides = [1, 1]} : vector<128x8xf32> to vector<128x1xf32>
      %cst_30 = arith.constant dense<0xFF800000> : vector<128xf32>
      %124 = vector.multi_reduction <maximumf>, %122, %cst_30 [1] : vector<128x128xf32> to vector<128xf32>
      %125 = vector.shape_cast %124 : vector<128xf32> to vector<128x1xf32>
      %126 = arith.maximumf %123, %125 : vector<128x1xf32>
      %127 = arith.subf %123, %126 : vector<128x1xf32>
      %128 = math.exp %127 : vector<128x1xf32>
      %129 = vector.broadcast %126 : vector<128x1xf32> to vector<128x128xf32>
      %130 = arith.subf %122, %129 : vector<128x128xf32>
      %131 = math.exp %130 : vector<128x128xf32>
      %132 = arith.extf %17 : vector<128x128xbf16> to vector<128x128xf32>
      %133 = arith.mulf %131, %132 : vector<128x128xf32>
      %134 = vector.extract_strided_slice %21 {offsets = [0, 3], sizes = [128, 1], strides = [1, 1]} : vector<128x8xf32> to vector<128x1xf32>
      %135 = arith.mulf %128, %134 : vector<128x1xf32>
      %cst_31 = arith.constant dense<0.000000e+00> : vector<128xf32>
      %136 = vector.multi_reduction <add>, %133, %cst_31 [1] : vector<128x128xf32> to vector<128xf32>
      %137 = vector.shape_cast %136 : vector<128xf32> to vector<128x1xf32>
      %138 = arith.addf %135, %137 : vector<128x1xf32>
      %139 = arith.truncf %133 : vector<128x128xf32> to vector<128x128xbf16>
      %140 = vector.extract_strided_slice %19 {offsets = [0, 24], sizes = [128, 8], strides = [1, 1]} : vector<128x128xbf16> to vector<128x8xbf16>
      %cst_32 = arith.constant dense<0.000000e+00> : vector<128x8xf32>
      %141 = tpu.matmul %139, %140, %cst_32 {dimension_numbers = #tpu.dot_dimension_numbers<[1], [0], [0], [1], [0, 0, 1, 1], [], []>} : vector<128x128xbf16>, vector<128x8xbf16>, vector<128x8xf32> -> vector<128x8xf32>
      %c0_33 = arith.constant 0 : index
      %c24 = arith.constant 24 : index
      %142 = vector.load %arg11[%c0_33, %c24] : memref<128x64xf32, #tpu.memory_space<vmem>>, vector<128x8xf32>
      %143 = vector.broadcast %128 : vector<128x1xf32> to vector<128x8xf32>
      %144 = arith.mulf %143, %142 : vector<128x8xf32>
      %145 = arith.addf %144, %141 : vector<128x8xf32>
      %146 = vector.extract_strided_slice %14 {offsets = [0, 4], sizes = [128, 1], strides = [1, 1]} : vector<128x8xf32> to vector<128x1xf32>
      %147 = vector.extract_strided_slice %16 {offsets = [4, 0], sizes = [1, 128], strides = [1, 1]} : vector<8x128xf32> to vector<1x128xf32>
      %148 = vector.broadcast %146 : vector<128x1xf32> to vector<128x128xf32>
      %149 = vector.broadcast %147 : vector<1x128xf32> to vector<128x128xf32>
      %150 = arith.addf %148, %149 : vector<128x128xf32>
      %cst_34 = arith.constant 2.000000e-01 : f32
      %151 = vector.broadcast %cst_34 : f32 to vector<128x128xf32>
      %152 = arith.mulf %151, %150 : vector<128x128xf32>
      %153 = arith.maximumf %150, %152 : vector<128x128xf32>
      %154 = vector.extract_strided_slice %20 {offsets = [0, 4], sizes = [128, 1], strides = [1, 1]} : vector<128x8xf32> to vector<128x1xf32>
      %cst_35 = arith.constant dense<0xFF800000> : vector<128xf32>
      %155 = vector.multi_reduction <maximumf>, %153, %cst_35 [1] : vector<128x128xf32> to vector<128xf32>
      %156 = vector.shape_cast %155 : vector<128xf32> to vector<128x1xf32>
      %157 = arith.maximumf %154, %156 : vector<128x1xf32>
      %158 = arith.subf %154, %157 : vector<128x1xf32>
      %159 = math.exp %158 : vector<128x1xf32>
      %160 = vector.broadcast %157 : vector<128x1xf32> to vector<128x128xf32>
      %161 = arith.subf %153, %160 : vector<128x128xf32>
      %162 = math.exp %161 : vector<128x128xf32>
      %163 = arith.extf %17 : vector<128x128xbf16> to vector<128x128xf32>
      %164 = arith.mulf %162, %163 : vector<128x128xf32>
      %165 = vector.extract_strided_slice %21 {offsets = [0, 4], sizes = [128, 1], strides = [1, 1]} : vector<128x8xf32> to vector<128x1xf32>
      %166 = arith.mulf %159, %165 : vector<128x1xf32>
      %cst_36 = arith.constant dense<0.000000e+00> : vector<128xf32>
      %167 = vector.multi_reduction <add>, %164, %cst_36 [1] : vector<128x128xf32> to vector<128xf32>
      %168 = vector.shape_cast %167 : vector<128xf32> to vector<128x1xf32>
      %169 = arith.addf %166, %168 : vector<128x1xf32>
      %170 = arith.truncf %164 : vector<128x128xf32> to vector<128x128xbf16>
      %171 = vector.extract_strided_slice %19 {offsets = [0, 32], sizes = [128, 8], strides = [1, 1]} : vector<128x128xbf16> to vector<128x8xbf16>
      %cst_37 = arith.constant dense<0.000000e+00> : vector<128x8xf32>
      %172 = tpu.matmul %170, %171, %cst_37 {dimension_numbers = #tpu.dot_dimension_numbers<[1], [0], [0], [1], [0, 0, 1, 1], [], []>} : vector<128x128xbf16>, vector<128x8xbf16>, vector<128x8xf32> -> vector<128x8xf32>
      %c0_38 = arith.constant 0 : index
      %c32 = arith.constant 32 : index
      %173 = vector.load %arg11[%c0_38, %c32] : memref<128x64xf32, #tpu.memory_space<vmem>>, vector<128x8xf32>
      %174 = vector.broadcast %159 : vector<128x1xf32> to vector<128x8xf32>
      %175 = arith.mulf %174, %173 : vector<128x8xf32>
      %176 = arith.addf %175, %172 : vector<128x8xf32>
      %177 = vector.extract_strided_slice %14 {offsets = [0, 5], sizes = [128, 1], strides = [1, 1]} : vector<128x8xf32> to vector<128x1xf32>
      %178 = vector.extract_strided_slice %16 {offsets = [5, 0], sizes = [1, 128], strides = [1, 1]} : vector<8x128xf32> to vector<1x128xf32>
      %179 = vector.broadcast %177 : vector<128x1xf32> to vector<128x128xf32>
      %180 = vector.broadcast %178 : vector<1x128xf32> to vector<128x128xf32>
      %181 = arith.addf %179, %180 : vector<128x128xf32>
      %cst_39 = arith.constant 2.000000e-01 : f32
      %182 = vector.broadcast %cst_39 : f32 to vector<128x128xf32>
      %183 = arith.mulf %182, %181 : vector<128x128xf32>
      %184 = arith.maximumf %181, %183 : vector<128x128xf32>
      %185 = vector.extract_strided_slice %20 {offsets = [0, 5], sizes = [128, 1], strides = [1, 1]} : vector<128x8xf32> to vector<128x1xf32>
      %cst_40 = arith.constant dense<0xFF800000> : vector<128xf32>
      %186 = vector.multi_reduction <maximumf>, %184, %cst_40 [1] : vector<128x128xf32> to vector<128xf32>
      %187 = vector.shape_cast %186 : vector<128xf32> to vector<128x1xf32>
      %188 = arith.maximumf %185, %187 : vector<128x1xf32>
      %189 = arith.subf %185, %188 : vector<128x1xf32>
      %190 = math.exp %189 : vector<128x1xf32>
      %191 = vector.broadcast %188 : vector<128x1xf32> to vector<128x128xf32>
      %192 = arith.subf %184, %191 : vector<128x128xf32>
      %193 = math.exp %192 : vector<128x128xf32>
      %194 = arith.extf %17 : vector<128x128xbf16> to vector<128x128xf32>
      %195 = arith.mulf %193, %194 : vector<128x128xf32>
      %196 = vector.extract_strided_slice %21 {offsets = [0, 5], sizes = [128, 1], strides = [1, 1]} : vector<128x8xf32> to vector<128x1xf32>
      %197 = arith.mulf %190, %196 : vector<128x1xf32>
      %cst_41 = arith.constant dense<0.000000e+00> : vector<128xf32>
      %198 = vector.multi_reduction <add>, %195, %cst_41 [1] : vector<128x128xf32> to vector<128xf32>
      %199 = vector.shape_cast %198 : vector<128xf32> to vector<128x1xf32>
      %200 = arith.addf %197, %199 : vector<128x1xf32>
      %201 = arith.truncf %195 : vector<128x128xf32> to vector<128x128xbf16>
      %202 = vector.extract_strided_slice %19 {offsets = [0, 40], sizes = [128, 8], strides = [1, 1]} : vector<128x128xbf16> to vector<128x8xbf16>
      %cst_42 = arith.constant dense<0.000000e+00> : vector<128x8xf32>
      %203 = tpu.matmul %201, %202, %cst_42 {dimension_numbers = #tpu.dot_dimension_numbers<[1], [0], [0], [1], [0, 0, 1, 1], [], []>} : vector<128x128xbf16>, vector<128x8xbf16>, vector<128x8xf32> -> vector<128x8xf32>
      %c0_43 = arith.constant 0 : index
      %c40 = arith.constant 40 : index
      %204 = vector.load %arg11[%c0_43, %c40] : memref<128x64xf32, #tpu.memory_space<vmem>>, vector<128x8xf32>
      %205 = vector.broadcast %190 : vector<128x1xf32> to vector<128x8xf32>
      %206 = arith.mulf %205, %204 : vector<128x8xf32>
      %207 = arith.addf %206, %203 : vector<128x8xf32>
      %208 = vector.extract_strided_slice %14 {offsets = [0, 6], sizes = [128, 1], strides = [1, 1]} : vector<128x8xf32> to vector<128x1xf32>
      %209 = vector.extract_strided_slice %16 {offsets = [6, 0], sizes = [1, 128], strides = [1, 1]} : vector<8x128xf32> to vector<1x128xf32>
      %210 = vector.broadcast %208 : vector<128x1xf32> to vector<128x128xf32>
      %211 = vector.broadcast %209 : vector<1x128xf32> to vector<128x128xf32>
      %212 = arith.addf %210, %211 : vector<128x128xf32>
      %cst_44 = arith.constant 2.000000e-01 : f32
      %213 = vector.broadcast %cst_44 : f32 to vector<128x128xf32>
      %214 = arith.mulf %213, %212 : vector<128x128xf32>
      %215 = arith.maximumf %212, %214 : vector<128x128xf32>
      %216 = vector.extract_strided_slice %20 {offsets = [0, 6], sizes = [128, 1], strides = [1, 1]} : vector<128x8xf32> to vector<128x1xf32>
      %cst_45 = arith.constant dense<0xFF800000> : vector<128xf32>
      %217 = vector.multi_reduction <maximumf>, %215, %cst_45 [1] : vector<128x128xf32> to vector<128xf32>
      %218 = vector.shape_cast %217 : vector<128xf32> to vector<128x1xf32>
      %219 = arith.maximumf %216, %218 : vector<128x1xf32>
      %220 = arith.subf %216, %219 : vector<128x1xf32>
      %221 = math.exp %220 : vector<128x1xf32>
      %222 = vector.broadcast %219 : vector<128x1xf32> to vector<128x128xf32>
      %223 = arith.subf %215, %222 : vector<128x128xf32>
      %224 = math.exp %223 : vector<128x128xf32>
      %225 = arith.extf %17 : vector<128x128xbf16> to vector<128x128xf32>
      %226 = arith.mulf %224, %225 : vector<128x128xf32>
      %227 = vector.extract_strided_slice %21 {offsets = [0, 6], sizes = [128, 1], strides = [1, 1]} : vector<128x8xf32> to vector<128x1xf32>
      %228 = arith.mulf %221, %227 : vector<128x1xf32>
      %cst_46 = arith.constant dense<0.000000e+00> : vector<128xf32>
      %229 = vector.multi_reduction <add>, %226, %cst_46 [1] : vector<128x128xf32> to vector<128xf32>
      %230 = vector.shape_cast %229 : vector<128xf32> to vector<128x1xf32>
      %231 = arith.addf %228, %230 : vector<128x1xf32>
      %232 = arith.truncf %226 : vector<128x128xf32> to vector<128x128xbf16>
      %233 = vector.extract_strided_slice %19 {offsets = [0, 48], sizes = [128, 8], strides = [1, 1]} : vector<128x128xbf16> to vector<128x8xbf16>
      %cst_47 = arith.constant dense<0.000000e+00> : vector<128x8xf32>
      %234 = tpu.matmul %232, %233, %cst_47 {dimension_numbers = #tpu.dot_dimension_numbers<[1], [0], [0], [1], [0, 0, 1, 1], [], []>} : vector<128x128xbf16>, vector<128x8xbf16>, vector<128x8xf32> -> vector<128x8xf32>
      %c0_48 = arith.constant 0 : index
      %c48 = arith.constant 48 : index
      %235 = vector.load %arg11[%c0_48, %c48] : memref<128x64xf32, #tpu.memory_space<vmem>>, vector<128x8xf32>
      %236 = vector.broadcast %221 : vector<128x1xf32> to vector<128x8xf32>
      %237 = arith.mulf %236, %235 : vector<128x8xf32>
      %238 = arith.addf %237, %234 : vector<128x8xf32>
      %239 = vector.extract_strided_slice %14 {offsets = [0, 7], sizes = [128, 1], strides = [1, 1]} : vector<128x8xf32> to vector<128x1xf32>
      %240 = vector.extract_strided_slice %16 {offsets = [7, 0], sizes = [1, 128], strides = [1, 1]} : vector<8x128xf32> to vector<1x128xf32>
      %241 = vector.broadcast %239 : vector<128x1xf32> to vector<128x128xf32>
      %242 = vector.broadcast %240 : vector<1x128xf32> to vector<128x128xf32>
      %243 = arith.addf %241, %242 : vector<128x128xf32>
      %cst_49 = arith.constant 2.000000e-01 : f32
      %244 = vector.broadcast %cst_49 : f32 to vector<128x128xf32>
      %245 = arith.mulf %244, %243 : vector<128x128xf32>
      %246 = arith.maximumf %243, %245 : vector<128x128xf32>
      %247 = vector.extract_strided_slice %20 {offsets = [0, 7], sizes = [128, 1], strides = [1, 1]} : vector<128x8xf32> to vector<128x1xf32>
      %cst_50 = arith.constant dense<0xFF800000> : vector<128xf32>
      %248 = vector.multi_reduction <maximumf>, %246, %cst_50 [1] : vector<128x128xf32> to vector<128xf32>
      %249 = vector.shape_cast %248 : vector<128xf32> to vector<128x1xf32>
      %250 = arith.maximumf %247, %249 : vector<128x1xf32>
      %251 = arith.subf %247, %250 : vector<128x1xf32>
      %252 = math.exp %251 : vector<128x1xf32>
      %253 = vector.broadcast %250 : vector<128x1xf32> to vector<128x128xf32>
      %254 = arith.subf %246, %253 : vector<128x128xf32>
      %255 = math.exp %254 : vector<128x128xf32>
      %256 = arith.extf %17 : vector<128x128xbf16> to vector<128x128xf32>
      %257 = arith.mulf %255, %256 : vector<128x128xf32>
      %258 = vector.extract_strided_slice %21 {offsets = [0, 7], sizes = [128, 1], strides = [1, 1]} : vector<128x8xf32> to vector<128x1xf32>
      %259 = arith.mulf %252, %258 : vector<128x1xf32>
      %cst_51 = arith.constant dense<0.000000e+00> : vector<128xf32>
      %260 = vector.multi_reduction <add>, %257, %cst_51 [1] : vector<128x128xf32> to vector<128xf32>
      %261 = vector.shape_cast %260 : vector<128xf32> to vector<128x1xf32>
      %262 = arith.addf %259, %261 : vector<128x1xf32>
      %263 = arith.truncf %257 : vector<128x128xf32> to vector<128x128xbf16>
      %264 = vector.extract_strided_slice %19 {offsets = [0, 56], sizes = [128, 8], strides = [1, 1]} : vector<128x128xbf16> to vector<128x8xbf16>
      %cst_52 = arith.constant dense<0.000000e+00> : vector<128x8xf32>
      %265 = tpu.matmul %263, %264, %cst_52 {dimension_numbers = #tpu.dot_dimension_numbers<[1], [0], [0], [1], [0, 0, 1, 1], [], []>} : vector<128x128xbf16>, vector<128x8xbf16>, vector<128x8xf32> -> vector<128x8xf32>
      %c0_53 = arith.constant 0 : index
      %c56 = arith.constant 56 : index
      %266 = vector.load %arg11[%c0_53, %c56] : memref<128x64xf32, #tpu.memory_space<vmem>>, vector<128x8xf32>
      %267 = vector.broadcast %252 : vector<128x1xf32> to vector<128x8xf32>
      %268 = arith.mulf %267, %266 : vector<128x8xf32>
      %269 = arith.addf %268, %265 : vector<128x8xf32>
      %270 = tpu.concatenate %33, %64, %95, %126, %157, %188, %219, %250 in 1 : vector<128x1xf32>, vector<128x1xf32>, vector<128x1xf32>, vector<128x1xf32>, vector<128x1xf32>, vector<128x1xf32>, vector<128x1xf32>, vector<128x1xf32> -> vector<128x8xf32>
      %c0_54 = arith.constant 0 : index
      %c0_55 = arith.constant 0 : index
      %271 = vector.load %arg9[%c0_54, %c0_55] : memref<128x8xf32, #tpu.memory_space<vmem>>, vector<128x8xf32>
      tpu.vector_store %arg9[%c0_54, %c0_55], %270 {strides = array<i32>} : memref<128x8xf32, #tpu.memory_space<vmem>>, vector<128x8xf32>,
      %272 = tpu.concatenate %45, %76, %107, %138, %169, %200, %231, %262 in 1 : vector<128x1xf32>, vector<128x1xf32>, vector<128x1xf32>, vector<128x1xf32>, vector<128x1xf32>, vector<128x1xf32>, vector<128x1xf32>, vector<128x1xf32> -> vector<128x8xf32>
      %c0_56 = arith.constant 0 : index
      %c0_57 = arith.constant 0 : index
      %273 = vector.load %arg10[%c0_56, %c0_57] : memref<128x8xf32, #tpu.memory_space<vmem>>, vector<128x8xf32>
      tpu.vector_store %arg10[%c0_56, %c0_57], %272 {strides = array<i32>} : memref<128x8xf32, #tpu.memory_space<vmem>>, vector<128x8xf32>,
      %274 = tpu.concatenate %52, %83, %114, %145, %176, %207, %238, %269 in 1 : vector<128x8xf32>, vector<128x8xf32>, vector<128x8xf32>, vector<128x8xf32>, vector<128x8xf32>, vector<128x8xf32>, vector<128x8xf32>, vector<128x8xf32> -> vector<128x64xf32>
      %c0_58 = arith.constant 0 : index
      %c0_59 = arith.constant 0 : index
      %275 = vector.load %arg11[%c0_58, %c0_59] : memref<128x64xf32, #tpu.memory_space<vmem>>, vector<128x64xf32>
      tpu.vector_store %arg11[%c0_58, %c0_59], %274 {strides = array<i32>} : memref<128x64xf32, #tpu.memory_space<vmem>>, vector<128x64xf32>,
    } else {
    }
    %c0_i32_3 = arith.constant 0 : i32
    %9 = arith.cmpi eq, %arg1, %c0_i32_3 : i32
    %10 = arith.extui %9 : i1 to i32
    %c0_i32_4 = arith.constant 0 : i32
    %11 = arith.cmpi ne, %10, %c0_i32_4 : i32
    scf.if %11 {
      %c0 = arith.constant 0 : index
      %c0_5 = arith.constant 0 : index
      %12 = vector.load %arg10[%c0, %c0_5] : memref<128x8xf32, #tpu.memory_space<vmem>>, vector<128x8xf32>
      %13 = tpu.reciprocal %12 {approx = true} : vector<128x8xf32> -> vector<128x8xf32>
      %c0_6 = arith.constant 0 : index
      %c0_7 = arith.constant 0 : index
      %14 = vector.load %arg11[%c0_6, %c0_7] : memref<128x64xf32, #tpu.memory_space<vmem>>, vector<128x8xf32>
      %15 = vector.extract_strided_slice %13 {offsets = [0, 0], sizes = [128, 1], strides = [1, 1]} : vector<128x8xf32> to vector<128x1xf32>
      %16 = vector.broadcast %15 : vector<128x1xf32> to vector<128x8xf32>
      %17 = arith.mulf %14, %16 : vector<128x8xf32>
      %c0_8 = arith.constant 0 : index
      %c8 = arith.constant 8 : index
      %18 = vector.load %arg11[%c0_8, %c8] : memref<128x64xf32, #tpu.memory_space<vmem>>, vector<128x8xf32>
      %19 = vector.extract_strided_slice %13 {offsets = [0, 1], sizes = [128, 1], strides = [1, 1]} : vector<128x8xf32> to vector<128x1xf32>
      %20 = vector.broadcast %19 : vector<128x1xf32> to vector<128x8xf32>
      %21 = arith.mulf %18, %20 : vector<128x8xf32>
      %c0_9 = arith.constant 0 : index
      %c16 = arith.constant 16 : index
      %22 = vector.load %arg11[%c0_9, %c16] : memref<128x64xf32, #tpu.memory_space<vmem>>, vector<128x8xf32>
      %23 = vector.extract_strided_slice %13 {offsets = [0, 2], sizes = [128, 1], strides = [1, 1]} : vector<128x8xf32> to vector<128x1xf32>
      %24 = vector.broadcast %23 : vector<128x1xf32> to vector<128x8xf32>
      %25 = arith.mulf %22, %24 : vector<128x8xf32>
      %c0_10 = arith.constant 0 : index
      %c24 = arith.constant 24 : index
      %26 = vector.load %arg11[%c0_10, %c24] : memref<128x64xf32, #tpu.memory_space<vmem>>, vector<128x8xf32>
      %27 = vector.extract_strided_slice %13 {offsets = [0, 3], sizes = [128, 1], strides = [1, 1]} : vector<128x8xf32> to vector<128x1xf32>
      %28 = vector.broadcast %27 : vector<128x1xf32> to vector<128x8xf32>
      %29 = arith.mulf %26, %28 : vector<128x8xf32>
      %c0_11 = arith.constant 0 : index
      %c32 = arith.constant 32 : index
      %30 = vector.load %arg11[%c0_11, %c32] : memref<128x64xf32, #tpu.memory_space<vmem>>, vector<128x8xf32>
      %31 = vector.extract_strided_slice %13 {offsets = [0, 4], sizes = [128, 1], strides = [1, 1]} : vector<128x8xf32> to vector<128x1xf32>
      %32 = vector.broadcast %31 : vector<128x1xf32> to vector<128x8xf32>
      %33 = arith.mulf %30, %32 : vector<128x8xf32>
      %c0_12 = arith.constant 0 : index
      %c40 = arith.constant 40 : index
      %34 = vector.load %arg11[%c0_12, %c40] : memref<128x64xf32, #tpu.memory_space<vmem>>, vector<128x8xf32>
      %35 = vector.extract_strided_slice %13 {offsets = [0, 5], sizes = [128, 1], strides = [1, 1]} : vector<128x8xf32> to vector<128x1xf32>
      %36 = vector.broadcast %35 : vector<128x1xf32> to vector<128x8xf32>
      %37 = arith.mulf %34, %36 : vector<128x8xf32>
      %c0_13 = arith.constant 0 : index
      %c48 = arith.constant 48 : index
      %38 = vector.load %arg11[%c0_13, %c48] : memref<128x64xf32, #tpu.memory_space<vmem>>, vector<128x8xf32>
      %39 = vector.extract_strided_slice %13 {offsets = [0, 6], sizes = [128, 1], strides = [1, 1]} : vector<128x8xf32> to vector<128x1xf32>
      %40 = vector.broadcast %39 : vector<128x1xf32> to vector<128x8xf32>
      %41 = arith.mulf %38, %40 : vector<128x8xf32>
      %c0_14 = arith.constant 0 : index
      %c56 = arith.constant 56 : index
      %42 = vector.load %arg11[%c0_14, %c56] : memref<128x64xf32, #tpu.memory_space<vmem>>, vector<128x8xf32>
      %43 = vector.extract_strided_slice %13 {offsets = [0, 7], sizes = [128, 1], strides = [1, 1]} : vector<128x8xf32> to vector<128x1xf32>
      %44 = vector.broadcast %43 : vector<128x1xf32> to vector<128x8xf32>
      %45 = arith.mulf %42, %44 : vector<128x8xf32>
      %46 = tpu.concatenate %17, %21, %25, %29, %33, %37, %41, %45 in 1 : vector<128x8xf32>, vector<128x8xf32>, vector<128x8xf32>, vector<128x8xf32>, vector<128x8xf32>, vector<128x8xf32>, vector<128x8xf32>, vector<128x8xf32> -> vector<128x64xf32>
      %c0_15 = arith.constant 0 : index
      %c0_16 = arith.constant 0 : index
      %47 = vector.load %arg7[%c0_15, %c0_16] : memref<1x64xf32, #tpu.memory_space<vmem>>, vector<1x64xf32>
      %48 = vector.broadcast %47 : vector<1x64xf32> to vector<128x64xf32>
      %49 = arith.addf %46, %48 : vector<128x64xf32>
      %cst = arith.constant 0.000000e+00 : f32
      %50 = vector.broadcast %cst : f32 to vector<128x64xf32>
      %51 = arith.cmpf ogt, %49, %50 : vector<128x64xf32>
      %52 = math.exp %49 : vector<128x64xf32>
      %cst_17 = arith.constant 1.000000e+00 : f32
      %53 = vector.broadcast %cst_17 : f32 to vector<128x64xf32>
      %54 = arith.subf %52, %53 : vector<128x64xf32>
      %55 = arith.select %51, %49, %54 : vector<128x64xi1>, vector<128x64xf32>
      %cst_18 = arith.constant 0.000000e+00 : f32
      %56 = vector.broadcast %cst_18 : f32 to vector<128x64xf32>
      %57 = tpu.concatenate %55, %56 in 1 : vector<128x64xf32>, vector<128x64xf32> -> vector<128x128xf32>
      %c0_19 = arith.constant 0 : index
      %c0_20 = arith.constant 0 : index
      %58 = vector.load %arg8[%c0_19, %c0_20] : memref<128x128xf32, #tpu.memory_space<vmem>>, vector<128x128xf32>
      tpu.vector_store %arg8[%c0_19, %c0_20], %57 {strides = array<i32>} : memref<128x128xf32, #tpu.memory_space<vmem>>, vector<128x128xf32>,
    } else {
    }
    return
  }
  func.func @transform_0(%arg0: i32, %arg1: i32, %arg2: memref<1x1xi32, #tpu.memory_space<smem>>) -> (i32, i32) {
    %c0_i32 = arith.constant 0 : i32
    %c0_i32_0 = arith.constant 0 : i32
    return %arg0, %c0_i32 : i32, i32
  }
  func.func @transform_1(%arg0: i32, %arg1: i32, %arg2: memref<1x1xi32, #tpu.memory_space<smem>>) -> (i32, i32) {
    %c0_i32 = arith.constant 0 : i32
    %c0_i32_0 = arith.constant 0 : i32
    %c0_i32_1 = arith.constant 0 : i32
    return %c0_i32, %c0_i32_0 : i32, i32
  }
  func.func @transform_2(%arg0: i32, %arg1: i32, %arg2: memref<1x1xi32, #tpu.memory_space<smem>>) -> (i32, i32) {
    %0 = arith.index_cast %arg0 : i32 to index
    %1 = arith.index_cast %arg1 : i32 to index
    %2 = memref.load %arg2[%0, %1] : memref<1x1xi32, #tpu.memory_space<smem>>
    %c0_i32 = arith.constant 0 : i32
    %3 = arith.cmpi sgt, %2, %c0_i32 : i32
    %c0_i32_0 = arith.constant 0 : i32
    %4 = arith.select %3, %arg1, %c0_i32_0 : i32
    %c0_i32_1 = arith.constant 0 : i32
    return %arg0, %4 : i32, i32
  }
  func.func @transform_3(%arg0: i32, %arg1: i32, %arg2: memref<1x1xi32, #tpu.memory_space<smem>>) -> (i32, i32) {
    %c0_i32 = arith.constant 0 : i32
    %c0_i32_0 = arith.constant 0 : i32
    %c0_i32_1 = arith.constant 0 : i32
    return %c0_i32, %c0_i32_0 : i32, i32
  }
  func.func @transform_4(%arg0: i32, %arg1: i32, %arg2: memref<1x1xi32, #tpu.memory_space<smem>>) -> (i32, i32) {
    %c0_i32 = arith.constant 0 : i32
    %c0_i32_0 = arith.constant 0 : i32
    %c0_i32_1 = arith.constant 0 : i32
    return %c0_i32, %c0_i32_0 : i32, i32
  }
  func.func @transform_5(%arg0: i32, %arg1: i32, %arg2: memref<1x1xi32, #tpu.memory_space<smem>>) -> (i32, i32) {
    %c0_i32 = arith.constant 0 : i32
    %c0_i32_0 = arith.constant 0 : i32
    return %arg0, %c0_i32 : i32, i32
  }
}

module attributes {stable_mosaic.version = 11 : i64} {
  func.func @_proj_kernel(%arg0: i32, %arg1: i32, %arg2: memref<128x128xbf16, #tpu.memory_space<vmem>>, %arg3: memref<128x128xbf16, #tpu.memory_space<vmem>>, %arg4: memref<128x1xf32, #tpu.memory_space<vmem>>, %arg5: memref<128x1xf32, #tpu.memory_space<vmem>>, %arg6: memref<128x128xbf16, #tpu.memory_space<vmem>>, %arg7: memref<128x1xf32, #tpu.memory_space<vmem>>, %arg8: memref<128x1xf32, #tpu.memory_space<vmem>>, %arg9: memref<128x128xf32, #tpu.memory_space<vmem>>) attributes {dimension_semantics = [#tpu.dimension_semantics<parallel>, #tpu.dimension_semantics<arbitrary>], iteration_bounds = array<i64: 1, 1>, scalar_prefetch = 0 : i64, scratch_operands = 1 : i64, tpu.core_type = #tpu.core_type<tc>, window_params = [{transform_indices = @transform_0, window_bounds = array<i64: 128, 128>}, {transform_indices = @transform_1, window_bounds = array<i64: 128, 128>}, {pipeline_mode = #tpu.pipeline_mode<synchronous>, transform_indices = @transform_2, window_bounds = array<i64: 128, 1>}, {pipeline_mode = #tpu.pipeline_mode<synchronous>, transform_indices = @transform_3, window_bounds = array<i64: 128, 1>}, {transform_indices = @transform_4, window_bounds = array<i64: 128, 128>}, {transform_indices = @transform_5, window_bounds = array<i64: 128, 1>}, {transform_indices = @transform_6, window_bounds = array<i64: 128, 1>}]} {
    %c0_i32 = arith.constant 0 : i32
    %0 = arith.cmpi eq, %arg1, %c0_i32 : i32
    %1 = arith.extui %0 : i1 to i32
    %c0_i32_0 = arith.constant 0 : i32
    %2 = arith.cmpi ne, %1, %c0_i32_0 : i32
    scf.if %2 {
      %cst_10 = arith.constant 0.000000e+00 : f32
      %12 = vector.broadcast %cst_10 : f32 to vector<128x128xf32>
      %c0_11 = arith.constant 0 : index
      %c0_12 = arith.constant 0 : index
      %13 = vector.load %arg9[%c0_11, %c0_12] : memref<128x128xf32, #tpu.memory_space<vmem>>, vector<128x128xf32>
      tpu.vector_store %arg9[%c0_11, %c0_12], %12 {strides = array<i32>} : memref<128x128xf32, #tpu.memory_space<vmem>>, vector<128x128xf32>,
    } else {
    }
    %c0 = arith.constant 0 : index
    %c0_1 = arith.constant 0 : index
    %3 = vector.load %arg9[%c0, %c0_1] : memref<128x128xf32, #tpu.memory_space<vmem>>, vector<128x128xf32>
    %c0_2 = arith.constant 0 : index
    %c0_3 = arith.constant 0 : index
    %4 = vector.load %arg2[%c0_2, %c0_3] : memref<128x128xbf16, #tpu.memory_space<vmem>>, vector<128x128xbf16>
    %c0_4 = arith.constant 0 : index
    %c0_5 = arith.constant 0 : index
    %5 = vector.load %arg3[%c0_4, %c0_5] : memref<128x128xbf16, #tpu.memory_space<vmem>>, vector<128x128xbf16>
    %cst = arith.constant dense<0.000000e+00> : vector<128x128xf32>
    %6 = tpu.matmul %4, %5, %cst {dimension_numbers = #tpu.dot_dimension_numbers<[1], [0], [0], [1], [0, 0, 1, 1], [], []>} : vector<128x128xbf16>, vector<128x128xbf16>, vector<128x128xf32> -> vector<128x128xf32>
    %7 = arith.addf %3, %6 : vector<128x128xf32>
    %c0_6 = arith.constant 0 : index
    %c0_7 = arith.constant 0 : index
    %8 = vector.load %arg9[%c0_6, %c0_7] : memref<128x128xf32, #tpu.memory_space<vmem>>, vector<128x128xf32>
    tpu.vector_store %arg9[%c0_6, %c0_7], %7 {strides = array<i32>} : memref<128x128xf32, #tpu.memory_space<vmem>>, vector<128x128xf32>,
    %c0_i32_8 = arith.constant 0 : i32
    %9 = arith.cmpi eq, %arg1, %c0_i32_8 : i32
    %10 = arith.extui %9 : i1 to i32
    %c0_i32_9 = arith.constant 0 : i32
    %11 = arith.cmpi ne, %10, %c0_i32_9 : i32
    scf.if %11 {
      %c0_10 = arith.constant 0 : index
      %c0_11 = arith.constant 0 : index
      %12 = vector.load %arg9[%c0_10, %c0_11] : memref<128x128xf32, #tpu.memory_space<vmem>>, vector<128x128xf32>
      %13 = arith.truncf %12 : vector<128x128xf32> to vector<128x128xbf16>
      %c0_12 = arith.constant 0 : index
      %c0_13 = arith.constant 0 : index
      %14 = vector.load %arg6[%c0_12, %c0_13] : memref<128x128xbf16, #tpu.memory_space<vmem>>, vector<128x128xbf16>
      tpu.vector_store %arg6[%c0_12, %c0_13], %13 {strides = array<i32>} : memref<128x128xbf16, #tpu.memory_space<vmem>>, vector<128x128xbf16>,
      %c0_14 = arith.constant 0 : index
      %c0_15 = arith.constant 0 : index
      %15 = vector.load %arg4[%c0_14, %c0_15] : memref<128x1xf32, #tpu.memory_space<vmem>>, vector<128x1xf32>
      %cst_16 = arith.constant dense<0.000000e+00> : vector<128x1xf32>
      %16 = tpu.matmul %12, %15, %cst_16 {dimension_numbers = #tpu.dot_dimension_numbers<[1], [0], [0], [1], [0, 0, 1, 1], [], []>} : vector<128x128xf32>, vector<128x1xf32>, vector<128x1xf32> -> vector<128x1xf32>
      %c0_17 = arith.constant 0 : index
      %c0_18 = arith.constant 0 : index
      %17 = vector.load %arg7[%c0_17, %c0_18] : memref<128x1xf32, #tpu.memory_space<vmem>>, vector<128x1xf32>
      tpu.vector_store %arg7[%c0_17, %c0_18], %16 {strides = array<i32>} : memref<128x1xf32, #tpu.memory_space<vmem>>, vector<128x1xf32>,
      %c0_19 = arith.constant 0 : index
      %c0_20 = arith.constant 0 : index
      %18 = vector.load %arg5[%c0_19, %c0_20] : memref<128x1xf32, #tpu.memory_space<vmem>>, vector<128x1xf32>
      %cst_21 = arith.constant dense<0.000000e+00> : vector<128x1xf32>
      %19 = tpu.matmul %12, %18, %cst_21 {dimension_numbers = #tpu.dot_dimension_numbers<[1], [0], [0], [1], [0, 0, 1, 1], [], []>} : vector<128x128xf32>, vector<128x1xf32>, vector<128x1xf32> -> vector<128x1xf32>
      %c0_22 = arith.constant 0 : index
      %c0_23 = arith.constant 0 : index
      %20 = vector.load %arg8[%c0_22, %c0_23] : memref<128x1xf32, #tpu.memory_space<vmem>>, vector<128x1xf32>
      tpu.vector_store %arg8[%c0_22, %c0_23], %19 {strides = array<i32>} : memref<128x1xf32, #tpu.memory_space<vmem>>, vector<128x1xf32>,
    } else {
    }
    return
  }
  func.func @transform_0(%arg0: i32, %arg1: i32) -> (i32, i32) {
    %c0_i32 = arith.constant 0 : i32
    return %arg0, %arg1 : i32, i32
  }
  func.func @transform_1(%arg0: i32, %arg1: i32) -> (i32, i32) {
    %c0_i32 = arith.constant 0 : i32
    %c0_i32_0 = arith.constant 0 : i32
    return %arg1, %c0_i32 : i32, i32
  }
  func.func @transform_2(%arg0: i32, %arg1: i32) -> (i32, i32) {
    %c0_i32 = arith.constant 0 : i32
    %c0_i32_0 = arith.constant 0 : i32
    %c0_i32_1 = arith.constant 0 : i32
    return %c0_i32, %c0_i32_0 : i32, i32
  }
  func.func @transform_3(%arg0: i32, %arg1: i32) -> (i32, i32) {
    %c0_i32 = arith.constant 0 : i32
    %c0_i32_0 = arith.constant 0 : i32
    %c0_i32_1 = arith.constant 0 : i32
    return %c0_i32, %c0_i32_0 : i32, i32
  }
  func.func @transform_4(%arg0: i32, %arg1: i32) -> (i32, i32) {
    %c0_i32 = arith.constant 0 : i32
    %c0_i32_0 = arith.constant 0 : i32
    return %arg0, %c0_i32 : i32, i32
  }
  func.func @transform_5(%arg0: i32, %arg1: i32) -> (i32, i32) {
    %c0_i32 = arith.constant 0 : i32
    %c0_i32_0 = arith.constant 0 : i32
    return %arg0, %c0_i32 : i32, i32
  }
  func.func @transform_6(%arg0: i32, %arg1: i32) -> (i32, i32) {
    %c0_i32 = arith.constant 0 : i32
    %c0_i32_0 = arith.constant 0 : i32
    return %arg0, %c0_i32 : i32, i32
  }
}

module attributes {stable_mosaic.version = 11 : i64} {
  func.func @_attn_kernel(%arg0: i32, %arg1: i32, %arg2: memref<1x1xi32, #tpu.memory_space<smem>>, %arg3: memref<128x1xf32, #tpu.memory_space<vmem>>, %arg4: memref<1x128xf32, #tpu.memory_space<vmem>>, %arg5: memref<128x128xbf16, #tpu.memory_space<vmem>>, %arg6: memref<128x128xbf16, #tpu.memory_space<vmem>>, %arg7: memref<1x6xf32, #tpu.memory_space<vmem>>, %arg8: memref<128x128xf32, #tpu.memory_space<vmem>>, %arg9: memref<128x1xf32, #tpu.memory_space<vmem>>, %arg10: memref<128x1xf32, #tpu.memory_space<vmem>>, %arg11: memref<128x6xf32, #tpu.memory_space<vmem>>) attributes {dimension_semantics = [#tpu.dimension_semantics<parallel>, #tpu.dimension_semantics<arbitrary>], iteration_bounds = array<i64: 1, 1>, scalar_prefetch = 1 : i64, scratch_operands = 3 : i64, tpu.core_type = #tpu.core_type<tc>, window_params = [{transform_indices = @transform_0, window_bounds = array<i64: 128, 1>}, {pipeline_mode = #tpu.pipeline_mode<synchronous>, transform_indices = @transform_1, window_bounds = array<i64: 1, 128>}, {transform_indices = @transform_2, window_bounds = array<i64: 128, 128>}, {pipeline_mode = #tpu.pipeline_mode<synchronous>, transform_indices = @transform_3, window_bounds = array<i64: 128, 128>}, {pipeline_mode = #tpu.pipeline_mode<synchronous>, transform_indices = @transform_4, window_bounds = array<i64: 1, 6>}, {transform_indices = @transform_5, window_bounds = array<i64: 128, 128>}]} {
    %c0_i32 = arith.constant 0 : i32
    %0 = arith.cmpi eq, %arg1, %c0_i32 : i32
    %1 = arith.extui %0 : i1 to i32
    %c0_i32_0 = arith.constant 0 : i32
    %2 = arith.cmpi ne, %1, %c0_i32_0 : i32
    scf.if %2 {
      %cst = arith.constant -1.000000e+30 : f32
      %12 = vector.broadcast %cst : f32 to vector<128x1xf32>
      %c0 = arith.constant 0 : index
      %c0_5 = arith.constant 0 : index
      %13 = vector.load %arg9[%c0, %c0_5] : memref<128x1xf32, #tpu.memory_space<vmem>>, vector<128x1xf32>
      tpu.vector_store %arg9[%c0, %c0_5], %12 {strides = array<i32>} : memref<128x1xf32, #tpu.memory_space<vmem>>, vector<128x1xf32>,
      %cst_6 = arith.constant 0.000000e+00 : f32
      %14 = vector.broadcast %cst_6 : f32 to vector<128x1xf32>
      %c0_7 = arith.constant 0 : index
      %c0_8 = arith.constant 0 : index
      %15 = vector.load %arg10[%c0_7, %c0_8] : memref<128x1xf32, #tpu.memory_space<vmem>>, vector<128x1xf32>
      tpu.vector_store %arg10[%c0_7, %c0_8], %14 {strides = array<i32>} : memref<128x1xf32, #tpu.memory_space<vmem>>, vector<128x1xf32>,
      %cst_9 = arith.constant 0.000000e+00 : f32
      %16 = vector.broadcast %cst_9 : f32 to vector<128x6xf32>
      %c0_10 = arith.constant 0 : index
      %c0_11 = arith.constant 0 : index
      %17 = vector.load %arg11[%c0_10, %c0_11] : memref<128x6xf32, #tpu.memory_space<vmem>>, vector<128x6xf32>
      tpu.vector_store %arg11[%c0_10, %c0_11], %16 {strides = array<i32>} : memref<128x6xf32, #tpu.memory_space<vmem>>, vector<128x6xf32>,
    } else {
    }
    %3 = arith.index_cast %arg0 : i32 to index
    %4 = arith.index_cast %arg1 : i32 to index
    %5 = memref.load %arg2[%3, %4] : memref<1x1xi32, #tpu.memory_space<smem>>
    %c0_i32_1 = arith.constant 0 : i32
    %6 = arith.cmpi sgt, %5, %c0_i32_1 : i32
    %7 = arith.extui %6 : i1 to i32
    %c0_i32_2 = arith.constant 0 : i32
    %8 = arith.cmpi ne, %7, %c0_i32_2 : i32
    scf.if %8 {
      %c128_i32 = arith.constant 128 : i32
      %12 = arith.muli %arg1, %c128_i32 : i32
      %13 = tpu.assume_multiple %12, 128 : i32
      %c0 = arith.constant 0 : index
      %c0_5 = arith.constant 0 : index
      %14 = vector.load %arg3[%c0, %c0_5] : memref<128x1xf32, #tpu.memory_space<vmem>>, vector<128x1xf32>
      %c0_6 = arith.constant 0 : index
      %15 = arith.index_cast %13 : i32 to index
      %16 = vector.load %arg4[%c0_6, %15] : memref<1x128xf32, #tpu.memory_space<vmem>>, vector<1x128xf32>
      %c0_7 = arith.constant 0 : index
      %c0_8 = arith.constant 0 : index
      %17 = vector.load %arg5[%c0_7, %c0_8] : memref<128x128xbf16, #tpu.memory_space<vmem>>, vector<128x128xbf16>
      %18 = arith.index_cast %13 : i32 to index
      %c0_9 = arith.constant 0 : index
      %19 = vector.load %arg6[%18, %c0_9] : memref<128x128xbf16, #tpu.memory_space<vmem>>, vector<128x128xbf16>
      %c0_10 = arith.constant 0 : index
      %c0_11 = arith.constant 0 : index
      %20 = vector.load %arg9[%c0_10, %c0_11] : memref<128x1xf32, #tpu.memory_space<vmem>>, vector<128x1xf32>
      %c0_12 = arith.constant 0 : index
      %c0_13 = arith.constant 0 : index
      %21 = vector.load %arg10[%c0_12, %c0_13] : memref<128x1xf32, #tpu.memory_space<vmem>>, vector<128x1xf32>
      %22 = vector.broadcast %14 : vector<128x1xf32> to vector<128x128xf32>
      %23 = vector.broadcast %16 : vector<1x128xf32> to vector<128x128xf32>
      %24 = arith.addf %22, %23 : vector<128x128xf32>
      %cst = arith.constant 2.000000e-01 : f32
      %25 = vector.broadcast %cst : f32 to vector<128x128xf32>
      %26 = arith.mulf %25, %24 : vector<128x128xf32>
      %27 = arith.maximumf %24, %26 : vector<128x128xf32>
      %cst_14 = arith.constant dense<0xFF800000> : vector<128xf32>
      %28 = vector.multi_reduction <maximumf>, %27, %cst_14 [1] : vector<128x128xf32> to vector<128xf32>
      %29 = vector.shape_cast %28 : vector<128xf32> to vector<128x1xf32>
      %30 = arith.maximumf %20, %29 : vector<128x1xf32>
      %31 = arith.subf %20, %30 : vector<128x1xf32>
      %32 = math.exp %31 : vector<128x1xf32>
      %33 = vector.broadcast %30 : vector<128x1xf32> to vector<128x128xf32>
      %34 = arith.subf %27, %33 : vector<128x128xf32>
      %35 = math.exp %34 : vector<128x128xf32>
      %36 = arith.extf %17 : vector<128x128xbf16> to vector<128x128xf32>
      %37 = arith.mulf %35, %36 : vector<128x128xf32>
      %38 = arith.mulf %32, %21 : vector<128x1xf32>
      %cst_15 = arith.constant dense<0.000000e+00> : vector<128xf32>
      %39 = vector.multi_reduction <add>, %37, %cst_15 [1] : vector<128x128xf32> to vector<128xf32>
      %40 = vector.shape_cast %39 : vector<128xf32> to vector<128x1xf32>
      %41 = arith.addf %38, %40 : vector<128x1xf32>
      %42 = arith.truncf %37 : vector<128x128xf32> to vector<128x128xbf16>
      %43 = vector.extract_strided_slice %19 {offsets = [0, 0], sizes = [128, 6], strides = [1, 1]} : vector<128x128xbf16> to vector<128x6xbf16>
      %cst_16 = arith.constant dense<0.000000e+00> : vector<128x6xf32>
      %44 = tpu.matmul %42, %43, %cst_16 {dimension_numbers = #tpu.dot_dimension_numbers<[1], [0], [0], [1], [0, 0, 1, 1], [], []>} : vector<128x128xbf16>, vector<128x6xbf16>, vector<128x6xf32> -> vector<128x6xf32>
      %c0_17 = arith.constant 0 : index
      %c0_18 = arith.constant 0 : index
      %45 = vector.load %arg11[%c0_17, %c0_18] : memref<128x6xf32, #tpu.memory_space<vmem>>, vector<128x6xf32>
      %46 = vector.broadcast %32 : vector<128x1xf32> to vector<128x6xf32>
      %47 = arith.mulf %46, %45 : vector<128x6xf32>
      %48 = arith.addf %47, %44 : vector<128x6xf32>
      %c0_19 = arith.constant 0 : index
      %c0_20 = arith.constant 0 : index
      %49 = vector.load %arg9[%c0_19, %c0_20] : memref<128x1xf32, #tpu.memory_space<vmem>>, vector<128x1xf32>
      tpu.vector_store %arg9[%c0_19, %c0_20], %30 {strides = array<i32>} : memref<128x1xf32, #tpu.memory_space<vmem>>, vector<128x1xf32>,
      %c0_21 = arith.constant 0 : index
      %c0_22 = arith.constant 0 : index
      %50 = vector.load %arg10[%c0_21, %c0_22] : memref<128x1xf32, #tpu.memory_space<vmem>>, vector<128x1xf32>
      tpu.vector_store %arg10[%c0_21, %c0_22], %41 {strides = array<i32>} : memref<128x1xf32, #tpu.memory_space<vmem>>, vector<128x1xf32>,
      %c0_23 = arith.constant 0 : index
      %c0_24 = arith.constant 0 : index
      %51 = vector.load %arg11[%c0_23, %c0_24] : memref<128x6xf32, #tpu.memory_space<vmem>>, vector<128x6xf32>
      tpu.vector_store %arg11[%c0_23, %c0_24], %48 {strides = array<i32>} : memref<128x6xf32, #tpu.memory_space<vmem>>, vector<128x6xf32>,
    } else {
    }
    %c0_i32_3 = arith.constant 0 : i32
    %9 = arith.cmpi eq, %arg1, %c0_i32_3 : i32
    %10 = arith.extui %9 : i1 to i32
    %c0_i32_4 = arith.constant 0 : i32
    %11 = arith.cmpi ne, %10, %c0_i32_4 : i32
    scf.if %11 {
      %c0 = arith.constant 0 : index
      %c0_5 = arith.constant 0 : index
      %12 = vector.load %arg10[%c0, %c0_5] : memref<128x1xf32, #tpu.memory_space<vmem>>, vector<128x1xf32>
      %13 = tpu.reciprocal %12 {approx = true} : vector<128x1xf32> -> vector<128x1xf32>
      %c0_6 = arith.constant 0 : index
      %c0_7 = arith.constant 0 : index
      %14 = vector.load %arg11[%c0_6, %c0_7] : memref<128x6xf32, #tpu.memory_space<vmem>>, vector<128x6xf32>
      %15 = vector.broadcast %13 : vector<128x1xf32> to vector<128x6xf32>
      %16 = arith.mulf %14, %15 : vector<128x6xf32>
      %cst = arith.constant 1.000000e+00 : f32
      %17 = vector.broadcast %cst : f32 to vector<128x6xf32>
      %18 = arith.mulf %16, %17 : vector<128x6xf32>
      %c0_8 = arith.constant 0 : index
      %c0_9 = arith.constant 0 : index
      %19 = vector.load %arg7[%c0_8, %c0_9] : memref<1x6xf32, #tpu.memory_space<vmem>>, vector<1x6xf32>
      %20 = vector.broadcast %19 : vector<1x6xf32> to vector<128x6xf32>
      %21 = arith.addf %18, %20 : vector<128x6xf32>
      %cst_10 = arith.constant dense<0xFF800000> : vector<128xf32>
      %22 = vector.multi_reduction <maximumf>, %21, %cst_10 [1] : vector<128x6xf32> to vector<128xf32>
      %23 = vector.shape_cast %22 : vector<128xf32> to vector<128x1xf32>
      %24 = vector.broadcast %23 : vector<128x1xf32> to vector<128x6xf32>
      %25 = arith.subf %21, %24 : vector<128x6xf32>
      %26 = math.exp %25 : vector<128x6xf32>
      %cst_11 = arith.constant dense<0.000000e+00> : vector<128xf32>
      %27 = vector.multi_reduction <add>, %26, %cst_11 [1] : vector<128x6xf32> to vector<128xf32>
      %28 = vector.shape_cast %27 : vector<128xf32> to vector<128x1xf32>
      %29 = math.log %28 : vector<128x1xf32>
      %30 = vector.broadcast %29 : vector<128x1xf32> to vector<128x6xf32>
      %31 = arith.subf %25, %30 : vector<128x6xf32>
      %cst_12 = arith.constant 0.000000e+00 : f32
      %32 = vector.broadcast %cst_12 : f32 to vector<128x122xf32>
      %33 = tpu.concatenate %31, %32 in 1 : vector<128x6xf32>, vector<128x122xf32> -> vector<128x128xf32>
      %c0_13 = arith.constant 0 : index
      %c0_14 = arith.constant 0 : index
      %34 = vector.load %arg8[%c0_13, %c0_14] : memref<128x128xf32, #tpu.memory_space<vmem>>, vector<128x128xf32>
      tpu.vector_store %arg8[%c0_13, %c0_14], %33 {strides = array<i32>} : memref<128x128xf32, #tpu.memory_space<vmem>>, vector<128x128xf32>,
    } else {
    }
    return
  }
  func.func @transform_0(%arg0: i32, %arg1: i32, %arg2: memref<1x1xi32, #tpu.memory_space<smem>>) -> (i32, i32) {
    %c0_i32 = arith.constant 0 : i32
    %c0_i32_0 = arith.constant 0 : i32
    return %arg0, %c0_i32 : i32, i32
  }
  func.func @transform_1(%arg0: i32, %arg1: i32, %arg2: memref<1x1xi32, #tpu.memory_space<smem>>) -> (i32, i32) {
    %c0_i32 = arith.constant 0 : i32
    %c0_i32_0 = arith.constant 0 : i32
    %c0_i32_1 = arith.constant 0 : i32
    return %c0_i32, %c0_i32_0 : i32, i32
  }
  func.func @transform_2(%arg0: i32, %arg1: i32, %arg2: memref<1x1xi32, #tpu.memory_space<smem>>) -> (i32, i32) {
    %0 = arith.index_cast %arg0 : i32 to index
    %1 = arith.index_cast %arg1 : i32 to index
    %2 = memref.load %arg2[%0, %1] : memref<1x1xi32, #tpu.memory_space<smem>>
    %c0_i32 = arith.constant 0 : i32
    %3 = arith.cmpi sgt, %2, %c0_i32 : i32
    %c0_i32_0 = arith.constant 0 : i32
    %4 = arith.select %3, %arg1, %c0_i32_0 : i32
    %c0_i32_1 = arith.constant 0 : i32
    return %arg0, %4 : i32, i32
  }
  func.func @transform_3(%arg0: i32, %arg1: i32, %arg2: memref<1x1xi32, #tpu.memory_space<smem>>) -> (i32, i32) {
    %c0_i32 = arith.constant 0 : i32
    %c0_i32_0 = arith.constant 0 : i32
    %c0_i32_1 = arith.constant 0 : i32
    return %c0_i32, %c0_i32_0 : i32, i32
  }
  func.func @transform_4(%arg0: i32, %arg1: i32, %arg2: memref<1x1xi32, #tpu.memory_space<smem>>) -> (i32, i32) {
    %c0_i32 = arith.constant 0 : i32
    %c0_i32_0 = arith.constant 0 : i32
    %c0_i32_1 = arith.constant 0 : i32
    return %c0_i32, %c0_i32_0 : i32, i32
  }
  func.func @transform_5(%arg0: i32, %arg1: i32, %arg2: memref<1x1xi32, #tpu.memory_space<smem>>) -> (i32, i32) {
    %c0_i32 = arith.constant 0 : i32
    %c0_i32_0 = arith.constant 0 : i32
    return %arg0, %c0_i32 : i32, i32
  }
}

</mosaic_0001>

<llo_original>
// kernel: gat_forward.6
$region0: #{gat_forward.6}
  #allocation0 [shape = 'u32[]', space=smem, size = 0x4, offset = 0x4, fixed_abs, tag = 'smem constant byte address 0x4 - core index']
  #allocation1 [shape = 'u32[72,128]{1,0:T(1,128)}', space=vmem, size = 0x9000, scoped, tag = 'internal scratch']
  #allocation2 [shape = 'f32[128,128]{1,0:T(8,128)}', space=vmem, size = 0x10000, scoped, tag = 'scratch operand']
  %s0 = inlined_call_operand.vmem [shape: bf16[128,128], index: 0, kind: input, shape index: {}]
  %s1 = inlined_call_operand.vmem [shape: bf16[128,128], index: 1, kind: input, shape index: {}]
  %s2 = inlined_call_operand.vmem [shape: f32[128,1], index: 2, kind: input, shape index: {}]
  %s3 = inlined_call_operand.vmem [shape: f32[128,1], index: 3, kind: input, shape index: {}]
  %s4 = inlined_call_operand.vmem [shape: bf16[128,128], index: 4, kind: output, shape index: {0}]
  %s5 = inlined_call_operand.vmem [shape: f32[128,1], index: 5, kind: output, shape index: {1}]
  %s6 = inlined_call_operand.vmem [shape: f32[128,1], index: 6, kind: output, shape index: {2}]
  %7 = xla_tuple %s4, %s5, %s6
  %s8 = sld [smem:[#allocation0]]
  $region50: #{gat_forward.6} parent=0
    _
  %s10 = ssub.s32 1, %s8
  %s11 = scalar_select 0, %s10, %s8
  // Predicated region
  $region2: #{gat_forward.6} parent=0 // pred_check
    _
  $region3: #{gat_forward.6} parent=0 // pred_check_branch
    %13 = sbr.rel (0) target = $region5
  $region4: #{gat_forward.6} parent=0 // pred_region
    _
  $region5: #{gat_forward.6} parent=0 // pred_fallthru
    _
  // Predicated region
  $region6: #{gat_forward.6} parent=0 // pred_check
    _
  $region7: #{gat_forward.6} parent=0 // pred_check_branch
    %15 = sbr.rel (0) target = $region9
  $region8: #{gat_forward.6} parent=0 // pred_region
    _
  $region9: #{gat_forward.6} parent=0 // pred_fallthru
    _
  // Predicated region
  $region10: #{gat_forward.6} parent=0 // pred_check
    _
  $region11: #{gat_forward.6} parent=0 // pred_check_branch
    %17 = sbr.rel (0) target = $region13
  $region12: #{gat_forward.6} parent=0 // pred_region
    _
  $region13: #{gat_forward.6} parent=0 // pred_fallthru
    _
  // Predicated region
  $region14: #{gat_forward.6} parent=0 // pred_check
    _
  $region15: #{gat_forward.6} parent=0 // pred_check_branch
    %19 = sbr.rel (0) target = $region17
  $region16: #{gat_forward.6} parent=0 // pred_region
    _
  $region17: #{gat_forward.6} parent=0 // pred_fallthru
    _
  %p20 = scmp.eq.s32.totalorder 0, 0
  // Predicated region
  $region18: #{gat_forward.6} parent=0 // pred_check
    %p21 = pneg %p20
  $region19: #{gat_forward.6} parent=0 // pred_check_branch
    %23 = sbr.rel (%p21) target = $region21
  $region20: #{gat_forward.6} parent=0 // pred_region
    %24 = vst [vmem:[#allocation2] sm:$0xff] 0.0
    %25 = vst [vmem:[#allocation2 + $0x8] sm:$0xff] 0.0
    %26 = vst [vmem:[#allocation2 + $0x10] sm:$0xff] 0.0
    %27 = vst [vmem:[#allocation2 + $0x18] sm:$0xff] 0.0
    %28 = vst [vmem:[#allocation2 + $0x20] sm:$0xff] 0.0
    %29 = vst [vmem:[#allocation2 + $0x28] sm:$0xff] 0.0
    %30 = vst [vmem:[#allocation2 + $0x30] sm:$0xff] 0.0
    %31 = vst [vmem:[#allocation2 + $0x38] sm:$0xff] 0.0
    %32 = vst [vmem:[#allocation2 + $0x40] sm:$0xff] 0.0
    %33 = vst [vmem:[#allocation2 + $0x48] sm:$0xff] 0.0
    %34 = vst [vmem:[#allocation2 + $0x50] sm:$0xff] 0.0
    %35 = vst [vmem:[#allocation2 + $0x58] sm:$0xff] 0.0
    %36 = vst [vmem:[#allocation2 + $0x60] sm:$0xff] 0.0
    %37 = vst [vmem:[#allocation2 + $0x68] sm:$0xff] 0.0
    %38 = vst [vmem:[#allocation2 + $0x70] sm:$0xff] 0.0
    %39 = vst [vmem:[#allocation2 + $0x78] sm:$0xff] 0.0
  $region21: #{gat_forward.6} parent=0 // pred_fallthru
    _
  %v40 = vld [vmem:[#allocation2] sm:$0xff]
  %v41 = vld [vmem:[#allocation2 + $0x8] sm:$0xff]
  %v42 = vld [vmem:[#allocation2 + $0x10] sm:$0xff]
  %v43 = vld [vmem:[#allocation2 + $0x18] sm:$0xff]
  %v44 = vld [vmem:[#allocation2 + $0x20] sm:$0xff]
  %v45 = vld [vmem:[#allocation2 + $0x28] sm:$0xff]
  %v46 = vld [vmem:[#allocation2 + $0x30] sm:$0xff]
  %v47 = vld [vmem:[#allocation2 + $0x38] sm:$0xff]
  %v48 = vld [vmem:[#allocation2 + $0x40] sm:$0xff]
  %v49 = vld [vmem:[#allocation2 + $0x48] sm:$0xff]
  %v50 = vld [vmem:[#allocation2 + $0x50] sm:$0xff]
  %v51 = vld [vmem:[#allocation2 + $0x58] sm:$0xff]
  %v52 = vld [vmem:[#allocation2 + $0x60] sm:$0xff]
  %v53 = vld [vmem:[#allocation2 + $0x68] sm:$0xff]
  %v54 = vld [vmem:[#allocation2 + $0x70] sm:$0xff]
  %v55 = vld [vmem:[#allocation2 + $0x78] sm:$0xff]
  %v56 = vld [vmem:[%s0] sm:$0xf]
  %v57 = vld [vmem:[%s0 + $0x4] sm:$0xf]
  %v58 = vld [vmem:[%s0 + $0x8] sm:$0xf]
  %v59 = vld [vmem:[%s0 + $0xc] sm:$0xf]
  %v60 = vld [vmem:[%s0 + $0x10] sm:$0xf]
  %v61 = vld [vmem:[%s0 + $0x14] sm:$0xf]
  %v62 = vld [vmem:[%s0 + $0x18] sm:$0xf]
  %v63 = vld [vmem:[%s0 + $0x1c] sm:$0xf]
  %v64 = vld [vmem:[%s0 + $0x20] sm:$0xf]
  %v65 = vld [vmem:[%s0 + $0x24] sm:$0xf]
  %v66 = vld [vmem:[%s0 + $0x28] sm:$0xf]
  %v67 = vld [vmem:[%s0 + $0x2c] sm:$0xf]
  %v68 = vld [vmem:[%s0 + $0x30] sm:$0xf]
  %v69 = vld [vmem:[%s0 + $0x34] sm:$0xf]
  %v70 = vld [vmem:[%s0 + $0x38] sm:$0xf]
  %v71 = vld [vmem:[%s0 + $0x3c] sm:$0xf]
  %v72 = vld [vmem:[%s1] sm:$0xf]
  %v73 = vld [vmem:[%s1 + $0x4] sm:$0xf]
  %v74 = vld [vmem:[%s1 + $0x8] sm:$0xf]
  %v75 = vld [vmem:[%s1 + $0xc] sm:$0xf]
  %v76 = vld [vmem:[%s1 + $0x10] sm:$0xf]
  %v77 = vld [vmem:[%s1 + $0x14] sm:$0xf]
  %v78 = vld [vmem:[%s1 + $0x18] sm:$0xf]
  %v79 = vld [vmem:[%s1 + $0x1c] sm:$0xf]
  %v80 = vld [vmem:[%s1 + $0x20] sm:$0xf]
  %v81 = vld [vmem:[%s1 + $0x24] sm:$0xf]
  %v82 = vld [vmem:[%s1 + $0x28] sm:$0xf]
  %v83 = vld [vmem:[%s1 + $0x2c] sm:$0xf]
  %v84 = vld [vmem:[%s1 + $0x30] sm:$0xf]
  %v85 = vld [vmem:[%s1 + $0x34] sm:$0xf]
  %v86 = vld [vmem:[%s1 + $0x38] sm:$0xf]
  %v87 = vld [vmem:[%s1 + $0x3c] sm:$0xf]
  %v104 = vunpack.c.l.b16 %v56
  %v105 = vunpack.c.l.b16 %v57
  %v106 = vunpack.c.l.b16 %v58
  %v107 = vunpack.c.l.b16 %v59
  %v108 = vunpack.c.l.b16 %v60
  %v109 = vunpack.c.l.b16 %v61
  %v110 = vunpack.c.l.b16 %v62
  %v111 = vunpack.c.l.b16 %v63
  %v112 = vunpack.c.l.b16 %v64
  %v113 = vunpack.c.l.b16 %v65
  %v114 = vunpack.c.l.b16 %v66
  %v115 = vunpack.c.l.b16 %v67
  %v116 = vunpack.c.l.b16 %v68
  %v117 = vunpack.c.l.b16 %v69
  %v118 = vunpack.c.l.b16 %v70
  %v119 = vunpack.c.l.b16 %v71
  %v120 = vpack.c.b16 %v105, %v104
  %v121 = vpack.c.b16 %v107, %v106
  %v122 = vpack.c.b16 %v109, %v108
  %v123 = vpack.c.b16 %v111, %v110
  %v124 = vpack.c.b16 %v113, %v112
  %v125 = vpack.c.b16 %v115, %v114
  %v126 = vpack.c.b16 %v117, %v116
  %v127 = vpack.c.b16 %v119, %v118
  %v152 = vunpack.c.l.b16 %v72
  %v153 = vunpack.c.l.b16 %v73
  %v154 = vunpack.c.l.b16 %v74
  %v155 = vunpack.c.l.b16 %v75
  %v156 = vunpack.c.l.b16 %v76
  %v157 = vunpack.c.l.b16 %v77
  %v158 = vunpack.c.l.b16 %v78
  %v159 = vunpack.c.l.b16 %v79
  %v160 = vunpack.c.l.b16 %v80
  %v161 = vunpack.c.l.b16 %v81
  %v162 = vunpack.c.l.b16 %v82
  %v163 = vunpack.c.l.b16 %v83
  %v164 = vunpack.c.l.b16 %v84
  %v165 = vunpack.c.l.b16 %v85
  %v166 = vunpack.c.l.b16 %v86
  %v167 = vunpack.c.l.b16 %v87
  %v168 = vpack.c.b16 %v153, %v152
  %v169 = vpack.c.b16 %v155, %v154
  %v170 = vpack.c.b16 %v157, %v156
  %v171 = vpack.c.b16 %v159, %v158
  %v172 = vpack.c.b16 %v161, %v160
  %v173 = vpack.c.b16 %v163, %v162
  %v174 = vpack.c.b16 %v165, %v164
  %v175 = vpack.c.b16 %v167, %v166
  %184 = vmatpush.bf16.msra.mxu0 %v175
  %185 = vmatpush.bf16.msra.mxu0 %v174
  %186 = vmatpush.bf16.msra.mxu0 %v173
  %187 = vmatpush.bf16.msra.mxu0 %v172
  %188 = vmatpush.bf16.msra.mxu0 %v171
  %189 = vmatpush.bf16.msra.mxu0 %v170
  %190 = vmatpush.bf16.msra.mxu0 %v169
  %191 = vmatpush.bf16.msra.mxu0 %v168
  %192 = vmatmul.bf16.gmra.mxu0 %v120
  %v193 = vpop.f32.mrf.mxu0
  %v194 = vadd.f32 0.0, %v193
  %v195 = vpop.f32.mrf.mxu0
  %v196 = vadd.f32 0.0, %v195
  %197 = vmatmul.bf16.gmra.mxu0 %v121
  %v198 = vpop.f32.mrf.mxu0
  %v199 = vadd.f32 0.0, %v198
  %v200 = vpop.f32.mrf.mxu0
  %v201 = vadd.f32 0.0, %v200
  %202 = vmatmul.bf16.gmra.mxu0 %v122
  %v203 = vpop.f32.mrf.mxu0
  %v204 = vadd.f32 0.0, %v203
  %v205 = vpop.f32.mrf.mxu0
  %v206 = vadd.f32 0.0, %v205
  %207 = vmatmul.bf16.gmra.mxu0 %v123
  %v208 = vpop.f32.mrf.mxu0
  %v209 = vadd.f32 0.0, %v208
  %v210 = vpop.f32.mrf.mxu0
  %v211 = vadd.f32 0.0, %v210
  %212 = vmatmul.bf16.gmra.mxu0 %v124
  %v213 = vpop.f32.mrf.mxu0
  %v214 = vadd.f32 0.0, %v213
  %v215 = vpop.f32.mrf.mxu0
  %v216 = vadd.f32 0.0, %v215
  %217 = vmatmul.bf16.gmra.mxu0 %v125
  %v218 = vpop.f32.mrf.mxu0
  %v219 = vadd.f32 0.0, %v218
  %v220 = vpop.f32.mrf.mxu0
  %v221 = vadd.f32 0.0, %v220
  %222 = vmatmul.bf16.gmra.mxu0 %v126
  %v223 = vpop.f32.mrf.mxu0
  %v224 = vadd.f32 0.0, %v223
  %v225 = vpop.f32.mrf.mxu0
  %v226 = vadd.f32 0.0, %v225
  %227 = vmatmul.bf16.gmra.mxu0 %v127
  %v228 = vpop.f32.mrf.mxu0
  %v229 = vadd.f32 0.0, %v228
  %v230 = vpop.f32.mrf.mxu0
  %v231 = vadd.f32 0.0, %v230
  %232 = vdwg.mxu0
  %v233 = vadd.f32 %v40, %v194
  %v234 = vadd.f32 %v41, %v196
  %v235 = vadd.f32 %v42, %v199
  %v236 = vadd.f32 %v43, %v201
  %v237 = vadd.f32 %v44, %v204
  %v238 = vadd.f32 %v45, %v206
  %v239 = vadd.f32 %v46, %v209
  %v240 = vadd.f32 %v47, %v211
  %v241 = vadd.f32 %v48, %v214
  %v242 = vadd.f32 %v49, %v216
  %v243 = vadd.f32 %v50, %v219
  %v244 = vadd.f32 %v51, %v221
  %v245 = vadd.f32 %v52, %v224
  %v246 = vadd.f32 %v53, %v226
  %v247 = vadd.f32 %v54, %v229
  %v248 = vadd.f32 %v55, %v231
  %249 = vst [vmem:[#allocation2] sm:$0xff] %v233
  %250 = vst [vmem:[#allocation2 + $0x8] sm:$0xff] %v234
  %251 = vst [vmem:[#allocation2 + $0x10] sm:$0xff] %v235
  %252 = vst [vmem:[#allocation2 + $0x18] sm:$0xff] %v236
  %253 = vst [vmem:[#allocation2 + $0x20] sm:$0xff] %v237
  %254 = vst [vmem:[#allocation2 + $0x28] sm:$0xff] %v238
  %255 = vst [vmem:[#allocation2 + $0x30] sm:$0xff] %v239
  %256 = vst [vmem:[#allocation2 + $0x38] sm:$0xff] %v240
  %257 = vst [vmem:[#allocation2 + $0x40] sm:$0xff] %v241
  %258 = vst [vmem:[#allocation2 + $0x48] sm:$0xff] %v242
  %259 = vst [vmem:[#allocation2 + $0x50] sm:$0xff] %v243
  %260 = vst [vmem:[#allocation2 + $0x58] sm:$0xff] %v244
  %261 = vst [vmem:[#allocation2 + $0x60] sm:$0xff] %v245
  %262 = vst [vmem:[#allocation2 + $0x68] sm:$0xff] %v246
  %263 = vst [vmem:[#allocation2 + $0x70] sm:$0xff] %v247
  %264 = vst [vmem:[#allocation2 + $0x78] sm:$0xff] %v248
  // Predicated region
  $region22: #{gat_forward.6} parent=0 // pred_check
    %p265 = pneg %p20
  $region23: #{gat_forward.6} parent=0 // pred_check_branch
    %267 = sbr.rel (%p265) target = $region25
  $region24: #{gat_forward.6} parent=0 // pred_region
    %v268 = vld [vmem:[#allocation2] sm:$0xff]
    %v269 = vld [vmem:[#allocation2 + $0x8] sm:$0xff]
    %v270 = vld [vmem:[#allocation2 + $0x10] sm:$0xff]
    %v271 = vld [vmem:[#allocation2 + $0x18] sm:$0xff]
    %v272 = vld [vmem:[#allocation2 + $0x20] sm:$0xff]
    %v273 = vld [vmem:[#allocation2 + $0x28] sm:$0xff]
    %v274 = vld [vmem:[#allocation2 + $0x30] sm:$0xff]
    %v275 = vld [vmem:[#allocation2 + $0x38] sm:$0xff]
    %v276 = vld [vmem:[#allocation2 + $0x40] sm:$0xff]
    %v277 = vld [vmem:[#allocation2 + $0x48] sm:$0xff]
    %v278 = vld [vmem:[#allocation2 + $0x50] sm:$0xff]
    %v279 = vld [vmem:[#allocation2 + $0x58] sm:$0xff]
    %v280 = vld [vmem:[#allocation2 + $0x60] sm:$0xff]
    %v281 = vld [vmem:[#allocation2 + $0x68] sm:$0xff]
    %v282 = vld [vmem:[#allocation2 + $0x70] sm:$0xff]
    %v283 = vld [vmem:[#allocation2 + $0x78] sm:$0xff]
    %v284 = vpack.c.bf16 %v268, %v268
    %v285 = vpack.c.bf16 %v269, %v269
    %v286 = vpack.c.bf16 %v270, %v270
    %v287 = vpack.c.bf16 %v271, %v271
    %v288 = vpack.c.bf16 %v272, %v272
    %v289 = vpack.c.bf16 %v273, %v273
    %v290 = vpack.c.bf16 %v274, %v274
    %v291 = vpack.c.bf16 %v275, %v275
    %v292 = vpack.c.bf16 %v276, %v276
    %v293 = vpack.c.bf16 %v277, %v277
    %v294 = vpack.c.bf16 %v278, %v278
    %v295 = vpack.c.bf16 %v279, %v279
    %v296 = vpack.c.bf16 %v280, %v280
    %v297 = vpack.c.bf16 %v281, %v281
    %v298 = vpack.c.bf16 %v282, %v282
    %v299 = vpack.c.bf16 %v283, %v283
    %300 = vst [vmem:[%s4] sm:$0xf] %v284
    %301 = vst [vmem:[%s4 + $0x4] sm:$0xf] %v285
    %302 = vst [vmem:[%s4 + $0x8] sm:$0xf] %v286
    %303 = vst [vmem:[%s4 + $0xc] sm:$0xf] %v287
    %304 = vst [vmem:[%s4 + $0x10] sm:$0xf] %v288
    %305 = vst [vmem:[%s4 + $0x14] sm:$0xf] %v289
    %306 = vst [vmem:[%s4 + $0x18] sm:$0xf] %v290
    %307 = vst [vmem:[%s4 + $0x1c] sm:$0xf] %v291
    %308 = vst [vmem:[%s4 + $0x20] sm:$0xf] %v292
    %309 = vst [vmem:[%s4 + $0x24] sm:$0xf] %v293
    %310 = vst [vmem:[%s4 + $0x28] sm:$0xf] %v294
    %311 = vst [vmem:[%s4 + $0x2c] sm:$0xf] %v295
    %312 = vst [vmem:[%s4 + $0x30] sm:$0xf] %v296
    %313 = vst [vmem:[%s4 + $0x34] sm:$0xf] %v297
    %314 = vst [vmem:[%s4 + $0x38] sm:$0xf] %v298
    %315 = vst [vmem:[%s4 + $0x3c] sm:$0xf] %v299
    %v316 = vld [vmem:[%s2] sm:$0xff]
    %v317 = vld [vmem:[%s2 + $0x8] sm:$0xff]
    %v318 = vld [vmem:[%s2 + $0x10] sm:$0xff]
    %v319 = vld [vmem:[%s2 + $0x18] sm:$0xff]
    %v320 = vld [vmem:[%s2 + $0x20] sm:$0xff]
    %v321 = vld [vmem:[%s2 + $0x28] sm:$0xff]
    %v322 = vld [vmem:[%s2 + $0x30] sm:$0xff]
    %v323 = vld [vmem:[%s2 + $0x38] sm:$0xff]
    %v324 = vld [vmem:[%s2 + $0x40] sm:$0xff]
    %v325 = vld [vmem:[%s2 + $0x48] sm:$0xff]
    %v326 = vld [vmem:[%s2 + $0x50] sm:$0xff]
    %v327 = vld [vmem:[%s2 + $0x58] sm:$0xff]
    %v328 = vld [vmem:[%s2 + $0x60] sm:$0xff]
    %v329 = vld [vmem:[%s2 + $0x68] sm:$0xff]
    %v330 = vld [vmem:[%s2 + $0x70] sm:$0xff]
    %v331 = vld [vmem:[%s2 + $0x78] sm:$0xff]
    %332 = vmatpush.msra.mxu0 %v331
    %333 = vmatpush.msra.mxu0 %v330
    %334 = vmatpush.msra.mxu0 %v329
    %335 = vmatpush.msra.mxu0 %v328
    %336 = vmatpush.msra.mxu0 %v327
    %337 = vmatpush.msra.mxu0 %v326
    %338 = vmatpush.msra.mxu0 %v325
    %339 = vmatpush.msra.mxu0 %v324
    %340 = vmatpush.msra.mxu0 %v323
    %341 = vmatpush.msra.mxu0 %v322
    %342 = vmatpush.msra.mxu0 %v321
    %343 = vmatpush.msra.mxu0 %v320
    %344 = vmatpush.msra.mxu0 %v319
    %345 = vmatpush.msra.mxu0 %v318
    %346 = vmatpush.msra.mxu0 %v317
    %347 = vmatpush.msra.mxu0 %v316
    %348 = vmatmul.f32.gmra.mxu0 %v268
    %v349 = vpop.f32.mrf.mxu0
    %v350 = vadd.f32 0.0, %v349
    %351 = vmatmul.f32.gmra.mxu0 %v269
    %v352 = vpop.f32.mrf.mxu0
    %v353 = vadd.f32 0.0, %v352
    %354 = vmatmul.f32.gmra.mxu0 %v270
    %v355 = vpop.f32.mrf.mxu0
    %v356 = vadd.f32 0.0, %v355
    %357 = vmatmul.f32.gmra.mxu0 %v271
    %v358 = vpop.f32.mrf.mxu0
    %v359 = vadd.f32 0.0, %v358
    %360 = vmatmul.f32.gmra.mxu0 %v272
    %v361 = vpop.f32.mrf.mxu0
    %v362 = vadd.f32 0.0, %v361
    %363 = vmatmul.f32.gmra.mxu0 %v273
    %v364 = vpop.f32.mrf.mxu0
    %v365 = vadd.f32 0.0, %v364
    %366 = vmatmul.f32.gmra.mxu0 %v274
    %v367 = vpop.f32.mrf.mxu0
    %v368 = vadd.f32 0.0, %v367
    %369 = vmatmul.f32.gmra.mxu0 %v275
    %v370 = vpop.f32.mrf.mxu0
    %v371 = vadd.f32 0.0, %v370
    %372 = vmatmul.f32.gmra.mxu0 %v276
    %v373 = vpop.f32.mrf.mxu0
    %v374 = vadd.f32 0.0, %v373
    %375 = vmatmul.f32.gmra.mxu0 %v277
    %v376 = vpop.f32.mrf.mxu0
    %v377 = vadd.f32 0.0, %v376
    %378 = vmatmul.f32.gmra.mxu0 %v278
    %v379 = vpop.f32.mrf.mxu0
    %v380 = vadd.f32 0.0, %v379
    %381 = vmatmul.f32.gmra.mxu0 %v279
    %v382 = vpop.f32.mrf.mxu0
    %v383 = vadd.f32 0.0, %v382
    %384 = vmatmul.f32.gmra.mxu0 %v280
    %v385 = vpop.f32.mrf.mxu0
    %v386 = vadd.f32 0.0, %v385
    %387 = vmatmul.f32.gmra.mxu0 %v281
    %v388 = vpop.f32.mrf.mxu0
    %v389 = vadd.f32 0.0, %v388
    %390 = vmatmul.f32.gmra.mxu0 %v282
    %v391 = vpop.f32.mrf.mxu0
    %v392 = vadd.f32 0.0, %v391
    %393 = vmatmul.f32.gmra.mxu0 %v283
    %v394 = vpop.f32.mrf.mxu0
    %v395 = vadd.f32 0.0, %v394
    %396 = vdwg.mxu0
    %vm397 = vcmask 7168
    %398 = vst.msk [vmem:[%s5] sm:$0xff] %vm397, %v350
    %399 = vst.msk [vmem:[%s5 + $0x8] sm:$0xff] %vm397, %v353
    %400 = vst.msk [vmem:[%s5 + $0x10] sm:$0xff] %vm397, %v356
    %401 = vst.msk [vmem:[%s5 + $0x18] sm:$0xff] %vm397, %v359
    %402 = vst.msk [vmem:[%s5 + $0x20] sm:$0xff] %vm397, %v362
    %403 = vst.msk [vmem:[%s5 + $0x28] sm:$0xff] %vm397, %v365
    %404 = vst.msk [vmem:[%s5 + $0x30] sm:$0xff] %vm397, %v368
    %405 = vst.msk [vmem:[%s5 + $0x38] sm:$0xff] %vm397, %v371
    %406 = vst.msk [vmem:[%s5 + $0x40] sm:$0xff] %vm397, %v374
    %407 = vst.msk [vmem:[%s5 + $0x48] sm:$0xff] %vm397, %v377
    %408 = vst.msk [vmem:[%s5 + $0x50] sm:$0xff] %vm397, %v380
    %409 = vst.msk [vmem:[%s5 + $0x58] sm:$0xff] %vm397, %v383
    %410 = vst.msk [vmem:[%s5 + $0x60] sm:$0xff] %vm397, %v386
    %411 = vst.msk [vmem:[%s5 + $0x68] sm:$0xff] %vm397, %v389
    %412 = vst.msk [vmem:[%s5 + $0x70] sm:$0xff] %vm397, %v392
    %413 = vst.msk [vmem:[%s5 + $0x78] sm:$0xff] %vm397, %v395
    %v414 = vld [vmem:[%s3] sm:$0xff]
    %v415 = vld [vmem:[%s3 + $0x8] sm:$0xff]
    %v416 = vld [vmem:[%s3 + $0x10] sm:$0xff]
    %v417 = vld [vmem:[%s3 + $0x18] sm:$0xff]
    %v418 = vld [vmem:[%s3 + $0x20] sm:$0xff]
    %v419 = vld [vmem:[%s3 + $0x28] sm:$0xff]
    %v420 = vld [vmem:[%s3 + $0x30] sm:$0xff]
    %v421 = vld [vmem:[%s3 + $0x38] sm:$0xff]
    %v422 = vld [vmem:[%s3 + $0x40] sm:$0xff]
    %v423 = vld [vmem:[%s3 + $0x48] sm:$0xff]
    %v424 = vld [vmem:[%s3 + $0x50] sm:$0xff]
    %v425 = vld [vmem:[%s3 + $0x58] sm:$0xff]
    %v426 = vld [vmem:[%s3 + $0x60] sm:$0xff]
    %v427 = vld [vmem:[%s3 + $0x68] sm:$0xff]
    %v428 = vld [vmem:[%s3 + $0x70] sm:$0xff]
    %v429 = vld [vmem:[%s3 + $0x78] sm:$0xff]
    %430 = vmatpush.msra.mxu0 %v429
    %431 = vmatpush.msra.mxu0 %v428
    %432 = vmatpush.msra.mxu0 %v427
    %433 = vmatpush.msra.mxu0 %v426
    %434 = vmatpush.msra.mxu0 %v425
    %435 = vmatpush.msra.mxu0 %v424
    %436 = vmatpush.msra.mxu0 %v423
    %437 = vmatpush.msra.mxu0 %v422
    %438 = vmatpush.msra.mxu0 %v421
    %439 = vmatpush.msra.mxu0 %v420
    %440 = vmatpush.msra.mxu0 %v419
    %441 = vmatpush.msra.mxu0 %v418
    %442 = vmatpush.msra.mxu0 %v417
    %443 = vmatpush.msra.mxu0 %v416
    %444 = vmatpush.msra.mxu0 %v415
    %445 = vmatpush.msra.mxu0 %v414
    %446 = vmatmul.f32.gmra.mxu0 %v268
    %v447 = vpop.f32.mrf.mxu0
    %v448 = vadd.f32 0.0, %v447
    %449 = vmatmul.f32.gmra.mxu0 %v269
    %v450 = vpop.f32.mrf.mxu0
    %v451 = vadd.f32 0.0, %v450
    %452 = vmatmul.f32.gmra.mxu0 %v270
    %v453 = vpop.f32.mrf.mxu0
    %v454 = vadd.f32 0.0, %v453
    %455 = vmatmul.f32.gmra.mxu0 %v271
    %v456 = vpop.f32.mrf.mxu0
    %v457 = vadd.f32 0.0, %v456
    %458 = vmatmul.f32.gmra.mxu0 %v272
    %v459 = vpop.f32.mrf.mxu0
    %v460 = vadd.f32 0.0, %v459
    %461 = vmatmul.f32.gmra.mxu0 %v273
    %v462 = vpop.f32.mrf.mxu0
    %v463 = vadd.f32 0.0, %v462
    %464 = vmatmul.f32.gmra.mxu0 %v274
    %v465 = vpop.f32.mrf.mxu0
    %v466 = vadd.f32 0.0, %v465
    %467 = vmatmul.f32.gmra.mxu0 %v275
    %v468 = vpop.f32.mrf.mxu0
    %v469 = vadd.f32 0.0, %v468
    %470 = vmatmul.f32.gmra.mxu0 %v276
    %v471 = vpop.f32.mrf.mxu0
    %v472 = vadd.f32 0.0, %v471
    %473 = vmatmul.f32.gmra.mxu0 %v277
    %v474 = vpop.f32.mrf.mxu0
    %v475 = vadd.f32 0.0, %v474
    %476 = vmatmul.f32.gmra.mxu0 %v278
    %v477 = vpop.f32.mrf.mxu0
    %v478 = vadd.f32 0.0, %v477
    %479 = vmatmul.f32.gmra.mxu0 %v279
    %v480 = vpop.f32.mrf.mxu0
    %v481 = vadd.f32 0.0, %v480
    %482 = vmatmul.f32.gmra.mxu0 %v280
    %v483 = vpop.f32.mrf.mxu0
    %v484 = vadd.f32 0.0, %v483
    %485 = vmatmul.f32.gmra.mxu0 %v281
    %v486 = vpop.f32.mrf.mxu0
    %v487 = vadd.f32 0.0, %v486
    %488 = vmatmul.f32.gmra.mxu0 %v282
    %v489 = vpop.f32.mrf.mxu0
    %v490 = vadd.f32 0.0, %v489
    %491 = vmatmul.f32.gmra.mxu0 %v283
    %v492 = vpop.f32.mrf.mxu0
    %v493 = vadd.f32 0.0, %v492
    %494 = vdwg.mxu0
    %495 = vst.msk [vmem:[%s6] sm:$0xff] %vm397, %v448
    %496 = vst.msk [vmem:[%s6 + $0x8] sm:$0xff] %vm397, %v451
    %497 = vst.msk [vmem:[%s6 + $0x10] sm:$0xff] %vm397, %v454
    %498 = vst.msk [vmem:[%s6 + $0x18] sm:$0xff] %vm397, %v457
    %499 = vst.msk [vmem:[%s6 + $0x20] sm:$0xff] %vm397, %v460
    %500 = vst.msk [vmem:[%s6 + $0x28] sm:$0xff] %vm397, %v463
    %501 = vst.msk [vmem:[%s6 + $0x30] sm:$0xff] %vm397, %v466
    %502 = vst.msk [vmem:[%s6 + $0x38] sm:$0xff] %vm397, %v469
    %503 = vst.msk [vmem:[%s6 + $0x40] sm:$0xff] %vm397, %v472
    %504 = vst.msk [vmem:[%s6 + $0x48] sm:$0xff] %vm397, %v475
    %505 = vst.msk [vmem:[%s6 + $0x50] sm:$0xff] %vm397, %v478
    %506 = vst.msk [vmem:[%s6 + $0x58] sm:$0xff] %vm397, %v481
    %507 = vst.msk [vmem:[%s6 + $0x60] sm:$0xff] %vm397, %v484
    %508 = vst.msk [vmem:[%s6 + $0x68] sm:$0xff] %vm397, %v487
    %509 = vst.msk [vmem:[%s6 + $0x70] sm:$0xff] %vm397, %v490
    %510 = vst.msk [vmem:[%s6 + $0x78] sm:$0xff] %vm397, %v493
  $region25: #{gat_forward.6} parent=0 // pred_fallthru
    _
  // Predicated region
  $region26: #{gat_forward.6} parent=0 // pred_check
    _
  $region27: #{gat_forward.6} parent=0 // pred_check_branch
    %512 = sbr.rel (0) target = $region29
  $region28: #{gat_forward.6} parent=0 // pred_region
    _
  $region29: #{gat_forward.6} parent=0 // pred_fallthru
    _
  // Predicated region
  $region30: #{gat_forward.6} parent=0 // pred_check
    _
  $region31: #{gat_forward.6} parent=0 // pred_check_branch
    %514 = sbr.rel (0) target = $region33
  $region32: #{gat_forward.6} parent=0 // pred_region
    _
  $region33: #{gat_forward.6} parent=0 // pred_fallthru
    _
  // Predicated region
  $region34: #{gat_forward.6} parent=0 // pred_check
    _
  $region35: #{gat_forward.6} parent=0 // pred_check_branch
    %516 = sbr.rel (0) target = $region37
  $region36: #{gat_forward.6} parent=0 // pred_region
    _
  $region37: #{gat_forward.6} parent=0 // pred_fallthru
    _
  // Predicated region
  $region38: #{gat_forward.6} parent=0 // pred_check
    _
  $region39: #{gat_forward.6} parent=0 // pred_check_branch
    %518 = sbr.rel (0) target = $region41
  $region40: #{gat_forward.6} parent=0 // pred_region
    _
  $region41: #{gat_forward.6} parent=0 // pred_fallthru
    _
  // Predicated region
  $region42: #{gat_forward.6} parent=0 // pred_check
    _
  $region43: #{gat_forward.6} parent=0 // pred_check_branch
    %520 = sbr.rel (0) target = $region45
  $region44: #{gat_forward.6} parent=0 // pred_region
    _
  $region45: #{gat_forward.6} parent=0 // pred_fallthru
    _
  // Predicated region
  $region46: #{gat_forward.6} parent=0 // pred_check
    _
  $region47: #{gat_forward.6} parent=0 // pred_check_branch
    %522 = sbr.rel (0) target = $region49
  $region48: #{gat_forward.6} parent=0 // pred_region
    _
  $region49: #{gat_forward.6} parent=0 // pred_fallthru
    _

// kernel: gat_forward.4
$region0: #{gat_forward.4}
  #allocation0 [shape = 'u32[]', space=smem, size = 0x4, offset = 0x4, fixed_abs, tag = 'smem constant byte address 0x4 - core index']
  #allocation1 [shape = 'u32[72,128]{1,0:T(1,128)}', space=vmem, size = 0x9000, scoped, tag = 'internal scratch']
  #allocation2 [shape = 'f32[128,128]{1,0:T(8,128)}', space=vmem, size = 0x10000, scoped, tag = 'scratch operand']
  %s0 = inlined_call_operand.vmem [shape: bf16[128,128], index: 0, kind: input, shape index: {}]
  %s1 = inlined_call_operand.vmem [shape: bf16[128,128], index: 1, kind: input, shape index: {}]
  %s2 = inlined_call_operand.vmem [shape: f32[128,8], index: 2, kind: input, shape index: {}]
  %s3 = inlined_call_operand.vmem [shape: f32[128,8], index: 3, kind: input, shape index: {}]
  %s4 = inlined_call_operand.vmem [shape: bf16[128,128], index: 4, kind: output, shape index: {0}]
  %s5 = inlined_call_operand.vmem [shape: f32[128,8], index: 5, kind: output, shape index: {1}]
  %s6 = inlined_call_operand.vmem [shape: f32[128,8], index: 6, kind: output, shape index: {2}]
  %7 = xla_tuple %s4, %s5, %s6
  %s8 = sld [smem:[#allocation0]]
  $region50: #{gat_forward.4} parent=0
    _
  %s10 = ssub.s32 1, %s8
  %s11 = scalar_select 0, %s10, %s8
  // Predicated region
  $region2: #{gat_forward.4} parent=0 // pred_check
    _
  $region3: #{gat_forward.4} parent=0 // pred_check_branch
    %13 = sbr.rel (0) target = $region5
  $region4: #{gat_forward.4} parent=0 // pred_region
    _
  $region5: #{gat_forward.4} parent=0 // pred_fallthru
    _
  // Predicated region
  $region6: #{gat_forward.4} parent=0 // pred_check
    _
  $region7: #{gat_forward.4} parent=0 // pred_check_branch
    %15 = sbr.rel (0) target = $region9
  $region8: #{gat_forward.4} parent=0 // pred_region
    _
  $region9: #{gat_forward.4} parent=0 // pred_fallthru
    _
  // Predicated region
  $region10: #{gat_forward.4} parent=0 // pred_check
    _
  $region11: #{gat_forward.4} parent=0 // pred_check_branch
    %17 = sbr.rel (0) target = $region13
  $region12: #{gat_forward.4} parent=0 // pred_region
    _
  $region13: #{gat_forward.4} parent=0 // pred_fallthru
    _
  // Predicated region
  $region14: #{gat_forward.4} parent=0 // pred_check
    _
  $region15: #{gat_forward.4} parent=0 // pred_check_branch
    %19 = sbr.rel (0) target = $region17
  $region16: #{gat_forward.4} parent=0 // pred_region
    _
  $region17: #{gat_forward.4} parent=0 // pred_fallthru
    _
  %p20 = scmp.eq.s32.totalorder 0, 0
  // Predicated region
  $region18: #{gat_forward.4} parent=0 // pred_check
    %p21 = pneg %p20
  $region19: #{gat_forward.4} parent=0 // pred_check_branch
    %23 = sbr.rel (%p21) target = $region21
  $region20: #{gat_forward.4} parent=0 // pred_region
    %24 = vst [vmem:[#allocation2] sm:$0xff] 0.0
    %25 = vst [vmem:[#allocation2 + $0x8] sm:$0xff] 0.0
    %26 = vst [vmem:[#allocation2 + $0x10] sm:$0xff] 0.0
    %27 = vst [vmem:[#allocation2 + $0x18] sm:$0xff] 0.0
    %28 = vst [vmem:[#allocation2 + $0x20] sm:$0xff] 0.0
    %29 = vst [vmem:[#allocation2 + $0x28] sm:$0xff] 0.0
    %30 = vst [vmem:[#allocation2 + $0x30] sm:$0xff] 0.0
    %31 = vst [vmem:[#allocation2 + $0x38] sm:$0xff] 0.0
    %32 = vst [vmem:[#allocation2 + $0x40] sm:$0xff] 0.0
    %33 = vst [vmem:[#allocation2 + $0x48] sm:$0xff] 0.0
    %34 = vst [vmem:[#allocation2 + $0x50] sm:$0xff] 0.0
    %35 = vst [vmem:[#allocation2 + $0x58] sm:$0xff] 0.0
    %36 = vst [vmem:[#allocation2 + $0x60] sm:$0xff] 0.0
    %37 = vst [vmem:[#allocation2 + $0x68] sm:$0xff] 0.0
    %38 = vst [vmem:[#allocation2 + $0x70] sm:$0xff] 0.0
    %39 = vst [vmem:[#allocation2 + $0x78] sm:$0xff] 0.0
  $region21: #{gat_forward.4} parent=0 // pred_fallthru
    _
  %v40 = vld [vmem:[#allocation2] sm:$0xff]
  %v41 = vld [vmem:[#allocation2 + $0x8] sm:$0xff]
  %v42 = vld [vmem:[#allocation2 + $0x10] sm:$0xff]
  %v43 = vld [vmem:[#allocation2 + $0x18] sm:$0xff]
  %v44 = vld [vmem:[#allocation2 + $0x20] sm:$0xff]
  %v45 = vld [vmem:[#allocation2 + $0x28] sm:$0xff]
  %v46 = vld [vmem:[#allocation2 + $0x30] sm:$0xff]
  %v47 = vld [vmem:[#allocation2 + $0x38] sm:$0xff]
  %v48 = vld [vmem:[#allocation2 + $0x40] sm:$0xff]
  %v49 = vld [vmem:[#allocation2 + $0x48] sm:$0xff]
  %v50 = vld [vmem:[#allocation2 + $0x50] sm:$0xff]
  %v51 = vld [vmem:[#allocation2 + $0x58] sm:$0xff]
  %v52 = vld [vmem:[#allocation2 + $0x60] sm:$0xff]
  %v53 = vld [vmem:[#allocation2 + $0x68] sm:$0xff]
  %v54 = vld [vmem:[#allocation2 + $0x70] sm:$0xff]
  %v55 = vld [vmem:[#allocation2 + $0x78] sm:$0xff]
  %v56 = vld [vmem:[%s0] sm:$0xf]
  %v57 = vld [vmem:[%s0 + $0x4] sm:$0xf]
  %v58 = vld [vmem:[%s0 + $0x8] sm:$0xf]
  %v59 = vld [vmem:[%s0 + $0xc] sm:$0xf]
  %v60 = vld [vmem:[%s0 + $0x10] sm:$0xf]
  %v61 = vld [vmem:[%s0 + $0x14] sm:$0xf]
  %v62 = vld [vmem:[%s0 + $0x18] sm:$0xf]
  %v63 = vld [vmem:[%s0 + $0x1c] sm:$0xf]
  %v64 = vld [vmem:[%s0 + $0x20] sm:$0xf]
  %v65 = vld [vmem:[%s0 + $0x24] sm:$0xf]
  %v66 = vld [vmem:[%s0 + $0x28] sm:$0xf]
  %v67 = vld [vmem:[%s0 + $0x2c] sm:$0xf]
  %v68 = vld [vmem:[%s0 + $0x30] sm:$0xf]
  %v69 = vld [vmem:[%s0 + $0x34] sm:$0xf]
  %v70 = vld [vmem:[%s0 + $0x38] sm:$0xf]
  %v71 = vld [vmem:[%s0 + $0x3c] sm:$0xf]
  %v72 = vld [vmem:[%s1] sm:$0xf]
  %v73 = vld [vmem:[%s1 + $0x4] sm:$0xf]
  %v74 = vld [vmem:[%s1 + $0x8] sm:$0xf]
  %v75 = vld [vmem:[%s1 + $0xc] sm:$0xf]
  %v76 = vld [vmem:[%s1 + $0x10] sm:$0xf]
  %v77 = vld [vmem:[%s1 + $0x14] sm:$0xf]
  %v78 = vld [vmem:[%s1 + $0x18] sm:$0xf]
  %v79 = vld [vmem:[%s1 + $0x1c] sm:$0xf]
  %v80 = vld [vmem:[%s1 + $0x20] sm:$0xf]
  %v81 = vld [vmem:[%s1 + $0x24] sm:$0xf]
  %v82 = vld [vmem:[%s1 + $0x28] sm:$0xf]
  %v83 = vld [vmem:[%s1 + $0x2c] sm:$0xf]
  %v84 = vld [vmem:[%s1 + $0x30] sm:$0xf]
  %v85 = vld [vmem:[%s1 + $0x34] sm:$0xf]
  %v86 = vld [vmem:[%s1 + $0x38] sm:$0xf]
  %v87 = vld [vmem:[%s1 + $0x3c] sm:$0xf]
  %v104 = vunpack.c.l.b16 %v56
  %v105 = vunpack.c.l.b16 %v57
  %v106 = vunpack.c.l.b16 %v58
  %v107 = vunpack.c.l.b16 %v59
  %v108 = vunpack.c.l.b16 %v60
  %v109 = vunpack.c.l.b16 %v61
  %v110 = vunpack.c.l.b16 %v62
  %v111 = vunpack.c.l.b16 %v63
  %v112 = vunpack.c.l.b16 %v64
  %v113 = vunpack.c.l.b16 %v65
  %v114 = vunpack.c.l.b16 %v66
  %v115 = vunpack.c.l.b16 %v67
  %v116 = vunpack.c.l.b16 %v68
  %v117 = vunpack.c.l.b16 %v69
  %v118 = vunpack.c.l.b16 %v70
  %v119 = vunpack.c.l.b16 %v71
  %v120 = vpack.c.b16 %v105, %v104
  %v121 = vpack.c.b16 %v107, %v106
  %v122 = vpack.c.b16 %v109, %v108
  %v123 = vpack.c.b16 %v111, %v110
  %v124 = vpack.c.b16 %v113, %v112
  %v125 = vpack.c.b16 %v115, %v114
  %v126 = vpack.c.b16 %v117, %v116
  %v127 = vpack.c.b16 %v119, %v118
  %v152 = vunpack.c.l.b16 %v72
  %v153 = vunpack.c.l.b16 %v73
  %v154 = vunpack.c.l.b16 %v74
  %v155 = vunpack.c.l.b16 %v75
  %v156 = vunpack.c.l.b16 %v76
  %v157 = vunpack.c.l.b16 %v77
  %v158 = vunpack.c.l.b16 %v78
  %v159 = vunpack.c.l.b16 %v79
  %v160 = vunpack.c.l.b16 %v80
  %v161 = vunpack.c.l.b16 %v81
  %v162 = vunpack.c.l.b16 %v82
  %v163 = vunpack.c.l.b16 %v83
  %v164 = vunpack.c.l.b16 %v84
  %v165 = vunpack.c.l.b16 %v85
  %v166 = vunpack.c.l.b16 %v86
  %v167 = vunpack.c.l.b16 %v87
  %v168 = vpack.c.b16 %v153, %v152
  %v169 = vpack.c.b16 %v155, %v154
  %v170 = vpack.c.b16 %v157, %v156
  %v171 = vpack.c.b16 %v159, %v158
  %v172 = vpack.c.b16 %v161, %v160
  %v173 = vpack.c.b16 %v163, %v162
  %v174 = vpack.c.b16 %v165, %v164
  %v175 = vpack.c.b16 %v167, %v166
  %184 = vmatpush.bf16.msra.mxu0 %v175
  %185 = vmatpush.bf16.msra.mxu0 %v174
  %186 = vmatpush.bf16.msra.mxu0 %v173
  %187 = vmatpush.bf16.msra.mxu0 %v172
  %188 = vmatpush.bf16.msra.mxu0 %v171
  %189 = vmatpush.bf16.msra.mxu0 %v170
  %190 = vmatpush.bf16.msra.mxu0 %v169
  %191 = vmatpush.bf16.msra.mxu0 %v168
  %192 = vmatmul.bf16.gmra.mxu0 %v120
  %v193 = vpop.f32.mrf.mxu0
  %v194 = vadd.f32 0.0, %v193
  %v195 = vpop.f32.mrf.mxu0
  %v196 = vadd.f32 0.0, %v195
  %197 = vmatmul.bf16.gmra.mxu0 %v121
  %v198 = vpop.f32.mrf.mxu0
  %v199 = vadd.f32 0.0, %v198
  %v200 = vpop.f32.mrf.mxu0
  %v201 = vadd.f32 0.0, %v200
  %202 = vmatmul.bf16.gmra.mxu0 %v122
  %v203 = vpop.f32.mrf.mxu0
  %v204 = vadd.f32 0.0, %v203
  %v205 = vpop.f32.mrf.mxu0
  %v206 = vadd.f32 0.0, %v205
  %207 = vmatmul.bf16.gmra.mxu0 %v123
  %v208 = vpop.f32.mrf.mxu0
  %v209 = vadd.f32 0.0, %v208
  %v210 = vpop.f32.mrf.mxu0
  %v211 = vadd.f32 0.0, %v210
  %212 = vmatmul.bf16.gmra.mxu0 %v124
  %v213 = vpop.f32.mrf.mxu0
  %v214 = vadd.f32 0.0, %v213
  %v215 = vpop.f32.mrf.mxu0
  %v216 = vadd.f32 0.0, %v215
  %217 = vmatmul.bf16.gmra.mxu0 %v125
  %v218 = vpop.f32.mrf.mxu0
  %v219 = vadd.f32 0.0, %v218
  %v220 = vpop.f32.mrf.mxu0
  %v221 = vadd.f32 0.0, %v220
  %222 = vmatmul.bf16.gmra.mxu0 %v126
  %v223 = vpop.f32.mrf.mxu0
  %v224 = vadd.f32 0.0, %v223
  %v225 = vpop.f32.mrf.mxu0
  %v226 = vadd.f32 0.0, %v225
  %227 = vmatmul.bf16.gmra.mxu0 %v127
  %v228 = vpop.f32.mrf.mxu0
  %v229 = vadd.f32 0.0, %v228
  %v230 = vpop.f32.mrf.mxu0
  %v231 = vadd.f32 0.0, %v230
  %232 = vdwg.mxu0
  %v233 = vadd.f32 %v40, %v194
  %v234 = vadd.f32 %v41, %v196
  %v235 = vadd.f32 %v42, %v199
  %v236 = vadd.f32 %v43, %v201
  %v237 = vadd.f32 %v44, %v204
  %v238 = vadd.f32 %v45, %v206
  %v239 = vadd.f32 %v46, %v209
  %v240 = vadd.f32 %v47, %v211
  %v241 = vadd.f32 %v48, %v214
  %v242 = vadd.f32 %v49, %v216
  %v243 = vadd.f32 %v50, %v219
  %v244 = vadd.f32 %v51, %v221
  %v245 = vadd.f32 %v52, %v224
  %v246 = vadd.f32 %v53, %v226
  %v247 = vadd.f32 %v54, %v229
  %v248 = vadd.f32 %v55, %v231
  %249 = vst [vmem:[#allocation2] sm:$0xff] %v233
  %250 = vst [vmem:[#allocation2 + $0x8] sm:$0xff] %v234
  %251 = vst [vmem:[#allocation2 + $0x10] sm:$0xff] %v235
  %252 = vst [vmem:[#allocation2 + $0x18] sm:$0xff] %v236
  %253 = vst [vmem:[#allocation2 + $0x20] sm:$0xff] %v237
  %254 = vst [vmem:[#allocation2 + $0x28] sm:$0xff] %v238
  %255 = vst [vmem:[#allocation2 + $0x30] sm:$0xff] %v239
  %256 = vst [vmem:[#allocation2 + $0x38] sm:$0xff] %v240
  %257 = vst [vmem:[#allocation2 + $0x40] sm:$0xff] %v241
  %258 = vst [vmem:[#allocation2 + $0x48] sm:$0xff] %v242
  %259 = vst [vmem:[#allocation2 + $0x50] sm:$0xff] %v243
  %260 = vst [vmem:[#allocation2 + $0x58] sm:$0xff] %v244
  %261 = vst [vmem:[#allocation2 + $0x60] sm:$0xff] %v245
  %262 = vst [vmem:[#allocation2 + $0x68] sm:$0xff] %v246
  %263 = vst [vmem:[#allocation2 + $0x70] sm:$0xff] %v247
  %264 = vst [vmem:[#allocation2 + $0x78] sm:$0xff] %v248
  // Predicated region
  $region22: #{gat_forward.4} parent=0 // pred_check
    %p265 = pneg %p20
  $region23: #{gat_forward.4} parent=0 // pred_check_branch
    %267 = sbr.rel (%p265) target = $region25
  $region24: #{gat_forward.4} parent=0 // pred_region
    %v268 = vld [vmem:[#allocation2] sm:$0xff]
    %v269 = vld [vmem:[#allocation2 + $0x8] sm:$0xff]
    %v270 = vld [vmem:[#allocation2 + $0x10] sm:$0xff]
    %v271 = vld [vmem:[#allocation2 + $0x18] sm:$0xff]
    %v272 = vld [vmem:[#allocation2 + $0x20] sm:$0xff]
    %v273 = vld [vmem:[#allocation2 + $0x28] sm:$0xff]
    %v274 = vld [vmem:[#allocation2 + $0x30] sm:$0xff]
    %v275 = vld [vmem:[#allocation2 + $0x38] sm:$0xff]
    %v276 = vld [vmem:[#allocation2 + $0x40] sm:$0xff]
    %v277 = vld [vmem:[#allocation2 + $0x48] sm:$0xff]
    %v278 = vld [vmem:[#allocation2 + $0x50] sm:$0xff]
    %v279 = vld [vmem:[#allocation2 + $0x58] sm:$0xff]
    %v280 = vld [vmem:[#allocation2 + $0x60] sm:$0xff]
    %v281 = vld [vmem:[#allocation2 + $0x68] sm:$0xff]
    %v282 = vld [vmem:[#allocation2 + $0x70] sm:$0xff]
    %v283 = vld [vmem:[#allocation2 + $0x78] sm:$0xff]
    %v284 = vpack.c.bf16 %v268, %v268
    %v285 = vpack.c.bf16 %v269, %v269
    %v286 = vpack.c.bf16 %v270, %v270
    %v287 = vpack.c.bf16 %v271, %v271
    %v288 = vpack.c.bf16 %v272, %v272
    %v289 = vpack.c.bf16 %v273, %v273
    %v290 = vpack.c.bf16 %v274, %v274
    %v291 = vpack.c.bf16 %v275, %v275
    %v292 = vpack.c.bf16 %v276, %v276
    %v293 = vpack.c.bf16 %v277, %v277
    %v294 = vpack.c.bf16 %v278, %v278
    %v295 = vpack.c.bf16 %v279, %v279
    %v296 = vpack.c.bf16 %v280, %v280
    %v297 = vpack.c.bf16 %v281, %v281
    %v298 = vpack.c.bf16 %v282, %v282
    %v299 = vpack.c.bf16 %v283, %v283
    %300 = vst [vmem:[%s4] sm:$0xf] %v284
    %301 = vst [vmem:[%s4 + $0x4] sm:$0xf] %v285
    %302 = vst [vmem:[%s4 + $0x8] sm:$0xf] %v286
    %303 = vst [vmem:[%s4 + $0xc] sm:$0xf] %v287
    %304 = vst [vmem:[%s4 + $0x10] sm:$0xf] %v288
    %305 = vst [vmem:[%s4 + $0x14] sm:$0xf] %v289
    %306 = vst [vmem:[%s4 + $0x18] sm:$0xf] %v290
    %307 = vst [vmem:[%s4 + $0x1c] sm:$0xf] %v291
    %308 = vst [vmem:[%s4 + $0x20] sm:$0xf] %v292
    %309 = vst [vmem:[%s4 + $0x24] sm:$0xf] %v293
    %310 = vst [vmem:[%s4 + $0x28] sm:$0xf] %v294
    %311 = vst [vmem:[%s4 + $0x2c] sm:$0xf] %v295
    %312 = vst [vmem:[%s4 + $0x30] sm:$0xf] %v296
    %313 = vst [vmem:[%s4 + $0x34] sm:$0xf] %v297
    %314 = vst [vmem:[%s4 + $0x38] sm:$0xf] %v298
    %315 = vst [vmem:[%s4 + $0x3c] sm:$0xf] %v299
    %v316 = vld [vmem:[%s2] sm:$0xff]
    %v317 = vld [vmem:[%s2 + $0x8] sm:$0xff]
    %v318 = vld [vmem:[%s2 + $0x10] sm:$0xff]
    %v319 = vld [vmem:[%s2 + $0x18] sm:$0xff]
    %v320 = vld [vmem:[%s2 + $0x20] sm:$0xff]
    %v321 = vld [vmem:[%s2 + $0x28] sm:$0xff]
    %v322 = vld [vmem:[%s2 + $0x30] sm:$0xff]
    %v323 = vld [vmem:[%s2 + $0x38] sm:$0xff]
    %v324 = vld [vmem:[%s2 + $0x40] sm:$0xff]
    %v325 = vld [vmem:[%s2 + $0x48] sm:$0xff]
    %v326 = vld [vmem:[%s2 + $0x50] sm:$0xff]
    %v327 = vld [vmem:[%s2 + $0x58] sm:$0xff]
    %v328 = vld [vmem:[%s2 + $0x60] sm:$0xff]
    %v329 = vld [vmem:[%s2 + $0x68] sm:$0xff]
    %v330 = vld [vmem:[%s2 + $0x70] sm:$0xff]
    %v331 = vld [vmem:[%s2 + $0x78] sm:$0xff]
    %332 = vmatpush.msra.mxu0 %v331
    %333 = vmatpush.msra.mxu0 %v330
    %334 = vmatpush.msra.mxu0 %v329
    %335 = vmatpush.msra.mxu0 %v328
    %336 = vmatpush.msra.mxu0 %v327
    %337 = vmatpush.msra.mxu0 %v326
    %338 = vmatpush.msra.mxu0 %v325
    %339 = vmatpush.msra.mxu0 %v324
    %340 = vmatpush.msra.mxu0 %v323
    %341 = vmatpush.msra.mxu0 %v322
    %342 = vmatpush.msra.mxu0 %v321
    %343 = vmatpush.msra.mxu0 %v320
    %344 = vmatpush.msra.mxu0 %v319
    %345 = vmatpush.msra.mxu0 %v318
    %346 = vmatpush.msra.mxu0 %v317
    %347 = vmatpush.msra.mxu0 %v316
    %348 = vmatmul.f32.gmra.mxu0 %v268
    %v349 = vpop.f32.mrf.mxu0
    %v350 = vadd.f32 0.0, %v349
    %351 = vmatmul.f32.gmra.mxu0 %v269
    %v352 = vpop.f32.mrf.mxu0
    %v353 = vadd.f32 0.0, %v352
    %354 = vmatmul.f32.gmra.mxu0 %v270
    %v355 = vpop.f32.mrf.mxu0
    %v356 = vadd.f32 0.0, %v355
    %357 = vmatmul.f32.gmra.mxu0 %v271
    %v358 = vpop.f32.mrf.mxu0
    %v359 = vadd.f32 0.0, %v358
    %360 = vmatmul.f32.gmra.mxu0 %v272
    %v361 = vpop.f32.mrf.mxu0
    %v362 = vadd.f32 0.0, %v361
    %363 = vmatmul.f32.gmra.mxu0 %v273
    %v364 = vpop.f32.mrf.mxu0
    %v365 = vadd.f32 0.0, %v364
    %366 = vmatmul.f32.gmra.mxu0 %v274
    %v367 = vpop.f32.mrf.mxu0
    %v368 = vadd.f32 0.0, %v367
    %369 = vmatmul.f32.gmra.mxu0 %v275
    %v370 = vpop.f32.mrf.mxu0
    %v371 = vadd.f32 0.0, %v370
    %372 = vmatmul.f32.gmra.mxu0 %v276
    %v373 = vpop.f32.mrf.mxu0
    %v374 = vadd.f32 0.0, %v373
    %375 = vmatmul.f32.gmra.mxu0 %v277
    %v376 = vpop.f32.mrf.mxu0
    %v377 = vadd.f32 0.0, %v376
    %378 = vmatmul.f32.gmra.mxu0 %v278
    %v379 = vpop.f32.mrf.mxu0
    %v380 = vadd.f32 0.0, %v379
    %381 = vmatmul.f32.gmra.mxu0 %v279
    %v382 = vpop.f32.mrf.mxu0
    %v383 = vadd.f32 0.0, %v382
    %384 = vmatmul.f32.gmra.mxu0 %v280
    %v385 = vpop.f32.mrf.mxu0
    %v386 = vadd.f32 0.0, %v385
    %387 = vmatmul.f32.gmra.mxu0 %v281
    %v388 = vpop.f32.mrf.mxu0
    %v389 = vadd.f32 0.0, %v388
    %390 = vmatmul.f32.gmra.mxu0 %v282
    %v391 = vpop.f32.mrf.mxu0
    %v392 = vadd.f32 0.0, %v391
    %393 = vmatmul.f32.gmra.mxu0 %v283
    %v394 = vpop.f32.mrf.mxu0
    %v395 = vadd.f32 0.0, %v394
    %396 = vdwg.mxu0
    %vm397 = vcmask 64512
    %398 = vst.msk [vmem:[%s5] sm:$0xff] %vm397, %v350
    %399 = vst.msk [vmem:[%s5 + $0x8] sm:$0xff] %vm397, %v353
    %400 = vst.msk [vmem:[%s5 + $0x10] sm:$0xff] %vm397, %v356
    %401 = vst.msk [vmem:[%s5 + $0x18] sm:$0xff] %vm397, %v359
    %402 = vst.msk [vmem:[%s5 + $0x20] sm:$0xff] %vm397, %v362
    %403 = vst.msk [vmem:[%s5 + $0x28] sm:$0xff] %vm397, %v365
    %404 = vst.msk [vmem:[%s5 + $0x30] sm:$0xff] %vm397, %v368
    %405 = vst.msk [vmem:[%s5 + $0x38] sm:$0xff] %vm397, %v371
    %406 = vst.msk [vmem:[%s5 + $0x40] sm:$0xff] %vm397, %v374
    %407 = vst.msk [vmem:[%s5 + $0x48] sm:$0xff] %vm397, %v377
    %408 = vst.msk [vmem:[%s5 + $0x50] sm:$0xff] %vm397, %v380
    %409 = vst.msk [vmem:[%s5 + $0x58] sm:$0xff] %vm397, %v383
    %410 = vst.msk [vmem:[%s5 + $0x60] sm:$0xff] %vm397, %v386
    %411 = vst.msk [vmem:[%s5 + $0x68] sm:$0xff] %vm397, %v389
    %412 = vst.msk [vmem:[%s5 + $0x70] sm:$0xff] %vm397, %v392
    %413 = vst.msk [vmem:[%s5 + $0x78] sm:$0xff] %vm397, %v395
    %v414 = vld [vmem:[%s3] sm:$0xff]
    %v415 = vld [vmem:[%s3 + $0x8] sm:$0xff]
    %v416 = vld [vmem:[%s3 + $0x10] sm:$0xff]
    %v417 = vld [vmem:[%s3 + $0x18] sm:$0xff]
    %v418 = vld [vmem:[%s3 + $0x20] sm:$0xff]
    %v419 = vld [vmem:[%s3 + $0x28] sm:$0xff]
    %v420 = vld [vmem:[%s3 + $0x30] sm:$0xff]
    %v421 = vld [vmem:[%s3 + $0x38] sm:$0xff]
    %v422 = vld [vmem:[%s3 + $0x40] sm:$0xff]
    %v423 = vld [vmem:[%s3 + $0x48] sm:$0xff]
    %v424 = vld [vmem:[%s3 + $0x50] sm:$0xff]
    %v425 = vld [vmem:[%s3 + $0x58] sm:$0xff]
    %v426 = vld [vmem:[%s3 + $0x60] sm:$0xff]
    %v427 = vld [vmem:[%s3 + $0x68] sm:$0xff]
    %v428 = vld [vmem:[%s3 + $0x70] sm:$0xff]
    %v429 = vld [vmem:[%s3 + $0x78] sm:$0xff]
    %430 = vmatpush.msra.mxu0 %v429
    %431 = vmatpush.msra.mxu0 %v428
    %432 = vmatpush.msra.mxu0 %v427
    %433 = vmatpush.msra.mxu0 %v426
    %434 = vmatpush.msra.mxu0 %v425
    %435 = vmatpush.msra.mxu0 %v424
    %436 = vmatpush.msra.mxu0 %v423
    %437 = vmatpush.msra.mxu0 %v422
    %438 = vmatpush.msra.mxu0 %v421
    %439 = vmatpush.msra.mxu0 %v420
    %440 = vmatpush.msra.mxu0 %v419
    %441 = vmatpush.msra.mxu0 %v418
    %442 = vmatpush.msra.mxu0 %v417
    %443 = vmatpush.msra.mxu0 %v416
    %444 = vmatpush.msra.mxu0 %v415
    %445 = vmatpush.msra.mxu0 %v414
    %446 = vmatmul.f32.gmra.mxu0 %v268
    %v447 = vpop.f32.mrf.mxu0
    %v448 = vadd.f32 0.0, %v447
    %449 = vmatmul.f32.gmra.mxu0 %v269
    %v450 = vpop.f32.mrf.mxu0
    %v451 = vadd.f32 0.0, %v450
    %452 = vmatmul.f32.gmra.mxu0 %v270
    %v453 = vpop.f32.mrf.mxu0
    %v454 = vadd.f32 0.0, %v453
    %455 = vmatmul.f32.gmra.mxu0 %v271
    %v456 = vpop.f32.mrf.mxu0
    %v457 = vadd.f32 0.0, %v456
    %458 = vmatmul.f32.gmra.mxu0 %v272
    %v459 = vpop.f32.mrf.mxu0
    %v460 = vadd.f32 0.0, %v459
    %461 = vmatmul.f32.gmra.mxu0 %v273
    %v462 = vpop.f32.mrf.mxu0
    %v463 = vadd.f32 0.0, %v462
    %464 = vmatmul.f32.gmra.mxu0 %v274
    %v465 = vpop.f32.mrf.mxu0
    %v466 = vadd.f32 0.0, %v465
    %467 = vmatmul.f32.gmra.mxu0 %v275
    %v468 = vpop.f32.mrf.mxu0
    %v469 = vadd.f32 0.0, %v468
    %470 = vmatmul.f32.gmra.mxu0 %v276
    %v471 = vpop.f32.mrf.mxu0
    %v472 = vadd.f32 0.0, %v471
    %473 = vmatmul.f32.gmra.mxu0 %v277
    %v474 = vpop.f32.mrf.mxu0
    %v475 = vadd.f32 0.0, %v474
    %476 = vmatmul.f32.gmra.mxu0 %v278
    %v477 = vpop.f32.mrf.mxu0
    %v478 = vadd.f32 0.0, %v477
    %479 = vmatmul.f32.gmra.mxu0 %v279
    %v480 = vpop.f32.mrf.mxu0
    %v481 = vadd.f32 0.0, %v480
    %482 = vmatmul.f32.gmra.mxu0 %v280
    %v483 = vpop.f32.mrf.mxu0
    %v484 = vadd.f32 0.0, %v483
    %485 = vmatmul.f32.gmra.mxu0 %v281
    %v486 = vpop.f32.mrf.mxu0
    %v487 = vadd.f32 0.0, %v486
    %488 = vmatmul.f32.gmra.mxu0 %v282
    %v489 = vpop.f32.mrf.mxu0
    %v490 = vadd.f32 0.0, %v489
    %491 = vmatmul.f32.gmra.mxu0 %v283
    %v492 = vpop.f32.mrf.mxu0
    %v493 = vadd.f32 0.0, %v492
    %494 = vdwg.mxu0
    %495 = vst.msk [vmem:[%s6] sm:$0xff] %vm397, %v448
    %496 = vst.msk [vmem:[%s6 + $0x8] sm:$0xff] %vm397, %v451
    %497 = vst.msk [vmem:[%s6 + $0x10] sm:$0xff] %vm397, %v454
    %498 = vst.msk [vmem:[%s6 + $0x18] sm:$0xff] %vm397, %v457
    %499 = vst.msk [vmem:[%s6 + $0x20] sm:$0xff] %vm397, %v460
    %500 = vst.msk [vmem:[%s6 + $0x28] sm:$0xff] %vm397, %v463
    %501 = vst.msk [vmem:[%s6 + $0x30] sm:$0xff] %vm397, %v466
    %502 = vst.msk [vmem:[%s6 + $0x38] sm:$0xff] %vm397, %v469
    %503 = vst.msk [vmem:[%s6 + $0x40] sm:$0xff] %vm397, %v472
    %504 = vst.msk [vmem:[%s6 + $0x48] sm:$0xff] %vm397, %v475
    %505 = vst.msk [vmem:[%s6 + $0x50] sm:$0xff] %vm397, %v478
    %506 = vst.msk [vmem:[%s6 + $0x58] sm:$0xff] %vm397, %v481
    %507 = vst.msk [vmem:[%s6 + $0x60] sm:$0xff] %vm397, %v484
    %508 = vst.msk [vmem:[%s6 + $0x68] sm:$0xff] %vm397, %v487
    %509 = vst.msk [vmem:[%s6 + $0x70] sm:$0xff] %vm397, %v490
    %510 = vst.msk [vmem:[%s6 + $0x78] sm:$0xff] %vm397, %v493
  $region25: #{gat_forward.4} parent=0 // pred_fallthru
    _
  // Predicated region
  $region26: #{gat_forward.4} parent=0 // pred_check
    _
  $region27: #{gat_forward.4} parent=0 // pred_check_branch
    %512 = sbr.rel (0) target = $region29
  $region28: #{gat_forward.4} parent=0 // pred_region
    _
  $region29: #{gat_forward.4} parent=0 // pred_fallthru
    _
  // Predicated region
  $region30: #{gat_forward.4} parent=0 // pred_check
    _
  $region31: #{gat_forward.4} parent=0 // pred_check_branch
    %514 = sbr.rel (0) target = $region33
  $region32: #{gat_forward.4} parent=0 // pred_region
    _
  $region33: #{gat_forward.4} parent=0 // pred_fallthru
    _
  // Predicated region
  $region34: #{gat_forward.4} parent=0 // pred_check
    _
  $region35: #{gat_forward.4} parent=0 // pred_check_branch
    %516 = sbr.rel (0) target = $region37
  $region36: #{gat_forward.4} parent=0 // pred_region
    _
  $region37: #{gat_forward.4} parent=0 // pred_fallthru
    _
  // Predicated region
  $region38: #{gat_forward.4} parent=0 // pred_check
    _
  $region39: #{gat_forward.4} parent=0 // pred_check_branch
    %518 = sbr.rel (0) target = $region41
  $region40: #{gat_forward.4} parent=0 // pred_region
    _
  $region41: #{gat_forward.4} parent=0 // pred_fallthru
    _
  // Predicated region
  $region42: #{gat_forward.4} parent=0 // pred_check
    _
  $region43: #{gat_forward.4} parent=0 // pred_check_branch
    %520 = sbr.rel (0) target = $region45
  $region44: #{gat_forward.4} parent=0 // pred_region
    _
  $region45: #{gat_forward.4} parent=0 // pred_fallthru
    _
  // Predicated region
  $region46: #{gat_forward.4} parent=0 // pred_check
    _
  $region47: #{gat_forward.4} parent=0 // pred_check_branch
    %522 = sbr.rel (0) target = $region49
  $region48: #{gat_forward.4} parent=0 // pred_region
    _
  $region49: #{gat_forward.4} parent=0 // pred_fallthru
    _

// kernel: gat_forward.7
$region0: #{gat_forward.7}
  #allocation0 [shape = 'u32[]', space=smem, size = 0x4, offset = 0x4, fixed_abs, tag = 'smem constant byte address 0x4 - core index']
  #allocation1 [shape = 'u32[72,128]{1,0:T(1,128)}', space=vmem, size = 0x9000, scoped, tag = 'internal scratch']
  #allocation2 [shape = 'f32[128,1]{1,0:T(8,128)}', space=vmem, size = 0x10000, scoped, tag = 'scratch operand']
  #allocation3 [shape = 'f32[128,1]{1,0:T(8,128)}', space=vmem, size = 0x10000, scoped, tag = 'scratch operand']
  #allocation4 [shape = 'f32[128,6]{1,0:T(8,128)}', space=vmem, size = 0x10000, scoped, tag = 'scratch operand']
  #allocation5 [shape = 's32[1]{0}', space=sflag, size = 0x4, scoped, tag = 'scoped memory for gat_forward.7']
  #allocation6 [shape = 's32[1,1]{1,0:T(1,128)S(6)}', space=smem, size = 0x200, scoped, tag = 'prefetched SMEM operand 0']
  %s0 = inlined_call_operand.<no memory space> [shape: s32[1,1], index: 0, kind: input, shape index: {}]
  %s1 = inlined_call_operand.vmem [shape: f32[128,1], index: 1, kind: input, shape index: {}]
  %s2 = inlined_call_operand.vmem [shape: f32[1,128], index: 2, kind: input, shape index: {}]
  %s3 = inlined_call_operand.vmem [shape: bf16[128,128], index: 3, kind: input, shape index: {}]
  %s4 = inlined_call_operand.vmem [shape: bf16[128,128], index: 4, kind: input, shape index: {}]
  %s5 = inlined_call_operand.vmem [shape: f32[1,6], index: 5, kind: input, shape index: {}]
  %s6 = inlined_call_operand.vmem [shape: f32[128,128], index: 6, kind: output, shape index: {}]
  %s7 = sld [smem:[#allocation0]]
  $region42: #{gat_forward.7} parent=0
    _
  %s9 = ssub.s32 1, %s7
  %s10 = scalar_select 0, %s9, %s7
  %11 = sst [smem:[#allocation6]] %s0
  // Predicated region
  $region2: #{gat_forward.7} parent=0 // pred_check
    _
  $region3: #{gat_forward.7} parent=0 // pred_check_branch
    %13 = sbr.rel (0) target = $region5
  $region4: #{gat_forward.7} parent=0 // pred_region
    _
  $region5: #{gat_forward.7} parent=0 // pred_fallthru
    _
  // Predicated region
  $region6: #{gat_forward.7} parent=0 // pred_check
    _
  $region7: #{gat_forward.7} parent=0 // pred_check_branch
    %15 = sbr.rel (0) target = $region9
  $region8: #{gat_forward.7} parent=0 // pred_region
    _
  $region9: #{gat_forward.7} parent=0 // pred_fallthru
    _
  // Predicated region
  $region10: #{gat_forward.7} parent=0 // pred_check
    _
  $region11: #{gat_forward.7} parent=0 // pred_check_branch
    %17 = sbr.rel (0) target = $region13
  $region12: #{gat_forward.7} parent=0 // pred_region
    %s18 = sadd.s32 0, 0
    %s19 = smul.u32 %s18, 128
    %s20 = sadd.s32 %s19, 0
    %s21 = sld [smem:[#allocation6 + %s20]]
    %p22 = scmp.gt.s32.totalorder %s21, 0
    %s23 = scalar_select %p22, 0, 0
    %p24 = scmp.lt.s32.totalorder %s23, 0
    %s25 = scalar_select %p24, %s23, 0
    %s26 = smul.addr %s25, 4
    %s27 = scalar_lea.vmem %s3, %s26
    %s28 = sadd.s32 0, 0
    %s29 = smul.u32 %s28, 128
    %s30 = sadd.s32 %s29, 0
    %s31 = sld [smem:[#allocation6 + %s30]]
    %p32 = scmp.gt.s32.totalorder %s31, 0
    %s33 = scalar_select %p32, 0, 0
  $region13: #{gat_forward.7} parent=0 // pred_fallthru
    _
  // Predicated region
  $region14: #{gat_forward.7} parent=0 // pred_check
    _
  $region15: #{gat_forward.7} parent=0 // pred_check_branch
    %35 = sbr.rel (0) target = $region17
  $region16: #{gat_forward.7} parent=0 // pred_region
    _
  $region17: #{gat_forward.7} parent=0 // pred_fallthru
    _
  // Predicated region
  $region18: #{gat_forward.7} parent=0 // pred_check
    _
  $region19: #{gat_forward.7} parent=0 // pred_check_branch
    %37 = sbr.rel (0) target = $region21
  $region20: #{gat_forward.7} parent=0 // pred_region
    _
  $region21: #{gat_forward.7} parent=0 // pred_fallthru
    _
  %s38 = sadd.s32 0, 0
  %s39 = smul.u32 %s38, 128
  %s40 = sadd.s32 %s39, 0
  %s41 = sld [smem:[#allocation6 + %s40]]
  %p42 = scmp.gt.s32.totalorder %s41, 0
  %s43 = scalar_select %p42, 0, 0
  %p44 = scmp.lt.s32.totalorder %s43, 0
  %s45 = scalar_select %p44, %s43, 0
  %s46 = smul.addr %s45, 4
  %s47 = scalar_lea.vmem %s3, %s46
  %s48 = sadd.s32 0, 0
  %s49 = smul.u32 %s48, 128
  %s50 = sadd.s32 %s49, 0
  %s51 = sld [smem:[#allocation6 + %s50]]
  %p52 = scmp.gt.s32.totalorder %s51, 0
  %s53 = scalar_select %p52, 0, 0
  %p54 = scmp.lt.s32.totalorder %s53, 0
  %s55 = scalar_select %p54, %s53, 0
  %s56 = smul.addr %s55, 4
  %s57 = scalar_lea.vmem %s3, %s56
  %s58 = sadd.s32 0, 0
  %s59 = smul.u32 %s58, 128
  %s60 = sadd.s32 %s59, 0
  %s61 = sld [smem:[#allocation6 + %s60]]
  %p62 = scmp.gt.s32.totalorder %s61, 0
  %s63 = scalar_select %p62, 0, 0
  %p64 = scmp.eq.s32.totalorder 0, 0
  // Predicated region
  $region22: #{gat_forward.7} parent=0 // pred_check
    %p65 = pneg %p64
  $region23: #{gat_forward.7} parent=0 // pred_check_branch
    %67 = sbr.rel (%p65) target = $region25
  $region24: #{gat_forward.7} parent=0 // pred_region
    %vm68 = vcmask 7168
    %69 = vst.msk [vmem:[#allocation2] sm:$0xff] %vm68, -1e+30
    %70 = vst.msk [vmem:[#allocation2 + $0x8] sm:$0xff] %vm68, -1e+30
    %71 = vst.msk [vmem:[#allocation2 + $0x10] sm:$0xff] %vm68, -1e+30
    %72 = vst.msk [vmem:[#allocation2 + $0x18] sm:$0xff] %vm68, -1e+30
    %73 = vst.msk [vmem:[#allocation2 + $0x20] sm:$0xff] %vm68, -1e+30
    %74 = vst.msk [vmem:[#allocation2 + $0x28] sm:$0xff] %vm68, -1e+30
    %75 = vst.msk [vmem:[#allocation2 + $0x30] sm:$0xff] %vm68, -1e+30
    %76 = vst.msk [vmem:[#allocation2 + $0x38] sm:$0xff] %vm68, -1e+30
    %77 = vst.msk [vmem:[#allocation2 + $0x40] sm:$0xff] %vm68, -1e+30
    %78 = vst.msk [vmem:[#allocation2 + $0x48] sm:$0xff] %vm68, -1e+30
    %79 = vst.msk [vmem:[#allocation2 + $0x50] sm:$0xff] %vm68, -1e+30
    %80 = vst.msk [vmem:[#allocation2 + $0x58] sm:$0xff] %vm68, -1e+30
    %81 = vst.msk [vmem:[#allocation2 + $0x60] sm:$0xff] %vm68, -1e+30
    %82 = vst.msk [vmem:[#allocation2 + $0x68] sm:$0xff] %vm68, -1e+30
    %83 = vst.msk [vmem:[#allocation2 + $0x70] sm:$0xff] %vm68, -1e+30
    %84 = vst.msk [vmem:[#allocation2 + $0x78] sm:$0xff] %vm68, -1e+30
    %85 = vst.msk [vmem:[#allocation3] sm:$0xff] %vm68, 0.0
    %86 = vst.msk [vmem:[#allocation3 + $0x8] sm:$0xff] %vm68, 0.0
    %87 = vst.msk [vmem:[#allocation3 + $0x10] sm:$0xff] %vm68, 0.0
    %88 = vst.msk [vmem:[#allocation3 + $0x18] sm:$0xff] %vm68, 0.0
    %89 = vst.msk [vmem:[#allocation3 + $0x20] sm:$0xff] %vm68, 0.0
    %90 = vst.msk [vmem:[#allocation3 + $0x28] sm:$0xff] %vm68, 0.0
    %91 = vst.msk [vmem:[#allocation3 + $0x30] sm:$0xff] %vm68, 0.0
    %92 = vst.msk [vmem:[#allocation3 + $0x38] sm:$0xff] %vm68, 0.0
    %93 = vst.msk [vmem:[#allocation3 + $0x40] sm:$0xff] %vm68, 0.0
    %94 = vst.msk [vmem:[#allocation3 + $0x48] sm:$0xff] %vm68, 0.0
    %95 = vst.msk [vmem:[#allocation3 + $0x50] sm:$0xff] %vm68, 0.0
    %96 = vst.msk [vmem:[#allocation3 + $0x58] sm:$0xff] %vm68, 0.0
    %97 = vst.msk [vmem:[#allocation3 + $0x60] sm:$0xff] %vm68, 0.0
    %98 = vst.msk [vmem:[#allocation3 + $0x68] sm:$0xff] %vm68, 0.0
    %99 = vst.msk [vmem:[#allocation3 + $0x70] sm:$0xff] %vm68, 0.0
    %100 = vst.msk [vmem:[#allocation3 + $0x78] sm:$0xff] %vm68, 0.0
    %vm101 = vcmask 48128
    %102 = vst.msk [vmem:[#allocation4] sm:$0xff] %vm101, 0.0
    %103 = vst.msk [vmem:[#allocation4 + $0x8] sm:$0xff] %vm101, 0.0
    %104 = vst.msk [vmem:[#allocation4 + $0x10] sm:$0xff] %vm101, 0.0
    %105 = vst.msk [vmem:[#allocation4 + $0x18] sm:$0xff] %vm101, 0.0
    %106 = vst.msk [vmem:[#allocation4 + $0x20] sm:$0xff] %vm101, 0.0
    %107 = vst.msk [vmem:[#allocation4 + $0x28] sm:$0xff] %vm101, 0.0
    %108 = vst.msk [vmem:[#allocation4 + $0x30] sm:$0xff] %vm101, 0.0
    %109 = vst.msk [vmem:[#allocation4 + $0x38] sm:$0xff] %vm101, 0.0
    %110 = vst.msk [vmem:[#allocation4 + $0x40] sm:$0xff] %vm101, 0.0
    %111 = vst.msk [vmem:[#allocation4 + $0x48] sm:$0xff] %vm101, 0.0
    %112 = vst.msk [vmem:[#allocation4 + $0x50] sm:$0xff] %vm101, 0.0
    %113 = vst.msk [vmem:[#allocation4 + $0x58] sm:$0xff] %vm101, 0.0
    %114 = vst.msk [vmem:[#allocation4 + $0x60] sm:$0xff] %vm101, 0.0
    %115 = vst.msk [vmem:[#allocation4 + $0x68] sm:$0xff] %vm101, 0.0
    %116 = vst.msk [vmem:[#allocation4 + $0x70] sm:$0xff] %vm101, 0.0
    %117 = vst.msk [vmem:[#allocation4 + $0x78] sm:$0xff] %vm101, 0.0
  $region25: #{gat_forward.7} parent=0 // pred_fallthru
    _
  %s118 = sadd.s32 0, 0
  %s119 = smul.u32 %s118, 128
  %s120 = sadd.s32 %s119, 0
  %s121 = sld [smem:[#allocation6 + %s120]]
  %p122 = scmp.gt.s32.totalorder %s121, 0
  // Predicated region
  $region26: #{gat_forward.7} parent=0 // pred_check
    %p123 = pneg %p122
  $region27: #{gat_forward.7} parent=0 // pred_check_branch
    %125 = sbr.rel (%p123) target = $region29
  $region28: #{gat_forward.7} parent=0 // pred_region
    %s126 = smul.u32 0, 128
    %v127 = vld [vmem:[%s1] sm:$0xff]
    %v128 = vld [vmem:[%s1 + $0x8] sm:$0xff]
    %v129 = vld [vmem:[%s1 + $0x10] sm:$0xff]
    %v130 = vld [vmem:[%s1 + $0x18] sm:$0xff]
    %v131 = vld [vmem:[%s1 + $0x20] sm:$0xff]
    %v132 = vld [vmem:[%s1 + $0x28] sm:$0xff]
    %v133 = vld [vmem:[%s1 + $0x30] sm:$0xff]
    %v134 = vld [vmem:[%s1 + $0x38] sm:$0xff]
    %v135 = vld [vmem:[%s1 + $0x40] sm:$0xff]
    %v136 = vld [vmem:[%s1 + $0x48] sm:$0xff]
    %v137 = vld [vmem:[%s1 + $0x50] sm:$0xff]
    %v138 = vld [vmem:[%s1 + $0x58] sm:$0xff]
    %v139 = vld [vmem:[%s1 + $0x60] sm:$0xff]
    %v140 = vld [vmem:[%s1 + $0x68] sm:$0xff]
    %v141 = vld [vmem:[%s1 + $0x70] sm:$0xff]
    %v142 = vld [vmem:[%s1 + $0x78] sm:$0xff]
    %s143 = sshra.s32 %s126, 7
    %s144 = sand.u32 %s126, 127
    %s145 = scalar_lea.vmem %s2, %s143
    %v146 = vld [vmem:[%s145] sm:$0x1]
    %v147 = vld [vmem:[%s57] sm:$0xf]
    %v148 = vld [vmem:[%s57 + $0x4] sm:$0xf]
    %v149 = vld [vmem:[%s57 + $0x8] sm:$0xf]
    %v150 = vld [vmem:[%s57 + $0xc] sm:$0xf]
    %v151 = vld [vmem:[%s57 + $0x10] sm:$0xf]
    %v152 = vld [vmem:[%s57 + $0x14] sm:$0xf]
    %v153 = vld [vmem:[%s57 + $0x18] sm:$0xf]
    %v154 = vld [vmem:[%s57 + $0x1c] sm:$0xf]
    %v155 = vld [vmem:[%s57 + $0x20] sm:$0xf]
    %v156 = vld [vmem:[%s57 + $0x24] sm:$0xf]
    %v157 = vld [vmem:[%s57 + $0x28] sm:$0xf]
    %v158 = vld [vmem:[%s57 + $0x2c] sm:$0xf]
    %v159 = vld [vmem:[%s57 + $0x30] sm:$0xf]
    %v160 = vld [vmem:[%s57 + $0x34] sm:$0xf]
    %v161 = vld [vmem:[%s57 + $0x38] sm:$0xf]
    %v162 = vld [vmem:[%s57 + $0x3c] sm:$0xf]
    %s163 = sshra.s32 %s126, 3
    %s164 = sand.u32 %s126, 7
    %s165 = smul.addr %s163, 4
    %s166 = scalar_lea.vmem %s4, %s165
    %v167 = vld [vmem:[%s166] sm:$0xf]
    %v168 = vld [vmem:[%s166 + $0x4] sm:$0xf]
    %v169 = vld [vmem:[%s166 + $0x8] sm:$0xf]
    %v170 = vld [vmem:[%s166 + $0xc] sm:$0xf]
    %v171 = vld [vmem:[%s166 + $0x10] sm:$0xf]
    %v172 = vld [vmem:[%s166 + $0x14] sm:$0xf]
    %v173 = vld [vmem:[%s166 + $0x18] sm:$0xf]
    %v174 = vld [vmem:[%s166 + $0x1c] sm:$0xf]
    %v175 = vld [vmem:[%s166 + $0x20] sm:$0xf]
    %v176 = vld [vmem:[%s166 + $0x24] sm:$0xf]
    %v177 = vld [vmem:[%s166 + $0x28] sm:$0xf]
    %v178 = vld [vmem:[%s166 + $0x2c] sm:$0xf]
    %v179 = vld [vmem:[%s166 + $0x30] sm:$0xf]
    %v180 = vld [vmem:[%s166 + $0x34] sm:$0xf]
    %v181 = vld [vmem:[%s166 + $0x38] sm:$0xf]
    %v182 = vld [vmem:[%s166 + $0x3c] sm:$0xf]
    %v183 = vld [vmem:[#allocation2] sm:$0xff]
    %v184 = vld [vmem:[#allocation2 + $0x8] sm:$0xff]
    %v185 = vld [vmem:[#allocation2 + $0x10] sm:$0xff]
    %v186 = vld [vmem:[#allocation2 + $0x18] sm:$0xff]
    %v187 = vld [vmem:[#allocation2 + $0x20] sm:$0xff]
    %v188 = vld [vmem:[#allocation2 + $0x28] sm:$0xff]
    %v189 = vld [vmem:[#allocation2 + $0x30] sm:$0xff]
    %v190 = vld [vmem:[#allocation2 + $0x38] sm:$0xff]
    %v191 = vld [vmem:[#allocation2 + $0x40] sm:$0xff]
    %v192 = vld [vmem:[#allocation2 + $0x48] sm:$0xff]
    %v193 = vld [vmem:[#allocation2 + $0x50] sm:$0xff]
    %v194 = vld [vmem:[#allocation2 + $0x58] sm:$0xff]
    %v195 = vld [vmem:[#allocation2 + $0x60] sm:$0xff]
    %v196 = vld [vmem:[#allocation2 + $0x68] sm:$0xff]
    %v197 = vld [vmem:[#allocation2 + $0x70] sm:$0xff]
    %v198 = vld [vmem:[#allocation2 + $0x78] sm:$0xff]
    %v199 = vld [vmem:[#allocation3] sm:$0xff]
    %v200 = vld [vmem:[#allocation3 + $0x8] sm:$0xff]
    %v201 = vld [vmem:[#allocation3 + $0x10] sm:$0xff]
    %v202 = vld [vmem:[#allocation3 + $0x18] sm:$0xff]
    %v203 = vld [vmem:[#allocation3 + $0x20] sm:$0xff]
    %v204 = vld [vmem:[#allocation3 + $0x28] sm:$0xff]
    %v205 = vld [vmem:[#allocation3 + $0x30] sm:$0xff]
    %v206 = vld [vmem:[#allocation3 + $0x38] sm:$0xff]
    %v207 = vld [vmem:[#allocation3 + $0x40] sm:$0xff]
    %v208 = vld [vmem:[#allocation3 + $0x48] sm:$0xff]
    %v209 = vld [vmem:[#allocation3 + $0x50] sm:$0xff]
    %v210 = vld [vmem:[#allocation3 + $0x58] sm:$0xff]
    %v211 = vld [vmem:[#allocation3 + $0x60] sm:$0xff]
    %v212 = vld [vmem:[#allocation3 + $0x68] sm:$0xff]
    %v213 = vld [vmem:[#allocation3 + $0x70] sm:$0xff]
    %v214 = vld [vmem:[#allocation3 + $0x78] sm:$0xff]
    %216 = vset.pattern.permute.xlu0 0
    %217 = vperm.xlu0 %216, %v127
    %v218 = vpop.permute.xlu0 %217
    %221 = vset.pattern.permute.xlu0 0
    %222 = vperm.xlu0 %221, %v128
    %v223 = vpop.permute.xlu0 %222
    %226 = vset.pattern.permute.xlu0 0
    %227 = vperm.xlu0 %226, %v129
    %v228 = vpop.permute.xlu0 %227
    %231 = vset.pattern.permute.xlu0 0
    %232 = vperm.xlu0 %231, %v130
    %v233 = vpop.permute.xlu0 %232
    %236 = vset.pattern.permute.xlu0 0
    %237 = vperm.xlu0 %236, %v131
    %v238 = vpop.permute.xlu0 %237
    %241 = vset.pattern.permute.xlu0 0
    %242 = vperm.xlu0 %241, %v132
    %v243 = vpop.permute.xlu0 %242
    %246 = vset.pattern.permute.xlu0 0
    %247 = vperm.xlu0 %246, %v133
    %v248 = vpop.permute.xlu0 %247
    %251 = vset.pattern.permute.xlu0 0
    %252 = vperm.xlu0 %251, %v134
    %v253 = vpop.permute.xlu0 %252
    %256 = vset.pattern.permute.xlu0 0
    %257 = vperm.xlu0 %256, %v135
    %v258 = vpop.permute.xlu0 %257
    %261 = vset.pattern.permute.xlu0 0
    %262 = vperm.xlu0 %261, %v136
    %v263 = vpop.permute.xlu0 %262
    %266 = vset.pattern.permute.xlu0 0
    %267 = vperm.xlu0 %266, %v137
    %v268 = vpop.permute.xlu0 %267
    %271 = vset.pattern.permute.xlu0 0
    %272 = vperm.xlu0 %271, %v138
    %v273 = vpop.permute.xlu0 %272
    %276 = vset.pattern.permute.xlu0 0
    %277 = vperm.xlu0 %276, %v139
    %v278 = vpop.permute.xlu0 %277
    %281 = vset.pattern.permute.xlu0 0
    %282 = vperm.xlu0 %281, %v140
    %v283 = vpop.permute.xlu0 %282
    %286 = vset.pattern.permute.xlu0 0
    %287 = vperm.xlu0 %286, %v141
    %v288 = vpop.permute.xlu0 %287
    %291 = vset.pattern.permute.xlu0 0
    %292 = vperm.xlu0 %291, %v142
    %v293 = vpop.permute.xlu0 %292
    %v296 = vperm.slane %v146, 0
    %v298 = vadd.f32 %v218, %v296
    %v299 = vadd.f32 %v223, %v296
    %v300 = vadd.f32 %v228, %v296
    %v301 = vadd.f32 %v233, %v296
    %v302 = vadd.f32 %v238, %v296
    %v303 = vadd.f32 %v243, %v296
    %v304 = vadd.f32 %v248, %v296
    %v305 = vadd.f32 %v253, %v296
    %v306 = vadd.f32 %v258, %v296
    %v307 = vadd.f32 %v263, %v296
    %v308 = vadd.f32 %v268, %v296
    %v309 = vadd.f32 %v273, %v296
    %v310 = vadd.f32 %v278, %v296
    %v311 = vadd.f32 %v283, %v296
    %v312 = vadd.f32 %v288, %v296
    %v313 = vadd.f32 %v293, %v296
    %v314 = vmul.f32 %v298, 0.2
    %v315 = vmul.f32 %v299, 0.2
    %v316 = vmul.f32 %v300, 0.2
    %v317 = vmul.f32 %v301, 0.2
    %v318 = vmul.f32 %v302, 0.2
    %v319 = vmul.f32 %v303, 0.2
    %v320 = vmul.f32 %v304, 0.2
    %v321 = vmul.f32 %v305, 0.2
    %v322 = vmul.f32 %v306, 0.2
    %v323 = vmul.f32 %v307, 0.2
    %v324 = vmul.f32 %v308, 0.2
    %v325 = vmul.f32 %v309, 0.2
    %v326 = vmul.f32 %v310, 0.2
    %v327 = vmul.f32 %v311, 0.2
    %v328 = vmul.f32 %v312, 0.2
    %v329 = vmul.f32 %v313, 0.2
    %v330 = vmax.f32 %v298, %v314
    %v331 = vmax.f32 %v299, %v315
    %v332 = vmax.f32 %v300, %v316
    %v333 = vmax.f32 %v301, %v317
    %v334 = vmax.f32 %v302, %v318
    %v335 = vmax.f32 %v303, %v319
    %v336 = vmax.f32 %v304, %v320
    %v337 = vmax.f32 %v305, %v321
    %v338 = vmax.f32 %v306, %v322
    %v339 = vmax.f32 %v307, %v323
    %v340 = vmax.f32 %v308, %v324
    %v341 = vmax.f32 %v309, %v325
    %v342 = vmax.f32 %v310, %v326
    %v343 = vmax.f32 %v311, %v327
    %v344 = vmax.f32 %v312, %v328
    %v345 = vmax.f32 %v313, %v329
    %346 = vmax.xlane.f32.xlu0 %v330
    %v347 = vpop.xlane.xlu0 %346
    %348 = vmax.xlane.f32.xlu0 %v331
    %v349 = vpop.xlane.xlu0 %348
    %350 = vmax.xlane.f32.xlu0 %v332
    %v351 = vpop.xlane.xlu0 %350
    %352 = vmax.xlane.f32.xlu0 %v333
    %v353 = vpop.xlane.xlu0 %352
    %354 = vmax.xlane.f32.xlu0 %v334
    %v355 = vpop.xlane.xlu0 %354
    %356 = vmax.xlane.f32.xlu0 %v335
    %v357 = vpop.xlane.xlu0 %356
    %358 = vmax.xlane.f32.xlu0 %v336
    %v359 = vpop.xlane.xlu0 %358
    %360 = vmax.xlane.f32.xlu0 %v337
    %v361 = vpop.xlane.xlu0 %360
    %362 = vmax.xlane.f32.xlu0 %v338
    %v363 = vpop.xlane.xlu0 %362
    %364 = vmax.xlane.f32.xlu0 %v339
    %v365 = vpop.xlane.xlu0 %364
    %366 = vmax.xlane.f32.xlu0 %v340
    %v367 = vpop.xlane.xlu0 %366
    %368 = vmax.xlane.f32.xlu0 %v341
    %v369 = vpop.xlane.xlu0 %368
    %370 = vmax.xlane.f32.xlu0 %v342
    %v371 = vpop.xlane.xlu0 %370
    %372 = vmax.xlane.f32.xlu0 %v343
    %v373 = vpop.xlane.xlu0 %372
    %374 = vmax.xlane.f32.xlu0 %v344
    %v375 = vpop.xlane.xlu0 %374
    %376 = vmax.xlane.f32.xlu0 %v345
    %v377 = vpop.xlane.xlu0 %376
    %v378 = vmax.f32 %v183, %v347
    %v379 = vmax.f32 %v184, %v349
    %v380 = vmax.f32 %v185, %v351
    %v381 = vmax.f32 %v186, %v353
    %v382 = vmax.f32 %v187, %v355
    %v383 = vmax.f32 %v188, %v357
    %v384 = vmax.f32 %v189, %v359
    %v385 = vmax.f32 %v190, %v361
    %v386 = vmax.f32 %v191, %v363
    %v387 = vmax.f32 %v192, %v365
    %v388 = vmax.f32 %v193, %v367
    %v389 = vmax.f32 %v194, %v369
    %v390 = vmax.f32 %v195, %v371
    %v391 = vmax.f32 %v196, %v373
    %v392 = vmax.f32 %v197, %v375
    %v393 = vmax.f32 %v198, %v377
    %v394 = vsub.f32 %v183, %v378
    %v395 = vsub.f32 %v184, %v379
    %v396 = vsub.f32 %v185, %v380
    %v397 = vsub.f32 %v186, %v381
    %v398 = vsub.f32 %v187, %v382
    %v399 = vsub.f32 %v188, %v383
    %v400 = vsub.f32 %v189, %v384
    %v401 = vsub.f32 %v190, %v385
    %v402 = vsub.f32 %v191, %v386
    %v403 = vsub.f32 %v192, %v387
    %v404 = vsub.f32 %v193, %v388
    %v405 = vsub.f32 %v194, %v389
    %v406 = vsub.f32 %v195, %v390
    %v407 = vsub.f32 %v196, %v391
    %v408 = vsub.f32 %v197, %v392
    %v409 = vsub.f32 %v198, %v393
    %v410 = vmul.f32 %v394, 1.442695
    %v411 = vpow.pop %v410
    %v412 = vmul.f32 %v395, 1.442695
    %v413 = vpow.pop %v412
    %v414 = vmul.f32 %v396, 1.442695
    %v415 = vpow.pop %v414
    %v416 = vmul.f32 %v397, 1.442695
    %v417 = vpow.pop %v416
    %v418 = vmul.f32 %v398, 1.442695
    %v419 = vpow.pop %v418
    %v420 = vmul.f32 %v399, 1.442695
    %v421 = vpow.pop %v420
    %v422 = vmul.f32 %v400, 1.442695
    %v423 = vpow.pop %v422
    %v424 = vmul.f32 %v401, 1.442695
    %v425 = vpow.pop %v424
    %v426 = vmul.f32 %v402, 1.442695
    %v427 = vpow.pop %v426
    %v428 = vmul.f32 %v403, 1.442695
    %v429 = vpow.pop %v428
    %v430 = vmul.f32 %v404, 1.442695
    %v431 = vpow.pop %v430
    %v432 = vmul.f32 %v405, 1.442695
    %v433 = vpow.pop %v432
    %v434 = vmul.f32 %v406, 1.442695
    %v435 = vpow.pop %v434
    %v436 = vmul.f32 %v407, 1.442695
    %v437 = vpow.pop %v436
    %v438 = vmul.f32 %v408, 1.442695
    %v439 = vpow.pop %v438
    %v440 = vmul.f32 %v409, 1.442695
    %v441 = vpow.pop %v440
    %443 = vset.pattern.permute.xlu0 0
    %444 = vperm.xlu0 %443, %v378
    %v445 = vpop.permute.xlu0 %444
    %448 = vset.pattern.permute.xlu0 0
    %449 = vperm.xlu0 %448, %v379
    %v450 = vpop.permute.xlu0 %449
    %453 = vset.pattern.permute.xlu0 0
    %454 = vperm.xlu0 %453, %v380
    %v455 = vpop.permute.xlu0 %454
    %458 = vset.pattern.permute.xlu0 0
    %459 = vperm.xlu0 %458, %v381
    %v460 = vpop.permute.xlu0 %459
    %463 = vset.pattern.permute.xlu0 0
    %464 = vperm.xlu0 %463, %v382
    %v465 = vpop.permute.xlu0 %464
    %468 = vset.pattern.permute.xlu0 0
    %469 = vperm.xlu0 %468, %v383
    %v470 = vpop.permute.xlu0 %469
    %473 = vset.pattern.permute.xlu0 0
    %474 = vperm.xlu0 %473, %v384
    %v475 = vpop.permute.xlu0 %474
    %478 = vset.pattern.permute.xlu0 0
    %479 = vperm.xlu0 %478, %v385
    %v480 = vpop.permute.xlu0 %479
    %483 = vset.pattern.permute.xlu0 0
    %484 = vperm.xlu0 %483, %v386
    %v485 = vpop.permute.xlu0 %484
    %488 = vset.pattern.permute.xlu0 0
    %489 = vperm.xlu0 %488, %v387
    %v490 = vpop.permute.xlu0 %489
    %493 = vset.pattern.permute.xlu0 0
    %494 = vperm.xlu0 %493, %v388
    %v495 = vpop.permute.xlu0 %494
    %498 = vset.pattern.permute.xlu0 0
    %499 = vperm.xlu0 %498, %v389
    %v500 = vpop.permute.xlu0 %499
    %503 = vset.pattern.permute.xlu0 0
    %504 = vperm.xlu0 %503, %v390
    %v505 = vpop.permute.xlu0 %504
    %508 = vset.pattern.permute.xlu0 0
    %509 = vperm.xlu0 %508, %v391
    %v510 = vpop.permute.xlu0 %509
    %513 = vset.pattern.permute.xlu0 0
    %514 = vperm.xlu0 %513, %v392
    %v515 = vpop.permute.xlu0 %514
    %518 = vset.pattern.permute.xlu0 0
    %519 = vperm.xlu0 %518, %v393
    %v520 = vpop.permute.xlu0 %519
    %v522 = vsub.f32 %v330, %v445
    %v523 = vsub.f32 %v331, %v450
    %v524 = vsub.f32 %v332, %v455
    %v525 = vsub.f32 %v333, %v460
    %v526 = vsub.f32 %v334, %v465
    %v527 = vsub.f32 %v335, %v470
    %v528 = vsub.f32 %v336, %v475
    %v529 = vsub.f32 %v337, %v480
    %v530 = vsub.f32 %v338, %v485
    %v531 = vsub.f32 %v339, %v490
    %v532 = vsub.f32 %v340, %v495
    %v533 = vsub.f32 %v341, %v500
    %v534 = vsub.f32 %v342, %v505
    %v535 = vsub.f32 %v343, %v510
    %v536 = vsub.f32 %v344, %v515
    %v537 = vsub.f32 %v345, %v520
    %v538 = vmul.f32 %v522, 1.442695
    %v539 = vpow.pop %v538
    %v540 = vmul.f32 %v523, 1.442695
    %v541 = vpow.pop %v540
    %v542 = vmul.f32 %v524, 1.442695
    %v543 = vpow.pop %v542
    %v544 = vmul.f32 %v525, 1.442695
    %v545 = vpow.pop %v544
    %v546 = vmul.f32 %v526, 1.442695
    %v547 = vpow.pop %v546
    %v548 = vmul.f32 %v527, 1.442695
    %v549 = vpow.pop %v548
    %v550 = vmul.f32 %v528, 1.442695
    %v551 = vpow.pop %v550
    %v552 = vmul.f32 %v529, 1.442695
    %v553 = vpow.pop %v552
    %v554 = vmul.f32 %v530, 1.442695
    %v555 = vpow.pop %v554
    %v556 = vmul.f32 %v531, 1.442695
    %v557 = vpow.pop %v556
    %v558 = vmul.f32 %v532, 1.442695
    %v559 = vpow.pop %v558
    %v560 = vmul.f32 %v533, 1.442695
    %v561 = vpow.pop %v560
    %v562 = vmul.f32 %v534, 1.442695
    %v563 = vpow.pop %v562
    %v564 = vmul.f32 %v535, 1.442695
    %v565 = vpow.pop %v564
    %v566 = vmul.f32 %v536, 1.442695
    %v567 = vpow.pop %v566
    %v568 = vmul.f32 %v537, 1.442695
    %v569 = vpow.pop %v568
    %v570 = vunpack.c.l.bf16 %v147
    %v571 = vunpack.c.l.bf16 %v148
    %v572 = vunpack.c.l.bf16 %v149
    %v573 = vunpack.c.l.bf16 %v150
    %v574 = vunpack.c.l.bf16 %v151
    %v575 = vunpack.c.l.bf16 %v152
    %v576 = vunpack.c.l.bf16 %v153
    %v577 = vunpack.c.l.bf16 %v154
    %v578 = vunpack.c.l.bf16 %v155
    %v579 = vunpack.c.l.bf16 %v156
    %v580 = vunpack.c.l.bf16 %v157
    %v581 = vunpack.c.l.bf16 %v158
    %v582 = vunpack.c.l.bf16 %v159
    %v583 = vunpack.c.l.bf16 %v160
    %v584 = vunpack.c.l.bf16 %v161
    %v585 = vunpack.c.l.bf16 %v162
    %v586 = vmul.f32 %v539, %v570
    %v587 = vmul.f32 %v541, %v571
    %v588 = vmul.f32 %v543, %v572
    %v589 = vmul.f32 %v545, %v573
    %v590 = vmul.f32 %v547, %v574
    %v591 = vmul.f32 %v549, %v575
    %v592 = vmul.f32 %v551, %v576
    %v593 = vmul.f32 %v553, %v577
    %v594 = vmul.f32 %v555, %v578
    %v595 = vmul.f32 %v557, %v579
    %v596 = vmul.f32 %v559, %v580
    %v597 = vmul.f32 %v561, %v581
    %v598 = vmul.f32 %v563, %v582
    %v599 = vmul.f32 %v565, %v583
    %v600 = vmul.f32 %v567, %v584
    %v601 = vmul.f32 %v569, %v585
    %v602 = vmul.f32 %v411, %v199
    %v603 = vmul.f32 %v413, %v200
    %v604 = vmul.f32 %v415, %v201
    %v605 = vmul.f32 %v417, %v202
    %v606 = vmul.f32 %v419, %v203
    %v607 = vmul.f32 %v421, %v204
    %v608 = vmul.f32 %v423, %v205
    %v609 = vmul.f32 %v425, %v206
    %v610 = vmul.f32 %v427, %v207
    %v611 = vmul.f32 %v429, %v208
    %v612 = vmul.f32 %v431, %v209
    %v613 = vmul.f32 %v433, %v210
    %v614 = vmul.f32 %v435, %v211
    %v615 = vmul.f32 %v437, %v212
    %v616 = vmul.f32 %v439, %v213
    %v617 = vmul.f32 %v441, %v214
    %618 = vadd.xlane.f32.xlu0 %v586
    %v619 = vpop.xlane.xlu0 %618
    %620 = vadd.xlane.f32.xlu0 %v587
    %v621 = vpop.xlane.xlu0 %620
    %622 = vadd.xlane.f32.xlu0 %v588
    %v623 = vpop.xlane.xlu0 %622
    %624 = vadd.xlane.f32.xlu0 %v589
    %v625 = vpop.xlane.xlu0 %624
    %626 = vadd.xlane.f32.xlu0 %v590
    %v627 = vpop.xlane.xlu0 %626
    %628 = vadd.xlane.f32.xlu0 %v591
    %v629 = vpop.xlane.xlu0 %628
    %630 = vadd.xlane.f32.xlu0 %v592
    %v631 = vpop.xlane.xlu0 %630
    %632 = vadd.xlane.f32.xlu0 %v593
    %v633 = vpop.xlane.xlu0 %632
    %634 = vadd.xlane.f32.xlu0 %v594
    %v635 = vpop.xlane.xlu0 %634
    %636 = vadd.xlane.f32.xlu0 %v595
    %v637 = vpop.xlane.xlu0 %636
    %638 = vadd.xlane.f32.xlu0 %v596
    %v639 = vpop.xlane.xlu0 %638
    %640 = vadd.xlane.f32.xlu0 %v597
    %v641 = vpop.xlane.xlu0 %640
    %642 = vadd.xlane.f32.xlu0 %v598
    %v643 = vpop.xlane.xlu0 %642
    %644 = vadd.xlane.f32.xlu0 %v599
    %v645 = vpop.xlane.xlu0 %644
    %646 = vadd.xlane.f32.xlu0 %v600
    %v647 = vpop.xlane.xlu0 %646
    %648 = vadd.xlane.f32.xlu0 %v601
    %v649 = vpop.xlane.xlu0 %648
    %v650 = vadd.f32 %v602, %v619
    %v651 = vadd.f32 %v603, %v621
    %v652 = vadd.f32 %v604, %v623
    %v653 = vadd.f32 %v605, %v625
    %v654 = vadd.f32 %v606, %v627
    %v655 = vadd.f32 %v607, %v629
    %v656 = vadd.f32 %v608, %v631
    %v657 = vadd.f32 %v609, %v633
    %v658 = vadd.f32 %v610, %v635
    %v659 = vadd.f32 %v611, %v637
    %v660 = vadd.f32 %v612, %v639
    %v661 = vadd.f32 %v613, %v641
    %v662 = vadd.f32 %v614, %v643
    %v663 = vadd.f32 %v615, %v645
    %v664 = vadd.f32 %v616, %v647
    %v665 = vadd.f32 %v617, %v649
    %v666 = vpack.c.bf16 %v587, %v586
    %v667 = vpack.c.bf16 %v589, %v588
    %v668 = vpack.c.bf16 %v591, %v590
    %v669 = vpack.c.bf16 %v593, %v592
    %v670 = vpack.c.bf16 %v595, %v594
    %v671 = vpack.c.bf16 %v597, %v596
    %v672 = vpack.c.bf16 %v599, %v598
    %v673 = vpack.c.bf16 %v601, %v600
    %v690 = vunpack.c.l.b16 %v167
    %v691 = vunpack.c.l.b16 %v168
    %v692 = vunpack.c.l.b16 %v169
    %v693 = vunpack.c.l.b16 %v170
    %v694 = vunpack.c.l.b16 %v171
    %v695 = vunpack.c.l.b16 %v172
    %v696 = vunpack.c.l.b16 %v173
    %v697 = vunpack.c.l.b16 %v174
    %v698 = vunpack.c.l.b16 %v175
    %v699 = vunpack.c.l.b16 %v176
    %v700 = vunpack.c.l.b16 %v177
    %v701 = vunpack.c.l.b16 %v178
    %v702 = vunpack.c.l.b16 %v179
    %v703 = vunpack.c.l.b16 %v180
    %v704 = vunpack.c.l.b16 %v181
    %v705 = vunpack.c.l.b16 %v182
    %v706 = vpack.c.b16 %v691, %v690
    %v707 = vpack.c.b16 %v693, %v692
    %v708 = vpack.c.b16 %v695, %v694
    %v709 = vpack.c.b16 %v697, %v696
    %v710 = vpack.c.b16 %v699, %v698
    %v711 = vpack.c.b16 %v701, %v700
    %v712 = vpack.c.b16 %v703, %v702
    %v713 = vpack.c.b16 %v705, %v704
    %722 = vmatpush.bf16.msra.mxu0 %v713
    %723 = vmatpush.bf16.msra.mxu0 %v712
    %724 = vmatpush.bf16.msra.mxu0 %v711
    %725 = vmatpush.bf16.msra.mxu0 %v710
    %726 = vmatpush.bf16.msra.mxu0 %v709
    %727 = vmatpush.bf16.msra.mxu0 %v708
    %728 = vmatpush.bf16.msra.mxu0 %v707
    %729 = vmatpush.bf16.msra.mxu0 %v706
    %730 = vmatmul.bf16.gmra.mxu0 %v666
    %v731 = vpop.f32.mrf.mxu0
    %v732 = vadd.f32 0.0, %v731
    %v733 = vpop.f32.mrf.mxu0
    %v734 = vadd.f32 0.0, %v733
    %735 = vmatmul.bf16.gmra.mxu0 %v667
    %v736 = vpop.f32.mrf.mxu0
    %v737 = vadd.f32 0.0, %v736
    %v738 = vpop.f32.mrf.mxu0
    %v739 = vadd.f32 0.0, %v738
    %740 = vmatmul.bf16.gmra.mxu0 %v668
    %v741 = vpop.f32.mrf.mxu0
    %v742 = vadd.f32 0.0, %v741
    %v743 = vpop.f32.mrf.mxu0
    %v744 = vadd.f32 0.0, %v743
    %745 = vmatmul.bf16.gmra.mxu0 %v669
    %v746 = vpop.f32.mrf.mxu0
    %v747 = vadd.f32 0.0, %v746
    %v748 = vpop.f32.mrf.mxu0
    %v749 = vadd.f32 0.0, %v748
    %750 = vmatmul.bf16.gmra.mxu0 %v670
    %v751 = vpop.f32.mrf.mxu0
    %v752 = vadd.f32 0.0, %v751
    %v753 = vpop.f32.mrf.mxu0
    %v754 = vadd.f32 0.0, %v753
    %755 = vmatmul.bf16.gmra.mxu0 %v671
    %v756 = vpop.f32.mrf.mxu0
    %v757 = vadd.f32 0.0, %v756
    %v758 = vpop.f32.mrf.mxu0
    %v759 = vadd.f32 0.0, %v758
    %760 = vmatmul.bf16.gmra.mxu0 %v672
    %v761 = vpop.f32.mrf.mxu0
    %v762 = vadd.f32 0.0, %v761
    %v763 = vpop.f32.mrf.mxu0
    %v764 = vadd.f32 0.0, %v763
    %765 = vmatmul.bf16.gmra.mxu0 %v673
    %v766 = vpop.f32.mrf.mxu0
    %v767 = vadd.f32 0.0, %v766
    %v768 = vpop.f32.mrf.mxu0
    %v769 = vadd.f32 0.0, %v768
    %770 = vdwg.mxu0
    %v771 = vld [vmem:[#allocation4] sm:$0xff]
    %v772 = vld [vmem:[#allocation4 + $0x8] sm:$0xff]
    %v773 = vld [vmem:[#allocation4 + $0x10] sm:$0xff]
    %v774 = vld [vmem:[#allocation4 + $0x18] sm:$0xff]
    %v775 = vld [vmem:[#allocation4 + $0x20] sm:$0xff]
    %v776 = vld [vmem:[#allocation4 + $0x28] sm:$0xff]
    %v777 = vld [vmem:[#allocation4 + $0x30] sm:$0xff]
    %v778 = vld [vmem:[#allocation4 + $0x38] sm:$0xff]
    %v779 = vld [vmem:[#allocation4 + $0x40] sm:$0xff]
    %v780 = vld [vmem:[#allocation4 + $0x48] sm:$0xff]
    %v781 = vld [vmem:[#allocation4 + $0x50] sm:$0xff]
    %v782 = vld [vmem:[#allocation4 + $0x58] sm:$0xff]
    %v783 = vld [vmem:[#allocation4 + $0x60] sm:$0xff]
    %v784 = vld [vmem:[#allocation4 + $0x68] sm:$0xff]
    %v785 = vld [vmem:[#allocation4 + $0x70] sm:$0xff]
    %v786 = vld [vmem:[#allocation4 + $0x78] sm:$0xff]
    %788 = vset.pattern.permute.xlu0 0
    %789 = vperm.xlu0 %788, %v411
    %v790 = vpop.permute.xlu0 %789
    %793 = vset.pattern.permute.xlu0 0
    %794 = vperm.xlu0 %793, %v413
    %v795 = vpop.permute.xlu0 %794
    %798 = vset.pattern.permute.xlu0 0
    %799 = vperm.xlu0 %798, %v415
    %v800 = vpop.permute.xlu0 %799
    %803 = vset.pattern.permute.xlu0 0
    %804 = vperm.xlu0 %803, %v417
    %v805 = vpop.permute.xlu0 %804
    %808 = vset.pattern.permute.xlu0 0
    %809 = vperm.xlu0 %808, %v419
    %v810 = vpop.permute.xlu0 %809
    %813 = vset.pattern.permute.xlu0 0
    %814 = vperm.xlu0 %813, %v421
    %v815 = vpop.permute.xlu0 %814
    %818 = vset.pattern.permute.xlu0 0
    %819 = vperm.xlu0 %818, %v423
    %v820 = vpop.permute.xlu0 %819
    %823 = vset.pattern.permute.xlu0 0
    %824 = vperm.xlu0 %823, %v425
    %v825 = vpop.permute.xlu0 %824
    %828 = vset.pattern.permute.xlu0 0
    %829 = vperm.xlu0 %828, %v427
    %v830 = vpop.permute.xlu0 %829
    %833 = vset.pattern.permute.xlu0 0
    %834 = vperm.xlu0 %833, %v429
    %v835 = vpop.permute.xlu0 %834
    %838 = vset.pattern.permute.xlu0 0
    %839 = vperm.xlu0 %838, %v431
    %v840 = vpop.permute.xlu0 %839
    %843 = vset.pattern.permute.xlu0 0
    %844 = vperm.xlu0 %843, %v433
    %v845 = vpop.permute.xlu0 %844
    %848 = vset.pattern.permute.xlu0 0
    %849 = vperm.xlu0 %848, %v435
    %v850 = vpop.permute.xlu0 %849
    %853 = vset.pattern.permute.xlu0 0
    %854 = vperm.xlu0 %853, %v437
    %v855 = vpop.permute.xlu0 %854
    %858 = vset.pattern.permute.xlu0 0
    %859 = vperm.xlu0 %858, %v439
    %v860 = vpop.permute.xlu0 %859
    %863 = vset.pattern.permute.xlu0 0
    %864 = vperm.xlu0 %863, %v441
    %v865 = vpop.permute.xlu0 %864
    %v867 = vmul.f32 %v790, %v771
    %v868 = vmul.f32 %v795, %v772
    %v869 = vmul.f32 %v800, %v773
    %v870 = vmul.f32 %v805, %v774
    %v871 = vmul.f32 %v810, %v775
    %v872 = vmul.f32 %v815, %v776
    %v873 = vmul.f32 %v820, %v777
    %v874 = vmul.f32 %v825, %v778
    %v875 = vmul.f32 %v830, %v779
    %v876 = vmul.f32 %v835, %v780
    %v877 = vmul.f32 %v840, %v781
    %v878 = vmul.f32 %v845, %v782
    %v879 = vmul.f32 %v850, %v783
    %v880 = vmul.f32 %v855, %v784
    %v881 = vmul.f32 %v860, %v785
    %v882 = vmul.f32 %v865, %v786
    %v883 = vadd.f32 %v867, %v732
    %v884 = vadd.f32 %v868, %v734
    %v885 = vadd.f32 %v869, %v737
    %v886 = vadd.f32 %v870, %v739
    %v887 = vadd.f32 %v871, %v742
    %v888 = vadd.f32 %v872, %v744
    %v889 = vadd.f32 %v873, %v747
    %v890 = vadd.f32 %v874, %v749
    %v891 = vadd.f32 %v875, %v752
    %v892 = vadd.f32 %v876, %v754
    %v893 = vadd.f32 %v877, %v757
    %v894 = vadd.f32 %v878, %v759
    %v895 = vadd.f32 %v879, %v762
    %v896 = vadd.f32 %v880, %v764
    %v897 = vadd.f32 %v881, %v767
    %v898 = vadd.f32 %v882, %v769
    %vm899 = vcmask 7168
    %900 = vst.msk [vmem:[#allocation2] sm:$0xff] %vm899, %v378
    %901 = vst.msk [vmem:[#allocation2 + $0x8] sm:$0xff] %vm899, %v379
    %902 = vst.msk [vmem:[#allocation2 + $0x10] sm:$0xff] %vm899, %v380
    %903 = vst.msk [vmem:[#allocation2 + $0x18] sm:$0xff] %vm899, %v381
    %904 = vst.msk [vmem:[#allocation2 + $0x20] sm:$0xff] %vm899, %v382
    %905 = vst.msk [vmem:[#allocation2 + $0x28] sm:$0xff] %vm899, %v383
    %906 = vst.msk [vmem:[#allocation2 + $0x30] sm:$0xff] %vm899, %v384
    %907 = vst.msk [vmem:[#allocation2 + $0x38] sm:$0xff] %vm899, %v385
    %908 = vst.msk [vmem:[#allocation2 + $0x40] sm:$0xff] %vm899, %v386
    %909 = vst.msk [vmem:[#allocation2 + $0x48] sm:$0xff] %vm899, %v387
    %910 = vst.msk [vmem:[#allocation2 + $0x50] sm:$0xff] %vm899, %v388
    %911 = vst.msk [vmem:[#allocation2 + $0x58] sm:$0xff] %vm899, %v389
    %912 = vst.msk [vmem:[#allocation2 + $0x60] sm:$0xff] %vm899, %v390
    %913 = vst.msk [vmem:[#allocation2 + $0x68] sm:$0xff] %vm899, %v391
    %914 = vst.msk [vmem:[#allocation2 + $0x70] sm:$0xff] %vm899, %v392
    %915 = vst.msk [vmem:[#allocation2 + $0x78] sm:$0xff] %vm899, %v393
    %916 = vst.msk [vmem:[#allocation3] sm:$0xff] %vm899, %v650
    %917 = vst.msk [vmem:[#allocation3 + $0x8] sm:$0xff] %vm899, %v651
    %918 = vst.msk [vmem:[#allocation3 + $0x10] sm:$0xff] %vm899, %v652
    %919 = vst.msk [vmem:[#allocation3 + $0x18] sm:$0xff] %vm899, %v653
    %920 = vst.msk [vmem:[#allocation3 + $0x20] sm:$0xff] %vm899, %v654
    %921 = vst.msk [vmem:[#allocation3 + $0x28] sm:$0xff] %vm899, %v655
    %922 = vst.msk [vmem:[#allocation3 + $0x30] sm:$0xff] %vm899, %v656
    %923 = vst.msk [vmem:[#allocation3 + $0x38] sm:$0xff] %vm899, %v657
    %924 = vst.msk [vmem:[#allocation3 + $0x40] sm:$0xff] %vm899, %v658
    %925 = vst.msk [vmem:[#allocation3 + $0x48] sm:$0xff] %vm899, %v659
    %926 = vst.msk [vmem:[#allocation3 + $0x50] sm:$0xff] %vm899, %v660
    %927 = vst.msk [vmem:[#allocation3 + $0x58] sm:$0xff] %vm899, %v661
    %928 = vst.msk [vmem:[#allocation3 + $0x60] sm:$0xff] %vm899, %v662
    %929 = vst.msk [vmem:[#allocation3 + $0x68] sm:$0xff] %vm899, %v663
    %930 = vst.msk [vmem:[#allocation3 + $0x70] sm:$0xff] %vm899, %v664
    %931 = vst.msk [vmem:[#allocation3 + $0x78] sm:$0xff] %vm899, %v665
    %vm932 = vcmask 48128
    %933 = vst.msk [vmem:[#allocation4] sm:$0xff] %vm932, %v883
    %934 = vst.msk [vmem:[#allocation4 + $0x8] sm:$0xff] %vm932, %v884
    %935 = vst.msk [vmem:[#allocation4 + $0x10] sm:$0xff] %vm932, %v885
    %936 = vst.msk [vmem:[#allocation4 + $0x18] sm:$0xff] %vm932, %v886
    %937 = vst.msk [vmem:[#allocation4 + $0x20] sm:$0xff] %vm932, %v887
    %938 = vst.msk [vmem:[#allocation4 + $0x28] sm:$0xff] %vm932, %v888
    %939 = vst.msk [vmem:[#allocation4 + $0x30] sm:$0xff] %vm932, %v889
    %940 = vst.msk [vmem:[#allocation4 + $0x38] sm:$0xff] %vm932, %v890
    %941 = vst.msk [vmem:[#allocation4 + $0x40] sm:$0xff] %vm932, %v891
    %942 = vst.msk [vmem:[#allocation4 + $0x48] sm:$0xff] %vm932, %v892
    %943 = vst.msk [vmem:[#allocation4 + $0x50] sm:$0xff] %vm932, %v893
    %944 = vst.msk [vmem:[#allocation4 + $0x58] sm:$0xff] %vm932, %v894
    %945 = vst.msk [vmem:[#allocation4 + $0x60] sm:$0xff] %vm932, %v895
    %946 = vst.msk [vmem:[#allocation4 + $0x68] sm:$0xff] %vm932, %v896
    %947 = vst.msk [vmem:[#allocation4 + $0x70] sm:$0xff] %vm932, %v897
    %948 = vst.msk [vmem:[#allocation4 + $0x78] sm:$0xff] %vm932, %v898
  $region29: #{gat_forward.7} parent=0 // pred_fallthru
    _
  // Predicated region
  $region30: #{gat_forward.7} parent=0 // pred_check
    %p949 = pneg %p64
  $region31: #{gat_forward.7} parent=0 // pred_check_branch
    %951 = sbr.rel (%p949) target = $region33
  $region32: #{gat_forward.7} parent=0 // pred_region
    %v952 = vld [vmem:[#allocation3] sm:$0xff]
    %v953 = vld [vmem:[#allocation3 + $0x8] sm:$0xff]
    %v954 = vld [vmem:[#allocation3 + $0x10] sm:$0xff]
    %v955 = vld [vmem:[#allocation3 + $0x18] sm:$0xff]
    %v956 = vld [vmem:[#allocation3 + $0x20] sm:$0xff]
    %v957 = vld [vmem:[#allocation3 + $0x28] sm:$0xff]
    %v958 = vld [vmem:[#allocation3 + $0x30] sm:$0xff]
    %v959 = vld [vmem:[#allocation3 + $0x38] sm:$0xff]
    %v960 = vld [vmem:[#allocation3 + $0x40] sm:$0xff]
    %v961 = vld [vmem:[#allocation3 + $0x48] sm:$0xff]
    %v962 = vld [vmem:[#allocation3 + $0x50] sm:$0xff]
    %v963 = vld [vmem:[#allocation3 + $0x58] sm:$0xff]
    %v964 = vld [vmem:[#allocation3 + $0x60] sm:$0xff]
    %v965 = vld [vmem:[#allocation3 + $0x68] sm:$0xff]
    %v966 = vld [vmem:[#allocation3 + $0x70] sm:$0xff]
    %v967 = vld [vmem:[#allocation3 + $0x78] sm:$0xff]
    %v968 = vrcp.pop %v952
    %v969 = vrcp.pop %v953
    %v970 = vrcp.pop %v954
    %v971 = vrcp.pop %v955
    %v972 = vrcp.pop %v956
    %v973 = vrcp.pop %v957
    %v974 = vrcp.pop %v958
    %v975 = vrcp.pop %v959
    %v976 = vrcp.pop %v960
    %v977 = vrcp.pop %v961
    %v978 = vrcp.pop %v962
    %v979 = vrcp.pop %v963
    %v980 = vrcp.pop %v964
    %v981 = vrcp.pop %v965
    %v982 = vrcp.pop %v966
    %v983 = vrcp.pop %v967
    %v984 = vld [vmem:[#allocation4] sm:$0xff]
    %v985 = vld [vmem:[#allocation4 + $0x8] sm:$0xff]
    %v986 = vld [vmem:[#allocation4 + $0x10] sm:$0xff]
    %v987 = vld [vmem:[#allocation4 + $0x18] sm:$0xff]
    %v988 = vld [vmem:[#allocation4 + $0x20] sm:$0xff]
    %v989 = vld [vmem:[#allocation4 + $0x28] sm:$0xff]
    %v990 = vld [vmem:[#allocation4 + $0x30] sm:$0xff]
    %v991 = vld [vmem:[#allocation4 + $0x38] sm:$0xff]
    %v992 = vld [vmem:[#allocation4 + $0x40] sm:$0xff]
    %v993 = vld [vmem:[#allocation4 + $0x48] sm:$0xff]
    %v994 = vld [vmem:[#allocation4 + $0x50] sm:$0xff]
    %v995 = vld [vmem:[#allocation4 + $0x58] sm:$0xff]
    %v996 = vld [vmem:[#allocation4 + $0x60] sm:$0xff]
    %v997 = vld [vmem:[#allocation4 + $0x68] sm:$0xff]
    %v998 = vld [vmem:[#allocation4 + $0x70] sm:$0xff]
    %v999 = vld [vmem:[#allocation4 + $0x78] sm:$0xff]
    %1001 = vset.pattern.permute.xlu0 0
    %1002 = vperm.xlu0 %1001, %v968
    %v1003 = vpop.permute.xlu0 %1002
    %1006 = vset.pattern.permute.xlu0 0
    %1007 = vperm.xlu0 %1006, %v969
    %v1008 = vpop.permute.xlu0 %1007
    %1011 = vset.pattern.permute.xlu0 0
    %1012 = vperm.xlu0 %1011, %v970
    %v1013 = vpop.permute.xlu0 %1012
    %1016 = vset.pattern.permute.xlu0 0
    %1017 = vperm.xlu0 %1016, %v971
    %v1018 = vpop.permute.xlu0 %1017
    %1021 = vset.pattern.permute.xlu0 0
    %1022 = vperm.xlu0 %1021, %v972
    %v1023 = vpop.permute.xlu0 %1022
    %1026 = vset.pattern.permute.xlu0 0
    %1027 = vperm.xlu0 %1026, %v973
    %v1028 = vpop.permute.xlu0 %1027
    %1031 = vset.pattern.permute.xlu0 0
    %1032 = vperm.xlu0 %1031, %v974
    %v1033 = vpop.permute.xlu0 %1032
    %1036 = vset.pattern.permute.xlu0 0
    %1037 = vperm.xlu0 %1036, %v975
    %v1038 = vpop.permute.xlu0 %1037
    %1041 = vset.pattern.permute.xlu0 0
    %1042 = vperm.xlu0 %1041, %v976
    %v1043 = vpop.permute.xlu0 %1042
    %1046 = vset.pattern.permute.xlu0 0
    %1047 = vperm.xlu0 %1046, %v977
    %v1048 = vpop.permute.xlu0 %1047
    %1051 = vset.pattern.permute.xlu0 0
    %1052 = vperm.xlu0 %1051, %v978
    %v1053 = vpop.permute.xlu0 %1052
    %1056 = vset.pattern.permute.xlu0 0
    %1057 = vperm.xlu0 %1056, %v979
    %v1058 = vpop.permute.xlu0 %1057
    %1061 = vset.pattern.permute.xlu0 0
    %1062 = vperm.xlu0 %1061, %v980
    %v1063 = vpop.permute.xlu0 %1062
    %1066 = vset.pattern.permute.xlu0 0
    %1067 = vperm.xlu0 %1066, %v981
    %v1068 = vpop.permute.xlu0 %1067
    %1071 = vset.pattern.permute.xlu0 0
    %1072 = vperm.xlu0 %1071, %v982
    %v1073 = vpop.permute.xlu0 %1072
    %1076 = vset.pattern.permute.xlu0 0
    %1077 = vperm.xlu0 %1076, %v983
    %v1078 = vpop.permute.xlu0 %1077
    %v1080 = vmul.f32 %v984, %v1003
    %v1081 = vmul.f32 %v985, %v1008
    %v1082 = vmul.f32 %v986, %v1013
    %v1083 = vmul.f32 %v987, %v1018
    %v1084 = vmul.f32 %v988, %v1023
    %v1085 = vmul.f32 %v989, %v1028
    %v1086 = vmul.f32 %v990, %v1033
    %v1087 = vmul.f32 %v991, %v1038
    %v1088 = vmul.f32 %v992, %v1043
    %v1089 = vmul.f32 %v993, %v1048
    %v1090 = vmul.f32 %v994, %v1053
    %v1091 = vmul.f32 %v995, %v1058
    %v1092 = vmul.f32 %v996, %v1063
    %v1093 = vmul.f32 %v997, %v1068
    %v1094 = vmul.f32 %v998, %v1073
    %v1095 = vmul.f32 %v999, %v1078
    %v1096 = vld [vmem:[%s5] sm:$0x1]
    %v1098 = vperm.slane %v1096, 0
    %v1100 = vadd.f32 %v1080, %v1098
    %v1101 = vadd.f32 %v1081, %v1098
    %v1102 = vadd.f32 %v1082, %v1098
    %v1103 = vadd.f32 %v1083, %v1098
    %v1104 = vadd.f32 %v1084, %v1098
    %v1105 = vadd.f32 %v1085, %v1098
    %v1106 = vadd.f32 %v1086, %v1098
    %v1107 = vadd.f32 %v1087, %v1098
    %v1108 = vadd.f32 %v1088, %v1098
    %v1109 = vadd.f32 %v1089, %v1098
    %v1110 = vadd.f32 %v1090, %v1098
    %v1111 = vadd.f32 %v1091, %v1098
    %v1112 = vadd.f32 %v1092, %v1098
    %v1113 = vadd.f32 %v1093, %v1098
    %v1114 = vadd.f32 %v1094, %v1098
    %v1115 = vadd.f32 %v1095, %v1098
    %vm1116 = vcmask 48128
    %v1117 = vsel %vm1116, %v1100, -inf
    %1118 = vmax.xlane.f32.xlu0 %v1117
    %v1119 = vpop.xlane.xlu0 %1118
    %v1120 = vsel %vm1116, %v1101, -inf
    %1121 = vmax.xlane.f32.xlu0 %v1120
    %v1122 = vpop.xlane.xlu0 %1121
    %v1123 = vsel %vm1116, %v1102, -inf
    %1124 = vmax.xlane.f32.xlu0 %v1123
    %v1125 = vpop.xlane.xlu0 %1124
    %v1126 = vsel %vm1116, %v1103, -inf
    %1127 = vmax.xlane.f32.xlu0 %v1126
    %v1128 = vpop.xlane.xlu0 %1127
    %v1129 = vsel %vm1116, %v1104, -inf
    %1130 = vmax.xlane.f32.xlu0 %v1129
    %v1131 = vpop.xlane.xlu0 %1130
    %v1132 = vsel %vm1116, %v1105, -inf
    %1133 = vmax.xlane.f32.xlu0 %v1132
    %v1134 = vpop.xlane.xlu0 %1133
    %v1135 = vsel %vm1116, %v1106, -inf
    %1136 = vmax.xlane.f32.xlu0 %v1135
    %v1137 = vpop.xlane.xlu0 %1136
    %v1138 = vsel %vm1116, %v1107, -inf
    %1139 = vmax.xlane.f32.xlu0 %v1138
    %v1140 = vpop.xlane.xlu0 %1139
    %v1141 = vsel %vm1116, %v1108, -inf
    %1142 = vmax.xlane.f32.xlu0 %v1141
    %v1143 = vpop.xlane.xlu0 %1142
    %v1144 = vsel %vm1116, %v1109, -inf
    %1145 = vmax.xlane.f32.xlu0 %v1144
    %v1146 = vpop.xlane.xlu0 %1145
    %v1147 = vsel %vm1116, %v1110, -inf
    %1148 = vmax.xlane.f32.xlu0 %v1147
    %v1149 = vpop.xlane.xlu0 %1148
    %v1150 = vsel %vm1116, %v1111, -inf
    %1151 = vmax.xlane.f32.xlu0 %v1150
    %v1152 = vpop.xlane.xlu0 %1151
    %v1153 = vsel %vm1116, %v1112, -inf
    %1154 = vmax.xlane.f32.xlu0 %v1153
    %v1155 = vpop.xlane.xlu0 %1154
    %v1156 = vsel %vm1116, %v1113, -inf
    %1157 = vmax.xlane.f32.xlu0 %v1156
    %v1158 = vpop.xlane.xlu0 %1157
    %v1159 = vsel %vm1116, %v1114, -inf
    %1160 = vmax.xlane.f32.xlu0 %v1159
    %v1161 = vpop.xlane.xlu0 %1160
    %v1162 = vsel %vm1116, %v1115, -inf
    %1163 = vmax.xlane.f32.xlu0 %v1162
    %v1164 = vpop.xlane.xlu0 %1163
    %v1165 = vsub.f32 %v1100, %v1119
    %v1166 = vsub.f32 %v1101, %v1122
    %v1167 = vsub.f32 %v1102, %v1125
    %v1168 = vsub.f32 %v1103, %v1128
    %v1169 = vsub.f32 %v1104, %v1131
    %v1170 = vsub.f32 %v1105, %v1134
    %v1171 = vsub.f32 %v1106, %v1137
    %v1172 = vsub.f32 %v1107, %v1140
    %v1173 = vsub.f32 %v1108, %v1143
    %v1174 = vsub.f32 %v1109, %v1146
    %v1175 = vsub.f32 %v1110, %v1149
    %v1176 = vsub.f32 %v1111, %v1152
    %v1177 = vsub.f32 %v1112, %v1155
    %v1178 = vsub.f32 %v1113, %v1158
    %v1179 = vsub.f32 %v1114, %v1161
    %v1180 = vsub.f32 %v1115, %v1164
    %v1181 = vmul.f32 %v1165, 1.442695
    %v1182 = vpow.pop %v1181
    %v1183 = vmul.f32 %v1166, 1.442695
    %v1184 = vpow.pop %v1183
    %v1185 = vmul.f32 %v1167, 1.442695
    %v1186 = vpow.pop %v1185
    %v1187 = vmul.f32 %v1168, 1.442695
    %v1188 = vpow.pop %v1187
    %v1189 = vmul.f32 %v1169, 1.442695
    %v1190 = vpow.pop %v1189
    %v1191 = vmul.f32 %v1170, 1.442695
    %v1192 = vpow.pop %v1191
    %v1193 = vmul.f32 %v1171, 1.442695
    %v1194 = vpow.pop %v1193
    %v1195 = vmul.f32 %v1172, 1.442695
    %v1196 = vpow.pop %v1195
    %v1197 = vmul.f32 %v1173, 1.442695
    %v1198 = vpow.pop %v1197
    %v1199 = vmul.f32 %v1174, 1.442695
    %v1200 = vpow.pop %v1199
    %v1201 = vmul.f32 %v1175, 1.442695
    %v1202 = vpow.pop %v1201
    %v1203 = vmul.f32 %v1176, 1.442695
    %v1204 = vpow.pop %v1203
    %v1205 = vmul.f32 %v1177, 1.442695
    %v1206 = vpow.pop %v1205
    %v1207 = vmul.f32 %v1178, 1.442695
    %v1208 = vpow.pop %v1207
    %v1209 = vmul.f32 %v1179, 1.442695
    %v1210 = vpow.pop %v1209
    %v1211 = vmul.f32 %v1180, 1.442695
    %v1212 = vpow.pop %v1211
    %v1213 = vsel %vm1116, %v1182, 0.0
    %1214 = vadd.xlane.f32.xlu0 %v1213
    %v1215 = vpop.xlane.xlu0 %1214
    %v1216 = vsel %vm1116, %v1184, 0.0
    %1217 = vadd.xlane.f32.xlu0 %v1216
    %v1218 = vpop.xlane.xlu0 %1217
    %v1219 = vsel %vm1116, %v1186, 0.0
    %1220 = vadd.xlane.f32.xlu0 %v1219
    %v1221 = vpop.xlane.xlu0 %1220
    %v1222 = vsel %vm1116, %v1188, 0.0
    %1223 = vadd.xlane.f32.xlu0 %v1222
    %v1224 = vpop.xlane.xlu0 %1223
    %v1225 = vsel %vm1116, %v1190, 0.0
    %1226 = vadd.xlane.f32.xlu0 %v1225
    %v1227 = vpop.xlane.xlu0 %1226
    %v1228 = vsel %vm1116, %v1192, 0.0
    %1229 = vadd.xlane.f32.xlu0 %v1228
    %v1230 = vpop.xlane.xlu0 %1229
    %v1231 = vsel %vm1116, %v1194, 0.0
    %1232 = vadd.xlane.f32.xlu0 %v1231
    %v1233 = vpop.xlane.xlu0 %1232
    %v1234 = vsel %vm1116, %v1196, 0.0
    %1235 = vadd.xlane.f32.xlu0 %v1234
    %v1236 = vpop.xlane.xlu0 %1235
    %v1237 = vsel %vm1116, %v1198, 0.0
    %1238 = vadd.xlane.f32.xlu0 %v1237
    %v1239 = vpop.xlane.xlu0 %1238
    %v1240 = vsel %vm1116, %v1200, 0.0
    %1241 = vadd.xlane.f32.xlu0 %v1240
    %v1242 = vpop.xlane.xlu0 %1241
    %v1243 = vsel %vm1116, %v1202, 0.0
    %1244 = vadd.xlane.f32.xlu0 %v1243
    %v1245 = vpop.xlane.xlu0 %1244
    %v1246 = vsel %vm1116, %v1204, 0.0
    %1247 = vadd.xlane.f32.xlu0 %v1246
    %v1248 = vpop.xlane.xlu0 %1247
    %v1249 = vsel %vm1116, %v1206, 0.0
    %1250 = vadd.xlane.f32.xlu0 %v1249
    %v1251 = vpop.xlane.xlu0 %1250
    %v1252 = vsel %vm1116, %v1208, 0.0
    %1253 = vadd.xlane.f32.xlu0 %v1252
    %v1254 = vpop.xlane.xlu0 %1253
    %v1255 = vsel %vm1116, %v1210, 0.0
    %1256 = vadd.xlane.f32.xlu0 %v1255
    %v1257 = vpop.xlane.xlu0 %1256
    %v1258 = vsel %vm1116, %v1212, 0.0
    %1259 = vadd.xlane.f32.xlu0 %v1258
    %v1260 = vpop.xlane.xlu0 %1259
    %v1261 = vlog2.pop %v1215
    %v1262 = vmul.f32 %v1261, 0.6931472
    %v1263 = vlog2.pop %v1218
    %v1264 = vmul.f32 %v1263, 0.6931472
    %v1265 = vlog2.pop %v1221
    %v1266 = vmul.f32 %v1265, 0.6931472
    %v1267 = vlog2.pop %v1224
    %v1268 = vmul.f32 %v1267, 0.6931472
    %v1269 = vlog2.pop %v1227
    %v1270 = vmul.f32 %v1269, 0.6931472
    %v1271 = vlog2.pop %v1230
    %v1272 = vmul.f32 %v1271, 0.6931472
    %v1273 = vlog2.pop %v1233
    %v1274 = vmul.f32 %v1273, 0.6931472
    %v1275 = vlog2.pop %v1236
    %v1276 = vmul.f32 %v1275, 0.6931472
    %v1277 = vlog2.pop %v1239
    %v1278 = vmul.f32 %v1277, 0.6931472
    %v1279 = vlog2.pop %v1242
    %v1280 = vmul.f32 %v1279, 0.6931472
    %v1281 = vlog2.pop %v1245
    %v1282 = vmul.f32 %v1281, 0.6931472
    %v1283 = vlog2.pop %v1248
    %v1284 = vmul.f32 %v1283, 0.6931472
    %v1285 = vlog2.pop %v1251
    %v1286 = vmul.f32 %v1285, 0.6931472
    %v1287 = vlog2.pop %v1254
    %v1288 = vmul.f32 %v1287, 0.6931472
    %v1289 = vlog2.pop %v1257
    %v1290 = vmul.f32 %v1289, 0.6931472
    %v1291 = vlog2.pop %v1260
    %v1292 = vmul.f32 %v1291, 0.6931472
    %v1293 = vsub.f32 %v1165, %v1262
    %v1294 = vsub.f32 %v1166, %v1264
    %v1295 = vsub.f32 %v1167, %v1266
    %v1296 = vsub.f32 %v1168, %v1268
    %v1297 = vsub.f32 %v1169, %v1270
    %v1298 = vsub.f32 %v1170, %v1272
    %v1299 = vsub.f32 %v1171, %v1274
    %v1300 = vsub.f32 %v1172, %v1276
    %v1301 = vsub.f32 %v1173, %v1278
    %v1302 = vsub.f32 %v1174, %v1280
    %v1303 = vsub.f32 %v1175, %v1282
    %v1304 = vsub.f32 %v1176, %v1284
    %v1305 = vsub.f32 %v1177, %v1286
    %v1306 = vsub.f32 %v1178, %v1288
    %v1307 = vsub.f32 %v1179, %v1290
    %v1308 = vsub.f32 %v1180, %v1292
    %v1309 = vsel %vm1116, %v1293, 0.0
    %v1310 = vsel %vm1116, %v1294, 0.0
    %v1311 = vsel %vm1116, %v1295, 0.0
    %v1312 = vsel %vm1116, %v1296, 0.0
    %v1313 = vsel %vm1116, %v1297, 0.0
    %v1314 = vsel %vm1116, %v1298, 0.0
    %v1315 = vsel %vm1116, %v1299, 0.0
    %v1316 = vsel %vm1116, %v1300, 0.0
    %v1317 = vsel %vm1116, %v1301, 0.0
    %v1318 = vsel %vm1116, %v1302, 0.0
    %v1319 = vsel %vm1116, %v1303, 0.0
    %v1320 = vsel %vm1116, %v1304, 0.0
    %v1321 = vsel %vm1116, %v1305, 0.0
    %v1322 = vsel %vm1116, %v1306, 0.0
    %v1323 = vsel %vm1116, %v1307, 0.0
    %v1324 = vsel %vm1116, %v1308, 0.0
    %1325 = vst [vmem:[%s6] sm:$0xff] %v1309
    %1326 = vst [vmem:[%s6 + $0x8] sm:$0xff] %v1310
    %1327 = vst [vmem:[%s6 + $0x10] sm:$0xff] %v1311
    %1328 = vst [vmem:[%s6 + $0x18] sm:$0xff] %v1312
    %1329 = vst [vmem:[%s6 + $0x20] sm:$0xff] %v1313
    %1330 = vst [vmem:[%s6 + $0x28] sm:$0xff] %v1314
    %1331 = vst [vmem:[%s6 + $0x30] sm:$0xff] %v1315
    %1332 = vst [vmem:[%s6 + $0x38] sm:$0xff] %v1316
    %1333 = vst [vmem:[%s6 + $0x40] sm:$0xff] %v1317
    %1334 = vst [vmem:[%s6 + $0x48] sm:$0xff] %v1318
    %1335 = vst [vmem:[%s6 + $0x50] sm:$0xff] %v1319
    %1336 = vst [vmem:[%s6 + $0x58] sm:$0xff] %v1320
    %1337 = vst [vmem:[%s6 + $0x60] sm:$0xff] %v1321
    %1338 = vst [vmem:[%s6 + $0x68] sm:$0xff] %v1322
    %1339 = vst [vmem:[%s6 + $0x70] sm:$0xff] %v1323
    %1340 = vst [vmem:[%s6 + $0x78] sm:$0xff] %v1324
  $region33: #{gat_forward.7} parent=0 // pred_fallthru
    _
  // Predicated region
  $region34: #{gat_forward.7} parent=0 // pred_check
    _
  $region35: #{gat_forward.7} parent=0 // pred_check_branch
    %1342 = sbr.rel (0) target = $region37
  $region36: #{gat_forward.7} parent=0 // pred_region
    _
  $region37: #{gat_forward.7} parent=0 // pred_fallthru
    _
  // Predicated region
  $region38: #{gat_forward.7} parent=0 // pred_check
    _
  $region39: #{gat_forward.7} parent=0 // pred_check_branch
    %1344 = sbr.rel (0) target = $region41
  $region40: #{gat_forward.7} parent=0 // pred_region
    _
  $region41: #{gat_forward.7} parent=0 // pred_fallthru
    _

// kernel: gat_forward.5
$region0: #{gat_forward.5}
  #allocation0 [shape = 'u32[]', space=smem, size = 0x4, offset = 0x4, fixed_abs, tag = 'smem constant byte address 0x4 - core index']
  #allocation1 [shape = 'u32[72,128]{1,0:T(1,128)}', space=vmem, size = 0x9000, scoped, tag = 'internal scratch']
  #allocation2 [shape = 'f32[128,8]{1,0:T(8,128)}', space=vmem, size = 0x10000, scoped, tag = 'scratch operand']
  #allocation3 [shape = 'f32[128,8]{1,0:T(8,128)}', space=vmem, size = 0x10000, scoped, tag = 'scratch operand']
  #allocation4 [shape = 'f32[128,64]{1,0:T(8,128)}', space=vmem, size = 0x10000, scoped, tag = 'scratch operand']
  #allocation5 [shape = 's32[1]{0}', space=sflag, size = 0x4, scoped, tag = 'scoped memory for gat_forward.5']
  #allocation6 [shape = 's32[1,1]{1,0:T(1,128)S(6)}', space=smem, size = 0x200, scoped, tag = 'prefetched SMEM operand 0']
  %s0 = inlined_call_operand.<no memory space> [shape: s32[1,1], index: 0, kind: input, shape index: {}]
  %s1 = inlined_call_operand.vmem [shape: f32[128,8], index: 1, kind: input, shape index: {}]
  %s2 = inlined_call_operand.vmem [shape: f32[8,128], index: 2, kind: input, shape index: {}]
  %s3 = inlined_call_operand.vmem [shape: bf16[128,128], index: 3, kind: input, shape index: {}]
  %s4 = inlined_call_operand.vmem [shape: bf16[128,128], index: 4, kind: input, shape index: {}]
  %s5 = inlined_call_operand.vmem [shape: f32[1,64], index: 5, kind: input, shape index: {}]
  %s6 = inlined_call_operand.vmem [shape: f32[128,128], index: 6, kind: output, shape index: {}]
  %s7 = sld [smem:[#allocation0]]
  $region42: #{gat_forward.5} parent=0
    _
  %s9 = ssub.s32 1, %s7
  %s10 = scalar_select 0, %s9, %s7
  %11 = sst [smem:[#allocation6]] %s0
  // Predicated region
  $region2: #{gat_forward.5} parent=0 // pred_check
    _
  $region3: #{gat_forward.5} parent=0 // pred_check_branch
    %13 = sbr.rel (0) target = $region5
  $region4: #{gat_forward.5} parent=0 // pred_region
    _
  $region5: #{gat_forward.5} parent=0 // pred_fallthru
    _
  // Predicated region
  $region6: #{gat_forward.5} parent=0 // pred_check
    _
  $region7: #{gat_forward.5} parent=0 // pred_check_branch
    %15 = sbr.rel (0) target = $region9
  $region8: #{gat_forward.5} parent=0 // pred_region
    _
  $region9: #{gat_forward.5} parent=0 // pred_fallthru
    _
  // Predicated region
  $region10: #{gat_forward.5} parent=0 // pred_check
    _
  $region11: #{gat_forward.5} parent=0 // pred_check_branch
    %17 = sbr.rel (0) target = $region13
  $region12: #{gat_forward.5} parent=0 // pred_region
    %s18 = sadd.s32 0, 0
    %s19 = smul.u32 %s18, 128
    %s20 = sadd.s32 %s19, 0
    %s21 = sld [smem:[#allocation6 + %s20]]
    %p22 = scmp.gt.s32.totalorder %s21, 0
    %s23 = scalar_select %p22, 0, 0
    %p24 = scmp.lt.s32.totalorder %s23, 0
    %s25 = scalar_select %p24, %s23, 0
    %s26 = smul.addr %s25, 4
    %s27 = scalar_lea.vmem %s3, %s26
    %s28 = sadd.s32 0, 0
    %s29 = smul.u32 %s28, 128
    %s30 = sadd.s32 %s29, 0
    %s31 = sld [smem:[#allocation6 + %s30]]
    %p32 = scmp.gt.s32.totalorder %s31, 0
    %s33 = scalar_select %p32, 0, 0
  $region13: #{gat_forward.5} parent=0 // pred_fallthru
    _
  // Predicated region
  $region14: #{gat_forward.5} parent=0 // pred_check
    _
  $region15: #{gat_forward.5} parent=0 // pred_check_branch
    %35 = sbr.rel (0) target = $region17
  $region16: #{gat_forward.5} parent=0 // pred_region
    _
  $region17: #{gat_forward.5} parent=0 // pred_fallthru
    _
  // Predicated region
  $region18: #{gat_forward.5} parent=0 // pred_check
    _
  $region19: #{gat_forward.5} parent=0 // pred_check_branch
    %37 = sbr.rel (0) target = $region21
  $region20: #{gat_forward.5} parent=0 // pred_region
    _
  $region21: #{gat_forward.5} parent=0 // pred_fallthru
    _
  %s38 = sadd.s32 0, 0
  %s39 = smul.u32 %s38, 128
  %s40 = sadd.s32 %s39, 0
  %s41 = sld [smem:[#allocation6 + %s40]]
  %p42 = scmp.gt.s32.totalorder %s41, 0
  %s43 = scalar_select %p42, 0, 0
  %p44 = scmp.lt.s32.totalorder %s43, 0
  %s45 = scalar_select %p44, %s43, 0
  %s46 = smul.addr %s45, 4
  %s47 = scalar_lea.vmem %s3, %s46
  %s48 = sadd.s32 0, 0
  %s49 = smul.u32 %s48, 128
  %s50 = sadd.s32 %s49, 0
  %s51 = sld [smem:[#allocation6 + %s50]]
  %p52 = scmp.gt.s32.totalorder %s51, 0
  %s53 = scalar_select %p52, 0, 0
  %p54 = scmp.lt.s32.totalorder %s53, 0
  %s55 = scalar_select %p54, %s53, 0
  %s56 = smul.addr %s55, 4
  %s57 = scalar_lea.vmem %s3, %s56
  %s58 = sadd.s32 0, 0
  %s59 = smul.u32 %s58, 128
  %s60 = sadd.s32 %s59, 0
  %s61 = sld [smem:[#allocation6 + %s60]]
  %p62 = scmp.gt.s32.totalorder %s61, 0
  %s63 = scalar_select %p62, 0, 0
  %p64 = scmp.eq.s32.totalorder 0, 0
  // Predicated region
  $region22: #{gat_forward.5} parent=0 // pred_check
    %p65 = pneg %p64
  $region23: #{gat_forward.5} parent=0 // pred_check_branch
    %67 = sbr.rel (%p65) target = $region25
  $region24: #{gat_forward.5} parent=0 // pred_region
    %vm68 = vcmask 64512
    %69 = vst.msk [vmem:[#allocation2] sm:$0xff] %vm68, -1e+30
    %70 = vst.msk [vmem:[#allocation2 + $0x8] sm:$0xff] %vm68, -1e+30
    %71 = vst.msk [vmem:[#allocation2 + $0x10] sm:$0xff] %vm68, -1e+30
    %72 = vst.msk [vmem:[#allocation2 + $0x18] sm:$0xff] %vm68, -1e+30
    %73 = vst.msk [vmem:[#allocation2 + $0x20] sm:$0xff] %vm68, -1e+30
    %74 = vst.msk [vmem:[#allocation2 + $0x28] sm:$0xff] %vm68, -1e+30
    %75 = vst.msk [vmem:[#allocation2 + $0x30] sm:$0xff] %vm68, -1e+30
    %76 = vst.msk [vmem:[#allocation2 + $0x38] sm:$0xff] %vm68, -1e+30
    %77 = vst.msk [vmem:[#allocation2 + $0x40] sm:$0xff] %vm68, -1e+30
    %78 = vst.msk [vmem:[#allocation2 + $0x48] sm:$0xff] %vm68, -1e+30
    %79 = vst.msk [vmem:[#allocation2 + $0x50] sm:$0xff] %vm68, -1e+30
    %80 = vst.msk [vmem:[#allocation2 + $0x58] sm:$0xff] %vm68, -1e+30
    %81 = vst.msk [vmem:[#allocation2 + $0x60] sm:$0xff] %vm68, -1e+30
    %82 = vst.msk [vmem:[#allocation2 + $0x68] sm:$0xff] %vm68, -1e+30
    %83 = vst.msk [vmem:[#allocation2 + $0x70] sm:$0xff] %vm68, -1e+30
    %84 = vst.msk [vmem:[#allocation2 + $0x78] sm:$0xff] %vm68, -1e+30
    %85 = vst.msk [vmem:[#allocation3] sm:$0xff] %vm68, 0.0
    %86 = vst.msk [vmem:[#allocation3 + $0x8] sm:$0xff] %vm68, 0.0
    %87 = vst.msk [vmem:[#allocation3 + $0x10] sm:$0xff] %vm68, 0.0
    %88 = vst.msk [vmem:[#allocation3 + $0x18] sm:$0xff] %vm68, 0.0
    %89 = vst.msk [vmem:[#allocation3 + $0x20] sm:$0xff] %vm68, 0.0
    %90 = vst.msk [vmem:[#allocation3 + $0x28] sm:$0xff] %vm68, 0.0
    %91 = vst.msk [vmem:[#allocation3 + $0x30] sm:$0xff] %vm68, 0.0
    %92 = vst.msk [vmem:[#allocation3 + $0x38] sm:$0xff] %vm68, 0.0
    %93 = vst.msk [vmem:[#allocation3 + $0x40] sm:$0xff] %vm68, 0.0
    %94 = vst.msk [vmem:[#allocation3 + $0x48] sm:$0xff] %vm68, 0.0
    %95 = vst.msk [vmem:[#allocation3 + $0x50] sm:$0xff] %vm68, 0.0
    %96 = vst.msk [vmem:[#allocation3 + $0x58] sm:$0xff] %vm68, 0.0
    %97 = vst.msk [vmem:[#allocation3 + $0x60] sm:$0xff] %vm68, 0.0
    %98 = vst.msk [vmem:[#allocation3 + $0x68] sm:$0xff] %vm68, 0.0
    %99 = vst.msk [vmem:[#allocation3 + $0x70] sm:$0xff] %vm68, 0.0
    %100 = vst.msk [vmem:[#allocation3 + $0x78] sm:$0xff] %vm68, 0.0
    %vm101 = vcmask 523264
    %102 = vst.msk [vmem:[#allocation4] sm:$0xff] %vm101, 0.0
    %103 = vst.msk [vmem:[#allocation4 + $0x8] sm:$0xff] %vm101, 0.0
    %104 = vst.msk [vmem:[#allocation4 + $0x10] sm:$0xff] %vm101, 0.0
    %105 = vst.msk [vmem:[#allocation4 + $0x18] sm:$0xff] %vm101, 0.0
    %106 = vst.msk [vmem:[#allocation4 + $0x20] sm:$0xff] %vm101, 0.0
    %107 = vst.msk [vmem:[#allocation4 + $0x28] sm:$0xff] %vm101, 0.0
    %108 = vst.msk [vmem:[#allocation4 + $0x30] sm:$0xff] %vm101, 0.0
    %109 = vst.msk [vmem:[#allocation4 + $0x38] sm:$0xff] %vm101, 0.0
    %110 = vst.msk [vmem:[#allocation4 + $0x40] sm:$0xff] %vm101, 0.0
    %111 = vst.msk [vmem:[#allocation4 + $0x48] sm:$0xff] %vm101, 0.0
    %112 = vst.msk [vmem:[#allocation4 + $0x50] sm:$0xff] %vm101, 0.0
    %113 = vst.msk [vmem:[#allocation4 + $0x58] sm:$0xff] %vm101, 0.0
    %114 = vst.msk [vmem:[#allocation4 + $0x60] sm:$0xff] %vm101, 0.0
    %115 = vst.msk [vmem:[#allocation4 + $0x68] sm:$0xff] %vm101, 0.0
    %116 = vst.msk [vmem:[#allocation4 + $0x70] sm:$0xff] %vm101, 0.0
    %117 = vst.msk [vmem:[#allocation4 + $0x78] sm:$0xff] %vm101, 0.0
  $region25: #{gat_forward.5} parent=0 // pred_fallthru
    _
  %s118 = sadd.s32 0, 0
  %s119 = smul.u32 %s118, 128
  %s120 = sadd.s32 %s119, 0
  %s121 = sld [smem:[#allocation6 + %s120]]
  %p122 = scmp.gt.s32.totalorder %s121, 0
  // Predicated region
  $region26: #{gat_forward.5} parent=0 // pred_check
    %p123 = pneg %p122
  $region27: #{gat_forward.5} parent=0 // pred_check_branch
    %125 = sbr.rel (%p123) target = $region29
  $region28: #{gat_forward.5} parent=0 // pred_region
    %s126 = smul.u32 0, 128
    %v127 = vld [vmem:[%s1] sm:$0xff]
    %v128 = vld [vmem:[%s1 + $0x8] sm:$0xff]
    %v129 = vld [vmem:[%s1 + $0x10] sm:$0xff]
    %v130 = vld [vmem:[%s1 + $0x18] sm:$0xff]
    %v131 = vld [vmem:[%s1 + $0x20] sm:$0xff]
    %v132 = vld [vmem:[%s1 + $0x28] sm:$0xff]
    %v133 = vld [vmem:[%s1 + $0x30] sm:$0xff]
    %v134 = vld [vmem:[%s1 + $0x38] sm:$0xff]
    %v135 = vld [vmem:[%s1 + $0x40] sm:$0xff]
    %v136 = vld [vmem:[%s1 + $0x48] sm:$0xff]
    %v137 = vld [vmem:[%s1 + $0x50] sm:$0xff]
    %v138 = vld [vmem:[%s1 + $0x58] sm:$0xff]
    %v139 = vld [vmem:[%s1 + $0x60] sm:$0xff]
    %v140 = vld [vmem:[%s1 + $0x68] sm:$0xff]
    %v141 = vld [vmem:[%s1 + $0x70] sm:$0xff]
    %v142 = vld [vmem:[%s1 + $0x78] sm:$0xff]
    %s143 = sshra.s32 %s126, 7
    %s144 = sand.u32 %s126, 127
    %s145 = scalar_lea.vmem %s2, %s143
    %v146 = vld [vmem:[%s145] sm:$0xff]
    %v147 = vld [vmem:[%s57] sm:$0xf]
    %v148 = vld [vmem:[%s57 + $0x4] sm:$0xf]
    %v149 = vld [vmem:[%s57 + $0x8] sm:$0xf]
    %v150 = vld [vmem:[%s57 + $0xc] sm:$0xf]
    %v151 = vld [vmem:[%s57 + $0x10] sm:$0xf]
    %v152 = vld [vmem:[%s57 + $0x14] sm:$0xf]
    %v153 = vld [vmem:[%s57 + $0x18] sm:$0xf]
    %v154 = vld [vmem:[%s57 + $0x1c] sm:$0xf]
    %v155 = vld [vmem:[%s57 + $0x20] sm:$0xf]
    %v156 = vld [vmem:[%s57 + $0x24] sm:$0xf]
    %v157 = vld [vmem:[%s57 + $0x28] sm:$0xf]
    %v158 = vld [vmem:[%s57 + $0x2c] sm:$0xf]
    %v159 = vld [vmem:[%s57 + $0x30] sm:$0xf]
    %v160 = vld [vmem:[%s57 + $0x34] sm:$0xf]
    %v161 = vld [vmem:[%s57 + $0x38] sm:$0xf]
    %v162 = vld [vmem:[%s57 + $0x3c] sm:$0xf]
    %s163 = sshra.s32 %s126, 3
    %s164 = sand.u32 %s126, 7
    %s165 = smul.addr %s163, 4
    %s166 = scalar_lea.vmem %s4, %s165
    %v167 = vld [vmem:[%s166] sm:$0xf]
    %v168 = vld [vmem:[%s166 + $0x4] sm:$0xf]
    %v169 = vld [vmem:[%s166 + $0x8] sm:$0xf]
    %v170 = vld [vmem:[%s166 + $0xc] sm:$0xf]
    %v171 = vld [vmem:[%s166 + $0x10] sm:$0xf]
    %v172 = vld [vmem:[%s166 + $0x14] sm:$0xf]
    %v173 = vld [vmem:[%s166 + $0x18] sm:$0xf]
    %v174 = vld [vmem:[%s166 + $0x1c] sm:$0xf]
    %v175 = vld [vmem:[%s166 + $0x20] sm:$0xf]
    %v176 = vld [vmem:[%s166 + $0x24] sm:$0xf]
    %v177 = vld [vmem:[%s166 + $0x28] sm:$0xf]
    %v178 = vld [vmem:[%s166 + $0x2c] sm:$0xf]
    %v179 = vld [vmem:[%s166 + $0x30] sm:$0xf]
    %v180 = vld [vmem:[%s166 + $0x34] sm:$0xf]
    %v181 = vld [vmem:[%s166 + $0x38] sm:$0xf]
    %v182 = vld [vmem:[%s166 + $0x3c] sm:$0xf]
    %v183 = vld [vmem:[#allocation2] sm:$0xff]
    %v184 = vld [vmem:[#allocation2 + $0x8] sm:$0xff]
    %v185 = vld [vmem:[#allocation2 + $0x10] sm:$0xff]
    %v186 = vld [vmem:[#allocation2 + $0x18] sm:$0xff]
    %v187 = vld [vmem:[#allocation2 + $0x20] sm:$0xff]
    %v188 = vld [vmem:[#allocation2 + $0x28] sm:$0xff]
    %v189 = vld [vmem:[#allocation2 + $0x30] sm:$0xff]
    %v190 = vld [vmem:[#allocation2 + $0x38] sm:$0xff]
    %v191 = vld [vmem:[#allocation2 + $0x40] sm:$0xff]
    %v192 = vld [vmem:[#allocation2 + $0x48] sm:$0xff]
    %v193 = vld [vmem:[#allocation2 + $0x50] sm:$0xff]
    %v194 = vld [vmem:[#allocation2 + $0x58] sm:$0xff]
    %v195 = vld [vmem:[#allocation2 + $0x60] sm:$0xff]
    %v196 = vld [vmem:[#allocation2 + $0x68] sm:$0xff]
    %v197 = vld [vmem:[#allocation2 + $0x70] sm:$0xff]
    %v198 = vld [vmem:[#allocation2 + $0x78] sm:$0xff]
    %v199 = vld [vmem:[#allocation3] sm:$0xff]
    %v200 = vld [vmem:[#allocation3 + $0x8] sm:$0xff]
    %v201 = vld [vmem:[#allocation3 + $0x10] sm:$0xff]
    %v202 = vld [vmem:[#allocation3 + $0x18] sm:$0xff]
    %v203 = vld [vmem:[#allocation3 + $0x20] sm:$0xff]
    %v204 = vld [vmem:[#allocation3 + $0x28] sm:$0xff]
    %v205 = vld [vmem:[#allocation3 + $0x30] sm:$0xff]
    %v206 = vld [vmem:[#allocation3 + $0x38] sm:$0xff]
    %v207 = vld [vmem:[#allocation3 + $0x40] sm:$0xff]
    %v208 = vld [vmem:[#allocation3 + $0x48] sm:$0xff]
    %v209 = vld [vmem:[#allocation3 + $0x50] sm:$0xff]
    %v210 = vld [vmem:[#allocation3 + $0x58] sm:$0xff]
    %v211 = vld [vmem:[#allocation3 + $0x60] sm:$0xff]
    %v212 = vld [vmem:[#allocation3 + $0x68] sm:$0xff]
    %v213 = vld [vmem:[#allocation3 + $0x70] sm:$0xff]
    %v214 = vld [vmem:[#allocation3 + $0x78] sm:$0xff]
    %216 = vset.pattern.permute.xlu0 0
    %217 = vperm.xlu0 %216, %v127
    %v218 = vpop.permute.xlu0 %217
    %221 = vset.pattern.permute.xlu0 0
    %222 = vperm.xlu0 %221, %v128
    %v223 = vpop.permute.xlu0 %222
    %226 = vset.pattern.permute.xlu0 0
    %227 = vperm.xlu0 %226, %v129
    %v228 = vpop.permute.xlu0 %227
    %231 = vset.pattern.permute.xlu0 0
    %232 = vperm.xlu0 %231, %v130
    %v233 = vpop.permute.xlu0 %232
    %236 = vset.pattern.permute.xlu0 0
    %237 = vperm.xlu0 %236, %v131
    %v238 = vpop.permute.xlu0 %237
    %241 = vset.pattern.permute.xlu0 0
    %242 = vperm.xlu0 %241, %v132
    %v243 = vpop.permute.xlu0 %242
    %246 = vset.pattern.permute.xlu0 0
    %247 = vperm.xlu0 %246, %v133
    %v248 = vpop.permute.xlu0 %247
    %251 = vset.pattern.permute.xlu0 0
    %252 = vperm.xlu0 %251, %v134
    %v253 = vpop.permute.xlu0 %252
    %256 = vset.pattern.permute.xlu0 0
    %257 = vperm.xlu0 %256, %v135
    %v258 = vpop.permute.xlu0 %257
    %261 = vset.pattern.permute.xlu0 0
    %262 = vperm.xlu0 %261, %v136
    %v263 = vpop.permute.xlu0 %262
    %266 = vset.pattern.permute.xlu0 0
    %267 = vperm.xlu0 %266, %v137
    %v268 = vpop.permute.xlu0 %267
    %271 = vset.pattern.permute.xlu0 0
    %272 = vperm.xlu0 %271, %v138
    %v273 = vpop.permute.xlu0 %272
    %276 = vset.pattern.permute.xlu0 0
    %277 = vperm.xlu0 %276, %v139
    %v278 = vpop.permute.xlu0 %277
    %281 = vset.pattern.permute.xlu0 0
    %282 = vperm.xlu0 %281, %v140
    %v283 = vpop.permute.xlu0 %282
    %286 = vset.pattern.permute.xlu0 0
    %287 = vperm.xlu0 %286, %v141
    %v288 = vpop.permute.xlu0 %287
    %291 = vset.pattern.permute.xlu0 0
    %292 = vperm.xlu0 %291, %v142
    %v293 = vpop.permute.xlu0 %292
    %v295 = vperm.slane %v146, 0
    %v296 = vadd.f32 %v218, %v295
    %v297 = vadd.f32 %v223, %v295
    %v298 = vadd.f32 %v228, %v295
    %v299 = vadd.f32 %v233, %v295
    %v300 = vadd.f32 %v238, %v295
    %v301 = vadd.f32 %v243, %v295
    %v302 = vadd.f32 %v248, %v295
    %v303 = vadd.f32 %v253, %v295
    %v304 = vadd.f32 %v258, %v295
    %v305 = vadd.f32 %v263, %v295
    %v306 = vadd.f32 %v268, %v295
    %v307 = vadd.f32 %v273, %v295
    %v308 = vadd.f32 %v278, %v295
    %v309 = vadd.f32 %v283, %v295
    %v310 = vadd.f32 %v288, %v295
    %v311 = vadd.f32 %v293, %v295
    %v312 = vmul.f32 %v296, 0.2
    %v313 = vmul.f32 %v297, 0.2
    %v314 = vmul.f32 %v298, 0.2
    %v315 = vmul.f32 %v299, 0.2
    %v316 = vmul.f32 %v300, 0.2
    %v317 = vmul.f32 %v301, 0.2
    %v318 = vmul.f32 %v302, 0.2
    %v319 = vmul.f32 %v303, 0.2
    %v320 = vmul.f32 %v304, 0.2
    %v321 = vmul.f32 %v305, 0.2
    %v322 = vmul.f32 %v306, 0.2
    %v323 = vmul.f32 %v307, 0.2
    %v324 = vmul.f32 %v308, 0.2
    %v325 = vmul.f32 %v309, 0.2
    %v326 = vmul.f32 %v310, 0.2
    %v327 = vmul.f32 %v311, 0.2
    %v328 = vmax.f32 %v296, %v312
    %v329 = vmax.f32 %v297, %v313
    %v330 = vmax.f32 %v298, %v314
    %v331 = vmax.f32 %v299, %v315
    %v332 = vmax.f32 %v300, %v316
    %v333 = vmax.f32 %v301, %v317
    %v334 = vmax.f32 %v302, %v318
    %v335 = vmax.f32 %v303, %v319
    %v336 = vmax.f32 %v304, %v320
    %v337 = vmax.f32 %v305, %v321
    %v338 = vmax.f32 %v306, %v322
    %v339 = vmax.f32 %v307, %v323
    %v340 = vmax.f32 %v308, %v324
    %v341 = vmax.f32 %v309, %v325
    %v342 = vmax.f32 %v310, %v326
    %v343 = vmax.f32 %v311, %v327
    %344 = vmax.xlane.f32.xlu0 %v328
    %v345 = vpop.xlane.xlu0 %344
    %346 = vmax.xlane.f32.xlu0 %v329
    %v347 = vpop.xlane.xlu0 %346
    %348 = vmax.xlane.f32.xlu0 %v330
    %v349 = vpop.xlane.xlu0 %348
    %350 = vmax.xlane.f32.xlu0 %v331
    %v351 = vpop.xlane.xlu0 %350
    %352 = vmax.xlane.f32.xlu0 %v332
    %v353 = vpop.xlane.xlu0 %352
    %354 = vmax.xlane.f32.xlu0 %v333
    %v355 = vpop.xlane.xlu0 %354
    %356 = vmax.xlane.f32.xlu0 %v334
    %v357 = vpop.xlane.xlu0 %356
    %358 = vmax.xlane.f32.xlu0 %v335
    %v359 = vpop.xlane.xlu0 %358
    %360 = vmax.xlane.f32.xlu0 %v336
    %v361 = vpop.xlane.xlu0 %360
    %362 = vmax.xlane.f32.xlu0 %v337
    %v363 = vpop.xlane.xlu0 %362
    %364 = vmax.xlane.f32.xlu0 %v338
    %v365 = vpop.xlane.xlu0 %364
    %366 = vmax.xlane.f32.xlu0 %v339
    %v367 = vpop.xlane.xlu0 %366
    %368 = vmax.xlane.f32.xlu0 %v340
    %v369 = vpop.xlane.xlu0 %368
    %370 = vmax.xlane.f32.xlu0 %v341
    %v371 = vpop.xlane.xlu0 %370
    %372 = vmax.xlane.f32.xlu0 %v342
    %v373 = vpop.xlane.xlu0 %372
    %374 = vmax.xlane.f32.xlu0 %v343
    %v375 = vpop.xlane.xlu0 %374
    %v376 = vmax.f32 %v183, %v345
    %v377 = vmax.f32 %v184, %v347
    %v378 = vmax.f32 %v185, %v349
    %v379 = vmax.f32 %v186, %v351
    %v380 = vmax.f32 %v187, %v353
    %v381 = vmax.f32 %v188, %v355
    %v382 = vmax.f32 %v189, %v357
    %v383 = vmax.f32 %v190, %v359
    %v384 = vmax.f32 %v191, %v361
    %v385 = vmax.f32 %v192, %v363
    %v386 = vmax.f32 %v193, %v365
    %v387 = vmax.f32 %v194, %v367
    %v388 = vmax.f32 %v195, %v369
    %v389 = vmax.f32 %v196, %v371
    %v390 = vmax.f32 %v197, %v373
    %v391 = vmax.f32 %v198, %v375
    %v392 = vsub.f32 %v183, %v376
    %v393 = vsub.f32 %v184, %v377
    %v394 = vsub.f32 %v185, %v378
    %v395 = vsub.f32 %v186, %v379
    %v396 = vsub.f32 %v187, %v380
    %v397 = vsub.f32 %v188, %v381
    %v398 = vsub.f32 %v189, %v382
    %v399 = vsub.f32 %v190, %v383
    %v400 = vsub.f32 %v191, %v384
    %v401 = vsub.f32 %v192, %v385
    %v402 = vsub.f32 %v193, %v386
    %v403 = vsub.f32 %v194, %v387
    %v404 = vsub.f32 %v195, %v388
    %v405 = vsub.f32 %v196, %v389
    %v406 = vsub.f32 %v197, %v390
    %v407 = vsub.f32 %v198, %v391
    %v408 = vmul.f32 %v392, 1.442695
    %v409 = vpow.pop %v408
    %v410 = vmul.f32 %v393, 1.442695
    %v411 = vpow.pop %v410
    %v412 = vmul.f32 %v394, 1.442695
    %v413 = vpow.pop %v412
    %v414 = vmul.f32 %v395, 1.442695
    %v415 = vpow.pop %v414
    %v416 = vmul.f32 %v396, 1.442695
    %v417 = vpow.pop %v416
    %v418 = vmul.f32 %v397, 1.442695
    %v419 = vpow.pop %v418
    %v420 = vmul.f32 %v398, 1.442695
    %v421 = vpow.pop %v420
    %v422 = vmul.f32 %v399, 1.442695
    %v423 = vpow.pop %v422
    %v424 = vmul.f32 %v400, 1.442695
    %v425 = vpow.pop %v424
    %v426 = vmul.f32 %v401, 1.442695
    %v427 = vpow.pop %v426
    %v428 = vmul.f32 %v402, 1.442695
    %v429 = vpow.pop %v428
    %v430 = vmul.f32 %v403, 1.442695
    %v431 = vpow.pop %v430
    %v432 = vmul.f32 %v404, 1.442695
    %v433 = vpow.pop %v432
    %v434 = vmul.f32 %v405, 1.442695
    %v435 = vpow.pop %v434
    %v436 = vmul.f32 %v406, 1.442695
    %v437 = vpow.pop %v436
    %v438 = vmul.f32 %v407, 1.442695
    %v439 = vpow.pop %v438
    %441 = vset.pattern.permute.xlu0 0
    %442 = vperm.xlu0 %441, %v376
    %v443 = vpop.permute.xlu0 %442
    %446 = vset.pattern.permute.xlu0 0
    %447 = vperm.xlu0 %446, %v377
    %v448 = vpop.permute.xlu0 %447
    %451 = vset.pattern.permute.xlu0 0
    %452 = vperm.xlu0 %451, %v378
    %v453 = vpop.permute.xlu0 %452
    %456 = vset.pattern.permute.xlu0 0
    %457 = vperm.xlu0 %456, %v379
    %v458 = vpop.permute.xlu0 %457
    %461 = vset.pattern.permute.xlu0 0
    %462 = vperm.xlu0 %461, %v380
    %v463 = vpop.permute.xlu0 %462
    %466 = vset.pattern.permute.xlu0 0
    %467 = vperm.xlu0 %466, %v381
    %v468 = vpop.permute.xlu0 %467
    %471 = vset.pattern.permute.xlu0 0
    %472 = vperm.xlu0 %471, %v382
    %v473 = vpop.permute.xlu0 %472
    %476 = vset.pattern.permute.xlu0 0
    %477 = vperm.xlu0 %476, %v383
    %v478 = vpop.permute.xlu0 %477
    %481 = vset.pattern.permute.xlu0 0
    %482 = vperm.xlu0 %481, %v384
    %v483 = vpop.permute.xlu0 %482
    %486 = vset.pattern.permute.xlu0 0
    %487 = vperm.xlu0 %486, %v385
    %v488 = vpop.permute.xlu0 %487
    %491 = vset.pattern.permute.xlu0 0
    %492 = vperm.xlu0 %491, %v386
    %v493 = vpop.permute.xlu0 %492
    %496 = vset.pattern.permute.xlu0 0
    %497 = vperm.xlu0 %496, %v387
    %v498 = vpop.permute.xlu0 %497
    %501 = vset.pattern.permute.xlu0 0
    %502 = vperm.xlu0 %501, %v388
    %v503 = vpop.permute.xlu0 %502
    %506 = vset.pattern.permute.xlu0 0
    %507 = vperm.xlu0 %506, %v389
    %v508 = vpop.permute.xlu0 %507
    %511 = vset.pattern.permute.xlu0 0
    %512 = vperm.xlu0 %511, %v390
    %v513 = vpop.permute.xlu0 %512
    %516 = vset.pattern.permute.xlu0 0
    %517 = vperm.xlu0 %516, %v391
    %v518 = vpop.permute.xlu0 %517
    %v520 = vsub.f32 %v328, %v443
    %v521 = vsub.f32 %v329, %v448
    %v522 = vsub.f32 %v330, %v453
    %v523 = vsub.f32 %v331, %v458
    %v524 = vsub.f32 %v332, %v463
    %v525 = vsub.f32 %v333, %v468
    %v526 = vsub.f32 %v334, %v473
    %v527 = vsub.f32 %v335, %v478
    %v528 = vsub.f32 %v336, %v483
    %v529 = vsub.f32 %v337, %v488
    %v530 = vsub.f32 %v338, %v493
    %v531 = vsub.f32 %v339, %v498
    %v532 = vsub.f32 %v340, %v503
    %v533 = vsub.f32 %v341, %v508
    %v534 = vsub.f32 %v342, %v513
    %v535 = vsub.f32 %v343, %v518
    %v536 = vmul.f32 %v520, 1.442695
    %v537 = vpow.pop %v536
    %v538 = vmul.f32 %v521, 1.442695
    %v539 = vpow.pop %v538
    %v540 = vmul.f32 %v522, 1.442695
    %v541 = vpow.pop %v540
    %v542 = vmul.f32 %v523, 1.442695
    %v543 = vpow.pop %v542
    %v544 = vmul.f32 %v524, 1.442695
    %v545 = vpow.pop %v544
    %v546 = vmul.f32 %v525, 1.442695
    %v547 = vpow.pop %v546
    %v548 = vmul.f32 %v526, 1.442695
    %v549 = vpow.pop %v548
    %v550 = vmul.f32 %v527, 1.442695
    %v551 = vpow.pop %v550
    %v552 = vmul.f32 %v528, 1.442695
    %v553 = vpow.pop %v552
    %v554 = vmul.f32 %v529, 1.442695
    %v555 = vpow.pop %v554
    %v556 = vmul.f32 %v530, 1.442695
    %v557 = vpow.pop %v556
    %v558 = vmul.f32 %v531, 1.442695
    %v559 = vpow.pop %v558
    %v560 = vmul.f32 %v532, 1.442695
    %v561 = vpow.pop %v560
    %v562 = vmul.f32 %v533, 1.442695
    %v563 = vpow.pop %v562
    %v564 = vmul.f32 %v534, 1.442695
    %v565 = vpow.pop %v564
    %v566 = vmul.f32 %v535, 1.442695
    %v567 = vpow.pop %v566
    %v568 = vunpack.c.l.bf16 %v147
    %v569 = vunpack.c.l.bf16 %v148
    %v570 = vunpack.c.l.bf16 %v149
    %v571 = vunpack.c.l.bf16 %v150
    %v572 = vunpack.c.l.bf16 %v151
    %v573 = vunpack.c.l.bf16 %v152
    %v574 = vunpack.c.l.bf16 %v153
    %v575 = vunpack.c.l.bf16 %v154
    %v576 = vunpack.c.l.bf16 %v155
    %v577 = vunpack.c.l.bf16 %v156
    %v578 = vunpack.c.l.bf16 %v157
    %v579 = vunpack.c.l.bf16 %v158
    %v580 = vunpack.c.l.bf16 %v159
    %v581 = vunpack.c.l.bf16 %v160
    %v582 = vunpack.c.l.bf16 %v161
    %v583 = vunpack.c.l.bf16 %v162
    %v584 = vmul.f32 %v537, %v568
    %v585 = vmul.f32 %v539, %v569
    %v586 = vmul.f32 %v541, %v570
    %v587 = vmul.f32 %v543, %v571
    %v588 = vmul.f32 %v545, %v572
    %v589 = vmul.f32 %v547, %v573
    %v590 = vmul.f32 %v549, %v574
    %v591 = vmul.f32 %v551, %v575
    %v592 = vmul.f32 %v553, %v576
    %v593 = vmul.f32 %v555, %v577
    %v594 = vmul.f32 %v557, %v578
    %v595 = vmul.f32 %v559, %v579
    %v596 = vmul.f32 %v561, %v580
    %v597 = vmul.f32 %v563, %v581
    %v598 = vmul.f32 %v565, %v582
    %v599 = vmul.f32 %v567, %v583
    %v600 = vmul.f32 %v409, %v199
    %v601 = vmul.f32 %v411, %v200
    %v602 = vmul.f32 %v413, %v201
    %v603 = vmul.f32 %v415, %v202
    %v604 = vmul.f32 %v417, %v203
    %v605 = vmul.f32 %v419, %v204
    %v606 = vmul.f32 %v421, %v205
    %v607 = vmul.f32 %v423, %v206
    %v608 = vmul.f32 %v425, %v207
    %v609 = vmul.f32 %v427, %v208
    %v610 = vmul.f32 %v429, %v209
    %v611 = vmul.f32 %v431, %v210
    %v612 = vmul.f32 %v433, %v211
    %v613 = vmul.f32 %v435, %v212
    %v614 = vmul.f32 %v437, %v213
    %v615 = vmul.f32 %v439, %v214
    %616 = vadd.xlane.f32.xlu0 %v584
    %v617 = vpop.xlane.xlu0 %616
    %618 = vadd.xlane.f32.xlu0 %v585
    %v619 = vpop.xlane.xlu0 %618
    %620 = vadd.xlane.f32.xlu0 %v586
    %v621 = vpop.xlane.xlu0 %620
    %622 = vadd.xlane.f32.xlu0 %v587
    %v623 = vpop.xlane.xlu0 %622
    %624 = vadd.xlane.f32.xlu0 %v588
    %v625 = vpop.xlane.xlu0 %624
    %626 = vadd.xlane.f32.xlu0 %v589
    %v627 = vpop.xlane.xlu0 %626
    %628 = vadd.xlane.f32.xlu0 %v590
    %v629 = vpop.xlane.xlu0 %628
    %630 = vadd.xlane.f32.xlu0 %v591
    %v631 = vpop.xlane.xlu0 %630
    %632 = vadd.xlane.f32.xlu0 %v592
    %v633 = vpop.xlane.xlu0 %632
    %634 = vadd.xlane.f32.xlu0 %v593
    %v635 = vpop.xlane.xlu0 %634
    %636 = vadd.xlane.f32.xlu0 %v594
    %v637 = vpop.xlane.xlu0 %636
    %638 = vadd.xlane.f32.xlu0 %v595
    %v639 = vpop.xlane.xlu0 %638
    %640 = vadd.xlane.f32.xlu0 %v596
    %v641 = vpop.xlane.xlu0 %640
    %642 = vadd.xlane.f32.xlu0 %v597
    %v643 = vpop.xlane.xlu0 %642
    %644 = vadd.xlane.f32.xlu0 %v598
    %v645 = vpop.xlane.xlu0 %644
    %646 = vadd.xlane.f32.xlu0 %v599
    %v647 = vpop.xlane.xlu0 %646
    %v648 = vadd.f32 %v600, %v617
    %v649 = vadd.f32 %v601, %v619
    %v650 = vadd.f32 %v602, %v621
    %v651 = vadd.f32 %v603, %v623
    %v652 = vadd.f32 %v604, %v625
    %v653 = vadd.f32 %v605, %v627
    %v654 = vadd.f32 %v606, %v629
    %v655 = vadd.f32 %v607, %v631
    %v656 = vadd.f32 %v608, %v633
    %v657 = vadd.f32 %v609, %v635
    %v658 = vadd.f32 %v610, %v637
    %v659 = vadd.f32 %v611, %v639
    %v660 = vadd.f32 %v612, %v641
    %v661 = vadd.f32 %v613, %v643
    %v662 = vadd.f32 %v614, %v645
    %v663 = vadd.f32 %v615, %v647
    %v664 = vpack.c.bf16 %v585, %v584
    %v665 = vpack.c.bf16 %v587, %v586
    %v666 = vpack.c.bf16 %v589, %v588
    %v667 = vpack.c.bf16 %v591, %v590
    %v668 = vpack.c.bf16 %v593, %v592
    %v669 = vpack.c.bf16 %v595, %v594
    %v670 = vpack.c.bf16 %v597, %v596
    %v671 = vpack.c.bf16 %v599, %v598
    %v688 = vunpack.c.l.b16 %v167
    %v689 = vunpack.c.l.b16 %v168
    %v690 = vunpack.c.l.b16 %v169
    %v691 = vunpack.c.l.b16 %v170
    %v692 = vunpack.c.l.b16 %v171
    %v693 = vunpack.c.l.b16 %v172
    %v694 = vunpack.c.l.b16 %v173
    %v695 = vunpack.c.l.b16 %v174
    %v696 = vunpack.c.l.b16 %v175
    %v697 = vunpack.c.l.b16 %v176
    %v698 = vunpack.c.l.b16 %v177
    %v699 = vunpack.c.l.b16 %v178
    %v700 = vunpack.c.l.b16 %v179
    %v701 = vunpack.c.l.b16 %v180
    %v702 = vunpack.c.l.b16 %v181
    %v703 = vunpack.c.l.b16 %v182
    %v704 = vpack.c.b16 %v689, %v688
    %v705 = vpack.c.b16 %v691, %v690
    %v706 = vpack.c.b16 %v693, %v692
    %v707 = vpack.c.b16 %v695, %v694
    %v708 = vpack.c.b16 %v697, %v696
    %v709 = vpack.c.b16 %v699, %v698
    %v710 = vpack.c.b16 %v701, %v700
    %v711 = vpack.c.b16 %v703, %v702
    %720 = vmatpush.bf16.msra.mxu0 %v711
    %721 = vmatpush.bf16.msra.mxu0 %v710
    %722 = vmatpush.bf16.msra.mxu0 %v709
    %723 = vmatpush.bf16.msra.mxu0 %v708
    %724 = vmatpush.bf16.msra.mxu0 %v707
    %725 = vmatpush.bf16.msra.mxu0 %v706
    %726 = vmatpush.bf16.msra.mxu0 %v705
    %727 = vmatpush.bf16.msra.mxu0 %v704
    %728 = vmatmul.bf16.gmra.mxu0 %v664
    %v729 = vpop.f32.mrf.mxu0
    %v730 = vadd.f32 0.0, %v729
    %v731 = vpop.f32.mrf.mxu0
    %v732 = vadd.f32 0.0, %v731
    %733 = vmatmul.bf16.gmra.mxu0 %v665
    %v734 = vpop.f32.mrf.mxu0
    %v735 = vadd.f32 0.0, %v734
    %v736 = vpop.f32.mrf.mxu0
    %v737 = vadd.f32 0.0, %v736
    %738 = vmatmul.bf16.gmra.mxu0 %v666
    %v739 = vpop.f32.mrf.mxu0
    %v740 = vadd.f32 0.0, %v739
    %v741 = vpop.f32.mrf.mxu0
    %v742 = vadd.f32 0.0, %v741
    %743 = vmatmul.bf16.gmra.mxu0 %v667
    %v744 = vpop.f32.mrf.mxu0
    %v745 = vadd.f32 0.0, %v744
    %v746 = vpop.f32.mrf.mxu0
    %v747 = vadd.f32 0.0, %v746
    %748 = vmatmul.bf16.gmra.mxu0 %v668
    %v749 = vpop.f32.mrf.mxu0
    %v750 = vadd.f32 0.0, %v749
    %v751 = vpop.f32.mrf.mxu0
    %v752 = vadd.f32 0.0, %v751
    %753 = vmatmul.bf16.gmra.mxu0 %v669
    %v754 = vpop.f32.mrf.mxu0
    %v755 = vadd.f32 0.0, %v754
    %v756 = vpop.f32.mrf.mxu0
    %v757 = vadd.f32 0.0, %v756
    %758 = vmatmul.bf16.gmra.mxu0 %v670
    %v759 = vpop.f32.mrf.mxu0
    %v760 = vadd.f32 0.0, %v759
    %v761 = vpop.f32.mrf.mxu0
    %v762 = vadd.f32 0.0, %v761
    %763 = vmatmul.bf16.gmra.mxu0 %v671
    %v764 = vpop.f32.mrf.mxu0
    %v765 = vadd.f32 0.0, %v764
    %v766 = vpop.f32.mrf.mxu0
    %v767 = vadd.f32 0.0, %v766
    %768 = vdwg.mxu0
    %v769 = vld [vmem:[#allocation4] sm:$0xff]
    %v770 = vld [vmem:[#allocation4 + $0x8] sm:$0xff]
    %v771 = vld [vmem:[#allocation4 + $0x10] sm:$0xff]
    %v772 = vld [vmem:[#allocation4 + $0x18] sm:$0xff]
    %v773 = vld [vmem:[#allocation4 + $0x20] sm:$0xff]
    %v774 = vld [vmem:[#allocation4 + $0x28] sm:$0xff]
    %v775 = vld [vmem:[#allocation4 + $0x30] sm:$0xff]
    %v776 = vld [vmem:[#allocation4 + $0x38] sm:$0xff]
    %v777 = vld [vmem:[#allocation4 + $0x40] sm:$0xff]
    %v778 = vld [vmem:[#allocation4 + $0x48] sm:$0xff]
    %v779 = vld [vmem:[#allocation4 + $0x50] sm:$0xff]
    %v780 = vld [vmem:[#allocation4 + $0x58] sm:$0xff]
    %v781 = vld [vmem:[#allocation4 + $0x60] sm:$0xff]
    %v782 = vld [vmem:[#allocation4 + $0x68] sm:$0xff]
    %v783 = vld [vmem:[#allocation4 + $0x70] sm:$0xff]
    %v784 = vld [vmem:[#allocation4 + $0x78] sm:$0xff]
    %786 = vset.pattern.permute.xlu0 0
    %787 = vperm.xlu0 %786, %v409
    %v788 = vpop.permute.xlu0 %787
    %791 = vset.pattern.permute.xlu0 0
    %792 = vperm.xlu0 %791, %v411
    %v793 = vpop.permute.xlu0 %792
    %796 = vset.pattern.permute.xlu0 0
    %797 = vperm.xlu0 %796, %v413
    %v798 = vpop.permute.xlu0 %797
    %801 = vset.pattern.permute.xlu0 0
    %802 = vperm.xlu0 %801, %v415
    %v803 = vpop.permute.xlu0 %802
    %806 = vset.pattern.permute.xlu0 0
    %807 = vperm.xlu0 %806, %v417
    %v808 = vpop.permute.xlu0 %807
    %811 = vset.pattern.permute.xlu0 0
    %812 = vperm.xlu0 %811, %v419
    %v813 = vpop.permute.xlu0 %812
    %816 = vset.pattern.permute.xlu0 0
    %817 = vperm.xlu0 %816, %v421
    %v818 = vpop.permute.xlu0 %817
    %821 = vset.pattern.permute.xlu0 0
    %822 = vperm.xlu0 %821, %v423
    %v823 = vpop.permute.xlu0 %822
    %826 = vset.pattern.permute.xlu0 0
    %827 = vperm.xlu0 %826, %v425
    %v828 = vpop.permute.xlu0 %827
    %831 = vset.pattern.permute.xlu0 0
    %832 = vperm.xlu0 %831, %v427
    %v833 = vpop.permute.xlu0 %832
    %836 = vset.pattern.permute.xlu0 0
    %837 = vperm.xlu0 %836, %v429
    %v838 = vpop.permute.xlu0 %837
    %841 = vset.pattern.permute.xlu0 0
    %842 = vperm.xlu0 %841, %v431
    %v843 = vpop.permute.xlu0 %842
    %846 = vset.pattern.permute.xlu0 0
    %847 = vperm.xlu0 %846, %v433
    %v848 = vpop.permute.xlu0 %847
    %851 = vset.pattern.permute.xlu0 0
    %852 = vperm.xlu0 %851, %v435
    %v853 = vpop.permute.xlu0 %852
    %856 = vset.pattern.permute.xlu0 0
    %857 = vperm.xlu0 %856, %v437
    %v858 = vpop.permute.xlu0 %857
    %861 = vset.pattern.permute.xlu0 0
    %862 = vperm.xlu0 %861, %v439
    %v863 = vpop.permute.xlu0 %862
    %v865 = vmul.f32 %v788, %v769
    %v866 = vmul.f32 %v793, %v770
    %v867 = vmul.f32 %v798, %v771
    %v868 = vmul.f32 %v803, %v772
    %v869 = vmul.f32 %v808, %v773
    %v870 = vmul.f32 %v813, %v774
    %v871 = vmul.f32 %v818, %v775
    %v872 = vmul.f32 %v823, %v776
    %v873 = vmul.f32 %v828, %v777
    %v874 = vmul.f32 %v833, %v778
    %v875 = vmul.f32 %v838, %v779
    %v876 = vmul.f32 %v843, %v780
    %v877 = vmul.f32 %v848, %v781
    %v878 = vmul.f32 %v853, %v782
    %v879 = vmul.f32 %v858, %v783
    %v880 = vmul.f32 %v863, %v784
    %v881 = vadd.f32 %v865, %v730
    %v882 = vadd.f32 %v866, %v732
    %v883 = vadd.f32 %v867, %v735
    %v884 = vadd.f32 %v868, %v737
    %v885 = vadd.f32 %v869, %v740
    %v886 = vadd.f32 %v870, %v742
    %v887 = vadd.f32 %v871, %v745
    %v888 = vadd.f32 %v872, %v747
    %v889 = vadd.f32 %v873, %v750
    %v890 = vadd.f32 %v874, %v752
    %v891 = vadd.f32 %v875, %v755
    %v892 = vadd.f32 %v876, %v757
    %v893 = vadd.f32 %v877, %v760
    %v894 = vadd.f32 %v878, %v762
    %v895 = vadd.f32 %v879, %v765
    %v896 = vadd.f32 %v880, %v767
    %897 = vset.pattern.permute.xlu0 1
    %898 = vperm.xlu0 %897, %v127
    %v899 = vpop.permute.xlu0 %898
    %901 = vset.pattern.permute.xlu0 1
    %902 = vperm.xlu0 %901, %v128
    %v903 = vpop.permute.xlu0 %902
    %905 = vset.pattern.permute.xlu0 1
    %906 = vperm.xlu0 %905, %v129
    %v907 = vpop.permute.xlu0 %906
    %909 = vset.pattern.permute.xlu0 1
    %910 = vperm.xlu0 %909, %v130
    %v911 = vpop.permute.xlu0 %910
    %913 = vset.pattern.permute.xlu0 1
    %914 = vperm.xlu0 %913, %v131
    %v915 = vpop.permute.xlu0 %914
    %917 = vset.pattern.permute.xlu0 1
    %918 = vperm.xlu0 %917, %v132
    %v919 = vpop.permute.xlu0 %918
    %921 = vset.pattern.permute.xlu0 1
    %922 = vperm.xlu0 %921, %v133
    %v923 = vpop.permute.xlu0 %922
    %925 = vset.pattern.permute.xlu0 1
    %926 = vperm.xlu0 %925, %v134
    %v927 = vpop.permute.xlu0 %926
    %929 = vset.pattern.permute.xlu0 1
    %930 = vperm.xlu0 %929, %v135
    %v931 = vpop.permute.xlu0 %930
    %933 = vset.pattern.permute.xlu0 1
    %934 = vperm.xlu0 %933, %v136
    %v935 = vpop.permute.xlu0 %934
    %937 = vset.pattern.permute.xlu0 1
    %938 = vperm.xlu0 %937, %v137
    %v939 = vpop.permute.xlu0 %938
    %941 = vset.pattern.permute.xlu0 1
    %942 = vperm.xlu0 %941, %v138
    %v943 = vpop.permute.xlu0 %942
    %945 = vset.pattern.permute.xlu0 1
    %946 = vperm.xlu0 %945, %v139
    %v947 = vpop.permute.xlu0 %946
    %949 = vset.pattern.permute.xlu0 1
    %950 = vperm.xlu0 %949, %v140
    %v951 = vpop.permute.xlu0 %950
    %953 = vset.pattern.permute.xlu0 1
    %954 = vperm.xlu0 %953, %v141
    %v955 = vpop.permute.xlu0 %954
    %957 = vset.pattern.permute.xlu0 1
    %958 = vperm.xlu0 %957, %v142
    %v959 = vpop.permute.xlu0 %958
    %v961 = vperm.slane %v146, 1
    %v962 = vadd.f32 %v899, %v961
    %v963 = vadd.f32 %v903, %v961
    %v964 = vadd.f32 %v907, %v961
    %v965 = vadd.f32 %v911, %v961
    %v966 = vadd.f32 %v915, %v961
    %v967 = vadd.f32 %v919, %v961
    %v968 = vadd.f32 %v923, %v961
    %v969 = vadd.f32 %v927, %v961
    %v970 = vadd.f32 %v931, %v961
    %v971 = vadd.f32 %v935, %v961
    %v972 = vadd.f32 %v939, %v961
    %v973 = vadd.f32 %v943, %v961
    %v974 = vadd.f32 %v947, %v961
    %v975 = vadd.f32 %v951, %v961
    %v976 = vadd.f32 %v955, %v961
    %v977 = vadd.f32 %v959, %v961
    %v978 = vmul.f32 %v962, 0.2
    %v979 = vmul.f32 %v963, 0.2
    %v980 = vmul.f32 %v964, 0.2
    %v981 = vmul.f32 %v965, 0.2
    %v982 = vmul.f32 %v966, 0.2
    %v983 = vmul.f32 %v967, 0.2
    %v984 = vmul.f32 %v968, 0.2
    %v985 = vmul.f32 %v969, 0.2
    %v986 = vmul.f32 %v970, 0.2
    %v987 = vmul.f32 %v971, 0.2
    %v988 = vmul.f32 %v972, 0.2
    %v989 = vmul.f32 %v973, 0.2
    %v990 = vmul.f32 %v974, 0.2
    %v991 = vmul.f32 %v975, 0.2
    %v992 = vmul.f32 %v976, 0.2
    %v993 = vmul.f32 %v977, 0.2
    %v994 = vmax.f32 %v962, %v978
    %v995 = vmax.f32 %v963, %v979
    %v996 = vmax.f32 %v964, %v980
    %v997 = vmax.f32 %v965, %v981
    %v998 = vmax.f32 %v966, %v982
    %v999 = vmax.f32 %v967, %v983
    %v1000 = vmax.f32 %v968, %v984
    %v1001 = vmax.f32 %v969, %v985
    %v1002 = vmax.f32 %v970, %v986
    %v1003 = vmax.f32 %v971, %v987
    %v1004 = vmax.f32 %v972, %v988
    %v1005 = vmax.f32 %v973, %v989
    %v1006 = vmax.f32 %v974, %v990
    %v1007 = vmax.f32 %v975, %v991
    %v1008 = vmax.f32 %v976, %v992
    %v1009 = vmax.f32 %v977, %v993
    %1010 = vmax.xlane.f32.xlu0 %v994
    %v1011 = vpop.xlane.xlu0 %1010
    %1012 = vmax.xlane.f32.xlu0 %v995
    %v1013 = vpop.xlane.xlu0 %1012
    %1014 = vmax.xlane.f32.xlu0 %v996
    %v1015 = vpop.xlane.xlu0 %1014
    %1016 = vmax.xlane.f32.xlu0 %v997
    %v1017 = vpop.xlane.xlu0 %1016
    %1018 = vmax.xlane.f32.xlu0 %v998
    %v1019 = vpop.xlane.xlu0 %1018
    %1020 = vmax.xlane.f32.xlu0 %v999
    %v1021 = vpop.xlane.xlu0 %1020
    %1022 = vmax.xlane.f32.xlu0 %v1000
    %v1023 = vpop.xlane.xlu0 %1022
    %1024 = vmax.xlane.f32.xlu0 %v1001
    %v1025 = vpop.xlane.xlu0 %1024
    %1026 = vmax.xlane.f32.xlu0 %v1002
    %v1027 = vpop.xlane.xlu0 %1026
    %1028 = vmax.xlane.f32.xlu0 %v1003
    %v1029 = vpop.xlane.xlu0 %1028
    %1030 = vmax.xlane.f32.xlu0 %v1004
    %v1031 = vpop.xlane.xlu0 %1030
    %1032 = vmax.xlane.f32.xlu0 %v1005
    %v1033 = vpop.xlane.xlu0 %1032
    %1034 = vmax.xlane.f32.xlu0 %v1006
    %v1035 = vpop.xlane.xlu0 %1034
    %1036 = vmax.xlane.f32.xlu0 %v1007
    %v1037 = vpop.xlane.xlu0 %1036
    %1038 = vmax.xlane.f32.xlu0 %v1008
    %v1039 = vpop.xlane.xlu0 %1038
    %1040 = vmax.xlane.f32.xlu0 %v1009
    %v1041 = vpop.xlane.xlu0 %1040
    %v1042 = vmax.f32 %v183, %v1011
    %v1043 = vmax.f32 %v184, %v1013
    %v1044 = vmax.f32 %v185, %v1015
    %v1045 = vmax.f32 %v186, %v1017
    %v1046 = vmax.f32 %v187, %v1019
    %v1047 = vmax.f32 %v188, %v1021
    %v1048 = vmax.f32 %v189, %v1023
    %v1049 = vmax.f32 %v190, %v1025
    %v1050 = vmax.f32 %v191, %v1027
    %v1051 = vmax.f32 %v192, %v1029
    %v1052 = vmax.f32 %v193, %v1031
    %v1053 = vmax.f32 %v194, %v1033
    %v1054 = vmax.f32 %v195, %v1035
    %v1055 = vmax.f32 %v196, %v1037
    %v1056 = vmax.f32 %v197, %v1039
    %v1057 = vmax.f32 %v198, %v1041
    %v1058 = vsub.f32 %v183, %v1042
    %v1059 = vsub.f32 %v184, %v1043
    %v1060 = vsub.f32 %v185, %v1044
    %v1061 = vsub.f32 %v186, %v1045
    %v1062 = vsub.f32 %v187, %v1046
    %v1063 = vsub.f32 %v188, %v1047
    %v1064 = vsub.f32 %v189, %v1048
    %v1065 = vsub.f32 %v190, %v1049
    %v1066 = vsub.f32 %v191, %v1050
    %v1067 = vsub.f32 %v192, %v1051
    %v1068 = vsub.f32 %v193, %v1052
    %v1069 = vsub.f32 %v194, %v1053
    %v1070 = vsub.f32 %v195, %v1054
    %v1071 = vsub.f32 %v196, %v1055
    %v1072 = vsub.f32 %v197, %v1056
    %v1073 = vsub.f32 %v198, %v1057
    %v1074 = vmul.f32 %v1058, 1.442695
    %v1075 = vpow.pop %v1074
    %v1076 = vmul.f32 %v1059, 1.442695
    %v1077 = vpow.pop %v1076
    %v1078 = vmul.f32 %v1060, 1.442695
    %v1079 = vpow.pop %v1078
    %v1080 = vmul.f32 %v1061, 1.442695
    %v1081 = vpow.pop %v1080
    %v1082 = vmul.f32 %v1062, 1.442695
    %v1083 = vpow.pop %v1082
    %v1084 = vmul.f32 %v1063, 1.442695
    %v1085 = vpow.pop %v1084
    %v1086 = vmul.f32 %v1064, 1.442695
    %v1087 = vpow.pop %v1086
    %v1088 = vmul.f32 %v1065, 1.442695
    %v1089 = vpow.pop %v1088
    %v1090 = vmul.f32 %v1066, 1.442695
    %v1091 = vpow.pop %v1090
    %v1092 = vmul.f32 %v1067, 1.442695
    %v1093 = vpow.pop %v1092
    %v1094 = vmul.f32 %v1068, 1.442695
    %v1095 = vpow.pop %v1094
    %v1096 = vmul.f32 %v1069, 1.442695
    %v1097 = vpow.pop %v1096
    %v1098 = vmul.f32 %v1070, 1.442695
    %v1099 = vpow.pop %v1098
    %v1100 = vmul.f32 %v1071, 1.442695
    %v1101 = vpow.pop %v1100
    %v1102 = vmul.f32 %v1072, 1.442695
    %v1103 = vpow.pop %v1102
    %v1104 = vmul.f32 %v1073, 1.442695
    %v1105 = vpow.pop %v1104
    %1107 = vset.pattern.permute.xlu0 1
    %1108 = vperm.xlu0 %1107, %v1042
    %v1109 = vpop.permute.xlu0 %1108
    %1112 = vset.pattern.permute.xlu0 1
    %1113 = vperm.xlu0 %1112, %v1043
    %v1114 = vpop.permute.xlu0 %1113
    %1117 = vset.pattern.permute.xlu0 1
    %1118 = vperm.xlu0 %1117, %v1044
    %v1119 = vpop.permute.xlu0 %1118
    %1122 = vset.pattern.permute.xlu0 1
    %1123 = vperm.xlu0 %1122, %v1045
    %v1124 = vpop.permute.xlu0 %1123
    %1127 = vset.pattern.permute.xlu0 1
    %1128 = vperm.xlu0 %1127, %v1046
    %v1129 = vpop.permute.xlu0 %1128
    %1132 = vset.pattern.permute.xlu0 1
    %1133 = vperm.xlu0 %1132, %v1047
    %v1134 = vpop.permute.xlu0 %1133
    %1137 = vset.pattern.permute.xlu0 1
    %1138 = vperm.xlu0 %1137, %v1048
    %v1139 = vpop.permute.xlu0 %1138
    %1142 = vset.pattern.permute.xlu0 1
    %1143 = vperm.xlu0 %1142, %v1049
    %v1144 = vpop.permute.xlu0 %1143
    %1147 = vset.pattern.permute.xlu0 1
    %1148 = vperm.xlu0 %1147, %v1050
    %v1149 = vpop.permute.xlu0 %1148
    %1152 = vset.pattern.permute.xlu0 1
    %1153 = vperm.xlu0 %1152, %v1051
    %v1154 = vpop.permute.xlu0 %1153
    %1157 = vset.pattern.permute.xlu0 1
    %1158 = vperm.xlu0 %1157, %v1052
    %v1159 = vpop.permute.xlu0 %1158
    %1162 = vset.pattern.permute.xlu0 1
    %1163 = vperm.xlu0 %1162, %v1053
    %v1164 = vpop.permute.xlu0 %1163
    %1167 = vset.pattern.permute.xlu0 1
    %1168 = vperm.xlu0 %1167, %v1054
    %v1169 = vpop.permute.xlu0 %1168
    %1172 = vset.pattern.permute.xlu0 1
    %1173 = vperm.xlu0 %1172, %v1055
    %v1174 = vpop.permute.xlu0 %1173
    %1177 = vset.pattern.permute.xlu0 1
    %1178 = vperm.xlu0 %1177, %v1056
    %v1179 = vpop.permute.xlu0 %1178
    %1182 = vset.pattern.permute.xlu0 1
    %1183 = vperm.xlu0 %1182, %v1057
    %v1184 = vpop.permute.xlu0 %1183
    %v1186 = vsub.f32 %v994, %v1109
    %v1187 = vsub.f32 %v995, %v1114
    %v1188 = vsub.f32 %v996, %v1119
    %v1189 = vsub.f32 %v997, %v1124
    %v1190 = vsub.f32 %v998, %v1129
    %v1191 = vsub.f32 %v999, %v1134
    %v1192 = vsub.f32 %v1000, %v1139
    %v1193 = vsub.f32 %v1001, %v1144
    %v1194 = vsub.f32 %v1002, %v1149
    %v1195 = vsub.f32 %v1003, %v1154
    %v1196 = vsub.f32 %v1004, %v1159
    %v1197 = vsub.f32 %v1005, %v1164
    %v1198 = vsub.f32 %v1006, %v1169
    %v1199 = vsub.f32 %v1007, %v1174
    %v1200 = vsub.f32 %v1008, %v1179
    %v1201 = vsub.f32 %v1009, %v1184
    %v1202 = vmul.f32 %v1186, 1.442695
    %v1203 = vpow.pop %v1202
    %v1204 = vmul.f32 %v1187, 1.442695
    %v1205 = vpow.pop %v1204
    %v1206 = vmul.f32 %v1188, 1.442695
    %v1207 = vpow.pop %v1206
    %v1208 = vmul.f32 %v1189, 1.442695
    %v1209 = vpow.pop %v1208
    %v1210 = vmul.f32 %v1190, 1.442695
    %v1211 = vpow.pop %v1210
    %v1212 = vmul.f32 %v1191, 1.442695
    %v1213 = vpow.pop %v1212
    %v1214 = vmul.f32 %v1192, 1.442695
    %v1215 = vpow.pop %v1214
    %v1216 = vmul.f32 %v1193, 1.442695
    %v1217 = vpow.pop %v1216
    %v1218 = vmul.f32 %v1194, 1.442695
    %v1219 = vpow.pop %v1218
    %v1220 = vmul.f32 %v1195, 1.442695
    %v1221 = vpow.pop %v1220
    %v1222 = vmul.f32 %v1196, 1.442695
    %v1223 = vpow.pop %v1222
    %v1224 = vmul.f32 %v1197, 1.442695
    %v1225 = vpow.pop %v1224
    %v1226 = vmul.f32 %v1198, 1.442695
    %v1227 = vpow.pop %v1226
    %v1228 = vmul.f32 %v1199, 1.442695
    %v1229 = vpow.pop %v1228
    %v1230 = vmul.f32 %v1200, 1.442695
    %v1231 = vpow.pop %v1230
    %v1232 = vmul.f32 %v1201, 1.442695
    %v1233 = vpow.pop %v1232
    %v1234 = vmul.f32 %v1203, %v568
    %v1235 = vmul.f32 %v1205, %v569
    %v1236 = vmul.f32 %v1207, %v570
    %v1237 = vmul.f32 %v1209, %v571
    %v1238 = vmul.f32 %v1211, %v572
    %v1239 = vmul.f32 %v1213, %v573
    %v1240 = vmul.f32 %v1215, %v574
    %v1241 = vmul.f32 %v1217, %v575
    %v1242 = vmul.f32 %v1219, %v576
    %v1243 = vmul.f32 %v1221, %v577
    %v1244 = vmul.f32 %v1223, %v578
    %v1245 = vmul.f32 %v1225, %v579
    %v1246 = vmul.f32 %v1227, %v580
    %v1247 = vmul.f32 %v1229, %v581
    %v1248 = vmul.f32 %v1231, %v582
    %v1249 = vmul.f32 %v1233, %v583
    %v1250 = vmul.f32 %v1075, %v199
    %v1251 = vmul.f32 %v1077, %v200
    %v1252 = vmul.f32 %v1079, %v201
    %v1253 = vmul.f32 %v1081, %v202
    %v1254 = vmul.f32 %v1083, %v203
    %v1255 = vmul.f32 %v1085, %v204
    %v1256 = vmul.f32 %v1087, %v205
    %v1257 = vmul.f32 %v1089, %v206
    %v1258 = vmul.f32 %v1091, %v207
    %v1259 = vmul.f32 %v1093, %v208
    %v1260 = vmul.f32 %v1095, %v209
    %v1261 = vmul.f32 %v1097, %v210
    %v1262 = vmul.f32 %v1099, %v211
    %v1263 = vmul.f32 %v1101, %v212
    %v1264 = vmul.f32 %v1103, %v213
    %v1265 = vmul.f32 %v1105, %v214
    %1266 = vadd.xlane.f32.xlu0 %v1234
    %v1267 = vpop.xlane.xlu0 %1266
    %1268 = vadd.xlane.f32.xlu0 %v1235
    %v1269 = vpop.xlane.xlu0 %1268
    %1270 = vadd.xlane.f32.xlu0 %v1236
    %v1271 = vpop.xlane.xlu0 %1270
    %1272 = vadd.xlane.f32.xlu0 %v1237
    %v1273 = vpop.xlane.xlu0 %1272
    %1274 = vadd.xlane.f32.xlu0 %v1238
    %v1275 = vpop.xlane.xlu0 %1274
    %1276 = vadd.xlane.f32.xlu0 %v1239
    %v1277 = vpop.xlane.xlu0 %1276
    %1278 = vadd.xlane.f32.xlu0 %v1240
    %v1279 = vpop.xlane.xlu0 %1278
    %1280 = vadd.xlane.f32.xlu0 %v1241
    %v1281 = vpop.xlane.xlu0 %1280
    %1282 = vadd.xlane.f32.xlu0 %v1242
    %v1283 = vpop.xlane.xlu0 %1282
    %1284 = vadd.xlane.f32.xlu0 %v1243
    %v1285 = vpop.xlane.xlu0 %1284
    %1286 = vadd.xlane.f32.xlu0 %v1244
    %v1287 = vpop.xlane.xlu0 %1286
    %1288 = vadd.xlane.f32.xlu0 %v1245
    %v1289 = vpop.xlane.xlu0 %1288
    %1290 = vadd.xlane.f32.xlu0 %v1246
    %v1291 = vpop.xlane.xlu0 %1290
    %1292 = vadd.xlane.f32.xlu0 %v1247
    %v1293 = vpop.xlane.xlu0 %1292
    %1294 = vadd.xlane.f32.xlu0 %v1248
    %v1295 = vpop.xlane.xlu0 %1294
    %1296 = vadd.xlane.f32.xlu0 %v1249
    %v1297 = vpop.xlane.xlu0 %1296
    %v1298 = vadd.f32 %v1250, %v1267
    %v1299 = vadd.f32 %v1251, %v1269
    %v1300 = vadd.f32 %v1252, %v1271
    %v1301 = vadd.f32 %v1253, %v1273
    %v1302 = vadd.f32 %v1254, %v1275
    %v1303 = vadd.f32 %v1255, %v1277
    %v1304 = vadd.f32 %v1256, %v1279
    %v1305 = vadd.f32 %v1257, %v1281
    %v1306 = vadd.f32 %v1258, %v1283
    %v1307 = vadd.f32 %v1259, %v1285
    %v1308 = vadd.f32 %v1260, %v1287
    %v1309 = vadd.f32 %v1261, %v1289
    %v1310 = vadd.f32 %v1262, %v1291
    %v1311 = vadd.f32 %v1263, %v1293
    %v1312 = vadd.f32 %v1264, %v1295
    %v1313 = vadd.f32 %v1265, %v1297
    %v1314 = vpack.c.bf16 %v1235, %v1234
    %v1315 = vpack.c.bf16 %v1237, %v1236
    %v1316 = vpack.c.bf16 %v1239, %v1238
    %v1317 = vpack.c.bf16 %v1241, %v1240
    %v1318 = vpack.c.bf16 %v1243, %v1242
    %v1319 = vpack.c.bf16 %v1245, %v1244
    %v1320 = vpack.c.bf16 %v1247, %v1246
    %v1321 = vpack.c.bf16 %v1249, %v1248
    %1322 = vrot.lane.b32.xlu0 %v704, 120
    %v1323 = vpop.permute.xlu0 %1322
    %1324 = vrot.lane.b32.xlu0 %v705, 120
    %v1325 = vpop.permute.xlu0 %1324
    %1326 = vrot.lane.b32.xlu0 %v706, 120
    %v1327 = vpop.permute.xlu0 %1326
    %1328 = vrot.lane.b32.xlu0 %v707, 120
    %v1329 = vpop.permute.xlu0 %1328
    %1330 = vrot.lane.b32.xlu0 %v708, 120
    %v1331 = vpop.permute.xlu0 %1330
    %1332 = vrot.lane.b32.xlu0 %v709, 120
    %v1333 = vpop.permute.xlu0 %1332
    %1334 = vrot.lane.b32.xlu0 %v710, 120
    %v1335 = vpop.permute.xlu0 %1334
    %1336 = vrot.lane.b32.xlu0 %v711, 120
    %v1337 = vpop.permute.xlu0 %1336
    %1346 = vmatpush.bf16.msra.mxu0 %v1337
    %1347 = vmatpush.bf16.msra.mxu0 %v1335
    %1348 = vmatpush.bf16.msra.mxu0 %v1333
    %1349 = vmatpush.bf16.msra.mxu0 %v1331
    %1350 = vmatpush.bf16.msra.mxu0 %v1329
    %1351 = vmatpush.bf16.msra.mxu0 %v1327
    %1352 = vmatpush.bf16.msra.mxu0 %v1325
    %1353 = vmatpush.bf16.msra.mxu0 %v1323
    %1354 = vmatmul.bf16.gmra.mxu0 %v1314
    %v1355 = vpop.f32.mrf.mxu0
    %v1356 = vadd.f32 0.0, %v1355
    %v1357 = vpop.f32.mrf.mxu0
    %v1358 = vadd.f32 0.0, %v1357
    %1359 = vmatmul.bf16.gmra.mxu0 %v1315
    %v1360 = vpop.f32.mrf.mxu0
    %v1361 = vadd.f32 0.0, %v1360
    %v1362 = vpop.f32.mrf.mxu0
    %v1363 = vadd.f32 0.0, %v1362
    %1364 = vmatmul.bf16.gmra.mxu0 %v1316
    %v1365 = vpop.f32.mrf.mxu0
    %v1366 = vadd.f32 0.0, %v1365
    %v1367 = vpop.f32.mrf.mxu0
    %v1368 = vadd.f32 0.0, %v1367
    %1369 = vmatmul.bf16.gmra.mxu0 %v1317
    %v1370 = vpop.f32.mrf.mxu0
    %v1371 = vadd.f32 0.0, %v1370
    %v1372 = vpop.f32.mrf.mxu0
    %v1373 = vadd.f32 0.0, %v1372
    %1374 = vmatmul.bf16.gmra.mxu0 %v1318
    %v1375 = vpop.f32.mrf.mxu0
    %v1376 = vadd.f32 0.0, %v1375
    %v1377 = vpop.f32.mrf.mxu0
    %v1378 = vadd.f32 0.0, %v1377
    %1379 = vmatmul.bf16.gmra.mxu0 %v1319
    %v1380 = vpop.f32.mrf.mxu0
    %v1381 = vadd.f32 0.0, %v1380
    %v1382 = vpop.f32.mrf.mxu0
    %v1383 = vadd.f32 0.0, %v1382
    %1384 = vmatmul.bf16.gmra.mxu0 %v1320
    %v1385 = vpop.f32.mrf.mxu0
    %v1386 = vadd.f32 0.0, %v1385
    %v1387 = vpop.f32.mrf.mxu0
    %v1388 = vadd.f32 0.0, %v1387
    %1389 = vmatmul.bf16.gmra.mxu0 %v1321
    %v1390 = vpop.f32.mrf.mxu0
    %v1391 = vadd.f32 0.0, %v1390
    %v1392 = vpop.f32.mrf.mxu0
    %v1393 = vadd.f32 0.0, %v1392
    %1394 = vdwg.mxu0
    %1396 = vset.pattern.permute.xlu0 1
    %1397 = vperm.xlu0 %1396, %v1075
    %v1398 = vpop.permute.xlu0 %1397
    %1401 = vset.pattern.permute.xlu0 1
    %1402 = vperm.xlu0 %1401, %v1077
    %v1403 = vpop.permute.xlu0 %1402
    %1406 = vset.pattern.permute.xlu0 1
    %1407 = vperm.xlu0 %1406, %v1079
    %v1408 = vpop.permute.xlu0 %1407
    %1411 = vset.pattern.permute.xlu0 1
    %1412 = vperm.xlu0 %1411, %v1081
    %v1413 = vpop.permute.xlu0 %1412
    %1416 = vset.pattern.permute.xlu0 1
    %1417 = vperm.xlu0 %1416, %v1083
    %v1418 = vpop.permute.xlu0 %1417
    %1421 = vset.pattern.permute.xlu0 1
    %1422 = vperm.xlu0 %1421, %v1085
    %v1423 = vpop.permute.xlu0 %1422
    %1426 = vset.pattern.permute.xlu0 1
    %1427 = vperm.xlu0 %1426, %v1087
    %v1428 = vpop.permute.xlu0 %1427
    %1431 = vset.pattern.permute.xlu0 1
    %1432 = vperm.xlu0 %1431, %v1089
    %v1433 = vpop.permute.xlu0 %1432
    %1436 = vset.pattern.permute.xlu0 1
    %1437 = vperm.xlu0 %1436, %v1091
    %v1438 = vpop.permute.xlu0 %1437
    %1441 = vset.pattern.permute.xlu0 1
    %1442 = vperm.xlu0 %1441, %v1093
    %v1443 = vpop.permute.xlu0 %1442
    %1446 = vset.pattern.permute.xlu0 1
    %1447 = vperm.xlu0 %1446, %v1095
    %v1448 = vpop.permute.xlu0 %1447
    %1451 = vset.pattern.permute.xlu0 1
    %1452 = vperm.xlu0 %1451, %v1097
    %v1453 = vpop.permute.xlu0 %1452
    %1456 = vset.pattern.permute.xlu0 1
    %1457 = vperm.xlu0 %1456, %v1099
    %v1458 = vpop.permute.xlu0 %1457
    %1461 = vset.pattern.permute.xlu0 1
    %1462 = vperm.xlu0 %1461, %v1101
    %v1463 = vpop.permute.xlu0 %1462
    %1466 = vset.pattern.permute.xlu0 1
    %1467 = vperm.xlu0 %1466, %v1103
    %v1468 = vpop.permute.xlu0 %1467
    %1471 = vset.pattern.permute.xlu0 1
    %1472 = vperm.xlu0 %1471, %v1105
    %v1473 = vpop.permute.xlu0 %1472
    %v1475 = vmul.f32 %v1398, %v769
    %v1476 = vmul.f32 %v1403, %v770
    %v1477 = vmul.f32 %v1408, %v771
    %v1478 = vmul.f32 %v1413, %v772
    %v1479 = vmul.f32 %v1418, %v773
    %v1480 = vmul.f32 %v1423, %v774
    %v1481 = vmul.f32 %v1428, %v775
    %v1482 = vmul.f32 %v1433, %v776
    %v1483 = vmul.f32 %v1438, %v777
    %v1484 = vmul.f32 %v1443, %v778
    %v1485 = vmul.f32 %v1448, %v779
    %v1486 = vmul.f32 %v1453, %v780
    %v1487 = vmul.f32 %v1458, %v781
    %v1488 = vmul.f32 %v1463, %v782
    %v1489 = vmul.f32 %v1468, %v783
    %v1490 = vmul.f32 %v1473, %v784
    %1507 = vrot.lane.b32.xlu0 %v1356, 8
    %v1508 = vpop.permute.xlu0 %1507
    %1509 = vrot.lane.b32.xlu0 %v1358, 8
    %v1510 = vpop.permute.xlu0 %1509
    %1511 = vrot.lane.b32.xlu0 %v1361, 8
    %v1512 = vpop.permute.xlu0 %1511
    %1513 = vrot.lane.b32.xlu0 %v1363, 8
    %v1514 = vpop.permute.xlu0 %1513
    %1515 = vrot.lane.b32.xlu0 %v1366, 8
    %v1516 = vpop.permute.xlu0 %1515
    %1517 = vrot.lane.b32.xlu0 %v1368, 8
    %v1518 = vpop.permute.xlu0 %1517
    %1519 = vrot.lane.b32.xlu0 %v1371, 8
    %v1520 = vpop.permute.xlu0 %1519
    %1521 = vrot.lane.b32.xlu0 %v1373, 8
    %v1522 = vpop.permute.xlu0 %1521
    %1523 = vrot.lane.b32.xlu0 %v1376, 8
    %v1524 = vpop.permute.xlu0 %1523
    %1525 = vrot.lane.b32.xlu0 %v1378, 8
    %v1526 = vpop.permute.xlu0 %1525
    %1527 = vrot.lane.b32.xlu0 %v1381, 8
    %v1528 = vpop.permute.xlu0 %1527
    %1529 = vrot.lane.b32.xlu0 %v1383, 8
    %v1530 = vpop.permute.xlu0 %1529
    %1531 = vrot.lane.b32.xlu0 %v1386, 8
    %v1532 = vpop.permute.xlu0 %1531
    %1533 = vrot.lane.b32.xlu0 %v1388, 8
    %v1534 = vpop.permute.xlu0 %1533
    %1535 = vrot.lane.b32.xlu0 %v1391, 8
    %v1536 = vpop.permute.xlu0 %1535
    %1537 = vrot.lane.b32.xlu0 %v1393, 8
    %v1538 = vpop.permute.xlu0 %1537
    %v1555 = vadd.f32 %v1475, %v1508
    %v1556 = vadd.f32 %v1476, %v1510
    %v1557 = vadd.f32 %v1477, %v1512
    %v1558 = vadd.f32 %v1478, %v1514
    %v1559 = vadd.f32 %v1479, %v1516
    %v1560 = vadd.f32 %v1480, %v1518
    %v1561 = vadd.f32 %v1481, %v1520
    %v1562 = vadd.f32 %v1482, %v1522
    %v1563 = vadd.f32 %v1483, %v1524
    %v1564 = vadd.f32 %v1484, %v1526
    %v1565 = vadd.f32 %v1485, %v1528
    %v1566 = vadd.f32 %v1486, %v1530
    %v1567 = vadd.f32 %v1487, %v1532
    %v1568 = vadd.f32 %v1488, %v1534
    %v1569 = vadd.f32 %v1489, %v1536
    %v1570 = vadd.f32 %v1490, %v1538
    %1571 = vset.pattern.permute.xlu0 2
    %1572 = vperm.xlu0 %1571, %v127
    %v1573 = vpop.permute.xlu0 %1572
    %1575 = vset.pattern.permute.xlu0 2
    %1576 = vperm.xlu0 %1575, %v128
    %v1577 = vpop.permute.xlu0 %1576
    %1579 = vset.pattern.permute.xlu0 2
    %1580 = vperm.xlu0 %1579, %v129
    %v1581 = vpop.permute.xlu0 %1580
    %1583 = vset.pattern.permute.xlu0 2
    %1584 = vperm.xlu0 %1583, %v130
    %v1585 = vpop.permute.xlu0 %1584
    %1587 = vset.pattern.permute.xlu0 2
    %1588 = vperm.xlu0 %1587, %v131
    %v1589 = vpop.permute.xlu0 %1588
    %1591 = vset.pattern.permute.xlu0 2
    %1592 = vperm.xlu0 %1591, %v132
    %v1593 = vpop.permute.xlu0 %1592
    %1595 = vset.pattern.permute.xlu0 2
    %1596 = vperm.xlu0 %1595, %v133
    %v1597 = vpop.permute.xlu0 %1596
    %1599 = vset.pattern.permute.xlu0 2
    %1600 = vperm.xlu0 %1599, %v134
    %v1601 = vpop.permute.xlu0 %1600
    %1603 = vset.pattern.permute.xlu0 2
    %1604 = vperm.xlu0 %1603, %v135
    %v1605 = vpop.permute.xlu0 %1604
    %1607 = vset.pattern.permute.xlu0 2
    %1608 = vperm.xlu0 %1607, %v136
    %v1609 = vpop.permute.xlu0 %1608
    %1611 = vset.pattern.permute.xlu0 2
    %1612 = vperm.xlu0 %1611, %v137
    %v1613 = vpop.permute.xlu0 %1612
    %1615 = vset.pattern.permute.xlu0 2
    %1616 = vperm.xlu0 %1615, %v138
    %v1617 = vpop.permute.xlu0 %1616
    %1619 = vset.pattern.permute.xlu0 2
    %1620 = vperm.xlu0 %1619, %v139
    %v1621 = vpop.permute.xlu0 %1620
    %1623 = vset.pattern.permute.xlu0 2
    %1624 = vperm.xlu0 %1623, %v140
    %v1625 = vpop.permute.xlu0 %1624
    %1627 = vset.pattern.permute.xlu0 2
    %1628 = vperm.xlu0 %1627, %v141
    %v1629 = vpop.permute.xlu0 %1628
    %1631 = vset.pattern.permute.xlu0 2
    %1632 = vperm.xlu0 %1631, %v142
    %v1633 = vpop.permute.xlu0 %1632
    %v1635 = vperm.slane %v146, 2
    %v1636 = vadd.f32 %v1573, %v1635
    %v1637 = vadd.f32 %v1577, %v1635
    %v1638 = vadd.f32 %v1581, %v1635
    %v1639 = vadd.f32 %v1585, %v1635
    %v1640 = vadd.f32 %v1589, %v1635
    %v1641 = vadd.f32 %v1593, %v1635
    %v1642 = vadd.f32 %v1597, %v1635
    %v1643 = vadd.f32 %v1601, %v1635
    %v1644 = vadd.f32 %v1605, %v1635
    %v1645 = vadd.f32 %v1609, %v1635
    %v1646 = vadd.f32 %v1613, %v1635
    %v1647 = vadd.f32 %v1617, %v1635
    %v1648 = vadd.f32 %v1621, %v1635
    %v1649 = vadd.f32 %v1625, %v1635
    %v1650 = vadd.f32 %v1629, %v1635
    %v1651 = vadd.f32 %v1633, %v1635
    %v1652 = vmul.f32 %v1636, 0.2
    %v1653 = vmul.f32 %v1637, 0.2
    %v1654 = vmul.f32 %v1638, 0.2
    %v1655 = vmul.f32 %v1639, 0.2
    %v1656 = vmul.f32 %v1640, 0.2
    %v1657 = vmul.f32 %v1641, 0.2
    %v1658 = vmul.f32 %v1642, 0.2
    %v1659 = vmul.f32 %v1643, 0.2
    %v1660 = vmul.f32 %v1644, 0.2
    %v1661 = vmul.f32 %v1645, 0.2
    %v1662 = vmul.f32 %v1646, 0.2
    %v1663 = vmul.f32 %v1647, 0.2
    %v1664 = vmul.f32 %v1648, 0.2
    %v1665 = vmul.f32 %v1649, 0.2
    %v1666 = vmul.f32 %v1650, 0.2
    %v1667 = vmul.f32 %v1651, 0.2
    %v1668 = vmax.f32 %v1636, %v1652
    %v1669 = vmax.f32 %v1637, %v1653
    %v1670 = vmax.f32 %v1638, %v1654
    %v1671 = vmax.f32 %v1639, %v1655
    %v1672 = vmax.f32 %v1640, %v1656
    %v1673 = vmax.f32 %v1641, %v1657
    %v1674 = vmax.f32 %v1642, %v1658
    %v1675 = vmax.f32 %v1643, %v1659
    %v1676 = vmax.f32 %v1644, %v1660
    %v1677 = vmax.f32 %v1645, %v1661
    %v1678 = vmax.f32 %v1646, %v1662
    %v1679 = vmax.f32 %v1647, %v1663
    %v1680 = vmax.f32 %v1648, %v1664
    %v1681 = vmax.f32 %v1649, %v1665
    %v1682 = vmax.f32 %v1650, %v1666
    %v1683 = vmax.f32 %v1651, %v1667
    %1684 = vmax.xlane.f32.xlu0 %v1668
    %v1685 = vpop.xlane.xlu0 %1684
    %1686 = vmax.xlane.f32.xlu0 %v1669
    %v1687 = vpop.xlane.xlu0 %1686
    %1688 = vmax.xlane.f32.xlu0 %v1670
    %v1689 = vpop.xlane.xlu0 %1688
    %1690 = vmax.xlane.f32.xlu0 %v1671
    %v1691 = vpop.xlane.xlu0 %1690
    %1692 = vmax.xlane.f32.xlu0 %v1672
    %v1693 = vpop.xlane.xlu0 %1692
    %1694 = vmax.xlane.f32.xlu0 %v1673
    %v1695 = vpop.xlane.xlu0 %1694
    %1696 = vmax.xlane.f32.xlu0 %v1674
    %v1697 = vpop.xlane.xlu0 %1696
    %1698 = vmax.xlane.f32.xlu0 %v1675
    %v1699 = vpop.xlane.xlu0 %1698
    %1700 = vmax.xlane.f32.xlu0 %v1676
    %v1701 = vpop.xlane.xlu0 %1700
    %1702 = vmax.xlane.f32.xlu0 %v1677
    %v1703 = vpop.xlane.xlu0 %1702
    %1704 = vmax.xlane.f32.xlu0 %v1678
    %v1705 = vpop.xlane.xlu0 %1704
    %1706 = vmax.xlane.f32.xlu0 %v1679
    %v1707 = vpop.xlane.xlu0 %1706
    %1708 = vmax.xlane.f32.xlu0 %v1680
    %v1709 = vpop.xlane.xlu0 %1708
    %1710 = vmax.xlane.f32.xlu0 %v1681
    %v1711 = vpop.xlane.xlu0 %1710
    %1712 = vmax.xlane.f32.xlu0 %v1682
    %v1713 = vpop.xlane.xlu0 %1712
    %1714 = vmax.xlane.f32.xlu0 %v1683
    %v1715 = vpop.xlane.xlu0 %1714
    %v1716 = vmax.f32 %v183, %v1685
    %v1717 = vmax.f32 %v184, %v1687
    %v1718 = vmax.f32 %v185, %v1689
    %v1719 = vmax.f32 %v186, %v1691
    %v1720 = vmax.f32 %v187, %v1693
    %v1721 = vmax.f32 %v188, %v1695
    %v1722 = vmax.f32 %v189, %v1697
    %v1723 = vmax.f32 %v190, %v1699
    %v1724 = vmax.f32 %v191, %v1701
    %v1725 = vmax.f32 %v192, %v1703
    %v1726 = vmax.f32 %v193, %v1705
    %v1727 = vmax.f32 %v194, %v1707
    %v1728 = vmax.f32 %v195, %v1709
    %v1729 = vmax.f32 %v196, %v1711
    %v1730 = vmax.f32 %v197, %v1713
    %v1731 = vmax.f32 %v198, %v1715
    %v1732 = vsub.f32 %v183, %v1716
    %v1733 = vsub.f32 %v184, %v1717
    %v1734 = vsub.f32 %v185, %v1718
    %v1735 = vsub.f32 %v186, %v1719
    %v1736 = vsub.f32 %v187, %v1720
    %v1737 = vsub.f32 %v188, %v1721
    %v1738 = vsub.f32 %v189, %v1722
    %v1739 = vsub.f32 %v190, %v1723
    %v1740 = vsub.f32 %v191, %v1724
    %v1741 = vsub.f32 %v192, %v1725
    %v1742 = vsub.f32 %v193, %v1726
    %v1743 = vsub.f32 %v194, %v1727
    %v1744 = vsub.f32 %v195, %v1728
    %v1745 = vsub.f32 %v196, %v1729
    %v1746 = vsub.f32 %v197, %v1730
    %v1747 = vsub.f32 %v198, %v1731
    %v1748 = vmul.f32 %v1732, 1.442695
    %v1749 = vpow.pop %v1748
    %v1750 = vmul.f32 %v1733, 1.442695
    %v1751 = vpow.pop %v1750
    %v1752 = vmul.f32 %v1734, 1.442695
    %v1753 = vpow.pop %v1752
    %v1754 = vmul.f32 %v1735, 1.442695
    %v1755 = vpow.pop %v1754
    %v1756 = vmul.f32 %v1736, 1.442695
    %v1757 = vpow.pop %v1756
    %v1758 = vmul.f32 %v1737, 1.442695
    %v1759 = vpow.pop %v1758
    %v1760 = vmul.f32 %v1738, 1.442695
    %v1761 = vpow.pop %v1760
    %v1762 = vmul.f32 %v1739, 1.442695
    %v1763 = vpow.pop %v1762
    %v1764 = vmul.f32 %v1740, 1.442695
    %v1765 = vpow.pop %v1764
    %v1766 = vmul.f32 %v1741, 1.442695
    %v1767 = vpow.pop %v1766
    %v1768 = vmul.f32 %v1742, 1.442695
    %v1769 = vpow.pop %v1768
    %v1770 = vmul.f32 %v1743, 1.442695
    %v1771 = vpow.pop %v1770
    %v1772 = vmul.f32 %v1744, 1.442695
    %v1773 = vpow.pop %v1772
    %v1774 = vmul.f32 %v1745, 1.442695
    %v1775 = vpow.pop %v1774
    %v1776 = vmul.f32 %v1746, 1.442695
    %v1777 = vpow.pop %v1776
    %v1778 = vmul.f32 %v1747, 1.442695
    %v1779 = vpow.pop %v1778
    %1781 = vset.pattern.permute.xlu0 2
    %1782 = vperm.xlu0 %1781, %v1716
    %v1783 = vpop.permute.xlu0 %1782
    %1786 = vset.pattern.permute.xlu0 2
    %1787 = vperm.xlu0 %1786, %v1717
    %v1788 = vpop.permute.xlu0 %1787
    %1791 = vset.pattern.permute.xlu0 2
    %1792 = vperm.xlu0 %1791, %v1718
    %v1793 = vpop.permute.xlu0 %1792
    %1796 = vset.pattern.permute.xlu0 2
    %1797 = vperm.xlu0 %1796, %v1719
    %v1798 = vpop.permute.xlu0 %1797
    %1801 = vset.pattern.permute.xlu0 2
    %1802 = vperm.xlu0 %1801, %v1720
    %v1803 = vpop.permute.xlu0 %1802
    %1806 = vset.pattern.permute.xlu0 2
    %1807 = vperm.xlu0 %1806, %v1721
    %v1808 = vpop.permute.xlu0 %1807
    %1811 = vset.pattern.permute.xlu0 2
    %1812 = vperm.xlu0 %1811, %v1722
    %v1813 = vpop.permute.xlu0 %1812
    %1816 = vset.pattern.permute.xlu0 2
    %1817 = vperm.xlu0 %1816, %v1723
    %v1818 = vpop.permute.xlu0 %1817
    %1821 = vset.pattern.permute.xlu0 2
    %1822 = vperm.xlu0 %1821, %v1724
    %v1823 = vpop.permute.xlu0 %1822
    %1826 = vset.pattern.permute.xlu0 2
    %1827 = vperm.xlu0 %1826, %v1725
    %v1828 = vpop.permute.xlu0 %1827
    %1831 = vset.pattern.permute.xlu0 2
    %1832 = vperm.xlu0 %1831, %v1726
    %v1833 = vpop.permute.xlu0 %1832
    %1836 = vset.pattern.permute.xlu0 2
    %1837 = vperm.xlu0 %1836, %v1727
    %v1838 = vpop.permute.xlu0 %1837
    %1841 = vset.pattern.permute.xlu0 2
    %1842 = vperm.xlu0 %1841, %v1728
    %v1843 = vpop.permute.xlu0 %1842
    %1846 = vset.pattern.permute.xlu0 2
    %1847 = vperm.xlu0 %1846, %v1729
    %v1848 = vpop.permute.xlu0 %1847
    %1851 = vset.pattern.permute.xlu0 2
    %1852 = vperm.xlu0 %1851, %v1730
    %v1853 = vpop.permute.xlu0 %1852
    %1856 = vset.pattern.permute.xlu0 2
    %1857 = vperm.xlu0 %1856, %v1731
    %v1858 = vpop.permute.xlu0 %1857
    %v1860 = vsub.f32 %v1668, %v1783
    %v1861 = vsub.f32 %v1669, %v1788
    %v1862 = vsub.f32 %v1670, %v1793
    %v1863 = vsub.f32 %v1671, %v1798
    %v1864 = vsub.f32 %v1672, %v1803
    %v1865 = vsub.f32 %v1673, %v1808
    %v1866 = vsub.f32 %v1674, %v1813
    %v1867 = vsub.f32 %v1675, %v1818
    %v1868 = vsub.f32 %v1676, %v1823
    %v1869 = vsub.f32 %v1677, %v1828
    %v1870 = vsub.f32 %v1678, %v1833
    %v1871 = vsub.f32 %v1679, %v1838
    %v1872 = vsub.f32 %v1680, %v1843
    %v1873 = vsub.f32 %v1681, %v1848
    %v1874 = vsub.f32 %v1682, %v1853
    %v1875 = vsub.f32 %v1683, %v1858
    %v1876 = vmul.f32 %v1860, 1.442695
    %v1877 = vpow.pop %v1876
    %v1878 = vmul.f32 %v1861, 1.442695
    %v1879 = vpow.pop %v1878
    %v1880 = vmul.f32 %v1862, 1.442695
    %v1881 = vpow.pop %v1880
    %v1882 = vmul.f32 %v1863, 1.442695
    %v1883 = vpow.pop %v1882
    %v1884 = vmul.f32 %v1864, 1.442695
    %v1885 = vpow.pop %v1884
    %v1886 = vmul.f32 %v1865, 1.442695
    %v1887 = vpow.pop %v1886
    %v1888 = vmul.f32 %v1866, 1.442695
    %v1889 = vpow.pop %v1888
    %v1890 = vmul.f32 %v1867, 1.442695
    %v1891 = vpow.pop %v1890
    %v1892 = vmul.f32 %v1868, 1.442695
    %v1893 = vpow.pop %v1892
    %v1894 = vmul.f32 %v1869, 1.442695
    %v1895 = vpow.pop %v1894
    %v1896 = vmul.f32 %v1870, 1.442695
    %v1897 = vpow.pop %v1896
    %v1898 = vmul.f32 %v1871, 1.442695
    %v1899 = vpow.pop %v1898
    %v1900 = vmul.f32 %v1872, 1.442695
    %v1901 = vpow.pop %v1900
    %v1902 = vmul.f32 %v1873, 1.442695
    %v1903 = vpow.pop %v1902
    %v1904 = vmul.f32 %v1874, 1.442695
    %v1905 = vpow.pop %v1904
    %v1906 = vmul.f32 %v1875, 1.442695
    %v1907 = vpow.pop %v1906
    %v1908 = vmul.f32 %v1877, %v568
    %v1909 = vmul.f32 %v1879, %v569
    %v1910 = vmul.f32 %v1881, %v570
    %v1911 = vmul.f32 %v1883, %v571
    %v1912 = vmul.f32 %v1885, %v572
    %v1913 = vmul.f32 %v1887, %v573
    %v1914 = vmul.f32 %v1889, %v574
    %v1915 = vmul.f32 %v1891, %v575
    %v1916 = vmul.f32 %v1893, %v576
    %v1917 = vmul.f32 %v1895, %v577
    %v1918 = vmul.f32 %v1897, %v578
    %v1919 = vmul.f32 %v1899, %v579
    %v1920 = vmul.f32 %v1901, %v580
    %v1921 = vmul.f32 %v1903, %v581
    %v1922 = vmul.f32 %v1905, %v582
    %v1923 = vmul.f32 %v1907, %v583
    %v1924 = vmul.f32 %v1749, %v199
    %v1925 = vmul.f32 %v1751, %v200
    %v1926 = vmul.f32 %v1753, %v201
    %v1927 = vmul.f32 %v1755, %v202
    %v1928 = vmul.f32 %v1757, %v203
    %v1929 = vmul.f32 %v1759, %v204
    %v1930 = vmul.f32 %v1761, %v205
    %v1931 = vmul.f32 %v1763, %v206
    %v1932 = vmul.f32 %v1765, %v207
    %v1933 = vmul.f32 %v1767, %v208
    %v1934 = vmul.f32 %v1769, %v209
    %v1935 = vmul.f32 %v1771, %v210
    %v1936 = vmul.f32 %v1773, %v211
    %v1937 = vmul.f32 %v1775, %v212
    %v1938 = vmul.f32 %v1777, %v213
    %v1939 = vmul.f32 %v1779, %v214
    %1940 = vadd.xlane.f32.xlu0 %v1908
    %v1941 = vpop.xlane.xlu0 %1940
    %1942 = vadd.xlane.f32.xlu0 %v1909
    %v1943 = vpop.xlane.xlu0 %1942
    %1944 = vadd.xlane.f32.xlu0 %v1910
    %v1945 = vpop.xlane.xlu0 %1944
    %1946 = vadd.xlane.f32.xlu0 %v1911
    %v1947 = vpop.xlane.xlu0 %1946
    %1948 = vadd.xlane.f32.xlu0 %v1912
    %v1949 = vpop.xlane.xlu0 %1948
    %1950 = vadd.xlane.f32.xlu0 %v1913
    %v1951 = vpop.xlane.xlu0 %1950
    %1952 = vadd.xlane.f32.xlu0 %v1914
    %v1953 = vpop.xlane.xlu0 %1952
    %1954 = vadd.xlane.f32.xlu0 %v1915
    %v1955 = vpop.xlane.xlu0 %1954
    %1956 = vadd.xlane.f32.xlu0 %v1916
    %v1957 = vpop.xlane.xlu0 %1956
    %1958 = vadd.xlane.f32.xlu0 %v1917
    %v1959 = vpop.xlane.xlu0 %1958
    %1960 = vadd.xlane.f32.xlu0 %v1918
    %v1961 = vpop.xlane.xlu0 %1960
    %1962 = vadd.xlane.f32.xlu0 %v1919
    %v1963 = vpop.xlane.xlu0 %1962
    %1964 = vadd.xlane.f32.xlu0 %v1920
    %v1965 = vpop.xlane.xlu0 %1964
    %1966 = vadd.xlane.f32.xlu0 %v1921
    %v1967 = vpop.xlane.xlu0 %1966
    %1968 = vadd.xlane.f32.xlu0 %v1922
    %v1969 = vpop.xlane.xlu0 %1968
    %1970 = vadd.xlane.f32.xlu0 %v1923
    %v1971 = vpop.xlane.xlu0 %1970
    %v1972 = vadd.f32 %v1924, %v1941
    %v1973 = vadd.f32 %v1925, %v1943
    %v1974 = vadd.f32 %v1926, %v1945
    %v1975 = vadd.f32 %v1927, %v1947
    %v1976 = vadd.f32 %v1928, %v1949
    %v1977 = vadd.f32 %v1929, %v1951
    %v1978 = vadd.f32 %v1930, %v1953
    %v1979 = vadd.f32 %v1931, %v1955
    %v1980 = vadd.f32 %v1932, %v1957
    %v1981 = vadd.f32 %v1933, %v1959
    %v1982 = vadd.f32 %v1934, %v1961
    %v1983 = vadd.f32 %v1935, %v1963
    %v1984 = vadd.f32 %v1936, %v1965
    %v1985 = vadd.f32 %v1937, %v1967
    %v1986 = vadd.f32 %v1938, %v1969
    %v1987 = vadd.f32 %v1939, %v1971
    %v1988 = vpack.c.bf16 %v1909, %v1908
    %v1989 = vpack.c.bf16 %v1911, %v1910
    %v1990 = vpack.c.bf16 %v1913, %v1912
    %v1991 = vpack.c.bf16 %v1915, %v1914
    %v1992 = vpack.c.bf16 %v1917, %v1916
    %v1993 = vpack.c.bf16 %v1919, %v1918
    %v1994 = vpack.c.bf16 %v1921, %v1920
    %v1995 = vpack.c.bf16 %v1923, %v1922
    %1996 = vrot.lane.b32.xlu0 %v704, 112
    %v1997 = vpop.permute.xlu0 %1996
    %1998 = vrot.lane.b32.xlu0 %v705, 112
    %v1999 = vpop.permute.xlu0 %1998
    %2000 = vrot.lane.b32.xlu0 %v706, 112
    %v2001 = vpop.permute.xlu0 %2000
    %2002 = vrot.lane.b32.xlu0 %v707, 112
    %v2003 = vpop.permute.xlu0 %2002
    %2004 = vrot.lane.b32.xlu0 %v708, 112
    %v2005 = vpop.permute.xlu0 %2004
    %2006 = vrot.lane.b32.xlu0 %v709, 112
    %v2007 = vpop.permute.xlu0 %2006
    %2008 = vrot.lane.b32.xlu0 %v710, 112
    %v2009 = vpop.permute.xlu0 %2008
    %2010 = vrot.lane.b32.xlu0 %v711, 112
    %v2011 = vpop.permute.xlu0 %2010
    %2020 = vmatpush.bf16.msra.mxu0 %v2011
    %2021 = vmatpush.bf16.msra.mxu0 %v2009
    %2022 = vmatpush.bf16.msra.mxu0 %v2007
    %2023 = vmatpush.bf16.msra.mxu0 %v2005
    %2024 = vmatpush.bf16.msra.mxu0 %v2003
    %2025 = vmatpush.bf16.msra.mxu0 %v2001
    %2026 = vmatpush.bf16.msra.mxu0 %v1999
    %2027 = vmatpush.bf16.msra.mxu0 %v1997
    %2028 = vmatmul.bf16.gmra.mxu0 %v1988
    %v2029 = vpop.f32.mrf.mxu0
    %v2030 = vadd.f32 0.0, %v2029
    %v2031 = vpop.f32.mrf.mxu0
    %v2032 = vadd.f32 0.0, %v2031
    %2033 = vmatmul.bf16.gmra.mxu0 %v1989
    %v2034 = vpop.f32.mrf.mxu0
    %v2035 = vadd.f32 0.0, %v2034
    %v2036 = vpop.f32.mrf.mxu0
    %v2037 = vadd.f32 0.0, %v2036
    %2038 = vmatmul.bf16.gmra.mxu0 %v1990
    %v2039 = vpop.f32.mrf.mxu0
    %v2040 = vadd.f32 0.0, %v2039
    %v2041 = vpop.f32.mrf.mxu0
    %v2042 = vadd.f32 0.0, %v2041
    %2043 = vmatmul.bf16.gmra.mxu0 %v1991
    %v2044 = vpop.f32.mrf.mxu0
    %v2045 = vadd.f32 0.0, %v2044
    %v2046 = vpop.f32.mrf.mxu0
    %v2047 = vadd.f32 0.0, %v2046
    %2048 = vmatmul.bf16.gmra.mxu0 %v1992
    %v2049 = vpop.f32.mrf.mxu0
    %v2050 = vadd.f32 0.0, %v2049
    %v2051 = vpop.f32.mrf.mxu0
    %v2052 = vadd.f32 0.0, %v2051
    %2053 = vmatmul.bf16.gmra.mxu0 %v1993
    %v2054 = vpop.f32.mrf.mxu0
    %v2055 = vadd.f32 0.0, %v2054
    %v2056 = vpop.f32.mrf.mxu0
    %v2057 = vadd.f32 0.0, %v2056
    %2058 = vmatmul.bf16.gmra.mxu0 %v1994
    %v2059 = vpop.f32.mrf.mxu0
    %v2060 = vadd.f32 0.0, %v2059
    %v2061 = vpop.f32.mrf.mxu0
    %v2062 = vadd.f32 0.0, %v2061
    %2063 = vmatmul.bf16.gmra.mxu0 %v1995
    %v2064 = vpop.f32.mrf.mxu0
    %v2065 = vadd.f32 0.0, %v2064
    %v2066 = vpop.f32.mrf.mxu0
    %v2067 = vadd.f32 0.0, %v2066
    %2068 = vdwg.mxu0
    %2070 = vset.pattern.permute.xlu0 2
    %2071 = vperm.xlu0 %2070, %v1749
    %v2072 = vpop.permute.xlu0 %2071
    %2075 = vset.pattern.permute.xlu0 2
    %2076 = vperm.xlu0 %2075, %v1751
    %v2077 = vpop.permute.xlu0 %2076
    %2080 = vset.pattern.permute.xlu0 2
    %2081 = vperm.xlu0 %2080, %v1753
    %v2082 = vpop.permute.xlu0 %2081
    %2085 = vset.pattern.permute.xlu0 2
    %2086 = vperm.xlu0 %2085, %v1755
    %v2087 = vpop.permute.xlu0 %2086
    %2090 = vset.pattern.permute.xlu0 2
    %2091 = vperm.xlu0 %2090, %v1757
    %v2092 = vpop.permute.xlu0 %2091
    %2095 = vset.pattern.permute.xlu0 2
    %2096 = vperm.xlu0 %2095, %v1759
    %v2097 = vpop.permute.xlu0 %2096
    %2100 = vset.pattern.permute.xlu0 2
    %2101 = vperm.xlu0 %2100, %v1761
    %v2102 = vpop.permute.xlu0 %2101
    %2105 = vset.pattern.permute.xlu0 2
    %2106 = vperm.xlu0 %2105, %v1763
    %v2107 = vpop.permute.xlu0 %2106
    %2110 = vset.pattern.permute.xlu0 2
    %2111 = vperm.xlu0 %2110, %v1765
    %v2112 = vpop.permute.xlu0 %2111
    %2115 = vset.pattern.permute.xlu0 2
    %2116 = vperm.xlu0 %2115, %v1767
    %v2117 = vpop.permute.xlu0 %2116
    %2120 = vset.pattern.permute.xlu0 2
    %2121 = vperm.xlu0 %2120, %v1769
    %v2122 = vpop.permute.xlu0 %2121
    %2125 = vset.pattern.permute.xlu0 2
    %2126 = vperm.xlu0 %2125, %v1771
    %v2127 = vpop.permute.xlu0 %2126
    %2130 = vset.pattern.permute.xlu0 2
    %2131 = vperm.xlu0 %2130, %v1773
    %v2132 = vpop.permute.xlu0 %2131
    %2135 = vset.pattern.permute.xlu0 2
    %2136 = vperm.xlu0 %2135, %v1775
    %v2137 = vpop.permute.xlu0 %2136
    %2140 = vset.pattern.permute.xlu0 2
    %2141 = vperm.xlu0 %2140, %v1777
    %v2142 = vpop.permute.xlu0 %2141
    %2145 = vset.pattern.permute.xlu0 2
    %2146 = vperm.xlu0 %2145, %v1779
    %v2147 = vpop.permute.xlu0 %2146
    %v2149 = vmul.f32 %v2072, %v769
    %v2150 = vmul.f32 %v2077, %v770
    %v2151 = vmul.f32 %v2082, %v771
    %v2152 = vmul.f32 %v2087, %v772
    %v2153 = vmul.f32 %v2092, %v773
    %v2154 = vmul.f32 %v2097, %v774
    %v2155 = vmul.f32 %v2102, %v775
    %v2156 = vmul.f32 %v2107, %v776
    %v2157 = vmul.f32 %v2112, %v777
    %v2158 = vmul.f32 %v2117, %v778
    %v2159 = vmul.f32 %v2122, %v779
    %v2160 = vmul.f32 %v2127, %v780
    %v2161 = vmul.f32 %v2132, %v781
    %v2162 = vmul.f32 %v2137, %v782
    %v2163 = vmul.f32 %v2142, %v783
    %v2164 = vmul.f32 %v2147, %v784
    %2181 = vrot.lane.b32.xlu0 %v2030, 16
    %v2182 = vpop.permute.xlu0 %2181
    %2183 = vrot.lane.b32.xlu0 %v2032, 16
    %v2184 = vpop.permute.xlu0 %2183
    %2185 = vrot.lane.b32.xlu0 %v2035, 16
    %v2186 = vpop.permute.xlu0 %2185
    %2187 = vrot.lane.b32.xlu0 %v2037, 16
    %v2188 = vpop.permute.xlu0 %2187
    %2189 = vrot.lane.b32.xlu0 %v2040, 16
    %v2190 = vpop.permute.xlu0 %2189
    %2191 = vrot.lane.b32.xlu0 %v2042, 16
    %v2192 = vpop.permute.xlu0 %2191
    %2193 = vrot.lane.b32.xlu0 %v2045, 16
    %v2194 = vpop.permute.xlu0 %2193
    %2195 = vrot.lane.b32.xlu0 %v2047, 16
    %v2196 = vpop.permute.xlu0 %2195
    %2197 = vrot.lane.b32.xlu0 %v2050, 16
    %v2198 = vpop.permute.xlu0 %2197
    %2199 = vrot.lane.b32.xlu0 %v2052, 16
    %v2200 = vpop.permute.xlu0 %2199
    %2201 = vrot.lane.b32.xlu0 %v2055, 16
    %v2202 = vpop.permute.xlu0 %2201
    %2203 = vrot.lane.b32.xlu0 %v2057, 16
    %v2204 = vpop.permute.xlu0 %2203
    %2205 = vrot.lane.b32.xlu0 %v2060, 16
    %v2206 = vpop.permute.xlu0 %2205
    %2207 = vrot.lane.b32.xlu0 %v2062, 16
    %v2208 = vpop.permute.xlu0 %2207
    %2209 = vrot.lane.b32.xlu0 %v2065, 16
    %v2210 = vpop.permute.xlu0 %2209
    %2211 = vrot.lane.b32.xlu0 %v2067, 16
    %v2212 = vpop.permute.xlu0 %2211
    %v2229 = vadd.f32 %v2149, %v2182
    %v2230 = vadd.f32 %v2150, %v2184
    %v2231 = vadd.f32 %v2151, %v2186
    %v2232 = vadd.f32 %v2152, %v2188
    %v2233 = vadd.f32 %v2153, %v2190
    %v2234 = vadd.f32 %v2154, %v2192
    %v2235 = vadd.f32 %v2155, %v2194
    %v2236 = vadd.f32 %v2156, %v2196
    %v2237 = vadd.f32 %v2157, %v2198
    %v2238 = vadd.f32 %v2158, %v2200
    %v2239 = vadd.f32 %v2159, %v2202
    %v2240 = vadd.f32 %v2160, %v2204
    %v2241 = vadd.f32 %v2161, %v2206
    %v2242 = vadd.f32 %v2162, %v2208
    %v2243 = vadd.f32 %v2163, %v2210
    %v2244 = vadd.f32 %v2164, %v2212
    %2245 = vset.pattern.permute.xlu0 3
    %2246 = vperm.xlu0 %2245, %v127
    %v2247 = vpop.permute.xlu0 %2246
    %2249 = vset.pattern.permute.xlu0 3
    %2250 = vperm.xlu0 %2249, %v128
    %v2251 = vpop.permute.xlu0 %2250
    %2253 = vset.pattern.permute.xlu0 3
    %2254 = vperm.xlu0 %2253, %v129
    %v2255 = vpop.permute.xlu0 %2254
    %2257 = vset.pattern.permute.xlu0 3
    %2258 = vperm.xlu0 %2257, %v130
    %v2259 = vpop.permute.xlu0 %2258
    %2261 = vset.pattern.permute.xlu0 3
    %2262 = vperm.xlu0 %2261, %v131
    %v2263 = vpop.permute.xlu0 %2262
    %2265 = vset.pattern.permute.xlu0 3
    %2266 = vperm.xlu0 %2265, %v132
    %v2267 = vpop.permute.xlu0 %2266
    %2269 = vset.pattern.permute.xlu0 3
    %2270 = vperm.xlu0 %2269, %v133
    %v2271 = vpop.permute.xlu0 %2270
    %2273 = vset.pattern.permute.xlu0 3
    %2274 = vperm.xlu0 %2273, %v134
    %v2275 = vpop.permute.xlu0 %2274
    %2277 = vset.pattern.permute.xlu0 3
    %2278 = vperm.xlu0 %2277, %v135
    %v2279 = vpop.permute.xlu0 %2278
    %2281 = vset.pattern.permute.xlu0 3
    %2282 = vperm.xlu0 %2281, %v136
    %v2283 = vpop.permute.xlu0 %2282
    %2285 = vset.pattern.permute.xlu0 3
    %2286 = vperm.xlu0 %2285, %v137
    %v2287 = vpop.permute.xlu0 %2286
    %2289 = vset.pattern.permute.xlu0 3
    %2290 = vperm.xlu0 %2289, %v138
    %v2291 = vpop.permute.xlu0 %2290
    %2293 = vset.pattern.permute.xlu0 3
    %2294 = vperm.xlu0 %2293, %v139
    %v2295 = vpop.permute.xlu0 %2294
    %2297 = vset.pattern.permute.xlu0 3
    %2298 = vperm.xlu0 %2297, %v140
    %v2299 = vpop.permute.xlu0 %2298
    %2301 = vset.pattern.permute.xlu0 3
    %2302 = vperm.xlu0 %2301, %v141
    %v2303 = vpop.permute.xlu0 %2302
    %2305 = vset.pattern.permute.xlu0 3
    %2306 = vperm.xlu0 %2305, %v142
    %v2307 = vpop.permute.xlu0 %2306
    %v2309 = vperm.slane %v146, 3
    %v2310 = vadd.f32 %v2247, %v2309
    %v2311 = vadd.f32 %v2251, %v2309
    %v2312 = vadd.f32 %v2255, %v2309
    %v2313 = vadd.f32 %v2259, %v2309
    %v2314 = vadd.f32 %v2263, %v2309
    %v2315 = vadd.f32 %v2267, %v2309
    %v2316 = vadd.f32 %v2271, %v2309
    %v2317 = vadd.f32 %v2275, %v2309
    %v2318 = vadd.f32 %v2279, %v2309
    %v2319 = vadd.f32 %v2283, %v2309
    %v2320 = vadd.f32 %v2287, %v2309
    %v2321 = vadd.f32 %v2291, %v2309
    %v2322 = vadd.f32 %v2295, %v2309
    %v2323 = vadd.f32 %v2299, %v2309
    %v2324 = vadd.f32 %v2303, %v2309
    %v2325 = vadd.f32 %v2307, %v2309
    %v2326 = vmul.f32 %v2310, 0.2
    %v2327 = vmul.f32 %v2311, 0.2
    %v2328 = vmul.f32 %v2312, 0.2
    %v2329 = vmul.f32 %v2313, 0.2
    %v2330 = vmul.f32 %v2314, 0.2
    %v2331 = vmul.f32 %v2315, 0.2
    %v2332 = vmul.f32 %v2316, 0.2
    %v2333 = vmul.f32 %v2317, 0.2
    %v2334 = vmul.f32 %v2318, 0.2
    %v2335 = vmul.f32 %v2319, 0.2
    %v2336 = vmul.f32 %v2320, 0.2
    %v2337 = vmul.f32 %v2321, 0.2
    %v2338 = vmul.f32 %v2322, 0.2
    %v2339 = vmul.f32 %v2323, 0.2
    %v2340 = vmul.f32 %v2324, 0.2
    %v2341 = vmul.f32 %v2325, 0.2
    %v2342 = vmax.f32 %v2310, %v2326
    %v2343 = vmax.f32 %v2311, %v2327
    %v2344 = vmax.f32 %v2312, %v2328
    %v2345 = vmax.f32 %v2313, %v2329
    %v2346 = vmax.f32 %v2314, %v2330
    %v2347 = vmax.f32 %v2315, %v2331
    %v2348 = vmax.f32 %v2316, %v2332
    %v2349 = vmax.f32 %v2317, %v2333
    %v2350 = vmax.f32 %v2318, %v2334
    %v2351 = vmax.f32 %v2319, %v2335
    %v2352 = vmax.f32 %v2320, %v2336
    %v2353 = vmax.f32 %v2321, %v2337
    %v2354 = vmax.f32 %v2322, %v2338
    %v2355 = vmax.f32 %v2323, %v2339
    %v2356 = vmax.f32 %v2324, %v2340
    %v2357 = vmax.f32 %v2325, %v2341
    %2358 = vmax.xlane.f32.xlu0 %v2342
    %v2359 = vpop.xlane.xlu0 %2358
    %2360 = vmax.xlane.f32.xlu0 %v2343
    %v2361 = vpop.xlane.xlu0 %2360
    %2362 = vmax.xlane.f32.xlu0 %v2344
    %v2363 = vpop.xlane.xlu0 %2362
    %2364 = vmax.xlane.f32.xlu0 %v2345
    %v2365 = vpop.xlane.xlu0 %2364
    %2366 = vmax.xlane.f32.xlu0 %v2346
    %v2367 = vpop.xlane.xlu0 %2366
    %2368 = vmax.xlane.f32.xlu0 %v2347
    %v2369 = vpop.xlane.xlu0 %2368
    %2370 = vmax.xlane.f32.xlu0 %v2348
    %v2371 = vpop.xlane.xlu0 %2370
    %2372 = vmax.xlane.f32.xlu0 %v2349
    %v2373 = vpop.xlane.xlu0 %2372
    %2374 = vmax.xlane.f32.xlu0 %v2350
    %v2375 = vpop.xlane.xlu0 %2374
    %2376 = vmax.xlane.f32.xlu0 %v2351
    %v2377 = vpop.xlane.xlu0 %2376
    %2378 = vmax.xlane.f32.xlu0 %v2352
    %v2379 = vpop.xlane.xlu0 %2378
    %2380 = vmax.xlane.f32.xlu0 %v2353
    %v2381 = vpop.xlane.xlu0 %2380
    %2382 = vmax.xlane.f32.xlu0 %v2354
    %v2383 = vpop.xlane.xlu0 %2382
    %2384 = vmax.xlane.f32.xlu0 %v2355
    %v2385 = vpop.xlane.xlu0 %2384
    %2386 = vmax.xlane.f32.xlu0 %v2356
    %v2387 = vpop.xlane.xlu0 %2386
    %2388 = vmax.xlane.f32.xlu0 %v2357
    %v2389 = vpop.xlane.xlu0 %2388
    %v2390 = vmax.f32 %v183, %v2359
    %v2391 = vmax.f32 %v184, %v2361
    %v2392 = vmax.f32 %v185, %v2363
    %v2393 = vmax.f32 %v186, %v2365
    %v2394 = vmax.f32 %v187, %v2367
    %v2395 = vmax.f32 %v188, %v2369
    %v2396 = vmax.f32 %v189, %v2371
    %v2397 = vmax.f32 %v190, %v2373
    %v2398 = vmax.f32 %v191, %v2375
    %v2399 = vmax.f32 %v192, %v2377
    %v2400 = vmax.f32 %v193, %v2379
    %v2401 = vmax.f32 %v194, %v2381
    %v2402 = vmax.f32 %v195, %v2383
    %v2403 = vmax.f32 %v196, %v2385
    %v2404 = vmax.f32 %v197, %v2387
    %v2405 = vmax.f32 %v198, %v2389
    %v2406 = vsub.f32 %v183, %v2390
    %v2407 = vsub.f32 %v184, %v2391
    %v2408 = vsub.f32 %v185, %v2392
    %v2409 = vsub.f32 %v186, %v2393
    %v2410 = vsub.f32 %v187, %v2394
    %v2411 = vsub.f32 %v188, %v2395
    %v2412 = vsub.f32 %v189, %v2396
    %v2413 = vsub.f32 %v190, %v2397
    %v2414 = vsub.f32 %v191, %v2398
    %v2415 = vsub.f32 %v192, %v2399
    %v2416 = vsub.f32 %v193, %v2400
    %v2417 = vsub.f32 %v194, %v2401
    %v2418 = vsub.f32 %v195, %v2402
    %v2419 = vsub.f32 %v196, %v2403
    %v2420 = vsub.f32 %v197, %v2404
    %v2421 = vsub.f32 %v198, %v2405
    %v2422 = vmul.f32 %v2406, 1.442695
    %v2423 = vpow.pop %v2422
    %v2424 = vmul.f32 %v2407, 1.442695
    %v2425 = vpow.pop %v2424
    %v2426 = vmul.f32 %v2408, 1.442695
    %v2427 = vpow.pop %v2426
    %v2428 = vmul.f32 %v2409, 1.442695
    %v2429 = vpow.pop %v2428
    %v2430 = vmul.f32 %v2410, 1.442695
    %v2431 = vpow.pop %v2430
    %v2432 = vmul.f32 %v2411, 1.442695
    %v2433 = vpow.pop %v2432
    %v2434 = vmul.f32 %v2412, 1.442695
    %v2435 = vpow.pop %v2434
    %v2436 = vmul.f32 %v2413, 1.442695
    %v2437 = vpow.pop %v2436
    %v2438 = vmul.f32 %v2414, 1.442695
    %v2439 = vpow.pop %v2438
    %v2440 = vmul.f32 %v2415, 1.442695
    %v2441 = vpow.pop %v2440
    %v2442 = vmul.f32 %v2416, 1.442695
    %v2443 = vpow.pop %v2442
    %v2444 = vmul.f32 %v2417, 1.442695
    %v2445 = vpow.pop %v2444
    %v2446 = vmul.f32 %v2418, 1.442695
    %v2447 = vpow.pop %v2446
    %v2448 = vmul.f32 %v2419, 1.442695
    %v2449 = vpow.pop %v2448
    %v2450 = vmul.f32 %v2420, 1.442695
    %v2451 = vpow.pop %v2450
    %v2452 = vmul.f32 %v2421, 1.442695
    %v2453 = vpow.pop %v2452
    %2455 = vset.pattern.permute.xlu0 3
    %2456 = vperm.xlu0 %2455, %v2390
    %v2457 = vpop.permute.xlu0 %2456
    %2460 = vset.pattern.permute.xlu0 3
    %2461 = vperm.xlu0 %2460, %v2391
    %v2462 = vpop.permute.xlu0 %2461
    %2465 = vset.pattern.permute.xlu0 3
    %2466 = vperm.xlu0 %2465, %v2392
    %v2467 = vpop.permute.xlu0 %2466
    %2470 = vset.pattern.permute.xlu0 3
    %2471 = vperm.xlu0 %2470, %v2393
    %v2472 = vpop.permute.xlu0 %2471
    %2475 = vset.pattern.permute.xlu0 3
    %2476 = vperm.xlu0 %2475, %v2394
    %v2477 = vpop.permute.xlu0 %2476
    %2480 = vset.pattern.permute.xlu0 3
    %2481 = vperm.xlu0 %2480, %v2395
    %v2482 = vpop.permute.xlu0 %2481
    %2485 = vset.pattern.permute.xlu0 3
    %2486 = vperm.xlu0 %2485, %v2396
    %v2487 = vpop.permute.xlu0 %2486
    %2490 = vset.pattern.permute.xlu0 3
    %2491 = vperm.xlu0 %2490, %v2397
    %v2492 = vpop.permute.xlu0 %2491
    %2495 = vset.pattern.permute.xlu0 3
    %2496 = vperm.xlu0 %2495, %v2398
    %v2497 = vpop.permute.xlu0 %2496
    %2500 = vset.pattern.permute.xlu0 3
    %2501 = vperm.xlu0 %2500, %v2399
    %v2502 = vpop.permute.xlu0 %2501
    %2505 = vset.pattern.permute.xlu0 3
    %2506 = vperm.xlu0 %2505, %v2400
    %v2507 = vpop.permute.xlu0 %2506
    %2510 = vset.pattern.permute.xlu0 3
    %2511 = vperm.xlu0 %2510, %v2401
    %v2512 = vpop.permute.xlu0 %2511
    %2515 = vset.pattern.permute.xlu0 3
    %2516 = vperm.xlu0 %2515, %v2402
    %v2517 = vpop.permute.xlu0 %2516
    %2520 = vset.pattern.permute.xlu0 3
    %2521 = vperm.xlu0 %2520, %v2403
    %v2522 = vpop.permute.xlu0 %2521
    %2525 = vset.pattern.permute.xlu0 3
    %2526 = vperm.xlu0 %2525, %v2404
    %v2527 = vpop.permute.xlu0 %2526
    %2530 = vset.pattern.permute.xlu0 3
    %2531 = vperm.xlu0 %2530, %v2405
    %v2532 = vpop.permute.xlu0 %2531
    %v2534 = vsub.f32 %v2342, %v2457
    %v2535 = vsub.f32 %v2343, %v2462
    %v2536 = vsub.f32 %v2344, %v2467
    %v2537 = vsub.f32 %v2345, %v2472
    %v2538 = vsub.f32 %v2346, %v2477
    %v2539 = vsub.f32 %v2347, %v2482
    %v2540 = vsub.f32 %v2348, %v2487
    %v2541 = vsub.f32 %v2349, %v2492
    %v2542 = vsub.f32 %v2350, %v2497
    %v2543 = vsub.f32 %v2351, %v2502
    %v2544 = vsub.f32 %v2352, %v2507
    %v2545 = vsub.f32 %v2353, %v2512
    %v2546 = vsub.f32 %v2354, %v2517
    %v2547 = vsub.f32 %v2355, %v2522
    %v2548 = vsub.f32 %v2356, %v2527
    %v2549 = vsub.f32 %v2357, %v2532
    %v2550 = vmul.f32 %v2534, 1.442695
    %v2551 = vpow.pop %v2550
    %v2552 = vmul.f32 %v2535, 1.442695
    %v2553 = vpow.pop %v2552
    %v2554 = vmul.f32 %v2536, 1.442695
    %v2555 = vpow.pop %v2554
    %v2556 = vmul.f32 %v2537, 1.442695
    %v2557 = vpow.pop %v2556
    %v2558 = vmul.f32 %v2538, 1.442695
    %v2559 = vpow.pop %v2558
    %v2560 = vmul.f32 %v2539, 1.442695
    %v2561 = vpow.pop %v2560
    %v2562 = vmul.f32 %v2540, 1.442695
    %v2563 = vpow.pop %v2562
    %v2564 = vmul.f32 %v2541, 1.442695
    %v2565 = vpow.pop %v2564
    %v2566 = vmul.f32 %v2542, 1.442695
    %v2567 = vpow.pop %v2566
    %v2568 = vmul.f32 %v2543, 1.442695
    %v2569 = vpow.pop %v2568
    %v2570 = vmul.f32 %v2544, 1.442695
    %v2571 = vpow.pop %v2570
    %v2572 = vmul.f32 %v2545, 1.442695
    %v2573 = vpow.pop %v2572
    %v2574 = vmul.f32 %v2546, 1.442695
    %v2575 = vpow.pop %v2574
    %v2576 = vmul.f32 %v2547, 1.442695
    %v2577 = vpow.pop %v2576
    %v2578 = vmul.f32 %v2548, 1.442695
    %v2579 = vpow.pop %v2578
    %v2580 = vmul.f32 %v2549, 1.442695
    %v2581 = vpow.pop %v2580
    %v2582 = vmul.f32 %v2551, %v568
    %v2583 = vmul.f32 %v2553, %v569
    %v2584 = vmul.f32 %v2555, %v570
    %v2585 = vmul.f32 %v2557, %v571
    %v2586 = vmul.f32 %v2559, %v572
    %v2587 = vmul.f32 %v2561, %v573
    %v2588 = vmul.f32 %v2563, %v574
    %v2589 = vmul.f32 %v2565, %v575
    %v2590 = vmul.f32 %v2567, %v576
    %v2591 = vmul.f32 %v2569, %v577
    %v2592 = vmul.f32 %v2571, %v578
    %v2593 = vmul.f32 %v2573, %v579
    %v2594 = vmul.f32 %v2575, %v580
    %v2595 = vmul.f32 %v2577, %v581
    %v2596 = vmul.f32 %v2579, %v582
    %v2597 = vmul.f32 %v2581, %v583
    %v2598 = vmul.f32 %v2423, %v199
    %v2599 = vmul.f32 %v2425, %v200
    %v2600 = vmul.f32 %v2427, %v201
    %v2601 = vmul.f32 %v2429, %v202
    %v2602 = vmul.f32 %v2431, %v203
    %v2603 = vmul.f32 %v2433, %v204
    %v2604 = vmul.f32 %v2435, %v205
    %v2605 = vmul.f32 %v2437, %v206
    %v2606 = vmul.f32 %v2439, %v207
    %v2607 = vmul.f32 %v2441, %v208
    %v2608 = vmul.f32 %v2443, %v209
    %v2609 = vmul.f32 %v2445, %v210
    %v2610 = vmul.f32 %v2447, %v211
    %v2611 = vmul.f32 %v2449, %v212
    %v2612 = vmul.f32 %v2451, %v213
    %v2613 = vmul.f32 %v2453, %v214
    %2614 = vadd.xlane.f32.xlu0 %v2582
    %v2615 = vpop.xlane.xlu0 %2614
    %2616 = vadd.xlane.f32.xlu0 %v2583
    %v2617 = vpop.xlane.xlu0 %2616
    %2618 = vadd.xlane.f32.xlu0 %v2584
    %v2619 = vpop.xlane.xlu0 %2618
    %2620 = vadd.xlane.f32.xlu0 %v2585
    %v2621 = vpop.xlane.xlu0 %2620
    %2622 = vadd.xlane.f32.xlu0 %v2586
    %v2623 = vpop.xlane.xlu0 %2622
    %2624 = vadd.xlane.f32.xlu0 %v2587
    %v2625 = vpop.xlane.xlu0 %2624
    %2626 = vadd.xlane.f32.xlu0 %v2588
    %v2627 = vpop.xlane.xlu0 %2626
    %2628 = vadd.xlane.f32.xlu0 %v2589
    %v2629 = vpop.xlane.xlu0 %2628
    %2630 = vadd.xlane.f32.xlu0 %v2590
    %v2631 = vpop.xlane.xlu0 %2630
    %2632 = vadd.xlane.f32.xlu0 %v2591
    %v2633 = vpop.xlane.xlu0 %2632
    %2634 = vadd.xlane.f32.xlu0 %v2592
    %v2635 = vpop.xlane.xlu0 %2634
    %2636 = vadd.xlane.f32.xlu0 %v2593
    %v2637 = vpop.xlane.xlu0 %2636
    %2638 = vadd.xlane.f32.xlu0 %v2594
    %v2639 = vpop.xlane.xlu0 %2638
    %2640 = vadd.xlane.f32.xlu0 %v2595
    %v2641 = vpop.xlane.xlu0 %2640
    %2642 = vadd.xlane.f32.xlu0 %v2596
    %v2643 = vpop.xlane.xlu0 %2642
    %2644 = vadd.xlane.f32.xlu0 %v2597
    %v2645 = vpop.xlane.xlu0 %2644
    %v2646 = vadd.f32 %v2598, %v2615
    %v2647 = vadd.f32 %v2599, %v2617
    %v2648 = vadd.f32 %v2600, %v2619
    %v2649 = vadd.f32 %v2601, %v2621
    %v2650 = vadd.f32 %v2602, %v2623
    %v2651 = vadd.f32 %v2603, %v2625
    %v2652 = vadd.f32 %v2604, %v2627
    %v2653 = vadd.f32 %v2605, %v2629
    %v2654 = vadd.f32 %v2606, %v2631
    %v2655 = vadd.f32 %v2607, %v2633
    %v2656 = vadd.f32 %v2608, %v2635
    %v2657 = vadd.f32 %v2609, %v2637
    %v2658 = vadd.f32 %v2610, %v2639
    %v2659 = vadd.f32 %v2611, %v2641
    %v2660 = vadd.f32 %v2612, %v2643
    %v2661 = vadd.f32 %v2613, %v2645
    %v2662 = vpack.c.bf16 %v2583, %v2582
    %v2663 = vpack.c.bf16 %v2585, %v2584
    %v2664 = vpack.c.bf16 %v2587, %v2586
    %v2665 = vpack.c.bf16 %v2589, %v2588
    %v2666 = vpack.c.bf16 %v2591, %v2590
    %v2667 = vpack.c.bf16 %v2593, %v2592
    %v2668 = vpack.c.bf16 %v2595, %v2594
    %v2669 = vpack.c.bf16 %v2597, %v2596
    %2670 = vrot.lane.b32.xlu0 %v704, 104
    %v2671 = vpop.permute.xlu0 %2670
    %2672 = vrot.lane.b32.xlu0 %v705, 104
    %v2673 = vpop.permute.xlu0 %2672
    %2674 = vrot.lane.b32.xlu0 %v706, 104
    %v2675 = vpop.permute.xlu0 %2674
    %2676 = vrot.lane.b32.xlu0 %v707, 104
    %v2677 = vpop.permute.xlu0 %2676
    %2678 = vrot.lane.b32.xlu0 %v708, 104
    %v2679 = vpop.permute.xlu0 %2678
    %2680 = vrot.lane.b32.xlu0 %v709, 104
    %v2681 = vpop.permute.xlu0 %2680
    %2682 = vrot.lane.b32.xlu0 %v710, 104
    %v2683 = vpop.permute.xlu0 %2682
    %2684 = vrot.lane.b32.xlu0 %v711, 104
    %v2685 = vpop.permute.xlu0 %2684
    %2694 = vmatpush.bf16.msra.mxu0 %v2685
    %2695 = vmatpush.bf16.msra.mxu0 %v2683
    %2696 = vmatpush.bf16.msra.mxu0 %v2681
    %2697 = vmatpush.bf16.msra.mxu0 %v2679
    %2698 = vmatpush.bf16.msra.mxu0 %v2677
    %2699 = vmatpush.bf16.msra.mxu0 %v2675
    %2700 = vmatpush.bf16.msra.mxu0 %v2673
    %2701 = vmatpush.bf16.msra.mxu0 %v2671
    %2702 = vmatmul.bf16.gmra.mxu0 %v2662
    %v2703 = vpop.f32.mrf.mxu0
    %v2704 = vadd.f32 0.0, %v2703
    %v2705 = vpop.f32.mrf.mxu0
    %v2706 = vadd.f32 0.0, %v2705
    %2707 = vmatmul.bf16.gmra.mxu0 %v2663
    %v2708 = vpop.f32.mrf.mxu0
    %v2709 = vadd.f32 0.0, %v2708
    %v2710 = vpop.f32.mrf.mxu0
    %v2711 = vadd.f32 0.0, %v2710
    %2712 = vmatmul.bf16.gmra.mxu0 %v2664
    %v2713 = vpop.f32.mrf.mxu0
    %v2714 = vadd.f32 0.0, %v2713
    %v2715 = vpop.f32.mrf.mxu0
    %v2716 = vadd.f32 0.0, %v2715
    %2717 = vmatmul.bf16.gmra.mxu0 %v2665
    %v2718 = vpop.f32.mrf.mxu0
    %v2719 = vadd.f32 0.0, %v2718
    %v2720 = vpop.f32.mrf.mxu0
    %v2721 = vadd.f32 0.0, %v2720
    %2722 = vmatmul.bf16.gmra.mxu0 %v2666
    %v2723 = vpop.f32.mrf.mxu0
    %v2724 = vadd.f32 0.0, %v2723
    %v2725 = vpop.f32.mrf.mxu0
    %v2726 = vadd.f32 0.0, %v2725
    %2727 = vmatmul.bf16.gmra.mxu0 %v2667
    %v2728 = vpop.f32.mrf.mxu0
    %v2729 = vadd.f32 0.0, %v2728
    %v2730 = vpop.f32.mrf.mxu0
    %v2731 = vadd.f32 0.0, %v2730
    %2732 = vmatmul.bf16.gmra.mxu0 %v2668
    %v2733 = vpop.f32.mrf.mxu0
    %v2734 = vadd.f32 0.0, %v2733
    %v2735 = vpop.f32.mrf.mxu0
    %v2736 = vadd.f32 0.0, %v2735
    %2737 = vmatmul.bf16.gmra.mxu0 %v2669
    %v2738 = vpop.f32.mrf.mxu0
    %v2739 = vadd.f32 0.0, %v2738
    %v2740 = vpop.f32.mrf.mxu0
    %v2741 = vadd.f32 0.0, %v2740
    %2742 = vdwg.mxu0
    %2744 = vset.pattern.permute.xlu0 3
    %2745 = vperm.xlu0 %2744, %v2423
    %v2746 = vpop.permute.xlu0 %2745
    %2749 = vset.pattern.permute.xlu0 3
    %2750 = vperm.xlu0 %2749, %v2425
    %v2751 = vpop.permute.xlu0 %2750
    %2754 = vset.pattern.permute.xlu0 3
    %2755 = vperm.xlu0 %2754, %v2427
    %v2756 = vpop.permute.xlu0 %2755
    %2759 = vset.pattern.permute.xlu0 3
    %2760 = vperm.xlu0 %2759, %v2429
    %v2761 = vpop.permute.xlu0 %2760
    %2764 = vset.pattern.permute.xlu0 3
    %2765 = vperm.xlu0 %2764, %v2431
    %v2766 = vpop.permute.xlu0 %2765
    %2769 = vset.pattern.permute.xlu0 3
    %2770 = vperm.xlu0 %2769, %v2433
    %v2771 = vpop.permute.xlu0 %2770
    %2774 = vset.pattern.permute.xlu0 3
    %2775 = vperm.xlu0 %2774, %v2435
    %v2776 = vpop.permute.xlu0 %2775
    %2779 = vset.pattern.permute.xlu0 3
    %2780 = vperm.xlu0 %2779, %v2437
    %v2781 = vpop.permute.xlu0 %2780
    %2784 = vset.pattern.permute.xlu0 3
    %2785 = vperm.xlu0 %2784, %v2439
    %v2786 = vpop.permute.xlu0 %2785
    %2789 = vset.pattern.permute.xlu0 3
    %2790 = vperm.xlu0 %2789, %v2441
    %v2791 = vpop.permute.xlu0 %2790
    %2794 = vset.pattern.permute.xlu0 3
    %2795 = vperm.xlu0 %2794, %v2443
    %v2796 = vpop.permute.xlu0 %2795
    %2799 = vset.pattern.permute.xlu0 3
    %2800 = vperm.xlu0 %2799, %v2445
    %v2801 = vpop.permute.xlu0 %2800
    %2804 = vset.pattern.permute.xlu0 3
    %2805 = vperm.xlu0 %2804, %v2447
    %v2806 = vpop.permute.xlu0 %2805
    %2809 = vset.pattern.permute.xlu0 3
    %2810 = vperm.xlu0 %2809, %v2449
    %v2811 = vpop.permute.xlu0 %2810
    %2814 = vset.pattern.permute.xlu0 3
    %2815 = vperm.xlu0 %2814, %v2451
    %v2816 = vpop.permute.xlu0 %2815
    %2819 = vset.pattern.permute.xlu0 3
    %2820 = vperm.xlu0 %2819, %v2453
    %v2821 = vpop.permute.xlu0 %2820
    %v2823 = vmul.f32 %v2746, %v769
    %v2824 = vmul.f32 %v2751, %v770
    %v2825 = vmul.f32 %v2756, %v771
    %v2826 = vmul.f32 %v2761, %v772
    %v2827 = vmul.f32 %v2766, %v773
    %v2828 = vmul.f32 %v2771, %v774
    %v2829 = vmul.f32 %v2776, %v775
    %v2830 = vmul.f32 %v2781, %v776
    %v2831 = vmul.f32 %v2786, %v777
    %v2832 = vmul.f32 %v2791, %v778
    %v2833 = vmul.f32 %v2796, %v779
    %v2834 = vmul.f32 %v2801, %v780
    %v2835 = vmul.f32 %v2806, %v781
    %v2836 = vmul.f32 %v2811, %v782
    %v2837 = vmul.f32 %v2816, %v783
    %v2838 = vmul.f32 %v2821, %v784
    %2855 = vrot.lane.b32.xlu0 %v2704, 24
    %v2856 = vpop.permute.xlu0 %2855
    %2857 = vrot.lane.b32.xlu0 %v2706, 24
    %v2858 = vpop.permute.xlu0 %2857
    %2859 = vrot.lane.b32.xlu0 %v2709, 24
    %v2860 = vpop.permute.xlu0 %2859
    %2861 = vrot.lane.b32.xlu0 %v2711, 24
    %v2862 = vpop.permute.xlu0 %2861
    %2863 = vrot.lane.b32.xlu0 %v2714, 24
    %v2864 = vpop.permute.xlu0 %2863
    %2865 = vrot.lane.b32.xlu0 %v2716, 24
    %v2866 = vpop.permute.xlu0 %2865
    %2867 = vrot.lane.b32.xlu0 %v2719, 24
    %v2868 = vpop.permute.xlu0 %2867
    %2869 = vrot.lane.b32.xlu0 %v2721, 24
    %v2870 = vpop.permute.xlu0 %2869
    %2871 = vrot.lane.b32.xlu0 %v2724, 24
    %v2872 = vpop.permute.xlu0 %2871
    %2873 = vrot.lane.b32.xlu0 %v2726, 24
    %v2874 = vpop.permute.xlu0 %2873
    %2875 = vrot.lane.b32.xlu0 %v2729, 24
    %v2876 = vpop.permute.xlu0 %2875
    %2877 = vrot.lane.b32.xlu0 %v2731, 24
    %v2878 = vpop.permute.xlu0 %2877
    %2879 = vrot.lane.b32.xlu0 %v2734, 24
    %v2880 = vpop.permute.xlu0 %2879
    %2881 = vrot.lane.b32.xlu0 %v2736, 24
    %v2882 = vpop.permute.xlu0 %2881
    %2883 = vrot.lane.b32.xlu0 %v2739, 24
    %v2884 = vpop.permute.xlu0 %2883
    %2885 = vrot.lane.b32.xlu0 %v2741, 24
    %v2886 = vpop.permute.xlu0 %2885
    %v2903 = vadd.f32 %v2823, %v2856
    %v2904 = vadd.f32 %v2824, %v2858
    %v2905 = vadd.f32 %v2825, %v2860
    %v2906 = vadd.f32 %v2826, %v2862
    %v2907 = vadd.f32 %v2827, %v2864
    %v2908 = vadd.f32 %v2828, %v2866
    %v2909 = vadd.f32 %v2829, %v2868
    %v2910 = vadd.f32 %v2830, %v2870
    %v2911 = vadd.f32 %v2831, %v2872
    %v2912 = vadd.f32 %v2832, %v2874
    %v2913 = vadd.f32 %v2833, %v2876
    %v2914 = vadd.f32 %v2834, %v2878
    %v2915 = vadd.f32 %v2835, %v2880
    %v2916 = vadd.f32 %v2836, %v2882
    %v2917 = vadd.f32 %v2837, %v2884
    %v2918 = vadd.f32 %v2838, %v2886
    %2919 = vset.pattern.permute.xlu0 4
    %2920 = vperm.xlu0 %2919, %v127
    %v2921 = vpop.permute.xlu0 %2920
    %2923 = vset.pattern.permute.xlu0 4
    %2924 = vperm.xlu0 %2923, %v128
    %v2925 = vpop.permute.xlu0 %2924
    %2927 = vset.pattern.permute.xlu0 4
    %2928 = vperm.xlu0 %2927, %v129
    %v2929 = vpop.permute.xlu0 %2928
    %2931 = vset.pattern.permute.xlu0 4
    %2932 = vperm.xlu0 %2931, %v130
    %v2933 = vpop.permute.xlu0 %2932
    %2935 = vset.pattern.permute.xlu0 4
    %2936 = vperm.xlu0 %2935, %v131
    %v2937 = vpop.permute.xlu0 %2936
    %2939 = vset.pattern.permute.xlu0 4
    %2940 = vperm.xlu0 %2939, %v132
    %v2941 = vpop.permute.xlu0 %2940
    %2943 = vset.pattern.permute.xlu0 4
    %2944 = vperm.xlu0 %2943, %v133
    %v2945 = vpop.permute.xlu0 %2944
    %2947 = vset.pattern.permute.xlu0 4
    %2948 = vperm.xlu0 %2947, %v134
    %v2949 = vpop.permute.xlu0 %2948
    %2951 = vset.pattern.permute.xlu0 4
    %2952 = vperm.xlu0 %2951, %v135
    %v2953 = vpop.permute.xlu0 %2952
    %2955 = vset.pattern.permute.xlu0 4
    %2956 = vperm.xlu0 %2955, %v136
    %v2957 = vpop.permute.xlu0 %2956
    %2959 = vset.pattern.permute.xlu0 4
    %2960 = vperm.xlu0 %2959, %v137
    %v2961 = vpop.permute.xlu0 %2960
    %2963 = vset.pattern.permute.xlu0 4
    %2964 = vperm.xlu0 %2963, %v138
    %v2965 = vpop.permute.xlu0 %2964
    %2967 = vset.pattern.permute.xlu0 4
    %2968 = vperm.xlu0 %2967, %v139
    %v2969 = vpop.permute.xlu0 %2968
    %2971 = vset.pattern.permute.xlu0 4
    %2972 = vperm.xlu0 %2971, %v140
    %v2973 = vpop.permute.xlu0 %2972
    %2975 = vset.pattern.permute.xlu0 4
    %2976 = vperm.xlu0 %2975, %v141
    %v2977 = vpop.permute.xlu0 %2976
    %2979 = vset.pattern.permute.xlu0 4
    %2980 = vperm.xlu0 %2979, %v142
    %v2981 = vpop.permute.xlu0 %2980
    %v2983 = vperm.slane %v146, 4
    %v2984 = vadd.f32 %v2921, %v2983
    %v2985 = vadd.f32 %v2925, %v2983
    %v2986 = vadd.f32 %v2929, %v2983
    %v2987 = vadd.f32 %v2933, %v2983
    %v2988 = vadd.f32 %v2937, %v2983
    %v2989 = vadd.f32 %v2941, %v2983
    %v2990 = vadd.f32 %v2945, %v2983
    %v2991 = vadd.f32 %v2949, %v2983
    %v2992 = vadd.f32 %v2953, %v2983
    %v2993 = vadd.f32 %v2957, %v2983
    %v2994 = vadd.f32 %v2961, %v2983
    %v2995 = vadd.f32 %v2965, %v2983
    %v2996 = vadd.f32 %v2969, %v2983
    %v2997 = vadd.f32 %v2973, %v2983
    %v2998 = vadd.f32 %v2977, %v2983
    %v2999 = vadd.f32 %v2981, %v2983
    %v3000 = vmul.f32 %v2984, 0.2
    %v3001 = vmul.f32 %v2985, 0.2
    %v3002 = vmul.f32 %v2986, 0.2
    %v3003 = vmul.f32 %v2987, 0.2
    %v3004 = vmul.f32 %v2988, 0.2
    %v3005 = vmul.f32 %v2989, 0.2
    %v3006 = vmul.f32 %v2990, 0.2
    %v3007 = vmul.f32 %v2991, 0.2
    %v3008 = vmul.f32 %v2992, 0.2
    %v3009 = vmul.f32 %v2993, 0.2
    %v3010 = vmul.f32 %v2994, 0.2
    %v3011 = vmul.f32 %v2995, 0.2
    %v3012 = vmul.f32 %v2996, 0.2
    %v3013 = vmul.f32 %v2997, 0.2
    %v3014 = vmul.f32 %v2998, 0.2
    %v3015 = vmul.f32 %v2999, 0.2
    %v3016 = vmax.f32 %v2984, %v3000
    %v3017 = vmax.f32 %v2985, %v3001
    %v3018 = vmax.f32 %v2986, %v3002
    %v3019 = vmax.f32 %v2987, %v3003
    %v3020 = vmax.f32 %v2988, %v3004
    %v3021 = vmax.f32 %v2989, %v3005
    %v3022 = vmax.f32 %v2990, %v3006
    %v3023 = vmax.f32 %v2991, %v3007
    %v3024 = vmax.f32 %v2992, %v3008
    %v3025 = vmax.f32 %v2993, %v3009
    %v3026 = vmax.f32 %v2994, %v3010
    %v3027 = vmax.f32 %v2995, %v3011
    %v3028 = vmax.f32 %v2996, %v3012
    %v3029 = vmax.f32 %v2997, %v3013
    %v3030 = vmax.f32 %v2998, %v3014
    %v3031 = vmax.f32 %v2999, %v3015
    %3032 = vmax.xlane.f32.xlu0 %v3016
    %v3033 = vpop.xlane.xlu0 %3032
    %3034 = vmax.xlane.f32.xlu0 %v3017
    %v3035 = vpop.xlane.xlu0 %3034
    %3036 = vmax.xlane.f32.xlu0 %v3018
    %v3037 = vpop.xlane.xlu0 %3036
    %3038 = vmax.xlane.f32.xlu0 %v3019
    %v3039 = vpop.xlane.xlu0 %3038
    %3040 = vmax.xlane.f32.xlu0 %v3020
    %v3041 = vpop.xlane.xlu0 %3040
    %3042 = vmax.xlane.f32.xlu0 %v3021
    %v3043 = vpop.xlane.xlu0 %3042
    %3044 = vmax.xlane.f32.xlu0 %v3022
    %v3045 = vpop.xlane.xlu0 %3044
    %3046 = vmax.xlane.f32.xlu0 %v3023
    %v3047 = vpop.xlane.xlu0 %3046
    %3048 = vmax.xlane.f32.xlu0 %v3024
    %v3049 = vpop.xlane.xlu0 %3048
    %3050 = vmax.xlane.f32.xlu0 %v3025
    %v3051 = vpop.xlane.xlu0 %3050
    %3052 = vmax.xlane.f32.xlu0 %v3026
    %v3053 = vpop.xlane.xlu0 %3052
    %3054 = vmax.xlane.f32.xlu0 %v3027
    %v3055 = vpop.xlane.xlu0 %3054
    %3056 = vmax.xlane.f32.xlu0 %v3028
    %v3057 = vpop.xlane.xlu0 %3056
    %3058 = vmax.xlane.f32.xlu0 %v3029
    %v3059 = vpop.xlane.xlu0 %3058
    %3060 = vmax.xlane.f32.xlu0 %v3030
    %v3061 = vpop.xlane.xlu0 %3060
    %3062 = vmax.xlane.f32.xlu0 %v3031
    %v3063 = vpop.xlane.xlu0 %3062
    %v3064 = vmax.f32 %v183, %v3033
    %v3065 = vmax.f32 %v184, %v3035
    %v3066 = vmax.f32 %v185, %v3037
    %v3067 = vmax.f32 %v186, %v3039
    %v3068 = vmax.f32 %v187, %v3041
    %v3069 = vmax.f32 %v188, %v3043
    %v3070 = vmax.f32 %v189, %v3045
    %v3071 = vmax.f32 %v190, %v3047
    %v3072 = vmax.f32 %v191, %v3049
    %v3073 = vmax.f32 %v192, %v3051
    %v3074 = vmax.f32 %v193, %v3053
    %v3075 = vmax.f32 %v194, %v3055
    %v3076 = vmax.f32 %v195, %v3057
    %v3077 = vmax.f32 %v196, %v3059
    %v3078 = vmax.f32 %v197, %v3061
    %v3079 = vmax.f32 %v198, %v3063
    %v3080 = vsub.f32 %v183, %v3064
    %v3081 = vsub.f32 %v184, %v3065
    %v3082 = vsub.f32 %v185, %v3066
    %v3083 = vsub.f32 %v186, %v3067
    %v3084 = vsub.f32 %v187, %v3068
    %v3085 = vsub.f32 %v188, %v3069
    %v3086 = vsub.f32 %v189, %v3070
    %v3087 = vsub.f32 %v190, %v3071
    %v3088 = vsub.f32 %v191, %v3072
    %v3089 = vsub.f32 %v192, %v3073
    %v3090 = vsub.f32 %v193, %v3074
    %v3091 = vsub.f32 %v194, %v3075
    %v3092 = vsub.f32 %v195, %v3076
    %v3093 = vsub.f32 %v196, %v3077
    %v3094 = vsub.f32 %v197, %v3078
    %v3095 = vsub.f32 %v198, %v3079
    %v3096 = vmul.f32 %v3080, 1.442695
    %v3097 = vpow.pop %v3096
    %v3098 = vmul.f32 %v3081, 1.442695
    %v3099 = vpow.pop %v3098
    %v3100 = vmul.f32 %v3082, 1.442695
    %v3101 = vpow.pop %v3100
    %v3102 = vmul.f32 %v3083, 1.442695
    %v3103 = vpow.pop %v3102
    %v3104 = vmul.f32 %v3084, 1.442695
    %v3105 = vpow.pop %v3104
    %v3106 = vmul.f32 %v3085, 1.442695
    %v3107 = vpow.pop %v3106
    %v3108 = vmul.f32 %v3086, 1.442695
    %v3109 = vpow.pop %v3108
    %v3110 = vmul.f32 %v3087, 1.442695
    %v3111 = vpow.pop %v3110
    %v3112 = vmul.f32 %v3088, 1.442695
    %v3113 = vpow.pop %v3112
    %v3114 = vmul.f32 %v3089, 1.442695
    %v3115 = vpow.pop %v3114
    %v3116 = vmul.f32 %v3090, 1.442695
    %v3117 = vpow.pop %v3116
    %v3118 = vmul.f32 %v3091, 1.442695
    %v3119 = vpow.pop %v3118
    %v3120 = vmul.f32 %v3092, 1.442695
    %v3121 = vpow.pop %v3120
    %v3122 = vmul.f32 %v3093, 1.442695
    %v3123 = vpow.pop %v3122
    %v3124 = vmul.f32 %v3094, 1.442695
    %v3125 = vpow.pop %v3124
    %v3126 = vmul.f32 %v3095, 1.442695
    %v3127 = vpow.pop %v3126
    %3129 = vset.pattern.permute.xlu0 4
    %3130 = vperm.xlu0 %3129, %v3064
    %v3131 = vpop.permute.xlu0 %3130
    %3134 = vset.pattern.permute.xlu0 4
    %3135 = vperm.xlu0 %3134, %v3065
    %v3136 = vpop.permute.xlu0 %3135
    %3139 = vset.pattern.permute.xlu0 4
    %3140 = vperm.xlu0 %3139, %v3066
    %v3141 = vpop.permute.xlu0 %3140
    %3144 = vset.pattern.permute.xlu0 4
    %3145 = vperm.xlu0 %3144, %v3067
    %v3146 = vpop.permute.xlu0 %3145
    %3149 = vset.pattern.permute.xlu0 4
    %3150 = vperm.xlu0 %3149, %v3068
    %v3151 = vpop.permute.xlu0 %3150
    %3154 = vset.pattern.permute.xlu0 4
    %3155 = vperm.xlu0 %3154, %v3069
    %v3156 = vpop.permute.xlu0 %3155
    %3159 = vset.pattern.permute.xlu0 4
    %3160 = vperm.xlu0 %3159, %v3070
    %v3161 = vpop.permute.xlu0 %3160
    %3164 = vset.pattern.permute.xlu0 4
    %3165 = vperm.xlu0 %3164, %v3071
    %v3166 = vpop.permute.xlu0 %3165
    %3169 = vset.pattern.permute.xlu0 4
    %3170 = vperm.xlu0 %3169, %v3072
    %v3171 = vpop.permute.xlu0 %3170
    %3174 = vset.pattern.permute.xlu0 4
    %3175 = vperm.xlu0 %3174, %v3073
    %v3176 = vpop.permute.xlu0 %3175
    %3179 = vset.pattern.permute.xlu0 4
    %3180 = vperm.xlu0 %3179, %v3074
    %v3181 = vpop.permute.xlu0 %3180
    %3184 = vset.pattern.permute.xlu0 4
    %3185 = vperm.xlu0 %3184, %v3075
    %v3186 = vpop.permute.xlu0 %3185
    %3189 = vset.pattern.permute.xlu0 4
    %3190 = vperm.xlu0 %3189, %v3076
    %v3191 = vpop.permute.xlu0 %3190
    %3194 = vset.pattern.permute.xlu0 4
    %3195 = vperm.xlu0 %3194, %v3077
    %v3196 = vpop.permute.xlu0 %3195
    %3199 = vset.pattern.permute.xlu0 4
    %3200 = vperm.xlu0 %3199, %v3078
    %v3201 = vpop.permute.xlu0 %3200
    %3204 = vset.pattern.permute.xlu0 4
    %3205 = vperm.xlu0 %3204, %v3079
    %v3206 = vpop.permute.xlu0 %3205
    %v3208 = vsub.f32 %v3016, %v3131
    %v3209 = vsub.f32 %v3017, %v3136
    %v3210 = vsub.f32 %v3018, %v3141
    %v3211 = vsub.f32 %v3019, %v3146
    %v3212 = vsub.f32 %v3020, %v3151
    %v3213 = vsub.f32 %v3021, %v3156
    %v3214 = vsub.f32 %v3022, %v3161
    %v3215 = vsub.f32 %v3023, %v3166
    %v3216 = vsub.f32 %v3024, %v3171
    %v3217 = vsub.f32 %v3025, %v3176
    %v3218 = vsub.f32 %v3026, %v3181
    %v3219 = vsub.f32 %v3027, %v3186
    %v3220 = vsub.f32 %v3028, %v3191
    %v3221 = vsub.f32 %v3029, %v3196
    %v3222 = vsub.f32 %v3030, %v3201
    %v3223 = vsub.f32 %v3031, %v3206
    %v3224 = vmul.f32 %v3208, 1.442695
    %v3225 = vpow.pop %v3224
    %v3226 = vmul.f32 %v3209, 1.442695
    %v3227 = vpow.pop %v3226
    %v3228 = vmul.f32 %v3210, 1.442695
    %v3229 = vpow.pop %v3228
    %v3230 = vmul.f32 %v3211, 1.442695
    %v3231 = vpow.pop %v3230
    %v3232 = vmul.f32 %v3212, 1.442695
    %v3233 = vpow.pop %v3232
    %v3234 = vmul.f32 %v3213, 1.442695
    %v3235 = vpow.pop %v3234
    %v3236 = vmul.f32 %v3214, 1.442695
    %v3237 = vpow.pop %v3236
    %v3238 = vmul.f32 %v3215, 1.442695
    %v3239 = vpow.pop %v3238
    %v3240 = vmul.f32 %v3216, 1.442695
    %v3241 = vpow.pop %v3240
    %v3242 = vmul.f32 %v3217, 1.442695
    %v3243 = vpow.pop %v3242
    %v3244 = vmul.f32 %v3218, 1.442695
    %v3245 = vpow.pop %v3244
    %v3246 = vmul.f32 %v3219, 1.442695
    %v3247 = vpow.pop %v3246
    %v3248 = vmul.f32 %v3220, 1.442695
    %v3249 = vpow.pop %v3248
    %v3250 = vmul.f32 %v3221, 1.442695
    %v3251 = vpow.pop %v3250
    %v3252 = vmul.f32 %v3222, 1.442695
    %v3253 = vpow.pop %v3252
    %v3254 = vmul.f32 %v3223, 1.442695
    %v3255 = vpow.pop %v3254
    %v3256 = vmul.f32 %v3225, %v568
    %v3257 = vmul.f32 %v3227, %v569
    %v3258 = vmul.f32 %v3229, %v570
    %v3259 = vmul.f32 %v3231, %v571
    %v3260 = vmul.f32 %v3233, %v572
    %v3261 = vmul.f32 %v3235, %v573
    %v3262 = vmul.f32 %v3237, %v574
    %v3263 = vmul.f32 %v3239, %v575
    %v3264 = vmul.f32 %v3241, %v576
    %v3265 = vmul.f32 %v3243, %v577
    %v3266 = vmul.f32 %v3245, %v578
    %v3267 = vmul.f32 %v3247, %v579
    %v3268 = vmul.f32 %v3249, %v580
    %v3269 = vmul.f32 %v3251, %v581
    %v3270 = vmul.f32 %v3253, %v582
    %v3271 = vmul.f32 %v3255, %v583
    %v3272 = vmul.f32 %v3097, %v199
    %v3273 = vmul.f32 %v3099, %v200
    %v3274 = vmul.f32 %v3101, %v201
    %v3275 = vmul.f32 %v3103, %v202
    %v3276 = vmul.f32 %v3105, %v203
    %v3277 = vmul.f32 %v3107, %v204
    %v3278 = vmul.f32 %v3109, %v205
    %v3279 = vmul.f32 %v3111, %v206
    %v3280 = vmul.f32 %v3113, %v207
    %v3281 = vmul.f32 %v3115, %v208
    %v3282 = vmul.f32 %v3117, %v209
    %v3283 = vmul.f32 %v3119, %v210
    %v3284 = vmul.f32 %v3121, %v211
    %v3285 = vmul.f32 %v3123, %v212
    %v3286 = vmul.f32 %v3125, %v213
    %v3287 = vmul.f32 %v3127, %v214
    %3288 = vadd.xlane.f32.xlu0 %v3256
    %v3289 = vpop.xlane.xlu0 %3288
    %3290 = vadd.xlane.f32.xlu0 %v3257
    %v3291 = vpop.xlane.xlu0 %3290
    %3292 = vadd.xlane.f32.xlu0 %v3258
    %v3293 = vpop.xlane.xlu0 %3292
    %3294 = vadd.xlane.f32.xlu0 %v3259
    %v3295 = vpop.xlane.xlu0 %3294
    %3296 = vadd.xlane.f32.xlu0 %v3260
    %v3297 = vpop.xlane.xlu0 %3296
    %3298 = vadd.xlane.f32.xlu0 %v3261
    %v3299 = vpop.xlane.xlu0 %3298
    %3300 = vadd.xlane.f32.xlu0 %v3262
    %v3301 = vpop.xlane.xlu0 %3300
    %3302 = vadd.xlane.f32.xlu0 %v3263
    %v3303 = vpop.xlane.xlu0 %3302
    %3304 = vadd.xlane.f32.xlu0 %v3264
    %v3305 = vpop.xlane.xlu0 %3304
    %3306 = vadd.xlane.f32.xlu0 %v3265
    %v3307 = vpop.xlane.xlu0 %3306
    %3308 = vadd.xlane.f32.xlu0 %v3266
    %v3309 = vpop.xlane.xlu0 %3308
    %3310 = vadd.xlane.f32.xlu0 %v3267
    %v3311 = vpop.xlane.xlu0 %3310
    %3312 = vadd.xlane.f32.xlu0 %v3268
    %v3313 = vpop.xlane.xlu0 %3312
    %3314 = vadd.xlane.f32.xlu0 %v3269
    %v3315 = vpop.xlane.xlu0 %3314
    %3316 = vadd.xlane.f32.xlu0 %v3270
    %v3317 = vpop.xlane.xlu0 %3316
    %3318 = vadd.xlane.f32.xlu0 %v3271
    %v3319 = vpop.xlane.xlu0 %3318
    %v3320 = vadd.f32 %v3272, %v3289
    %v3321 = vadd.f32 %v3273, %v3291
    %v3322 = vadd.f32 %v3274, %v3293
    %v3323 = vadd.f32 %v3275, %v3295
    %v3324 = vadd.f32 %v3276, %v3297
    %v3325 = vadd.f32 %v3277, %v3299
    %v3326 = vadd.f32 %v3278, %v3301
    %v3327 = vadd.f32 %v3279, %v3303
    %v3328 = vadd.f32 %v3280, %v3305
    %v3329 = vadd.f32 %v3281, %v3307
    %v3330 = vadd.f32 %v3282, %v3309
    %v3331 = vadd.f32 %v3283, %v3311
    %v3332 = vadd.f32 %v3284, %v3313
    %v3333 = vadd.f32 %v3285, %v3315
    %v3334 = vadd.f32 %v3286, %v3317
    %v3335 = vadd.f32 %v3287, %v3319
    %v3336 = vpack.c.bf16 %v3257, %v3256
    %v3337 = vpack.c.bf16 %v3259, %v3258
    %v3338 = vpack.c.bf16 %v3261, %v3260
    %v3339 = vpack.c.bf16 %v3263, %v3262
    %v3340 = vpack.c.bf16 %v3265, %v3264
    %v3341 = vpack.c.bf16 %v3267, %v3266
    %v3342 = vpack.c.bf16 %v3269, %v3268
    %v3343 = vpack.c.bf16 %v3271, %v3270
    %3344 = vrot.lane.b32.xlu0 %v704, 96
    %v3345 = vpop.permute.xlu0 %3344
    %3346 = vrot.lane.b32.xlu0 %v705, 96
    %v3347 = vpop.permute.xlu0 %3346
    %3348 = vrot.lane.b32.xlu0 %v706, 96
    %v3349 = vpop.permute.xlu0 %3348
    %3350 = vrot.lane.b32.xlu0 %v707, 96
    %v3351 = vpop.permute.xlu0 %3350
    %3352 = vrot.lane.b32.xlu0 %v708, 96
    %v3353 = vpop.permute.xlu0 %3352
    %3354 = vrot.lane.b32.xlu0 %v709, 96
    %v3355 = vpop.permute.xlu0 %3354
    %3356 = vrot.lane.b32.xlu0 %v710, 96
    %v3357 = vpop.permute.xlu0 %3356
    %3358 = vrot.lane.b32.xlu0 %v711, 96
    %v3359 = vpop.permute.xlu0 %3358
    %3368 = vmatpush.bf16.msra.mxu0 %v3359
    %3369 = vmatpush.bf16.msra.mxu0 %v3357
    %3370 = vmatpush.bf16.msra.mxu0 %v3355
    %3371 = vmatpush.bf16.msra.mxu0 %v3353
    %3372 = vmatpush.bf16.msra.mxu0 %v3351
    %3373 = vmatpush.bf16.msra.mxu0 %v3349
    %3374 = vmatpush.bf16.msra.mxu0 %v3347
    %3375 = vmatpush.bf16.msra.mxu0 %v3345
    %3376 = vmatmul.bf16.gmra.mxu0 %v3336
    %v3377 = vpop.f32.mrf.mxu0
    %v3378 = vadd.f32 0.0, %v3377
    %v3379 = vpop.f32.mrf.mxu0
    %v3380 = vadd.f32 0.0, %v3379
    %3381 = vmatmul.bf16.gmra.mxu0 %v3337
    %v3382 = vpop.f32.mrf.mxu0
    %v3383 = vadd.f32 0.0, %v3382
    %v3384 = vpop.f32.mrf.mxu0
    %v3385 = vadd.f32 0.0, %v3384
    %3386 = vmatmul.bf16.gmra.mxu0 %v3338
    %v3387 = vpop.f32.mrf.mxu0
    %v3388 = vadd.f32 0.0, %v3387
    %v3389 = vpop.f32.mrf.mxu0
    %v3390 = vadd.f32 0.0, %v3389
    %3391 = vmatmul.bf16.gmra.mxu0 %v3339
    %v3392 = vpop.f32.mrf.mxu0
    %v3393 = vadd.f32 0.0, %v3392
    %v3394 = vpop.f32.mrf.mxu0
    %v3395 = vadd.f32 0.0, %v3394
    %3396 = vmatmul.bf16.gmra.mxu0 %v3340
    %v3397 = vpop.f32.mrf.mxu0
    %v3398 = vadd.f32 0.0, %v3397
    %v3399 = vpop.f32.mrf.mxu0
    %v3400 = vadd.f32 0.0, %v3399
    %3401 = vmatmul.bf16.gmra.mxu0 %v3341
    %v3402 = vpop.f32.mrf.mxu0
    %v3403 = vadd.f32 0.0, %v3402
    %v3404 = vpop.f32.mrf.mxu0
    %v3405 = vadd.f32 0.0, %v3404
    %3406 = vmatmul.bf16.gmra.mxu0 %v3342
    %v3407 = vpop.f32.mrf.mxu0
    %v3408 = vadd.f32 0.0, %v3407
    %v3409 = vpop.f32.mrf.mxu0
    %v3410 = vadd.f32 0.0, %v3409
    %3411 = vmatmul.bf16.gmra.mxu0 %v3343
    %v3412 = vpop.f32.mrf.mxu0
    %v3413 = vadd.f32 0.0, %v3412
    %v3414 = vpop.f32.mrf.mxu0
    %v3415 = vadd.f32 0.0, %v3414
    %3416 = vdwg.mxu0
    %3418 = vset.pattern.permute.xlu0 4
    %3419 = vperm.xlu0 %3418, %v3097
    %v3420 = vpop.permute.xlu0 %3419
    %3423 = vset.pattern.permute.xlu0 4
    %3424 = vperm.xlu0 %3423, %v3099
    %v3425 = vpop.permute.xlu0 %3424
    %3428 = vset.pattern.permute.xlu0 4
    %3429 = vperm.xlu0 %3428, %v3101
    %v3430 = vpop.permute.xlu0 %3429
    %3433 = vset.pattern.permute.xlu0 4
    %3434 = vperm.xlu0 %3433, %v3103
    %v3435 = vpop.permute.xlu0 %3434
    %3438 = vset.pattern.permute.xlu0 4
    %3439 = vperm.xlu0 %3438, %v3105
    %v3440 = vpop.permute.xlu0 %3439
    %3443 = vset.pattern.permute.xlu0 4
    %3444 = vperm.xlu0 %3443, %v3107
    %v3445 = vpop.permute.xlu0 %3444
    %3448 = vset.pattern.permute.xlu0 4
    %3449 = vperm.xlu0 %3448, %v3109
    %v3450 = vpop.permute.xlu0 %3449
    %3453 = vset.pattern.permute.xlu0 4
    %3454 = vperm.xlu0 %3453, %v3111
    %v3455 = vpop.permute.xlu0 %3454
    %3458 = vset.pattern.permute.xlu0 4
    %3459 = vperm.xlu0 %3458, %v3113
    %v3460 = vpop.permute.xlu0 %3459
    %3463 = vset.pattern.permute.xlu0 4
    %3464 = vperm.xlu0 %3463, %v3115
    %v3465 = vpop.permute.xlu0 %3464
    %3468 = vset.pattern.permute.xlu0 4
    %3469 = vperm.xlu0 %3468, %v3117
    %v3470 = vpop.permute.xlu0 %3469
    %3473 = vset.pattern.permute.xlu0 4
    %3474 = vperm.xlu0 %3473, %v3119
    %v3475 = vpop.permute.xlu0 %3474
    %3478 = vset.pattern.permute.xlu0 4
    %3479 = vperm.xlu0 %3478, %v3121
    %v3480 = vpop.permute.xlu0 %3479
    %3483 = vset.pattern.permute.xlu0 4
    %3484 = vperm.xlu0 %3483, %v3123
    %v3485 = vpop.permute.xlu0 %3484
    %3488 = vset.pattern.permute.xlu0 4
    %3489 = vperm.xlu0 %3488, %v3125
    %v3490 = vpop.permute.xlu0 %3489
    %3493 = vset.pattern.permute.xlu0 4
    %3494 = vperm.xlu0 %3493, %v3127
    %v3495 = vpop.permute.xlu0 %3494
    %v3497 = vmul.f32 %v3420, %v769
    %v3498 = vmul.f32 %v3425, %v770
    %v3499 = vmul.f32 %v3430, %v771
    %v3500 = vmul.f32 %v3435, %v772
    %v3501 = vmul.f32 %v3440, %v773
    %v3502 = vmul.f32 %v3445, %v774
    %v3503 = vmul.f32 %v3450, %v775
    %v3504 = vmul.f32 %v3455, %v776
    %v3505 = vmul.f32 %v3460, %v777
    %v3506 = vmul.f32 %v3465, %v778
    %v3507 = vmul.f32 %v3470, %v779
    %v3508 = vmul.f32 %v3475, %v780
    %v3509 = vmul.f32 %v3480, %v781
    %v3510 = vmul.f32 %v3485, %v782
    %v3511 = vmul.f32 %v3490, %v783
    %v3512 = vmul.f32 %v3495, %v784
    %3529 = vrot.lane.b32.xlu0 %v3378, 32
    %v3530 = vpop.permute.xlu0 %3529
    %3531 = vrot.lane.b32.xlu0 %v3380, 32
    %v3532 = vpop.permute.xlu0 %3531
    %3533 = vrot.lane.b32.xlu0 %v3383, 32
    %v3534 = vpop.permute.xlu0 %3533
    %3535 = vrot.lane.b32.xlu0 %v3385, 32
    %v3536 = vpop.permute.xlu0 %3535
    %3537 = vrot.lane.b32.xlu0 %v3388, 32
    %v3538 = vpop.permute.xlu0 %3537
    %3539 = vrot.lane.b32.xlu0 %v3390, 32
    %v3540 = vpop.permute.xlu0 %3539
    %3541 = vrot.lane.b32.xlu0 %v3393, 32
    %v3542 = vpop.permute.xlu0 %3541
    %3543 = vrot.lane.b32.xlu0 %v3395, 32
    %v3544 = vpop.permute.xlu0 %3543
    %3545 = vrot.lane.b32.xlu0 %v3398, 32
    %v3546 = vpop.permute.xlu0 %3545
    %3547 = vrot.lane.b32.xlu0 %v3400, 32
    %v3548 = vpop.permute.xlu0 %3547
    %3549 = vrot.lane.b32.xlu0 %v3403, 32
    %v3550 = vpop.permute.xlu0 %3549
    %3551 = vrot.lane.b32.xlu0 %v3405, 32
    %v3552 = vpop.permute.xlu0 %3551
    %3553 = vrot.lane.b32.xlu0 %v3408, 32
    %v3554 = vpop.permute.xlu0 %3553
    %3555 = vrot.lane.b32.xlu0 %v3410, 32
    %v3556 = vpop.permute.xlu0 %3555
    %3557 = vrot.lane.b32.xlu0 %v3413, 32
    %v3558 = vpop.permute.xlu0 %3557
    %3559 = vrot.lane.b32.xlu0 %v3415, 32
    %v3560 = vpop.permute.xlu0 %3559
    %v3577 = vadd.f32 %v3497, %v3530
    %v3578 = vadd.f32 %v3498, %v3532
    %v3579 = vadd.f32 %v3499, %v3534
    %v3580 = vadd.f32 %v3500, %v3536
    %v3581 = vadd.f32 %v3501, %v3538
    %v3582 = vadd.f32 %v3502, %v3540
    %v3583 = vadd.f32 %v3503, %v3542
    %v3584 = vadd.f32 %v3504, %v3544
    %v3585 = vadd.f32 %v3505, %v3546
    %v3586 = vadd.f32 %v3506, %v3548
    %v3587 = vadd.f32 %v3507, %v3550
    %v3588 = vadd.f32 %v3508, %v3552
    %v3589 = vadd.f32 %v3509, %v3554
    %v3590 = vadd.f32 %v3510, %v3556
    %v3591 = vadd.f32 %v3511, %v3558
    %v3592 = vadd.f32 %v3512, %v3560
    %3593 = vset.pattern.permute.xlu0 5
    %3594 = vperm.xlu0 %3593, %v127
    %v3595 = vpop.permute.xlu0 %3594
    %3597 = vset.pattern.permute.xlu0 5
    %3598 = vperm.xlu0 %3597, %v128
    %v3599 = vpop.permute.xlu0 %3598
    %3601 = vset.pattern.permute.xlu0 5
    %3602 = vperm.xlu0 %3601, %v129
    %v3603 = vpop.permute.xlu0 %3602
    %3605 = vset.pattern.permute.xlu0 5
    %3606 = vperm.xlu0 %3605, %v130
    %v3607 = vpop.permute.xlu0 %3606
    %3609 = vset.pattern.permute.xlu0 5
    %3610 = vperm.xlu0 %3609, %v131
    %v3611 = vpop.permute.xlu0 %3610
    %3613 = vset.pattern.permute.xlu0 5
    %3614 = vperm.xlu0 %3613, %v132
    %v3615 = vpop.permute.xlu0 %3614
    %3617 = vset.pattern.permute.xlu0 5
    %3618 = vperm.xlu0 %3617, %v133
    %v3619 = vpop.permute.xlu0 %3618
    %3621 = vset.pattern.permute.xlu0 5
    %3622 = vperm.xlu0 %3621, %v134
    %v3623 = vpop.permute.xlu0 %3622
    %3625 = vset.pattern.permute.xlu0 5
    %3626 = vperm.xlu0 %3625, %v135
    %v3627 = vpop.permute.xlu0 %3626
    %3629 = vset.pattern.permute.xlu0 5
    %3630 = vperm.xlu0 %3629, %v136
    %v3631 = vpop.permute.xlu0 %3630
    %3633 = vset.pattern.permute.xlu0 5
    %3634 = vperm.xlu0 %3633, %v137
    %v3635 = vpop.permute.xlu0 %3634
    %3637 = vset.pattern.permute.xlu0 5
    %3638 = vperm.xlu0 %3637, %v138
    %v3639 = vpop.permute.xlu0 %3638
    %3641 = vset.pattern.permute.xlu0 5
    %3642 = vperm.xlu0 %3641, %v139
    %v3643 = vpop.permute.xlu0 %3642
    %3645 = vset.pattern.permute.xlu0 5
    %3646 = vperm.xlu0 %3645, %v140
    %v3647 = vpop.permute.xlu0 %3646
    %3649 = vset.pattern.permute.xlu0 5
    %3650 = vperm.xlu0 %3649, %v141
    %v3651 = vpop.permute.xlu0 %3650
    %3653 = vset.pattern.permute.xlu0 5
    %3654 = vperm.xlu0 %3653, %v142
    %v3655 = vpop.permute.xlu0 %3654
    %v3657 = vperm.slane %v146, 5
    %v3658 = vadd.f32 %v3595, %v3657
    %v3659 = vadd.f32 %v3599, %v3657
    %v3660 = vadd.f32 %v3603, %v3657
    %v3661 = vadd.f32 %v3607, %v3657
    %v3662 = vadd.f32 %v3611, %v3657
    %v3663 = vadd.f32 %v3615, %v3657
    %v3664 = vadd.f32 %v3619, %v3657
    %v3665 = vadd.f32 %v3623, %v3657
    %v3666 = vadd.f32 %v3627, %v3657
    %v3667 = vadd.f32 %v3631, %v3657
    %v3668 = vadd.f32 %v3635, %v3657
    %v3669 = vadd.f32 %v3639, %v3657
    %v3670 = vadd.f32 %v3643, %v3657
    %v3671 = vadd.f32 %v3647, %v3657
    %v3672 = vadd.f32 %v3651, %v3657
    %v3673 = vadd.f32 %v3655, %v3657
    %v3674 = vmul.f32 %v3658, 0.2
    %v3675 = vmul.f32 %v3659, 0.2
    %v3676 = vmul.f32 %v3660, 0.2
    %v3677 = vmul.f32 %v3661, 0.2
    %v3678 = vmul.f32 %v3662, 0.2
    %v3679 = vmul.f32 %v3663, 0.2
    %v3680 = vmul.f32 %v3664, 0.2
    %v3681 = vmul.f32 %v3665, 0.2
    %v3682 = vmul.f32 %v3666, 0.2
    %v3683 = vmul.f32 %v3667, 0.2
    %v3684 = vmul.f32 %v3668, 0.2
    %v3685 = vmul.f32 %v3669, 0.2
    %v3686 = vmul.f32 %v3670, 0.2
    %v3687 = vmul.f32 %v3671, 0.2
    %v3688 = vmul.f32 %v3672, 0.2
    %v3689 = vmul.f32 %v3673, 0.2
    %v3690 = vmax.f32 %v3658, %v3674
    %v3691 = vmax.f32 %v3659, %v3675
    %v3692 = vmax.f32 %v3660, %v3676
    %v3693 = vmax.f32 %v3661, %v3677
    %v3694 = vmax.f32 %v3662, %v3678
    %v3695 = vmax.f32 %v3663, %v3679
    %v3696 = vmax.f32 %v3664, %v3680
    %v3697 = vmax.f32 %v3665, %v3681
    %v3698 = vmax.f32 %v3666, %v3682
    %v3699 = vmax.f32 %v3667, %v3683
    %v3700 = vmax.f32 %v3668, %v3684
    %v3701 = vmax.f32 %v3669, %v3685
    %v3702 = vmax.f32 %v3670, %v3686
    %v3703 = vmax.f32 %v3671, %v3687
    %v3704 = vmax.f32 %v3672, %v3688
    %v3705 = vmax.f32 %v3673, %v3689
    %3706 = vmax.xlane.f32.xlu0 %v3690
    %v3707 = vpop.xlane.xlu0 %3706
    %3708 = vmax.xlane.f32.xlu0 %v3691
    %v3709 = vpop.xlane.xlu0 %3708
    %3710 = vmax.xlane.f32.xlu0 %v3692
    %v3711 = vpop.xlane.xlu0 %3710
    %3712 = vmax.xlane.f32.xlu0 %v3693
    %v3713 = vpop.xlane.xlu0 %3712
    %3714 = vmax.xlane.f32.xlu0 %v3694
    %v3715 = vpop.xlane.xlu0 %3714
    %3716 = vmax.xlane.f32.xlu0 %v3695
    %v3717 = vpop.xlane.xlu0 %3716
    %3718 = vmax.xlane.f32.xlu0 %v3696
    %v3719 = vpop.xlane.xlu0 %3718
    %3720 = vmax.xlane.f32.xlu0 %v3697
    %v3721 = vpop.xlane.xlu0 %3720
    %3722 = vmax.xlane.f32.xlu0 %v3698
    %v3723 = vpop.xlane.xlu0 %3722
    %3724 = vmax.xlane.f32.xlu0 %v3699
    %v3725 = vpop.xlane.xlu0 %3724
    %3726 = vmax.xlane.f32.xlu0 %v3700
    %v3727 = vpop.xlane.xlu0 %3726
    %3728 = vmax.xlane.f32.xlu0 %v3701
    %v3729 = vpop.xlane.xlu0 %3728
    %3730 = vmax.xlane.f32.xlu0 %v3702
    %v3731 = vpop.xlane.xlu0 %3730
    %3732 = vmax.xlane.f32.xlu0 %v3703
    %v3733 = vpop.xlane.xlu0 %3732
    %3734 = vmax.xlane.f32.xlu0 %v3704
    %v3735 = vpop.xlane.xlu0 %3734
    %3736 = vmax.xlane.f32.xlu0 %v3705
    %v3737 = vpop.xlane.xlu0 %3736
    %v3738 = vmax.f32 %v183, %v3707
    %v3739 = vmax.f32 %v184, %v3709
    %v3740 = vmax.f32 %v185, %v3711
    %v3741 = vmax.f32 %v186, %v3713
    %v3742 = vmax.f32 %v187, %v3715
    %v3743 = vmax.f32 %v188, %v3717
    %v3744 = vmax.f32 %v189, %v3719
    %v3745 = vmax.f32 %v190, %v3721
    %v3746 = vmax.f32 %v191, %v3723
    %v3747 = vmax.f32 %v192, %v3725
    %v3748 = vmax.f32 %v193, %v3727
    %v3749 = vmax.f32 %v194, %v3729
    %v3750 = vmax.f32 %v195, %v3731
    %v3751 = vmax.f32 %v196, %v3733
    %v3752 = vmax.f32 %v197, %v3735
    %v3753 = vmax.f32 %v198, %v3737
    %v3754 = vsub.f32 %v183, %v3738
    %v3755 = vsub.f32 %v184, %v3739
    %v3756 = vsub.f32 %v185, %v3740
    %v3757 = vsub.f32 %v186, %v3741
    %v3758 = vsub.f32 %v187, %v3742
    %v3759 = vsub.f32 %v188, %v3743
    %v3760 = vsub.f32 %v189, %v3744
    %v3761 = vsub.f32 %v190, %v3745
    %v3762 = vsub.f32 %v191, %v3746
    %v3763 = vsub.f32 %v192, %v3747
    %v3764 = vsub.f32 %v193, %v3748
    %v3765 = vsub.f32 %v194, %v3749
    %v3766 = vsub.f32 %v195, %v3750
    %v3767 = vsub.f32 %v196, %v3751
    %v3768 = vsub.f32 %v197, %v3752
    %v3769 = vsub.f32 %v198, %v3753
    %v3770 = vmul.f32 %v3754, 1.442695
    %v3771 = vpow.pop %v3770
    %v3772 = vmul.f32 %v3755, 1.442695
    %v3773 = vpow.pop %v3772
    %v3774 = vmul.f32 %v3756, 1.442695
    %v3775 = vpow.pop %v3774
    %v3776 = vmul.f32 %v3757, 1.442695
    %v3777 = vpow.pop %v3776
    %v3778 = vmul.f32 %v3758, 1.442695
    %v3779 = vpow.pop %v3778
    %v3780 = vmul.f32 %v3759, 1.442695
    %v3781 = vpow.pop %v3780
    %v3782 = vmul.f32 %v3760, 1.442695
    %v3783 = vpow.pop %v3782
    %v3784 = vmul.f32 %v3761, 1.442695
    %v3785 = vpow.pop %v3784
    %v3786 = vmul.f32 %v3762, 1.442695
    %v3787 = vpow.pop %v3786
    %v3788 = vmul.f32 %v3763, 1.442695
    %v3789 = vpow.pop %v3788
    %v3790 = vmul.f32 %v3764, 1.442695
    %v3791 = vpow.pop %v3790
    %v3792 = vmul.f32 %v3765, 1.442695
    %v3793 = vpow.pop %v3792
    %v3794 = vmul.f32 %v3766, 1.442695
    %v3795 = vpow.pop %v3794
    %v3796 = vmul.f32 %v3767, 1.442695
    %v3797 = vpow.pop %v3796
    %v3798 = vmul.f32 %v3768, 1.442695
    %v3799 = vpow.pop %v3798
    %v3800 = vmul.f32 %v3769, 1.442695
    %v3801 = vpow.pop %v3800
    %3803 = vset.pattern.permute.xlu0 5
    %3804 = vperm.xlu0 %3803, %v3738
    %v3805 = vpop.permute.xlu0 %3804
    %3808 = vset.pattern.permute.xlu0 5
    %3809 = vperm.xlu0 %3808, %v3739
    %v3810 = vpop.permute.xlu0 %3809
    %3813 = vset.pattern.permute.xlu0 5
    %3814 = vperm.xlu0 %3813, %v3740
    %v3815 = vpop.permute.xlu0 %3814
    %3818 = vset.pattern.permute.xlu0 5
    %3819 = vperm.xlu0 %3818, %v3741
    %v3820 = vpop.permute.xlu0 %3819
    %3823 = vset.pattern.permute.xlu0 5
    %3824 = vperm.xlu0 %3823, %v3742
    %v3825 = vpop.permute.xlu0 %3824
    %3828 = vset.pattern.permute.xlu0 5
    %3829 = vperm.xlu0 %3828, %v3743
    %v3830 = vpop.permute.xlu0 %3829
    %3833 = vset.pattern.permute.xlu0 5
    %3834 = vperm.xlu0 %3833, %v3744
    %v3835 = vpop.permute.xlu0 %3834
    %3838 = vset.pattern.permute.xlu0 5
    %3839 = vperm.xlu0 %3838, %v3745
    %v3840 = vpop.permute.xlu0 %3839
    %3843 = vset.pattern.permute.xlu0 5
    %3844 = vperm.xlu0 %3843, %v3746
    %v3845 = vpop.permute.xlu0 %3844
    %3848 = vset.pattern.permute.xlu0 5
    %3849 = vperm.xlu0 %3848, %v3747
    %v3850 = vpop.permute.xlu0 %3849
    %3853 = vset.pattern.permute.xlu0 5
    %3854 = vperm.xlu0 %3853, %v3748
    %v3855 = vpop.permute.xlu0 %3854
    %3858 = vset.pattern.permute.xlu0 5
    %3859 = vperm.xlu0 %3858, %v3749
    %v3860 = vpop.permute.xlu0 %3859
    %3863 = vset.pattern.permute.xlu0 5
    %3864 = vperm.xlu0 %3863, %v3750
    %v3865 = vpop.permute.xlu0 %3864
    %3868 = vset.pattern.permute.xlu0 5
    %3869 = vperm.xlu0 %3868, %v3751
    %v3870 = vpop.permute.xlu0 %3869
    %3873 = vset.pattern.permute.xlu0 5
    %3874 = vperm.xlu0 %3873, %v3752
    %v3875 = vpop.permute.xlu0 %3874
    %3878 = vset.pattern.permute.xlu0 5
    %3879 = vperm.xlu0 %3878, %v3753
    %v3880 = vpop.permute.xlu0 %3879
    %v3882 = vsub.f32 %v3690, %v3805
    %v3883 = vsub.f32 %v3691, %v3810
    %v3884 = vsub.f32 %v3692, %v3815
    %v3885 = vsub.f32 %v3693, %v3820
    %v3886 = vsub.f32 %v3694, %v3825
    %v3887 = vsub.f32 %v3695, %v3830
    %v3888 = vsub.f32 %v3696, %v3835
    %v3889 = vsub.f32 %v3697, %v3840
    %v3890 = vsub.f32 %v3698, %v3845
    %v3891 = vsub.f32 %v3699, %v3850
    %v3892 = vsub.f32 %v3700, %v3855
    %v3893 = vsub.f32 %v3701, %v3860
    %v3894 = vsub.f32 %v3702, %v3865
    %v3895 = vsub.f32 %v3703, %v3870
    %v3896 = vsub.f32 %v3704, %v3875
    %v3897 = vsub.f32 %v3705, %v3880
    %v3898 = vmul.f32 %v3882, 1.442695
    %v3899 = vpow.pop %v3898
    %v3900 = vmul.f32 %v3883, 1.442695
    %v3901 = vpow.pop %v3900
    %v3902 = vmul.f32 %v3884, 1.442695
    %v3903 = vpow.pop %v3902
    %v3904 = vmul.f32 %v3885, 1.442695
    %v3905 = vpow.pop %v3904
    %v3906 = vmul.f32 %v3886, 1.442695
    %v3907 = vpow.pop %v3906
    %v3908 = vmul.f32 %v3887, 1.442695
    %v3909 = vpow.pop %v3908
    %v3910 = vmul.f32 %v3888, 1.442695
    %v3911 = vpow.pop %v3910
    %v3912 = vmul.f32 %v3889, 1.442695
    %v3913 = vpow.pop %v3912
    %v3914 = vmul.f32 %v3890, 1.442695
    %v3915 = vpow.pop %v3914
    %v3916 = vmul.f32 %v3891, 1.442695
    %v3917 = vpow.pop %v3916
    %v3918 = vmul.f32 %v3892, 1.442695
    %v3919 = vpow.pop %v3918
    %v3920 = vmul.f32 %v3893, 1.442695
    %v3921 = vpow.pop %v3920
    %v3922 = vmul.f32 %v3894, 1.442695
    %v3923 = vpow.pop %v3922
    %v3924 = vmul.f32 %v3895, 1.442695
    %v3925 = vpow.pop %v3924
    %v3926 = vmul.f32 %v3896, 1.442695
    %v3927 = vpow.pop %v3926
    %v3928 = vmul.f32 %v3897, 1.442695
    %v3929 = vpow.pop %v3928
    %v3930 = vmul.f32 %v3899, %v568
    %v3931 = vmul.f32 %v3901, %v569
    %v3932 = vmul.f32 %v3903, %v570
    %v3933 = vmul.f32 %v3905, %v571
    %v3934 = vmul.f32 %v3907, %v572
    %v3935 = vmul.f32 %v3909, %v573
    %v3936 = vmul.f32 %v3911, %v574
    %v3937 = vmul.f32 %v3913, %v575
    %v3938 = vmul.f32 %v3915, %v576
    %v3939 = vmul.f32 %v3917, %v577
    %v3940 = vmul.f32 %v3919, %v578
    %v3941 = vmul.f32 %v3921, %v579
    %v3942 = vmul.f32 %v3923, %v580
    %v3943 = vmul.f32 %v3925, %v581
    %v3944 = vmul.f32 %v3927, %v582
    %v3945 = vmul.f32 %v3929, %v583
    %v3946 = vmul.f32 %v3771, %v199
    %v3947 = vmul.f32 %v3773, %v200
    %v3948 = vmul.f32 %v3775, %v201
    %v3949 = vmul.f32 %v3777, %v202
    %v3950 = vmul.f32 %v3779, %v203
    %v3951 = vmul.f32 %v3781, %v204
    %v3952 = vmul.f32 %v3783, %v205
    %v3953 = vmul.f32 %v3785, %v206
    %v3954 = vmul.f32 %v3787, %v207
    %v3955 = vmul.f32 %v3789, %v208
    %v3956 = vmul.f32 %v3791, %v209
    %v3957 = vmul.f32 %v3793, %v210
    %v3958 = vmul.f32 %v3795, %v211
    %v3959 = vmul.f32 %v3797, %v212
    %v3960 = vmul.f32 %v3799, %v213
    %v3961 = vmul.f32 %v3801, %v214
    %3962 = vadd.xlane.f32.xlu0 %v3930
    %v3963 = vpop.xlane.xlu0 %3962
    %3964 = vadd.xlane.f32.xlu0 %v3931
    %v3965 = vpop.xlane.xlu0 %3964
    %3966 = vadd.xlane.f32.xlu0 %v3932
    %v3967 = vpop.xlane.xlu0 %3966
    %3968 = vadd.xlane.f32.xlu0 %v3933
    %v3969 = vpop.xlane.xlu0 %3968
    %3970 = vadd.xlane.f32.xlu0 %v3934
    %v3971 = vpop.xlane.xlu0 %3970
    %3972 = vadd.xlane.f32.xlu0 %v3935
    %v3973 = vpop.xlane.xlu0 %3972
    %3974 = vadd.xlane.f32.xlu0 %v3936
    %v3975 = vpop.xlane.xlu0 %3974
    %3976 = vadd.xlane.f32.xlu0 %v3937
    %v3977 = vpop.xlane.xlu0 %3976
    %3978 = vadd.xlane.f32.xlu0 %v3938
    %v3979 = vpop.xlane.xlu0 %3978
    %3980 = vadd.xlane.f32.xlu0 %v3939
    %v3981 = vpop.xlane.xlu0 %3980
    %3982 = vadd.xlane.f32.xlu0 %v3940
    %v3983 = vpop.xlane.xlu0 %3982
    %3984 = vadd.xlane.f32.xlu0 %v3941
    %v3985 = vpop.xlane.xlu0 %3984
    %3986 = vadd.xlane.f32.xlu0 %v3942
    %v3987 = vpop.xlane.xlu0 %3986
    %3988 = vadd.xlane.f32.xlu0 %v3943
    %v3989 = vpop.xlane.xlu0 %3988
    %3990 = vadd.xlane.f32.xlu0 %v3944
    %v3991 = vpop.xlane.xlu0 %3990
    %3992 = vadd.xlane.f32.xlu0 %v3945
    %v3993 = vpop.xlane.xlu0 %3992
    %v3994 = vadd.f32 %v3946, %v3963
    %v3995 = vadd.f32 %v3947, %v3965
    %v3996 = vadd.f32 %v3948, %v3967
    %v3997 = vadd.f32 %v3949, %v3969
    %v3998 = vadd.f32 %v3950, %v3971
    %v3999 = vadd.f32 %v3951, %v3973
    %v4000 = vadd.f32 %v3952, %v3975
    %v4001 = vadd.f32 %v3953, %v3977
    %v4002 = vadd.f32 %v3954, %v3979
    %v4003 = vadd.f32 %v3955, %v3981
    %v4004 = vadd.f32 %v3956, %v3983
    %v4005 = vadd.f32 %v3957, %v3985
    %v4006 = vadd.f32 %v3958, %v3987
    %v4007 = vadd.f32 %v3959, %v3989
    %v4008 = vadd.f32 %v3960, %v3991
    %v4009 = vadd.f32 %v3961, %v3993
    %v4010 = vpack.c.bf16 %v3931, %v3930
    %v4011 = vpack.c.bf16 %v3933, %v3932
    %v4012 = vpack.c.bf16 %v3935, %v3934
    %v4013 = vpack.c.bf16 %v3937, %v3936
    %v4014 = vpack.c.bf16 %v3939, %v3938
    %v4015 = vpack.c.bf16 %v3941, %v3940
    %v4016 = vpack.c.bf16 %v3943, %v3942
    %v4017 = vpack.c.bf16 %v3945, %v3944
    %4018 = vrot.lane.b32.xlu0 %v704, 88
    %v4019 = vpop.permute.xlu0 %4018
    %4020 = vrot.lane.b32.xlu0 %v705, 88
    %v4021 = vpop.permute.xlu0 %4020
    %4022 = vrot.lane.b32.xlu0 %v706, 88
    %v4023 = vpop.permute.xlu0 %4022
    %4024 = vrot.lane.b32.xlu0 %v707, 88
    %v4025 = vpop.permute.xlu0 %4024
    %4026 = vrot.lane.b32.xlu0 %v708, 88
    %v4027 = vpop.permute.xlu0 %4026
    %4028 = vrot.lane.b32.xlu0 %v709, 88
    %v4029 = vpop.permute.xlu0 %4028
    %4030 = vrot.lane.b32.xlu0 %v710, 88
    %v4031 = vpop.permute.xlu0 %4030
    %4032 = vrot.lane.b32.xlu0 %v711, 88
    %v4033 = vpop.permute.xlu0 %4032
    %4042 = vmatpush.bf16.msra.mxu0 %v4033
    %4043 = vmatpush.bf16.msra.mxu0 %v4031
    %4044 = vmatpush.bf16.msra.mxu0 %v4029
    %4045 = vmatpush.bf16.msra.mxu0 %v4027
    %4046 = vmatpush.bf16.msra.mxu0 %v4025
    %4047 = vmatpush.bf16.msra.mxu0 %v4023
    %4048 = vmatpush.bf16.msra.mxu0 %v4021
    %4049 = vmatpush.bf16.msra.mxu0 %v4019
    %4050 = vmatmul.bf16.gmra.mxu0 %v4010
    %v4051 = vpop.f32.mrf.mxu0
    %v4052 = vadd.f32 0.0, %v4051
    %v4053 = vpop.f32.mrf.mxu0
    %v4054 = vadd.f32 0.0, %v4053
    %4055 = vmatmul.bf16.gmra.mxu0 %v4011
    %v4056 = vpop.f32.mrf.mxu0
    %v4057 = vadd.f32 0.0, %v4056
    %v4058 = vpop.f32.mrf.mxu0
    %v4059 = vadd.f32 0.0, %v4058
    %4060 = vmatmul.bf16.gmra.mxu0 %v4012
    %v4061 = vpop.f32.mrf.mxu0
    %v4062 = vadd.f32 0.0, %v4061
    %v4063 = vpop.f32.mrf.mxu0
    %v4064 = vadd.f32 0.0, %v4063
    %4065 = vmatmul.bf16.gmra.mxu0 %v4013
    %v4066 = vpop.f32.mrf.mxu0
    %v4067 = vadd.f32 0.0, %v4066
    %v4068 = vpop.f32.mrf.mxu0
    %v4069 = vadd.f32 0.0, %v4068
    %4070 = vmatmul.bf16.gmra.mxu0 %v4014
    %v4071 = vpop.f32.mrf.mxu0
    %v4072 = vadd.f32 0.0, %v4071
    %v4073 = vpop.f32.mrf.mxu0
    %v4074 = vadd.f32 0.0, %v4073
    %4075 = vmatmul.bf16.gmra.mxu0 %v4015
    %v4076 = vpop.f32.mrf.mxu0
    %v4077 = vadd.f32 0.0, %v4076
    %v4078 = vpop.f32.mrf.mxu0
    %v4079 = vadd.f32 0.0, %v4078
    %4080 = vmatmul.bf16.gmra.mxu0 %v4016
    %v4081 = vpop.f32.mrf.mxu0
    %v4082 = vadd.f32 0.0, %v4081
    %v4083 = vpop.f32.mrf.mxu0
    %v4084 = vadd.f32 0.0, %v4083
    %4085 = vmatmul.bf16.gmra.mxu0 %v4017
    %v4086 = vpop.f32.mrf.mxu0
    %v4087 = vadd.f32 0.0, %v4086
    %v4088 = vpop.f32.mrf.mxu0
    %v4089 = vadd.f32 0.0, %v4088
    %4090 = vdwg.mxu0
    %4092 = vset.pattern.permute.xlu0 5
    %4093 = vperm.xlu0 %4092, %v3771
    %v4094 = vpop.permute.xlu0 %4093
    %4097 = vset.pattern.permute.xlu0 5
    %4098 = vperm.xlu0 %4097, %v3773
    %v4099 = vpop.permute.xlu0 %4098
    %4102 = vset.pattern.permute.xlu0 5
    %4103 = vperm.xlu0 %4102, %v3775
    %v4104 = vpop.permute.xlu0 %4103
    %4107 = vset.pattern.permute.xlu0 5
    %4108 = vperm.xlu0 %4107, %v3777
    %v4109 = vpop.permute.xlu0 %4108
    %4112 = vset.pattern.permute.xlu0 5
    %4113 = vperm.xlu0 %4112, %v3779
    %v4114 = vpop.permute.xlu0 %4113
    %4117 = vset.pattern.permute.xlu0 5
    %4118 = vperm.xlu0 %4117, %v3781
    %v4119 = vpop.permute.xlu0 %4118
    %4122 = vset.pattern.permute.xlu0 5
    %4123 = vperm.xlu0 %4122, %v3783
    %v4124 = vpop.permute.xlu0 %4123
    %4127 = vset.pattern.permute.xlu0 5
    %4128 = vperm.xlu0 %4127, %v3785
    %v4129 = vpop.permute.xlu0 %4128
    %4132 = vset.pattern.permute.xlu0 5
    %4133 = vperm.xlu0 %4132, %v3787
    %v4134 = vpop.permute.xlu0 %4133
    %4137 = vset.pattern.permute.xlu0 5
    %4138 = vperm.xlu0 %4137, %v3789
    %v4139 = vpop.permute.xlu0 %4138
    %4142 = vset.pattern.permute.xlu0 5
    %4143 = vperm.xlu0 %4142, %v3791
    %v4144 = vpop.permute.xlu0 %4143
    %4147 = vset.pattern.permute.xlu0 5
    %4148 = vperm.xlu0 %4147, %v3793
    %v4149 = vpop.permute.xlu0 %4148
    %4152 = vset.pattern.permute.xlu0 5
    %4153 = vperm.xlu0 %4152, %v3795
    %v4154 = vpop.permute.xlu0 %4153
    %4157 = vset.pattern.permute.xlu0 5
    %4158 = vperm.xlu0 %4157, %v3797
    %v4159 = vpop.permute.xlu0 %4158
    %4162 = vset.pattern.permute.xlu0 5
    %4163 = vperm.xlu0 %4162, %v3799
    %v4164 = vpop.permute.xlu0 %4163
    %4167 = vset.pattern.permute.xlu0 5
    %4168 = vperm.xlu0 %4167, %v3801
    %v4169 = vpop.permute.xlu0 %4168
    %v4171 = vmul.f32 %v4094, %v769
    %v4172 = vmul.f32 %v4099, %v770
    %v4173 = vmul.f32 %v4104, %v771
    %v4174 = vmul.f32 %v4109, %v772
    %v4175 = vmul.f32 %v4114, %v773
    %v4176 = vmul.f32 %v4119, %v774
    %v4177 = vmul.f32 %v4124, %v775
    %v4178 = vmul.f32 %v4129, %v776
    %v4179 = vmul.f32 %v4134, %v777
    %v4180 = vmul.f32 %v4139, %v778
    %v4181 = vmul.f32 %v4144, %v779
    %v4182 = vmul.f32 %v4149, %v780
    %v4183 = vmul.f32 %v4154, %v781
    %v4184 = vmul.f32 %v4159, %v782
    %v4185 = vmul.f32 %v4164, %v783
    %v4186 = vmul.f32 %v4169, %v784
    %4203 = vrot.lane.b32.xlu0 %v4052, 40
    %v4204 = vpop.permute.xlu0 %4203
    %4205 = vrot.lane.b32.xlu0 %v4054, 40
    %v4206 = vpop.permute.xlu0 %4205
    %4207 = vrot.lane.b32.xlu0 %v4057, 40
    %v4208 = vpop.permute.xlu0 %4207
    %4209 = vrot.lane.b32.xlu0 %v4059, 40
    %v4210 = vpop.permute.xlu0 %4209
    %4211 = vrot.lane.b32.xlu0 %v4062, 40
    %v4212 = vpop.permute.xlu0 %4211
    %4213 = vrot.lane.b32.xlu0 %v4064, 40
    %v4214 = vpop.permute.xlu0 %4213
    %4215 = vrot.lane.b32.xlu0 %v4067, 40
    %v4216 = vpop.permute.xlu0 %4215
    %4217 = vrot.lane.b32.xlu0 %v4069, 40
    %v4218 = vpop.permute.xlu0 %4217
    %4219 = vrot.lane.b32.xlu0 %v4072, 40
    %v4220 = vpop.permute.xlu0 %4219
    %4221 = vrot.lane.b32.xlu0 %v4074, 40
    %v4222 = vpop.permute.xlu0 %4221
    %4223 = vrot.lane.b32.xlu0 %v4077, 40
    %v4224 = vpop.permute.xlu0 %4223
    %4225 = vrot.lane.b32.xlu0 %v4079, 40
    %v4226 = vpop.permute.xlu0 %4225
    %4227 = vrot.lane.b32.xlu0 %v4082, 40
    %v4228 = vpop.permute.xlu0 %4227
    %4229 = vrot.lane.b32.xlu0 %v4084, 40
    %v4230 = vpop.permute.xlu0 %4229
    %4231 = vrot.lane.b32.xlu0 %v4087, 40
    %v4232 = vpop.permute.xlu0 %4231
    %4233 = vrot.lane.b32.xlu0 %v4089, 40
    %v4234 = vpop.permute.xlu0 %4233
    %v4251 = vadd.f32 %v4171, %v4204
    %v4252 = vadd.f32 %v4172, %v4206
    %v4253 = vadd.f32 %v4173, %v4208
    %v4254 = vadd.f32 %v4174, %v4210
    %v4255 = vadd.f32 %v4175, %v4212
    %v4256 = vadd.f32 %v4176, %v4214
    %v4257 = vadd.f32 %v4177, %v4216
    %v4258 = vadd.f32 %v4178, %v4218
    %v4259 = vadd.f32 %v4179, %v4220
    %v4260 = vadd.f32 %v4180, %v4222
    %v4261 = vadd.f32 %v4181, %v4224
    %v4262 = vadd.f32 %v4182, %v4226
    %v4263 = vadd.f32 %v4183, %v4228
    %v4264 = vadd.f32 %v4184, %v4230
    %v4265 = vadd.f32 %v4185, %v4232
    %v4266 = vadd.f32 %v4186, %v4234
    %4267 = vset.pattern.permute.xlu0 6
    %4268 = vperm.xlu0 %4267, %v127
    %v4269 = vpop.permute.xlu0 %4268
    %4271 = vset.pattern.permute.xlu0 6
    %4272 = vperm.xlu0 %4271, %v128
    %v4273 = vpop.permute.xlu0 %4272
    %4275 = vset.pattern.permute.xlu0 6
    %4276 = vperm.xlu0 %4275, %v129
    %v4277 = vpop.permute.xlu0 %4276
    %4279 = vset.pattern.permute.xlu0 6
    %4280 = vperm.xlu0 %4279, %v130
    %v4281 = vpop.permute.xlu0 %4280
    %4283 = vset.pattern.permute.xlu0 6
    %4284 = vperm.xlu0 %4283, %v131
    %v4285 = vpop.permute.xlu0 %4284
    %4287 = vset.pattern.permute.xlu0 6
    %4288 = vperm.xlu0 %4287, %v132
    %v4289 = vpop.permute.xlu0 %4288
    %4291 = vset.pattern.permute.xlu0 6
    %4292 = vperm.xlu0 %4291, %v133
    %v4293 = vpop.permute.xlu0 %4292
    %4295 = vset.pattern.permute.xlu0 6
    %4296 = vperm.xlu0 %4295, %v134
    %v4297 = vpop.permute.xlu0 %4296
    %4299 = vset.pattern.permute.xlu0 6
    %4300 = vperm.xlu0 %4299, %v135
    %v4301 = vpop.permute.xlu0 %4300
    %4303 = vset.pattern.permute.xlu0 6
    %4304 = vperm.xlu0 %4303, %v136
    %v4305 = vpop.permute.xlu0 %4304
    %4307 = vset.pattern.permute.xlu0 6
    %4308 = vperm.xlu0 %4307, %v137
    %v4309 = vpop.permute.xlu0 %4308
    %4311 = vset.pattern.permute.xlu0 6
    %4312 = vperm.xlu0 %4311, %v138
    %v4313 = vpop.permute.xlu0 %4312
    %4315 = vset.pattern.permute.xlu0 6
    %4316 = vperm.xlu0 %4315, %v139
    %v4317 = vpop.permute.xlu0 %4316
    %4319 = vset.pattern.permute.xlu0 6
    %4320 = vperm.xlu0 %4319, %v140
    %v4321 = vpop.permute.xlu0 %4320
    %4323 = vset.pattern.permute.xlu0 6
    %4324 = vperm.xlu0 %4323, %v141
    %v4325 = vpop.permute.xlu0 %4324
    %4327 = vset.pattern.permute.xlu0 6
    %4328 = vperm.xlu0 %4327, %v142
    %v4329 = vpop.permute.xlu0 %4328
    %v4331 = vperm.slane %v146, 6
    %v4332 = vadd.f32 %v4269, %v4331
    %v4333 = vadd.f32 %v4273, %v4331
    %v4334 = vadd.f32 %v4277, %v4331
    %v4335 = vadd.f32 %v4281, %v4331
    %v4336 = vadd.f32 %v4285, %v4331
    %v4337 = vadd.f32 %v4289, %v4331
    %v4338 = vadd.f32 %v4293, %v4331
    %v4339 = vadd.f32 %v4297, %v4331
    %v4340 = vadd.f32 %v4301, %v4331
    %v4341 = vadd.f32 %v4305, %v4331
    %v4342 = vadd.f32 %v4309, %v4331
    %v4343 = vadd.f32 %v4313, %v4331
    %v4344 = vadd.f32 %v4317, %v4331
    %v4345 = vadd.f32 %v4321, %v4331
    %v4346 = vadd.f32 %v4325, %v4331
    %v4347 = vadd.f32 %v4329, %v4331
    %v4348 = vmul.f32 %v4332, 0.2
    %v4349 = vmul.f32 %v4333, 0.2
    %v4350 = vmul.f32 %v4334, 0.2
    %v4351 = vmul.f32 %v4335, 0.2
    %v4352 = vmul.f32 %v4336, 0.2
    %v4353 = vmul.f32 %v4337, 0.2
    %v4354 = vmul.f32 %v4338, 0.2
    %v4355 = vmul.f32 %v4339, 0.2
    %v4356 = vmul.f32 %v4340, 0.2
    %v4357 = vmul.f32 %v4341, 0.2
    %v4358 = vmul.f32 %v4342, 0.2
    %v4359 = vmul.f32 %v4343, 0.2
    %v4360 = vmul.f32 %v4344, 0.2
    %v4361 = vmul.f32 %v4345, 0.2
    %v4362 = vmul.f32 %v4346, 0.2
    %v4363 = vmul.f32 %v4347, 0.2
    %v4364 = vmax.f32 %v4332, %v4348
    %v4365 = vmax.f32 %v4333, %v4349
    %v4366 = vmax.f32 %v4334, %v4350
    %v4367 = vmax.f32 %v4335, %v4351
    %v4368 = vmax.f32 %v4336, %v4352
    %v4369 = vmax.f32 %v4337, %v4353
    %v4370 = vmax.f32 %v4338, %v4354
    %v4371 = vmax.f32 %v4339, %v4355
    %v4372 = vmax.f32 %v4340, %v4356
    %v4373 = vmax.f32 %v4341, %v4357
    %v4374 = vmax.f32 %v4342, %v4358
    %v4375 = vmax.f32 %v4343, %v4359
    %v4376 = vmax.f32 %v4344, %v4360
    %v4377 = vmax.f32 %v4345, %v4361
    %v4378 = vmax.f32 %v4346, %v4362
    %v4379 = vmax.f32 %v4347, %v4363
    %4380 = vmax.xlane.f32.xlu0 %v4364
    %v4381 = vpop.xlane.xlu0 %4380
    %4382 = vmax.xlane.f32.xlu0 %v4365
    %v4383 = vpop.xlane.xlu0 %4382
    %4384 = vmax.xlane.f32.xlu0 %v4366
    %v4385 = vpop.xlane.xlu0 %4384
    %4386 = vmax.xlane.f32.xlu0 %v4367
    %v4387 = vpop.xlane.xlu0 %4386
    %4388 = vmax.xlane.f32.xlu0 %v4368
    %v4389 = vpop.xlane.xlu0 %4388
    %4390 = vmax.xlane.f32.xlu0 %v4369
    %v4391 = vpop.xlane.xlu0 %4390
    %4392 = vmax.xlane.f32.xlu0 %v4370
    %v4393 = vpop.xlane.xlu0 %4392
    %4394 = vmax.xlane.f32.xlu0 %v4371
    %v4395 = vpop.xlane.xlu0 %4394
    %4396 = vmax.xlane.f32.xlu0 %v4372
    %v4397 = vpop.xlane.xlu0 %4396
    %4398 = vmax.xlane.f32.xlu0 %v4373
    %v4399 = vpop.xlane.xlu0 %4398
    %4400 = vmax.xlane.f32.xlu0 %v4374
    %v4401 = vpop.xlane.xlu0 %4400
    %4402 = vmax.xlane.f32.xlu0 %v4375
    %v4403 = vpop.xlane.xlu0 %4402
    %4404 = vmax.xlane.f32.xlu0 %v4376
    %v4405 = vpop.xlane.xlu0 %4404
    %4406 = vmax.xlane.f32.xlu0 %v4377
    %v4407 = vpop.xlane.xlu0 %4406
    %4408 = vmax.xlane.f32.xlu0 %v4378
    %v4409 = vpop.xlane.xlu0 %4408
    %4410 = vmax.xlane.f32.xlu0 %v4379
    %v4411 = vpop.xlane.xlu0 %4410
    %v4412 = vmax.f32 %v183, %v4381
    %v4413 = vmax.f32 %v184, %v4383
    %v4414 = vmax.f32 %v185, %v4385
    %v4415 = vmax.f32 %v186, %v4387
    %v4416 = vmax.f32 %v187, %v4389
    %v4417 = vmax.f32 %v188, %v4391
    %v4418 = vmax.f32 %v189, %v4393
    %v4419 = vmax.f32 %v190, %v4395
    %v4420 = vmax.f32 %v191, %v4397
    %v4421 = vmax.f32 %v192, %v4399
    %v4422 = vmax.f32 %v193, %v4401
    %v4423 = vmax.f32 %v194, %v4403
    %v4424 = vmax.f32 %v195, %v4405
    %v4425 = vmax.f32 %v196, %v4407
    %v4426 = vmax.f32 %v197, %v4409
    %v4427 = vmax.f32 %v198, %v4411
    %v4428 = vsub.f32 %v183, %v4412
    %v4429 = vsub.f32 %v184, %v4413
    %v4430 = vsub.f32 %v185, %v4414
    %v4431 = vsub.f32 %v186, %v4415
    %v4432 = vsub.f32 %v187, %v4416
    %v4433 = vsub.f32 %v188, %v4417
    %v4434 = vsub.f32 %v189, %v4418
    %v4435 = vsub.f32 %v190, %v4419
    %v4436 = vsub.f32 %v191, %v4420
    %v4437 = vsub.f32 %v192, %v4421
    %v4438 = vsub.f32 %v193, %v4422
    %v4439 = vsub.f32 %v194, %v4423
    %v4440 = vsub.f32 %v195, %v4424
    %v4441 = vsub.f32 %v196, %v4425
    %v4442 = vsub.f32 %v197, %v4426
    %v4443 = vsub.f32 %v198, %v4427
    %v4444 = vmul.f32 %v4428, 1.442695
    %v4445 = vpow.pop %v4444
    %v4446 = vmul.f32 %v4429, 1.442695
    %v4447 = vpow.pop %v4446
    %v4448 = vmul.f32 %v4430, 1.442695
    %v4449 = vpow.pop %v4448
    %v4450 = vmul.f32 %v4431, 1.442695
    %v4451 = vpow.pop %v4450
    %v4452 = vmul.f32 %v4432, 1.442695
    %v4453 = vpow.pop %v4452
    %v4454 = vmul.f32 %v4433, 1.442695
    %v4455 = vpow.pop %v4454
    %v4456 = vmul.f32 %v4434, 1.442695
    %v4457 = vpow.pop %v4456
    %v4458 = vmul.f32 %v4435, 1.442695
    %v4459 = vpow.pop %v4458
    %v4460 = vmul.f32 %v4436, 1.442695
    %v4461 = vpow.pop %v4460
    %v4462 = vmul.f32 %v4437, 1.442695
    %v4463 = vpow.pop %v4462
    %v4464 = vmul.f32 %v4438, 1.442695
    %v4465 = vpow.pop %v4464
    %v4466 = vmul.f32 %v4439, 1.442695
    %v4467 = vpow.pop %v4466
    %v4468 = vmul.f32 %v4440, 1.442695
    %v4469 = vpow.pop %v4468
    %v4470 = vmul.f32 %v4441, 1.442695
    %v4471 = vpow.pop %v4470
    %v4472 = vmul.f32 %v4442, 1.442695
    %v4473 = vpow.pop %v4472
    %v4474 = vmul.f32 %v4443, 1.442695
    %v4475 = vpow.pop %v4474
    %4477 = vset.pattern.permute.xlu0 6
    %4478 = vperm.xlu0 %4477, %v4412
    %v4479 = vpop.permute.xlu0 %4478
    %4482 = vset.pattern.permute.xlu0 6
    %4483 = vperm.xlu0 %4482, %v4413
    %v4484 = vpop.permute.xlu0 %4483
    %4487 = vset.pattern.permute.xlu0 6
    %4488 = vperm.xlu0 %4487, %v4414
    %v4489 = vpop.permute.xlu0 %4488
    %4492 = vset.pattern.permute.xlu0 6
    %4493 = vperm.xlu0 %4492, %v4415
    %v4494 = vpop.permute.xlu0 %4493
    %4497 = vset.pattern.permute.xlu0 6
    %4498 = vperm.xlu0 %4497, %v4416
    %v4499 = vpop.permute.xlu0 %4498
    %4502 = vset.pattern.permute.xlu0 6
    %4503 = vperm.xlu0 %4502, %v4417
    %v4504 = vpop.permute.xlu0 %4503
    %4507 = vset.pattern.permute.xlu0 6
    %4508 = vperm.xlu0 %4507, %v4418
    %v4509 = vpop.permute.xlu0 %4508
    %4512 = vset.pattern.permute.xlu0 6
    %4513 = vperm.xlu0 %4512, %v4419
    %v4514 = vpop.permute.xlu0 %4513
    %4517 = vset.pattern.permute.xlu0 6
    %4518 = vperm.xlu0 %4517, %v4420
    %v4519 = vpop.permute.xlu0 %4518
    %4522 = vset.pattern.permute.xlu0 6
    %4523 = vperm.xlu0 %4522, %v4421
    %v4524 = vpop.permute.xlu0 %4523
    %4527 = vset.pattern.permute.xlu0 6
    %4528 = vperm.xlu0 %4527, %v4422
    %v4529 = vpop.permute.xlu0 %4528
    %4532 = vset.pattern.permute.xlu0 6
    %4533 = vperm.xlu0 %4532, %v4423
    %v4534 = vpop.permute.xlu0 %4533
    %4537 = vset.pattern.permute.xlu0 6
    %4538 = vperm.xlu0 %4537, %v4424
    %v4539 = vpop.permute.xlu0 %4538
    %4542 = vset.pattern.permute.xlu0 6
    %4543 = vperm.xlu0 %4542, %v4425
    %v4544 = vpop.permute.xlu0 %4543
    %4547 = vset.pattern.permute.xlu0 6
    %4548 = vperm.xlu0 %4547, %v4426
    %v4549 = vpop.permute.xlu0 %4548
    %4552 = vset.pattern.permute.xlu0 6
    %4553 = vperm.xlu0 %4552, %v4427
    %v4554 = vpop.permute.xlu0 %4553
    %v4556 = vsub.f32 %v4364, %v4479
    %v4557 = vsub.f32 %v4365, %v4484
    %v4558 = vsub.f32 %v4366, %v4489
    %v4559 = vsub.f32 %v4367, %v4494
    %v4560 = vsub.f32 %v4368, %v4499
    %v4561 = vsub.f32 %v4369, %v4504
    %v4562 = vsub.f32 %v4370, %v4509
    %v4563 = vsub.f32 %v4371, %v4514
    %v4564 = vsub.f32 %v4372, %v4519
    %v4565 = vsub.f32 %v4373, %v4524
    %v4566 = vsub.f32 %v4374, %v4529
    %v4567 = vsub.f32 %v4375, %v4534
    %v4568 = vsub.f32 %v4376, %v4539
    %v4569 = vsub.f32 %v4377, %v4544
    %v4570 = vsub.f32 %v4378, %v4549
    %v4571 = vsub.f32 %v4379, %v4554
    %v4572 = vmul.f32 %v4556, 1.442695
    %v4573 = vpow.pop %v4572
    %v4574 = vmul.f32 %v4557, 1.442695
    %v4575 = vpow.pop %v4574
    %v4576 = vmul.f32 %v4558, 1.442695
    %v4577 = vpow.pop %v4576
    %v4578 = vmul.f32 %v4559, 1.442695
    %v4579 = vpow.pop %v4578
    %v4580 = vmul.f32 %v4560, 1.442695
    %v4581 = vpow.pop %v4580
    %v4582 = vmul.f32 %v4561, 1.442695
    %v4583 = vpow.pop %v4582
    %v4584 = vmul.f32 %v4562, 1.442695
    %v4585 = vpow.pop %v4584
    %v4586 = vmul.f32 %v4563, 1.442695
    %v4587 = vpow.pop %v4586
    %v4588 = vmul.f32 %v4564, 1.442695
    %v4589 = vpow.pop %v4588
    %v4590 = vmul.f32 %v4565, 1.442695
    %v4591 = vpow.pop %v4590
    %v4592 = vmul.f32 %v4566, 1.442695
    %v4593 = vpow.pop %v4592
    %v4594 = vmul.f32 %v4567, 1.442695
    %v4595 = vpow.pop %v4594
    %v4596 = vmul.f32 %v4568, 1.442695
    %v4597 = vpow.pop %v4596
    %v4598 = vmul.f32 %v4569, 1.442695
    %v4599 = vpow.pop %v4598
    %v4600 = vmul.f32 %v4570, 1.442695
    %v4601 = vpow.pop %v4600
    %v4602 = vmul.f32 %v4571, 1.442695
    %v4603 = vpow.pop %v4602
    %v4604 = vmul.f32 %v4573, %v568
    %v4605 = vmul.f32 %v4575, %v569
    %v4606 = vmul.f32 %v4577, %v570
    %v4607 = vmul.f32 %v4579, %v571
    %v4608 = vmul.f32 %v4581, %v572
    %v4609 = vmul.f32 %v4583, %v573
    %v4610 = vmul.f32 %v4585, %v574
    %v4611 = vmul.f32 %v4587, %v575
    %v4612 = vmul.f32 %v4589, %v576
    %v4613 = vmul.f32 %v4591, %v577
    %v4614 = vmul.f32 %v4593, %v578
    %v4615 = vmul.f32 %v4595, %v579
    %v4616 = vmul.f32 %v4597, %v580
    %v4617 = vmul.f32 %v4599, %v581
    %v4618 = vmul.f32 %v4601, %v582
    %v4619 = vmul.f32 %v4603, %v583
    %v4620 = vmul.f32 %v4445, %v199
    %v4621 = vmul.f32 %v4447, %v200
    %v4622 = vmul.f32 %v4449, %v201
    %v4623 = vmul.f32 %v4451, %v202
    %v4624 = vmul.f32 %v4453, %v203
    %v4625 = vmul.f32 %v4455, %v204
    %v4626 = vmul.f32 %v4457, %v205
    %v4627 = vmul.f32 %v4459, %v206
    %v4628 = vmul.f32 %v4461, %v207
    %v4629 = vmul.f32 %v4463, %v208
    %v4630 = vmul.f32 %v4465, %v209
    %v4631 = vmul.f32 %v4467, %v210
    %v4632 = vmul.f32 %v4469, %v211
    %v4633 = vmul.f32 %v4471, %v212
    %v4634 = vmul.f32 %v4473, %v213
    %v4635 = vmul.f32 %v4475, %v214
    %4636 = vadd.xlane.f32.xlu0 %v4604
    %v4637 = vpop.xlane.xlu0 %4636
    %4638 = vadd.xlane.f32.xlu0 %v4605
    %v4639 = vpop.xlane.xlu0 %4638
    %4640 = vadd.xlane.f32.xlu0 %v4606
    %v4641 = vpop.xlane.xlu0 %4640
    %4642 = vadd.xlane.f32.xlu0 %v4607
    %v4643 = vpop.xlane.xlu0 %4642
    %4644 = vadd.xlane.f32.xlu0 %v4608
    %v4645 = vpop.xlane.xlu0 %4644
    %4646 = vadd.xlane.f32.xlu0 %v4609
    %v4647 = vpop.xlane.xlu0 %4646
    %4648 = vadd.xlane.f32.xlu0 %v4610
    %v4649 = vpop.xlane.xlu0 %4648
    %4650 = vadd.xlane.f32.xlu0 %v4611
    %v4651 = vpop.xlane.xlu0 %4650
    %4652 = vadd.xlane.f32.xlu0 %v4612
    %v4653 = vpop.xlane.xlu0 %4652
    %4654 = vadd.xlane.f32.xlu0 %v4613
    %v4655 = vpop.xlane.xlu0 %4654
    %4656 = vadd.xlane.f32.xlu0 %v4614
    %v4657 = vpop.xlane.xlu0 %4656
    %4658 = vadd.xlane.f32.xlu0 %v4615
    %v4659 = vpop.xlane.xlu0 %4658
    %4660 = vadd.xlane.f32.xlu0 %v4616
    %v4661 = vpop.xlane.xlu0 %4660
    %4662 = vadd.xlane.f32.xlu0 %v4617
    %v4663 = vpop.xlane.xlu0 %4662
    %4664 = vadd.xlane.f32.xlu0 %v4618
    %v4665 = vpop.xlane.xlu0 %4664
    %4666 = vadd.xlane.f32.xlu0 %v4619
    %v4667 = vpop.xlane.xlu0 %4666
    %v4668 = vadd.f32 %v4620, %v4637
    %v4669 = vadd.f32 %v4621, %v4639
    %v4670 = vadd.f32 %v4622, %v4641
    %v4671 = vadd.f32 %v4623, %v4643
    %v4672 = vadd.f32 %v4624, %v4645
    %v4673 = vadd.f32 %v4625, %v4647
    %v4674 = vadd.f32 %v4626, %v4649
    %v4675 = vadd.f32 %v4627, %v4651
    %v4676 = vadd.f32 %v4628, %v4653
    %v4677 = vadd.f32 %v4629, %v4655
    %v4678 = vadd.f32 %v4630, %v4657
    %v4679 = vadd.f32 %v4631, %v4659
    %v4680 = vadd.f32 %v4632, %v4661
    %v4681 = vadd.f32 %v4633, %v4663
    %v4682 = vadd.f32 %v4634, %v4665
    %v4683 = vadd.f32 %v4635, %v4667
    %v4684 = vpack.c.bf16 %v4605, %v4604
    %v4685 = vpack.c.bf16 %v4607, %v4606
    %v4686 = vpack.c.bf16 %v4609, %v4608
    %v4687 = vpack.c.bf16 %v4611, %v4610
    %v4688 = vpack.c.bf16 %v4613, %v4612
    %v4689 = vpack.c.bf16 %v4615, %v4614
    %v4690 = vpack.c.bf16 %v4617, %v4616
    %v4691 = vpack.c.bf16 %v4619, %v4618
    %4692 = vrot.lane.b32.xlu0 %v704, 80
    %v4693 = vpop.permute.xlu0 %4692
    %4694 = vrot.lane.b32.xlu0 %v705, 80
    %v4695 = vpop.permute.xlu0 %4694
    %4696 = vrot.lane.b32.xlu0 %v706, 80
    %v4697 = vpop.permute.xlu0 %4696
    %4698 = vrot.lane.b32.xlu0 %v707, 80
    %v4699 = vpop.permute.xlu0 %4698
    %4700 = vrot.lane.b32.xlu0 %v708, 80
    %v4701 = vpop.permute.xlu0 %4700
    %4702 = vrot.lane.b32.xlu0 %v709, 80
    %v4703 = vpop.permute.xlu0 %4702
    %4704 = vrot.lane.b32.xlu0 %v710, 80
    %v4705 = vpop.permute.xlu0 %4704
    %4706 = vrot.lane.b32.xlu0 %v711, 80
    %v4707 = vpop.permute.xlu0 %4706
    %4716 = vmatpush.bf16.msra.mxu0 %v4707
    %4717 = vmatpush.bf16.msra.mxu0 %v4705
    %4718 = vmatpush.bf16.msra.mxu0 %v4703
    %4719 = vmatpush.bf16.msra.mxu0 %v4701
    %4720 = vmatpush.bf16.msra.mxu0 %v4699
    %4721 = vmatpush.bf16.msra.mxu0 %v4697
    %4722 = vmatpush.bf16.msra.mxu0 %v4695
    %4723 = vmatpush.bf16.msra.mxu0 %v4693
    %4724 = vmatmul.bf16.gmra.mxu0 %v4684
    %v4725 = vpop.f32.mrf.mxu0
    %v4726 = vadd.f32 0.0, %v4725
    %v4727 = vpop.f32.mrf.mxu0
    %v4728 = vadd.f32 0.0, %v4727
    %4729 = vmatmul.bf16.gmra.mxu0 %v4685
    %v4730 = vpop.f32.mrf.mxu0
    %v4731 = vadd.f32 0.0, %v4730
    %v4732 = vpop.f32.mrf.mxu0
    %v4733 = vadd.f32 0.0, %v4732
    %4734 = vmatmul.bf16.gmra.mxu0 %v4686
    %v4735 = vpop.f32.mrf.mxu0
    %v4736 = vadd.f32 0.0, %v4735
    %v4737 = vpop.f32.mrf.mxu0
    %v4738 = vadd.f32 0.0, %v4737
    %4739 = vmatmul.bf16.gmra.mxu0 %v4687
    %v4740 = vpop.f32.mrf.mxu0
    %v4741 = vadd.f32 0.0, %v4740
    %v4742 = vpop.f32.mrf.mxu0
    %v4743 = vadd.f32 0.0, %v4742
    %4744 = vmatmul.bf16.gmra.mxu0 %v4688
    %v4745 = vpop.f32.mrf.mxu0
    %v4746 = vadd.f32 0.0, %v4745
    %v4747 = vpop.f32.mrf.mxu0
    %v4748 = vadd.f32 0.0, %v4747
    %4749 = vmatmul.bf16.gmra.mxu0 %v4689
    %v4750 = vpop.f32.mrf.mxu0
    %v4751 = vadd.f32 0.0, %v4750
    %v4752 = vpop.f32.mrf.mxu0
    %v4753 = vadd.f32 0.0, %v4752
    %4754 = vmatmul.bf16.gmra.mxu0 %v4690
    %v4755 = vpop.f32.mrf.mxu0
    %v4756 = vadd.f32 0.0, %v4755
    %v4757 = vpop.f32.mrf.mxu0
    %v4758 = vadd.f32 0.0, %v4757
    %4759 = vmatmul.bf16.gmra.mxu0 %v4691
    %v4760 = vpop.f32.mrf.mxu0
    %v4761 = vadd.f32 0.0, %v4760
    %v4762 = vpop.f32.mrf.mxu0
    %v4763 = vadd.f32 0.0, %v4762
    %4764 = vdwg.mxu0
    %4766 = vset.pattern.permute.xlu0 6
    %4767 = vperm.xlu0 %4766, %v4445
    %v4768 = vpop.permute.xlu0 %4767
    %4771 = vset.pattern.permute.xlu0 6
    %4772 = vperm.xlu0 %4771, %v4447
    %v4773 = vpop.permute.xlu0 %4772
    %4776 = vset.pattern.permute.xlu0 6
    %4777 = vperm.xlu0 %4776, %v4449
    %v4778 = vpop.permute.xlu0 %4777
    %4781 = vset.pattern.permute.xlu0 6
    %4782 = vperm.xlu0 %4781, %v4451
    %v4783 = vpop.permute.xlu0 %4782
    %4786 = vset.pattern.permute.xlu0 6
    %4787 = vperm.xlu0 %4786, %v4453
    %v4788 = vpop.permute.xlu0 %4787
    %4791 = vset.pattern.permute.xlu0 6
    %4792 = vperm.xlu0 %4791, %v4455
    %v4793 = vpop.permute.xlu0 %4792
    %4796 = vset.pattern.permute.xlu0 6
    %4797 = vperm.xlu0 %4796, %v4457
    %v4798 = vpop.permute.xlu0 %4797
    %4801 = vset.pattern.permute.xlu0 6
    %4802 = vperm.xlu0 %4801, %v4459
    %v4803 = vpop.permute.xlu0 %4802
    %4806 = vset.pattern.permute.xlu0 6
    %4807 = vperm.xlu0 %4806, %v4461
    %v4808 = vpop.permute.xlu0 %4807
    %4811 = vset.pattern.permute.xlu0 6
    %4812 = vperm.xlu0 %4811, %v4463
    %v4813 = vpop.permute.xlu0 %4812
    %4816 = vset.pattern.permute.xlu0 6
    %4817 = vperm.xlu0 %4816, %v4465
    %v4818 = vpop.permute.xlu0 %4817
    %4821 = vset.pattern.permute.xlu0 6
    %4822 = vperm.xlu0 %4821, %v4467
    %v4823 = vpop.permute.xlu0 %4822
    %4826 = vset.pattern.permute.xlu0 6
    %4827 = vperm.xlu0 %4826, %v4469
    %v4828 = vpop.permute.xlu0 %4827
    %4831 = vset.pattern.permute.xlu0 6
    %4832 = vperm.xlu0 %4831, %v4471
    %v4833 = vpop.permute.xlu0 %4832
    %4836 = vset.pattern.permute.xlu0 6
    %4837 = vperm.xlu0 %4836, %v4473
    %v4838 = vpop.permute.xlu0 %4837
    %4841 = vset.pattern.permute.xlu0 6
    %4842 = vperm.xlu0 %4841, %v4475
    %v4843 = vpop.permute.xlu0 %4842
    %v4845 = vmul.f32 %v4768, %v769
    %v4846 = vmul.f32 %v4773, %v770
    %v4847 = vmul.f32 %v4778, %v771
    %v4848 = vmul.f32 %v4783, %v772
    %v4849 = vmul.f32 %v4788, %v773
    %v4850 = vmul.f32 %v4793, %v774
    %v4851 = vmul.f32 %v4798, %v775
    %v4852 = vmul.f32 %v4803, %v776
    %v4853 = vmul.f32 %v4808, %v777
    %v4854 = vmul.f32 %v4813, %v778
    %v4855 = vmul.f32 %v4818, %v779
    %v4856 = vmul.f32 %v4823, %v780
    %v4857 = vmul.f32 %v4828, %v781
    %v4858 = vmul.f32 %v4833, %v782
    %v4859 = vmul.f32 %v4838, %v783
    %v4860 = vmul.f32 %v4843, %v784
    %4877 = vrot.lane.b32.xlu0 %v4726, 48
    %v4878 = vpop.permute.xlu0 %4877
    %4879 = vrot.lane.b32.xlu0 %v4728, 48
    %v4880 = vpop.permute.xlu0 %4879
    %4881 = vrot.lane.b32.xlu0 %v4731, 48
    %v4882 = vpop.permute.xlu0 %4881
    %4883 = vrot.lane.b32.xlu0 %v4733, 48
    %v4884 = vpop.permute.xlu0 %4883
    %4885 = vrot.lane.b32.xlu0 %v4736, 48
    %v4886 = vpop.permute.xlu0 %4885
    %4887 = vrot.lane.b32.xlu0 %v4738, 48
    %v4888 = vpop.permute.xlu0 %4887
    %4889 = vrot.lane.b32.xlu0 %v4741, 48
    %v4890 = vpop.permute.xlu0 %4889
    %4891 = vrot.lane.b32.xlu0 %v4743, 48
    %v4892 = vpop.permute.xlu0 %4891
    %4893 = vrot.lane.b32.xlu0 %v4746, 48
    %v4894 = vpop.permute.xlu0 %4893
    %4895 = vrot.lane.b32.xlu0 %v4748, 48
    %v4896 = vpop.permute.xlu0 %4895
    %4897 = vrot.lane.b32.xlu0 %v4751, 48
    %v4898 = vpop.permute.xlu0 %4897
    %4899 = vrot.lane.b32.xlu0 %v4753, 48
    %v4900 = vpop.permute.xlu0 %4899
    %4901 = vrot.lane.b32.xlu0 %v4756, 48
    %v4902 = vpop.permute.xlu0 %4901
    %4903 = vrot.lane.b32.xlu0 %v4758, 48
    %v4904 = vpop.permute.xlu0 %4903
    %4905 = vrot.lane.b32.xlu0 %v4761, 48
    %v4906 = vpop.permute.xlu0 %4905
    %4907 = vrot.lane.b32.xlu0 %v4763, 48
    %v4908 = vpop.permute.xlu0 %4907
    %v4925 = vadd.f32 %v4845, %v4878
    %v4926 = vadd.f32 %v4846, %v4880
    %v4927 = vadd.f32 %v4847, %v4882
    %v4928 = vadd.f32 %v4848, %v4884
    %v4929 = vadd.f32 %v4849, %v4886
    %v4930 = vadd.f32 %v4850, %v4888
    %v4931 = vadd.f32 %v4851, %v4890
    %v4932 = vadd.f32 %v4852, %v4892
    %v4933 = vadd.f32 %v4853, %v4894
    %v4934 = vadd.f32 %v4854, %v4896
    %v4935 = vadd.f32 %v4855, %v4898
    %v4936 = vadd.f32 %v4856, %v4900
    %v4937 = vadd.f32 %v4857, %v4902
    %v4938 = vadd.f32 %v4858, %v4904
    %v4939 = vadd.f32 %v4859, %v4906
    %v4940 = vadd.f32 %v4860, %v4908
    %4941 = vset.pattern.permute.xlu0 7
    %4942 = vperm.xlu0 %4941, %v127
    %v4943 = vpop.permute.xlu0 %4942
    %4945 = vset.pattern.permute.xlu0 7
    %4946 = vperm.xlu0 %4945, %v128
    %v4947 = vpop.permute.xlu0 %4946
    %4949 = vset.pattern.permute.xlu0 7
    %4950 = vperm.xlu0 %4949, %v129
    %v4951 = vpop.permute.xlu0 %4950
    %4953 = vset.pattern.permute.xlu0 7
    %4954 = vperm.xlu0 %4953, %v130
    %v4955 = vpop.permute.xlu0 %4954
    %4957 = vset.pattern.permute.xlu0 7
    %4958 = vperm.xlu0 %4957, %v131
    %v4959 = vpop.permute.xlu0 %4958
    %4961 = vset.pattern.permute.xlu0 7
    %4962 = vperm.xlu0 %4961, %v132
    %v4963 = vpop.permute.xlu0 %4962
    %4965 = vset.pattern.permute.xlu0 7
    %4966 = vperm.xlu0 %4965, %v133
    %v4967 = vpop.permute.xlu0 %4966
    %4969 = vset.pattern.permute.xlu0 7
    %4970 = vperm.xlu0 %4969, %v134
    %v4971 = vpop.permute.xlu0 %4970
    %4973 = vset.pattern.permute.xlu0 7
    %4974 = vperm.xlu0 %4973, %v135
    %v4975 = vpop.permute.xlu0 %4974
    %4977 = vset.pattern.permute.xlu0 7
    %4978 = vperm.xlu0 %4977, %v136
    %v4979 = vpop.permute.xlu0 %4978
    %4981 = vset.pattern.permute.xlu0 7
    %4982 = vperm.xlu0 %4981, %v137
    %v4983 = vpop.permute.xlu0 %4982
    %4985 = vset.pattern.permute.xlu0 7
    %4986 = vperm.xlu0 %4985, %v138
    %v4987 = vpop.permute.xlu0 %4986
    %4989 = vset.pattern.permute.xlu0 7
    %4990 = vperm.xlu0 %4989, %v139
    %v4991 = vpop.permute.xlu0 %4990
    %4993 = vset.pattern.permute.xlu0 7
    %4994 = vperm.xlu0 %4993, %v140
    %v4995 = vpop.permute.xlu0 %4994
    %4997 = vset.pattern.permute.xlu0 7
    %4998 = vperm.xlu0 %4997, %v141
    %v4999 = vpop.permute.xlu0 %4998
    %5001 = vset.pattern.permute.xlu0 7
    %5002 = vperm.xlu0 %5001, %v142
    %v5003 = vpop.permute.xlu0 %5002
    %v5005 = vperm.slane %v146, 7
    %v5006 = vadd.f32 %v4943, %v5005
    %v5007 = vadd.f32 %v4947, %v5005
    %v5008 = vadd.f32 %v4951, %v5005
    %v5009 = vadd.f32 %v4955, %v5005
    %v5010 = vadd.f32 %v4959, %v5005
    %v5011 = vadd.f32 %v4963, %v5005
    %v5012 = vadd.f32 %v4967, %v5005
    %v5013 = vadd.f32 %v4971, %v5005
    %v5014 = vadd.f32 %v4975, %v5005
    %v5015 = vadd.f32 %v4979, %v5005
    %v5016 = vadd.f32 %v4983, %v5005
    %v5017 = vadd.f32 %v4987, %v5005
    %v5018 = vadd.f32 %v4991, %v5005
    %v5019 = vadd.f32 %v4995, %v5005
    %v5020 = vadd.f32 %v4999, %v5005
    %v5021 = vadd.f32 %v5003, %v5005
    %v5022 = vmul.f32 %v5006, 0.2
    %v5023 = vmul.f32 %v5007, 0.2
    %v5024 = vmul.f32 %v5008, 0.2
    %v5025 = vmul.f32 %v5009, 0.2
    %v5026 = vmul.f32 %v5010, 0.2
    %v5027 = vmul.f32 %v5011, 0.2
    %v5028 = vmul.f32 %v5012, 0.2
    %v5029 = vmul.f32 %v5013, 0.2
    %v5030 = vmul.f32 %v5014, 0.2
    %v5031 = vmul.f32 %v5015, 0.2
    %v5032 = vmul.f32 %v5016, 0.2
    %v5033 = vmul.f32 %v5017, 0.2
    %v5034 = vmul.f32 %v5018, 0.2
    %v5035 = vmul.f32 %v5019, 0.2
    %v5036 = vmul.f32 %v5020, 0.2
    %v5037 = vmul.f32 %v5021, 0.2
    %v5038 = vmax.f32 %v5006, %v5022
    %v5039 = vmax.f32 %v5007, %v5023
    %v5040 = vmax.f32 %v5008, %v5024
    %v5041 = vmax.f32 %v5009, %v5025
    %v5042 = vmax.f32 %v5010, %v5026
    %v5043 = vmax.f32 %v5011, %v5027
    %v5044 = vmax.f32 %v5012, %v5028
    %v5045 = vmax.f32 %v5013, %v5029
    %v5046 = vmax.f32 %v5014, %v5030
    %v5047 = vmax.f32 %v5015, %v5031
    %v5048 = vmax.f32 %v5016, %v5032
    %v5049 = vmax.f32 %v5017, %v5033
    %v5050 = vmax.f32 %v5018, %v5034
    %v5051 = vmax.f32 %v5019, %v5035
    %v5052 = vmax.f32 %v5020, %v5036
    %v5053 = vmax.f32 %v5021, %v5037
    %5054 = vmax.xlane.f32.xlu0 %v5038
    %v5055 = vpop.xlane.xlu0 %5054
    %5056 = vmax.xlane.f32.xlu0 %v5039
    %v5057 = vpop.xlane.xlu0 %5056
    %5058 = vmax.xlane.f32.xlu0 %v5040
    %v5059 = vpop.xlane.xlu0 %5058
    %5060 = vmax.xlane.f32.xlu0 %v5041
    %v5061 = vpop.xlane.xlu0 %5060
    %5062 = vmax.xlane.f32.xlu0 %v5042
    %v5063 = vpop.xlane.xlu0 %5062
    %5064 = vmax.xlane.f32.xlu0 %v5043
    %v5065 = vpop.xlane.xlu0 %5064
    %5066 = vmax.xlane.f32.xlu0 %v5044
    %v5067 = vpop.xlane.xlu0 %5066
    %5068 = vmax.xlane.f32.xlu0 %v5045
    %v5069 = vpop.xlane.xlu0 %5068
    %5070 = vmax.xlane.f32.xlu0 %v5046
    %v5071 = vpop.xlane.xlu0 %5070
    %5072 = vmax.xlane.f32.xlu0 %v5047
    %v5073 = vpop.xlane.xlu0 %5072
    %5074 = vmax.xlane.f32.xlu0 %v5048
    %v5075 = vpop.xlane.xlu0 %5074
    %5076 = vmax.xlane.f32.xlu0 %v5049
    %v5077 = vpop.xlane.xlu0 %5076
    %5078 = vmax.xlane.f32.xlu0 %v5050
    %v5079 = vpop.xlane.xlu0 %5078
    %5080 = vmax.xlane.f32.xlu0 %v5051
    %v5081 = vpop.xlane.xlu0 %5080
    %5082 = vmax.xlane.f32.xlu0 %v5052
    %v5083 = vpop.xlane.xlu0 %5082
    %5084 = vmax.xlane.f32.xlu0 %v5053
    %v5085 = vpop.xlane.xlu0 %5084
    %v5086 = vmax.f32 %v183, %v5055
    %v5087 = vmax.f32 %v184, %v5057
    %v5088 = vmax.f32 %v185, %v5059
    %v5089 = vmax.f32 %v186, %v5061
    %v5090 = vmax.f32 %v187, %v5063
    %v5091 = vmax.f32 %v188, %v5065
    %v5092 = vmax.f32 %v189, %v5067
    %v5093 = vmax.f32 %v190, %v5069
    %v5094 = vmax.f32 %v191, %v5071
    %v5095 = vmax.f32 %v192, %v5073
    %v5096 = vmax.f32 %v193, %v5075
    %v5097 = vmax.f32 %v194, %v5077
    %v5098 = vmax.f32 %v195, %v5079
    %v5099 = vmax.f32 %v196, %v5081
    %v5100 = vmax.f32 %v197, %v5083
    %v5101 = vmax.f32 %v198, %v5085
    %v5102 = vsub.f32 %v183, %v5086
    %v5103 = vsub.f32 %v184, %v5087
    %v5104 = vsub.f32 %v185, %v5088
    %v5105 = vsub.f32 %v186, %v5089
    %v5106 = vsub.f32 %v187, %v5090
    %v5107 = vsub.f32 %v188, %v5091
    %v5108 = vsub.f32 %v189, %v5092
    %v5109 = vsub.f32 %v190, %v5093
    %v5110 = vsub.f32 %v191, %v5094
    %v5111 = vsub.f32 %v192, %v5095
    %v5112 = vsub.f32 %v193, %v5096
    %v5113 = vsub.f32 %v194, %v5097
    %v5114 = vsub.f32 %v195, %v5098
    %v5115 = vsub.f32 %v196, %v5099
    %v5116 = vsub.f32 %v197, %v5100
    %v5117 = vsub.f32 %v198, %v5101
    %v5118 = vmul.f32 %v5102, 1.442695
    %v5119 = vpow.pop %v5118
    %v5120 = vmul.f32 %v5103, 1.442695
    %v5121 = vpow.pop %v5120
    %v5122 = vmul.f32 %v5104, 1.442695
    %v5123 = vpow.pop %v5122
    %v5124 = vmul.f32 %v5105, 1.442695
    %v5125 = vpow.pop %v5124
    %v5126 = vmul.f32 %v5106, 1.442695
    %v5127 = vpow.pop %v5126
    %v5128 = vmul.f32 %v5107, 1.442695
    %v5129 = vpow.pop %v5128
    %v5130 = vmul.f32 %v5108, 1.442695
    %v5131 = vpow.pop %v5130
    %v5132 = vmul.f32 %v5109, 1.442695
    %v5133 = vpow.pop %v5132
    %v5134 = vmul.f32 %v5110, 1.442695
    %v5135 = vpow.pop %v5134
    %v5136 = vmul.f32 %v5111, 1.442695
    %v5137 = vpow.pop %v5136
    %v5138 = vmul.f32 %v5112, 1.442695
    %v5139 = vpow.pop %v5138
    %v5140 = vmul.f32 %v5113, 1.442695
    %v5141 = vpow.pop %v5140
    %v5142 = vmul.f32 %v5114, 1.442695
    %v5143 = vpow.pop %v5142
    %v5144 = vmul.f32 %v5115, 1.442695
    %v5145 = vpow.pop %v5144
    %v5146 = vmul.f32 %v5116, 1.442695
    %v5147 = vpow.pop %v5146
    %v5148 = vmul.f32 %v5117, 1.442695
    %v5149 = vpow.pop %v5148
    %5151 = vset.pattern.permute.xlu0 7
    %5152 = vperm.xlu0 %5151, %v5086
    %v5153 = vpop.permute.xlu0 %5152
    %5156 = vset.pattern.permute.xlu0 7
    %5157 = vperm.xlu0 %5156, %v5087
    %v5158 = vpop.permute.xlu0 %5157
    %5161 = vset.pattern.permute.xlu0 7
    %5162 = vperm.xlu0 %5161, %v5088
    %v5163 = vpop.permute.xlu0 %5162
    %5166 = vset.pattern.permute.xlu0 7
    %5167 = vperm.xlu0 %5166, %v5089
    %v5168 = vpop.permute.xlu0 %5167
    %5171 = vset.pattern.permute.xlu0 7
    %5172 = vperm.xlu0 %5171, %v5090
    %v5173 = vpop.permute.xlu0 %5172
    %5176 = vset.pattern.permute.xlu0 7
    %5177 = vperm.xlu0 %5176, %v5091
    %v5178 = vpop.permute.xlu0 %5177
    %5181 = vset.pattern.permute.xlu0 7
    %5182 = vperm.xlu0 %5181, %v5092
    %v5183 = vpop.permute.xlu0 %5182
    %5186 = vset.pattern.permute.xlu0 7
    %5187 = vperm.xlu0 %5186, %v5093
    %v5188 = vpop.permute.xlu0 %5187
    %5191 = vset.pattern.permute.xlu0 7
    %5192 = vperm.xlu0 %5191, %v5094
    %v5193 = vpop.permute.xlu0 %5192
    %5196 = vset.pattern.permute.xlu0 7
    %5197 = vperm.xlu0 %5196, %v5095
    %v5198 = vpop.permute.xlu0 %5197
    %5201 = vset.pattern.permute.xlu0 7
    %5202 = vperm.xlu0 %5201, %v5096
    %v5203 = vpop.permute.xlu0 %5202
    %5206 = vset.pattern.permute.xlu0 7
    %5207 = vperm.xlu0 %5206, %v5097
    %v5208 = vpop.permute.xlu0 %5207
    %5211 = vset.pattern.permute.xlu0 7
    %5212 = vperm.xlu0 %5211, %v5098
    %v5213 = vpop.permute.xlu0 %5212
    %5216 = vset.pattern.permute.xlu0 7
    %5217 = vperm.xlu0 %5216, %v5099
    %v5218 = vpop.permute.xlu0 %5217
    %5221 = vset.pattern.permute.xlu0 7
    %5222 = vperm.xlu0 %5221, %v5100
    %v5223 = vpop.permute.xlu0 %5222
    %5226 = vset.pattern.permute.xlu0 7
    %5227 = vperm.xlu0 %5226, %v5101
    %v5228 = vpop.permute.xlu0 %5227
    %v5230 = vsub.f32 %v5038, %v5153
    %v5231 = vsub.f32 %v5039, %v5158
    %v5232 = vsub.f32 %v5040, %v5163
    %v5233 = vsub.f32 %v5041, %v5168
    %v5234 = vsub.f32 %v5042, %v5173
    %v5235 = vsub.f32 %v5043, %v5178
    %v5236 = vsub.f32 %v5044, %v5183
    %v5237 = vsub.f32 %v5045, %v5188
    %v5238 = vsub.f32 %v5046, %v5193
    %v5239 = vsub.f32 %v5047, %v5198
    %v5240 = vsub.f32 %v5048, %v5203
    %v5241 = vsub.f32 %v5049, %v5208
    %v5242 = vsub.f32 %v5050, %v5213
    %v5243 = vsub.f32 %v5051, %v5218
    %v5244 = vsub.f32 %v5052, %v5223
    %v5245 = vsub.f32 %v5053, %v5228
    %v5246 = vmul.f32 %v5230, 1.442695
    %v5247 = vpow.pop %v5246
    %v5248 = vmul.f32 %v5231, 1.442695
    %v5249 = vpow.pop %v5248
    %v5250 = vmul.f32 %v5232, 1.442695
    %v5251 = vpow.pop %v5250
    %v5252 = vmul.f32 %v5233, 1.442695
    %v5253 = vpow.pop %v5252
    %v5254 = vmul.f32 %v5234, 1.442695
    %v5255 = vpow.pop %v5254
    %v5256 = vmul.f32 %v5235, 1.442695
    %v5257 = vpow.pop %v5256
    %v5258 = vmul.f32 %v5236, 1.442695
    %v5259 = vpow.pop %v5258
    %v5260 = vmul.f32 %v5237, 1.442695
    %v5261 = vpow.pop %v5260
    %v5262 = vmul.f32 %v5238, 1.442695
    %v5263 = vpow.pop %v5262
    %v5264 = vmul.f32 %v5239, 1.442695
    %v5265 = vpow.pop %v5264
    %v5266 = vmul.f32 %v5240, 1.442695
    %v5267 = vpow.pop %v5266
    %v5268 = vmul.f32 %v5241, 1.442695
    %v5269 = vpow.pop %v5268
    %v5270 = vmul.f32 %v5242, 1.442695
    %v5271 = vpow.pop %v5270
    %v5272 = vmul.f32 %v5243, 1.442695
    %v5273 = vpow.pop %v5272
    %v5274 = vmul.f32 %v5244, 1.442695
    %v5275 = vpow.pop %v5274
    %v5276 = vmul.f32 %v5245, 1.442695
    %v5277 = vpow.pop %v5276
    %v5278 = vmul.f32 %v5247, %v568
    %v5279 = vmul.f32 %v5249, %v569
    %v5280 = vmul.f32 %v5251, %v570
    %v5281 = vmul.f32 %v5253, %v571
    %v5282 = vmul.f32 %v5255, %v572
    %v5283 = vmul.f32 %v5257, %v573
    %v5284 = vmul.f32 %v5259, %v574
    %v5285 = vmul.f32 %v5261, %v575
    %v5286 = vmul.f32 %v5263, %v576
    %v5287 = vmul.f32 %v5265, %v577
    %v5288 = vmul.f32 %v5267, %v578
    %v5289 = vmul.f32 %v5269, %v579
    %v5290 = vmul.f32 %v5271, %v580
    %v5291 = vmul.f32 %v5273, %v581
    %v5292 = vmul.f32 %v5275, %v582
    %v5293 = vmul.f32 %v5277, %v583
    %v5294 = vmul.f32 %v5119, %v199
    %v5295 = vmul.f32 %v5121, %v200
    %v5296 = vmul.f32 %v5123, %v201
    %v5297 = vmul.f32 %v5125, %v202
    %v5298 = vmul.f32 %v5127, %v203
    %v5299 = vmul.f32 %v5129, %v204
    %v5300 = vmul.f32 %v5131, %v205
    %v5301 = vmul.f32 %v5133, %v206
    %v5302 = vmul.f32 %v5135, %v207
    %v5303 = vmul.f32 %v5137, %v208
    %v5304 = vmul.f32 %v5139, %v209
    %v5305 = vmul.f32 %v5141, %v210
    %v5306 = vmul.f32 %v5143, %v211
    %v5307 = vmul.f32 %v5145, %v212
    %v5308 = vmul.f32 %v5147, %v213
    %v5309 = vmul.f32 %v5149, %v214
    %5310 = vadd.xlane.f32.xlu0 %v5278
    %v5311 = vpop.xlane.xlu0 %5310
    %5312 = vadd.xlane.f32.xlu0 %v5279
    %v5313 = vpop.xlane.xlu0 %5312
    %5314 = vadd.xlane.f32.xlu0 %v5280
    %v5315 = vpop.xlane.xlu0 %5314
    %5316 = vadd.xlane.f32.xlu0 %v5281
    %v5317 = vpop.xlane.xlu0 %5316
    %5318 = vadd.xlane.f32.xlu0 %v5282
    %v5319 = vpop.xlane.xlu0 %5318
    %5320 = vadd.xlane.f32.xlu0 %v5283
    %v5321 = vpop.xlane.xlu0 %5320
    %5322 = vadd.xlane.f32.xlu0 %v5284
    %v5323 = vpop.xlane.xlu0 %5322
    %5324 = vadd.xlane.f32.xlu0 %v5285
    %v5325 = vpop.xlane.xlu0 %5324
    %5326 = vadd.xlane.f32.xlu0 %v5286
    %v5327 = vpop.xlane.xlu0 %5326
    %5328 = vadd.xlane.f32.xlu0 %v5287
    %v5329 = vpop.xlane.xlu0 %5328
    %5330 = vadd.xlane.f32.xlu0 %v5288
    %v5331 = vpop.xlane.xlu0 %5330
    %5332 = vadd.xlane.f32.xlu0 %v5289
    %v5333 = vpop.xlane.xlu0 %5332
    %5334 = vadd.xlane.f32.xlu0 %v5290
    %v5335 = vpop.xlane.xlu0 %5334
    %5336 = vadd.xlane.f32.xlu0 %v5291
    %v5337 = vpop.xlane.xlu0 %5336
    %5338 = vadd.xlane.f32.xlu0 %v5292
    %v5339 = vpop.xlane.xlu0 %5338
    %5340 = vadd.xlane.f32.xlu0 %v5293
    %v5341 = vpop.xlane.xlu0 %5340
    %v5342 = vadd.f32 %v5294, %v5311
    %v5343 = vadd.f32 %v5295, %v5313
    %v5344 = vadd.f32 %v5296, %v5315
    %v5345 = vadd.f32 %v5297, %v5317
    %v5346 = vadd.f32 %v5298, %v5319
    %v5347 = vadd.f32 %v5299, %v5321
    %v5348 = vadd.f32 %v5300, %v5323
    %v5349 = vadd.f32 %v5301, %v5325
    %v5350 = vadd.f32 %v5302, %v5327
    %v5351 = vadd.f32 %v5303, %v5329
    %v5352 = vadd.f32 %v5304, %v5331
    %v5353 = vadd.f32 %v5305, %v5333
    %v5354 = vadd.f32 %v5306, %v5335
    %v5355 = vadd.f32 %v5307, %v5337
    %v5356 = vadd.f32 %v5308, %v5339
    %v5357 = vadd.f32 %v5309, %v5341
    %v5358 = vpack.c.bf16 %v5279, %v5278
    %v5359 = vpack.c.bf16 %v5281, %v5280
    %v5360 = vpack.c.bf16 %v5283, %v5282
    %v5361 = vpack.c.bf16 %v5285, %v5284
    %v5362 = vpack.c.bf16 %v5287, %v5286
    %v5363 = vpack.c.bf16 %v5289, %v5288
    %v5364 = vpack.c.bf16 %v5291, %v5290
    %v5365 = vpack.c.bf16 %v5293, %v5292
    %5366 = vrot.lane.b32.xlu0 %v704, 72
    %v5367 = vpop.permute.xlu0 %5366
    %5368 = vrot.lane.b32.xlu0 %v705, 72
    %v5369 = vpop.permute.xlu0 %5368
    %5370 = vrot.lane.b32.xlu0 %v706, 72
    %v5371 = vpop.permute.xlu0 %5370
    %5372 = vrot.lane.b32.xlu0 %v707, 72
    %v5373 = vpop.permute.xlu0 %5372
    %5374 = vrot.lane.b32.xlu0 %v708, 72
    %v5375 = vpop.permute.xlu0 %5374
    %5376 = vrot.lane.b32.xlu0 %v709, 72
    %v5377 = vpop.permute.xlu0 %5376
    %5378 = vrot.lane.b32.xlu0 %v710, 72
    %v5379 = vpop.permute.xlu0 %5378
    %5380 = vrot.lane.b32.xlu0 %v711, 72
    %v5381 = vpop.permute.xlu0 %5380
    %5390 = vmatpush.bf16.msra.mxu0 %v5381
    %5391 = vmatpush.bf16.msra.mxu0 %v5379
    %5392 = vmatpush.bf16.msra.mxu0 %v5377
    %5393 = vmatpush.bf16.msra.mxu0 %v5375
    %5394 = vmatpush.bf16.msra.mxu0 %v5373
    %5395 = vmatpush.bf16.msra.mxu0 %v5371
    %5396 = vmatpush.bf16.msra.mxu0 %v5369
    %5397 = vmatpush.bf16.msra.mxu0 %v5367
    %5398 = vmatmul.bf16.gmra.mxu0 %v5358
    %v5399 = vpop.f32.mrf.mxu0
    %v5400 = vadd.f32 0.0, %v5399
    %v5401 = vpop.f32.mrf.mxu0
    %v5402 = vadd.f32 0.0, %v5401
    %5403 = vmatmul.bf16.gmra.mxu0 %v5359
    %v5404 = vpop.f32.mrf.mxu0
    %v5405 = vadd.f32 0.0, %v5404
    %v5406 = vpop.f32.mrf.mxu0
    %v5407 = vadd.f32 0.0, %v5406
    %5408 = vmatmul.bf16.gmra.mxu0 %v5360
    %v5409 = vpop.f32.mrf.mxu0
    %v5410 = vadd.f32 0.0, %v5409
    %v5411 = vpop.f32.mrf.mxu0
    %v5412 = vadd.f32 0.0, %v5411
    %5413 = vmatmul.bf16.gmra.mxu0 %v5361
    %v5414 = vpop.f32.mrf.mxu0
    %v5415 = vadd.f32 0.0, %v5414
    %v5416 = vpop.f32.mrf.mxu0
    %v5417 = vadd.f32 0.0, %v5416
    %5418 = vmatmul.bf16.gmra.mxu0 %v5362
    %v5419 = vpop.f32.mrf.mxu0
    %v5420 = vadd.f32 0.0, %v5419
    %v5421 = vpop.f32.mrf.mxu0
    %v5422 = vadd.f32 0.0, %v5421
    %5423 = vmatmul.bf16.gmra.mxu0 %v5363
    %v5424 = vpop.f32.mrf.mxu0
    %v5425 = vadd.f32 0.0, %v5424
    %v5426 = vpop.f32.mrf.mxu0
    %v5427 = vadd.f32 0.0, %v5426
    %5428 = vmatmul.bf16.gmra.mxu0 %v5364
    %v5429 = vpop.f32.mrf.mxu0
    %v5430 = vadd.f32 0.0, %v5429
    %v5431 = vpop.f32.mrf.mxu0
    %v5432 = vadd.f32 0.0, %v5431
    %5433 = vmatmul.bf16.gmra.mxu0 %v5365
    %v5434 = vpop.f32.mrf.mxu0
    %v5435 = vadd.f32 0.0, %v5434
    %v5436 = vpop.f32.mrf.mxu0
    %v5437 = vadd.f32 0.0, %v5436
    %5438 = vdwg.mxu0
    %5440 = vset.pattern.permute.xlu0 7
    %5441 = vperm.xlu0 %5440, %v5119
    %v5442 = vpop.permute.xlu0 %5441
    %5445 = vset.pattern.permute.xlu0 7
    %5446 = vperm.xlu0 %5445, %v5121
    %v5447 = vpop.permute.xlu0 %5446
    %5450 = vset.pattern.permute.xlu0 7
    %5451 = vperm.xlu0 %5450, %v5123
    %v5452 = vpop.permute.xlu0 %5451
    %5455 = vset.pattern.permute.xlu0 7
    %5456 = vperm.xlu0 %5455, %v5125
    %v5457 = vpop.permute.xlu0 %5456
    %5460 = vset.pattern.permute.xlu0 7
    %5461 = vperm.xlu0 %5460, %v5127
    %v5462 = vpop.permute.xlu0 %5461
    %5465 = vset.pattern.permute.xlu0 7
    %5466 = vperm.xlu0 %5465, %v5129
    %v5467 = vpop.permute.xlu0 %5466
    %5470 = vset.pattern.permute.xlu0 7
    %5471 = vperm.xlu0 %5470, %v5131
    %v5472 = vpop.permute.xlu0 %5471
    %5475 = vset.pattern.permute.xlu0 7
    %5476 = vperm.xlu0 %5475, %v5133
    %v5477 = vpop.permute.xlu0 %5476
    %5480 = vset.pattern.permute.xlu0 7
    %5481 = vperm.xlu0 %5480, %v5135
    %v5482 = vpop.permute.xlu0 %5481
    %5485 = vset.pattern.permute.xlu0 7
    %5486 = vperm.xlu0 %5485, %v5137
    %v5487 = vpop.permute.xlu0 %5486
    %5490 = vset.pattern.permute.xlu0 7
    %5491 = vperm.xlu0 %5490, %v5139
    %v5492 = vpop.permute.xlu0 %5491
    %5495 = vset.pattern.permute.xlu0 7
    %5496 = vperm.xlu0 %5495, %v5141
    %v5497 = vpop.permute.xlu0 %5496
    %5500 = vset.pattern.permute.xlu0 7
    %5501 = vperm.xlu0 %5500, %v5143
    %v5502 = vpop.permute.xlu0 %5501
    %5505 = vset.pattern.permute.xlu0 7
    %5506 = vperm.xlu0 %5505, %v5145
    %v5507 = vpop.permute.xlu0 %5506
    %5510 = vset.pattern.permute.xlu0 7
    %5511 = vperm.xlu0 %5510, %v5147
    %v5512 = vpop.permute.xlu0 %5511
    %5515 = vset.pattern.permute.xlu0 7
    %5516 = vperm.xlu0 %5515, %v5149
    %v5517 = vpop.permute.xlu0 %5516
    %v5519 = vmul.f32 %v5442, %v769
    %v5520 = vmul.f32 %v5447, %v770
    %v5521 = vmul.f32 %v5452, %v771
    %v5522 = vmul.f32 %v5457, %v772
    %v5523 = vmul.f32 %v5462, %v773
    %v5524 = vmul.f32 %v5467, %v774
    %v5525 = vmul.f32 %v5472, %v775
    %v5526 = vmul.f32 %v5477, %v776
    %v5527 = vmul.f32 %v5482, %v777
    %v5528 = vmul.f32 %v5487, %v778
    %v5529 = vmul.f32 %v5492, %v779
    %v5530 = vmul.f32 %v5497, %v780
    %v5531 = vmul.f32 %v5502, %v781
    %v5532 = vmul.f32 %v5507, %v782
    %v5533 = vmul.f32 %v5512, %v783
    %v5534 = vmul.f32 %v5517, %v784
    %5551 = vrot.lane.b32.xlu0 %v5400, 56
    %v5552 = vpop.permute.xlu0 %5551
    %5553 = vrot.lane.b32.xlu0 %v5402, 56
    %v5554 = vpop.permute.xlu0 %5553
    %5555 = vrot.lane.b32.xlu0 %v5405, 56
    %v5556 = vpop.permute.xlu0 %5555
    %5557 = vrot.lane.b32.xlu0 %v5407, 56
    %v5558 = vpop.permute.xlu0 %5557
    %5559 = vrot.lane.b32.xlu0 %v5410, 56
    %v5560 = vpop.permute.xlu0 %5559
    %5561 = vrot.lane.b32.xlu0 %v5412, 56
    %v5562 = vpop.permute.xlu0 %5561
    %5563 = vrot.lane.b32.xlu0 %v5415, 56
    %v5564 = vpop.permute.xlu0 %5563
    %5565 = vrot.lane.b32.xlu0 %v5417, 56
    %v5566 = vpop.permute.xlu0 %5565
    %5567 = vrot.lane.b32.xlu0 %v5420, 56
    %v5568 = vpop.permute.xlu0 %5567
    %5569 = vrot.lane.b32.xlu0 %v5422, 56
    %v5570 = vpop.permute.xlu0 %5569
    %5571 = vrot.lane.b32.xlu0 %v5425, 56
    %v5572 = vpop.permute.xlu0 %5571
    %5573 = vrot.lane.b32.xlu0 %v5427, 56
    %v5574 = vpop.permute.xlu0 %5573
    %5575 = vrot.lane.b32.xlu0 %v5430, 56
    %v5576 = vpop.permute.xlu0 %5575
    %5577 = vrot.lane.b32.xlu0 %v5432, 56
    %v5578 = vpop.permute.xlu0 %5577
    %5579 = vrot.lane.b32.xlu0 %v5435, 56
    %v5580 = vpop.permute.xlu0 %5579
    %5581 = vrot.lane.b32.xlu0 %v5437, 56
    %v5582 = vpop.permute.xlu0 %5581
    %v5599 = vadd.f32 %v5519, %v5552
    %v5600 = vadd.f32 %v5520, %v5554
    %v5601 = vadd.f32 %v5521, %v5556
    %v5602 = vadd.f32 %v5522, %v5558
    %v5603 = vadd.f32 %v5523, %v5560
    %v5604 = vadd.f32 %v5524, %v5562
    %v5605 = vadd.f32 %v5525, %v5564
    %v5606 = vadd.f32 %v5526, %v5566
    %v5607 = vadd.f32 %v5527, %v5568
    %v5608 = vadd.f32 %v5528, %v5570
    %v5609 = vadd.f32 %v5529, %v5572
    %v5610 = vadd.f32 %v5530, %v5574
    %v5611 = vadd.f32 %v5531, %v5576
    %v5612 = vadd.f32 %v5532, %v5578
    %v5613 = vadd.f32 %v5533, %v5580
    %v5614 = vadd.f32 %v5534, %v5582
    %vm5615 = vcmask 7168
    %v5616 = vsel %vm5615, %v376, %v1042
    %v5617 = vsel %vm5615, %v377, %v1043
    %v5618 = vsel %vm5615, %v378, %v1044
    %v5619 = vsel %vm5615, %v379, %v1045
    %v5620 = vsel %vm5615, %v380, %v1046
    %v5621 = vsel %vm5615, %v381, %v1047
    %v5622 = vsel %vm5615, %v382, %v1048
    %v5623 = vsel %vm5615, %v383, %v1049
    %v5624 = vsel %vm5615, %v384, %v1050
    %v5625 = vsel %vm5615, %v385, %v1051
    %v5626 = vsel %vm5615, %v386, %v1052
    %v5627 = vsel %vm5615, %v387, %v1053
    %v5628 = vsel %vm5615, %v388, %v1054
    %v5629 = vsel %vm5615, %v389, %v1055
    %v5630 = vsel %vm5615, %v390, %v1056
    %v5631 = vsel %vm5615, %v391, %v1057
    %vm5632 = vcmask 15360
    %v5633 = vsel %vm5632, %v5616, %v1716
    %v5634 = vsel %vm5632, %v5617, %v1717
    %v5635 = vsel %vm5632, %v5618, %v1718
    %v5636 = vsel %vm5632, %v5619, %v1719
    %v5637 = vsel %vm5632, %v5620, %v1720
    %v5638 = vsel %vm5632, %v5621, %v1721
    %v5639 = vsel %vm5632, %v5622, %v1722
    %v5640 = vsel %vm5632, %v5623, %v1723
    %v5641 = vsel %vm5632, %v5624, %v1724
    %v5642 = vsel %vm5632, %v5625, %v1725
    %v5643 = vsel %vm5632, %v5626, %v1726
    %v5644 = vsel %vm5632, %v5627, %v1727
    %v5645 = vsel %vm5632, %v5628, %v1728
    %v5646 = vsel %vm5632, %v5629, %v1729
    %v5647 = vsel %vm5632, %v5630, %v1730
    %v5648 = vsel %vm5632, %v5631, %v1731
    %vm5649 = vcmask 23552
    %v5650 = vsel %vm5649, %v5633, %v2390
    %v5651 = vsel %vm5649, %v5634, %v2391
    %v5652 = vsel %vm5649, %v5635, %v2392
    %v5653 = vsel %vm5649, %v5636, %v2393
    %v5654 = vsel %vm5649, %v5637, %v2394
    %v5655 = vsel %vm5649, %v5638, %v2395
    %v5656 = vsel %vm5649, %v5639, %v2396
    %v5657 = vsel %vm5649, %v5640, %v2397
    %v5658 = vsel %vm5649, %v5641, %v2398
    %v5659 = vsel %vm5649, %v5642, %v2399
    %v5660 = vsel %vm5649, %v5643, %v2400
    %v5661 = vsel %vm5649, %v5644, %v2401
    %v5662 = vsel %vm5649, %v5645, %v2402
    %v5663 = vsel %vm5649, %v5646, %v2403
    %v5664 = vsel %vm5649, %v5647, %v2404
    %v5665 = vsel %vm5649, %v5648, %v2405
    %vm5666 = vcmask 31744
    %v5667 = vsel %vm5666, %v5650, %v3064
    %v5668 = vsel %vm5666, %v5651, %v3065
    %v5669 = vsel %vm5666, %v5652, %v3066
    %v5670 = vsel %vm5666, %v5653, %v3067
    %v5671 = vsel %vm5666, %v5654, %v3068
    %v5672 = vsel %vm5666, %v5655, %v3069
    %v5673 = vsel %vm5666, %v5656, %v3070
    %v5674 = vsel %vm5666, %v5657, %v3071
    %v5675 = vsel %vm5666, %v5658, %v3072
    %v5676 = vsel %vm5666, %v5659, %v3073
    %v5677 = vsel %vm5666, %v5660, %v3074
    %v5678 = vsel %vm5666, %v5661, %v3075
    %v5679 = vsel %vm5666, %v5662, %v3076
    %v5680 = vsel %vm5666, %v5663, %v3077
    %v5681 = vsel %vm5666, %v5664, %v3078
    %v5682 = vsel %vm5666, %v5665, %v3079
    %vm5683 = vcmask 39936
    %v5684 = vsel %vm5683, %v5667, %v3738
    %v5685 = vsel %vm5683, %v5668, %v3739
    %v5686 = vsel %vm5683, %v5669, %v3740
    %v5687 = vsel %vm5683, %v5670, %v3741
    %v5688 = vsel %vm5683, %v5671, %v3742
    %v5689 = vsel %vm5683, %v5672, %v3743
    %v5690 = vsel %vm5683, %v5673, %v3744
    %v5691 = vsel %vm5683, %v5674, %v3745
    %v5692 = vsel %vm5683, %v5675, %v3746
    %v5693 = vsel %vm5683, %v5676, %v3747
    %v5694 = vsel %vm5683, %v5677, %v3748
    %v5695 = vsel %vm5683, %v5678, %v3749
    %v5696 = vsel %vm5683, %v5679, %v3750
    %v5697 = vsel %vm5683, %v5680, %v3751
    %v5698 = vsel %vm5683, %v5681, %v3752
    %v5699 = vsel %vm5683, %v5682, %v3753
    %vm5700 = vcmask 48128
    %v5701 = vsel %vm5700, %v5684, %v4412
    %v5702 = vsel %vm5700, %v5685, %v4413
    %v5703 = vsel %vm5700, %v5686, %v4414
    %v5704 = vsel %vm5700, %v5687, %v4415
    %v5705 = vsel %vm5700, %v5688, %v4416
    %v5706 = vsel %vm5700, %v5689, %v4417
    %v5707 = vsel %vm5700, %v5690, %v4418
    %v5708 = vsel %vm5700, %v5691, %v4419
    %v5709 = vsel %vm5700, %v5692, %v4420
    %v5710 = vsel %vm5700, %v5693, %v4421
    %v5711 = vsel %vm5700, %v5694, %v4422
    %v5712 = vsel %vm5700, %v5695, %v4423
    %v5713 = vsel %vm5700, %v5696, %v4424
    %v5714 = vsel %vm5700, %v5697, %v4425
    %v5715 = vsel %vm5700, %v5698, %v4426
    %v5716 = vsel %vm5700, %v5699, %v4427
    %vm5717 = vcmask 56320
    %v5718 = vsel %vm5717, %v5701, %v5086
    %v5719 = vsel %vm5717, %v5702, %v5087
    %v5720 = vsel %vm5717, %v5703, %v5088
    %v5721 = vsel %vm5717, %v5704, %v5089
    %v5722 = vsel %vm5717, %v5705, %v5090
    %v5723 = vsel %vm5717, %v5706, %v5091
    %v5724 = vsel %vm5717, %v5707, %v5092
    %v5725 = vsel %vm5717, %v5708, %v5093
    %v5726 = vsel %vm5717, %v5709, %v5094
    %v5727 = vsel %vm5717, %v5710, %v5095
    %v5728 = vsel %vm5717, %v5711, %v5096
    %v5729 = vsel %vm5717, %v5712, %v5097
    %v5730 = vsel %vm5717, %v5713, %v5098
    %v5731 = vsel %vm5717, %v5714, %v5099
    %v5732 = vsel %vm5717, %v5715, %v5100
    %v5733 = vsel %vm5717, %v5716, %v5101
    %vm5734 = vcmask 64512
    %5735 = vst.msk [vmem:[#allocation2] sm:$0xff] %vm5734, %v5718
    %5736 = vst.msk [vmem:[#allocation2 + $0x8] sm:$0xff] %vm5734, %v5719
    %5737 = vst.msk [vmem:[#allocation2 + $0x10] sm:$0xff] %vm5734, %v5720
    %5738 = vst.msk [vmem:[#allocation2 + $0x18] sm:$0xff] %vm5734, %v5721
    %5739 = vst.msk [vmem:[#allocation2 + $0x20] sm:$0xff] %vm5734, %v5722
    %5740 = vst.msk [vmem:[#allocation2 + $0x28] sm:$0xff] %vm5734, %v5723
    %5741 = vst.msk [vmem:[#allocation2 + $0x30] sm:$0xff] %vm5734, %v5724
    %5742 = vst.msk [vmem:[#allocation2 + $0x38] sm:$0xff] %vm5734, %v5725
    %5743 = vst.msk [vmem:[#allocation2 + $0x40] sm:$0xff] %vm5734, %v5726
    %5744 = vst.msk [vmem:[#allocation2 + $0x48] sm:$0xff] %vm5734, %v5727
    %5745 = vst.msk [vmem:[#allocation2 + $0x50] sm:$0xff] %vm5734, %v5728
    %5746 = vst.msk [vmem:[#allocation2 + $0x58] sm:$0xff] %vm5734, %v5729
    %5747 = vst.msk [vmem:[#allocation2 + $0x60] sm:$0xff] %vm5734, %v5730
    %5748 = vst.msk [vmem:[#allocation2 + $0x68] sm:$0xff] %vm5734, %v5731
    %5749 = vst.msk [vmem:[#allocation2 + $0x70] sm:$0xff] %vm5734, %v5732
    %5750 = vst.msk [vmem:[#allocation2 + $0x78] sm:$0xff] %vm5734, %v5733
    %v5751 = vsel %vm5615, %v648, %v1298
    %v5752 = vsel %vm5615, %v649, %v1299
    %v5753 = vsel %vm5615, %v650, %v1300
    %v5754 = vsel %vm5615, %v651, %v1301
    %v5755 = vsel %vm5615, %v652, %v1302
    %v5756 = vsel %vm5615, %v653, %v1303
    %v5757 = vsel %vm5615, %v654, %v1304
    %v5758 = vsel %vm5615, %v655, %v1305
    %v5759 = vsel %vm5615, %v656, %v1306
    %v5760 = vsel %vm5615, %v657, %v1307
    %v5761 = vsel %vm5615, %v658, %v1308
    %v5762 = vsel %vm5615, %v659, %v1309
    %v5763 = vsel %vm5615, %v660, %v1310
    %v5764 = vsel %vm5615, %v661, %v1311
    %v5765 = vsel %vm5615, %v662, %v1312
    %v5766 = vsel %vm5615, %v663, %v1313
    %v5767 = vsel %vm5632, %v5751, %v1972
    %v5768 = vsel %vm5632, %v5752, %v1973
    %v5769 = vsel %vm5632, %v5753, %v1974
    %v5770 = vsel %vm5632, %v5754, %v1975
    %v5771 = vsel %vm5632, %v5755, %v1976
    %v5772 = vsel %vm5632, %v5756, %v1977
    %v5773 = vsel %vm5632, %v5757, %v1978
    %v5774 = vsel %vm5632, %v5758, %v1979
    %v5775 = vsel %vm5632, %v5759, %v1980
    %v5776 = vsel %vm5632, %v5760, %v1981
    %v5777 = vsel %vm5632, %v5761, %v1982
    %v5778 = vsel %vm5632, %v5762, %v1983
    %v5779 = vsel %vm5632, %v5763, %v1984
    %v5780 = vsel %vm5632, %v5764, %v1985
    %v5781 = vsel %vm5632, %v5765, %v1986
    %v5782 = vsel %vm5632, %v5766, %v1987
    %v5783 = vsel %vm5649, %v5767, %v2646
    %v5784 = vsel %vm5649, %v5768, %v2647
    %v5785 = vsel %vm5649, %v5769, %v2648
    %v5786 = vsel %vm5649, %v5770, %v2649
    %v5787 = vsel %vm5649, %v5771, %v2650
    %v5788 = vsel %vm5649, %v5772, %v2651
    %v5789 = vsel %vm5649, %v5773, %v2652
    %v5790 = vsel %vm5649, %v5774, %v2653
    %v5791 = vsel %vm5649, %v5775, %v2654
    %v5792 = vsel %vm5649, %v5776, %v2655
    %v5793 = vsel %vm5649, %v5777, %v2656
    %v5794 = vsel %vm5649, %v5778, %v2657
    %v5795 = vsel %vm5649, %v5779, %v2658
    %v5796 = vsel %vm5649, %v5780, %v2659
    %v5797 = vsel %vm5649, %v5781, %v2660
    %v5798 = vsel %vm5649, %v5782, %v2661
    %v5799 = vsel %vm5666, %v5783, %v3320
    %v5800 = vsel %vm5666, %v5784, %v3321
    %v5801 = vsel %vm5666, %v5785, %v3322
    %v5802 = vsel %vm5666, %v5786, %v3323
    %v5803 = vsel %vm5666, %v5787, %v3324
    %v5804 = vsel %vm5666, %v5788, %v3325
    %v5805 = vsel %vm5666, %v5789, %v3326
    %v5806 = vsel %vm5666, %v5790, %v3327
    %v5807 = vsel %vm5666, %v5791, %v3328
    %v5808 = vsel %vm5666, %v5792, %v3329
    %v5809 = vsel %vm5666, %v5793, %v3330
    %v5810 = vsel %vm5666, %v5794, %v3331
    %v5811 = vsel %vm5666, %v5795, %v3332
    %v5812 = vsel %vm5666, %v5796, %v3333
    %v5813 = vsel %vm5666, %v5797, %v3334
    %v5814 = vsel %vm5666, %v5798, %v3335
    %v5815 = vsel %vm5683, %v5799, %v3994
    %v5816 = vsel %vm5683, %v5800, %v3995
    %v5817 = vsel %vm5683, %v5801, %v3996
    %v5818 = vsel %vm5683, %v5802, %v3997
    %v5819 = vsel %vm5683, %v5803, %v3998
    %v5820 = vsel %vm5683, %v5804, %v3999
    %v5821 = vsel %vm5683, %v5805, %v4000
    %v5822 = vsel %vm5683, %v5806, %v4001
    %v5823 = vsel %vm5683, %v5807, %v4002
    %v5824 = vsel %vm5683, %v5808, %v4003
    %v5825 = vsel %vm5683, %v5809, %v4004
    %v5826 = vsel %vm5683, %v5810, %v4005
    %v5827 = vsel %vm5683, %v5811, %v4006
    %v5828 = vsel %vm5683, %v5812, %v4007
    %v5829 = vsel %vm5683, %v5813, %v4008
    %v5830 = vsel %vm5683, %v5814, %v4009
    %v5831 = vsel %vm5700, %v5815, %v4668
    %v5832 = vsel %vm5700, %v5816, %v4669
    %v5833 = vsel %vm5700, %v5817, %v4670
    %v5834 = vsel %vm5700, %v5818, %v4671
    %v5835 = vsel %vm5700, %v5819, %v4672
    %v5836 = vsel %vm5700, %v5820, %v4673
    %v5837 = vsel %vm5700, %v5821, %v4674
    %v5838 = vsel %vm5700, %v5822, %v4675
    %v5839 = vsel %vm5700, %v5823, %v4676
    %v5840 = vsel %vm5700, %v5824, %v4677
    %v5841 = vsel %vm5700, %v5825, %v4678
    %v5842 = vsel %vm5700, %v5826, %v4679
    %v5843 = vsel %vm5700, %v5827, %v4680
    %v5844 = vsel %vm5700, %v5828, %v4681
    %v5845 = vsel %vm5700, %v5829, %v4682
    %v5846 = vsel %vm5700, %v5830, %v4683
    %v5847 = vsel %vm5717, %v5831, %v5342
    %v5848 = vsel %vm5717, %v5832, %v5343
    %v5849 = vsel %vm5717, %v5833, %v5344
    %v5850 = vsel %vm5717, %v5834, %v5345
    %v5851 = vsel %vm5717, %v5835, %v5346
    %v5852 = vsel %vm5717, %v5836, %v5347
    %v5853 = vsel %vm5717, %v5837, %v5348
    %v5854 = vsel %vm5717, %v5838, %v5349
    %v5855 = vsel %vm5717, %v5839, %v5350
    %v5856 = vsel %vm5717, %v5840, %v5351
    %v5857 = vsel %vm5717, %v5841, %v5352
    %v5858 = vsel %vm5717, %v5842, %v5353
    %v5859 = vsel %vm5717, %v5843, %v5354
    %v5860 = vsel %vm5717, %v5844, %v5355
    %v5861 = vsel %vm5717, %v5845, %v5356
    %v5862 = vsel %vm5717, %v5846, %v5357
    %5863 = vst.msk [vmem:[#allocation3] sm:$0xff] %vm5734, %v5847
    %5864 = vst.msk [vmem:[#allocation3 + $0x8] sm:$0xff] %vm5734, %v5848
    %5865 = vst.msk [vmem:[#allocation3 + $0x10] sm:$0xff] %vm5734, %v5849
    %5866 = vst.msk [vmem:[#allocation3 + $0x18] sm:$0xff] %vm5734, %v5850
    %5867 = vst.msk [vmem:[#allocation3 + $0x20] sm:$0xff] %vm5734, %v5851
    %5868 = vst.msk [vmem:[#allocation3 + $0x28] sm:$0xff] %vm5734, %v5852
    %5869 = vst.msk [vmem:[#allocation3 + $0x30] sm:$0xff] %vm5734, %v5853
    %5870 = vst.msk [vmem:[#allocation3 + $0x38] sm:$0xff] %vm5734, %v5854
    %5871 = vst.msk [vmem:[#allocation3 + $0x40] sm:$0xff] %vm5734, %v5855
    %5872 = vst.msk [vmem:[#allocation3 + $0x48] sm:$0xff] %vm5734, %v5856
    %5873 = vst.msk [vmem:[#allocation3 + $0x50] sm:$0xff] %vm5734, %v5857
    %5874 = vst.msk [vmem:[#allocation3 + $0x58] sm:$0xff] %vm5734, %v5858
    %5875 = vst.msk [vmem:[#allocation3 + $0x60] sm:$0xff] %vm5734, %v5859
    %5876 = vst.msk [vmem:[#allocation3 + $0x68] sm:$0xff] %vm5734, %v5860
    %5877 = vst.msk [vmem:[#allocation3 + $0x70] sm:$0xff] %vm5734, %v5861
    %5878 = vst.msk [vmem:[#allocation3 + $0x78] sm:$0xff] %vm5734, %v5862
    %v5879 = vsel %vm5734, %v881, %v1555
    %v5880 = vsel %vm5734, %v882, %v1556
    %v5881 = vsel %vm5734, %v883, %v1557
    %v5882 = vsel %vm5734, %v884, %v1558
    %v5883 = vsel %vm5734, %v885, %v1559
    %v5884 = vsel %vm5734, %v886, %v1560
    %v5885 = vsel %vm5734, %v887, %v1561
    %v5886 = vsel %vm5734, %v888, %v1562
    %v5887 = vsel %vm5734, %v889, %v1563
    %v5888 = vsel %vm5734, %v890, %v1564
    %v5889 = vsel %vm5734, %v891, %v1565
    %v5890 = vsel %vm5734, %v892, %v1566
    %v5891 = vsel %vm5734, %v893, %v1567
    %v5892 = vsel %vm5734, %v894, %v1568
    %v5893 = vsel %vm5734, %v895, %v1569
    %v5894 = vsel %vm5734, %v896, %v1570
    %vm5895 = vcmask 130048
    %v5896 = vsel %vm5895, %v5879, %v2229
    %v5897 = vsel %vm5895, %v5880, %v2230
    %v5898 = vsel %vm5895, %v5881, %v2231
    %v5899 = vsel %vm5895, %v5882, %v2232
    %v5900 = vsel %vm5895, %v5883, %v2233
    %v5901 = vsel %vm5895, %v5884, %v2234
    %v5902 = vsel %vm5895, %v5885, %v2235
    %v5903 = vsel %vm5895, %v5886, %v2236
    %v5904 = vsel %vm5895, %v5887, %v2237
    %v5905 = vsel %vm5895, %v5888, %v2238
    %v5906 = vsel %vm5895, %v5889, %v2239
    %v5907 = vsel %vm5895, %v5890, %v2240
    %v5908 = vsel %vm5895, %v5891, %v2241
    %v5909 = vsel %vm5895, %v5892, %v2242
    %v5910 = vsel %vm5895, %v5893, %v2243
    %v5911 = vsel %vm5895, %v5894, %v2244
    %vm5912 = vcmask 195584
    %v5913 = vsel %vm5912, %v5896, %v2903
    %v5914 = vsel %vm5912, %v5897, %v2904
    %v5915 = vsel %vm5912, %v5898, %v2905
    %v5916 = vsel %vm5912, %v5899, %v2906
    %v5917 = vsel %vm5912, %v5900, %v2907
    %v5918 = vsel %vm5912, %v5901, %v2908
    %v5919 = vsel %vm5912, %v5902, %v2909
    %v5920 = vsel %vm5912, %v5903, %v2910
    %v5921 = vsel %vm5912, %v5904, %v2911
    %v5922 = vsel %vm5912, %v5905, %v2912
    %v5923 = vsel %vm5912, %v5906, %v2913
    %v5924 = vsel %vm5912, %v5907, %v2914
    %v5925 = vsel %vm5912, %v5908, %v2915
    %v5926 = vsel %vm5912, %v5909, %v2916
    %v5927 = vsel %vm5912, %v5910, %v2917
    %v5928 = vsel %vm5912, %v5911, %v2918
    %vm5929 = vcmask 261120
    %v5930 = vsel %vm5929, %v5913, %v3577
    %v5931 = vsel %vm5929, %v5914, %v3578
    %v5932 = vsel %vm5929, %v5915, %v3579
    %v5933 = vsel %vm5929, %v5916, %v3580
    %v5934 = vsel %vm5929, %v5917, %v3581
    %v5935 = vsel %vm5929, %v5918, %v3582
    %v5936 = vsel %vm5929, %v5919, %v3583
    %v5937 = vsel %vm5929, %v5920, %v3584
    %v5938 = vsel %vm5929, %v5921, %v3585
    %v5939 = vsel %vm5929, %v5922, %v3586
    %v5940 = vsel %vm5929, %v5923, %v3587
    %v5941 = vsel %vm5929, %v5924, %v3588
    %v5942 = vsel %vm5929, %v5925, %v3589
    %v5943 = vsel %vm5929, %v5926, %v3590
    %v5944 = vsel %vm5929, %v5927, %v3591
    %v5945 = vsel %vm5929, %v5928, %v3592
    %vm5946 = vcmask 326656
    %v5947 = vsel %vm5946, %v5930, %v4251
    %v5948 = vsel %vm5946, %v5931, %v4252
    %v5949 = vsel %vm5946, %v5932, %v4253
    %v5950 = vsel %vm5946, %v5933, %v4254
    %v5951 = vsel %vm5946, %v5934, %v4255
    %v5952 = vsel %vm5946, %v5935, %v4256
    %v5953 = vsel %vm5946, %v5936, %v4257
    %v5954 = vsel %vm5946, %v5937, %v4258
    %v5955 = vsel %vm5946, %v5938, %v4259
    %v5956 = vsel %vm5946, %v5939, %v4260
    %v5957 = vsel %vm5946, %v5940, %v4261
    %v5958 = vsel %vm5946, %v5941, %v4262
    %v5959 = vsel %vm5946, %v5942, %v4263
    %v5960 = vsel %vm5946, %v5943, %v4264
    %v5961 = vsel %vm5946, %v5944, %v4265
    %v5962 = vsel %vm5946, %v5945, %v4266
    %vm5963 = vcmask 392192
    %v5964 = vsel %vm5963, %v5947, %v4925
    %v5965 = vsel %vm5963, %v5948, %v4926
    %v5966 = vsel %vm5963, %v5949, %v4927
    %v5967 = vsel %vm5963, %v5950, %v4928
    %v5968 = vsel %vm5963, %v5951, %v4929
    %v5969 = vsel %vm5963, %v5952, %v4930
    %v5970 = vsel %vm5963, %v5953, %v4931
    %v5971 = vsel %vm5963, %v5954, %v4932
    %v5972 = vsel %vm5963, %v5955, %v4933
    %v5973 = vsel %vm5963, %v5956, %v4934
    %v5974 = vsel %vm5963, %v5957, %v4935
    %v5975 = vsel %vm5963, %v5958, %v4936
    %v5976 = vsel %vm5963, %v5959, %v4937
    %v5977 = vsel %vm5963, %v5960, %v4938
    %v5978 = vsel %vm5963, %v5961, %v4939
    %v5979 = vsel %vm5963, %v5962, %v4940
    %vm5980 = vcmask 457728
    %v5981 = vsel %vm5980, %v5964, %v5599
    %v5982 = vsel %vm5980, %v5965, %v5600
    %v5983 = vsel %vm5980, %v5966, %v5601
    %v5984 = vsel %vm5980, %v5967, %v5602
    %v5985 = vsel %vm5980, %v5968, %v5603
    %v5986 = vsel %vm5980, %v5969, %v5604
    %v5987 = vsel %vm5980, %v5970, %v5605
    %v5988 = vsel %vm5980, %v5971, %v5606
    %v5989 = vsel %vm5980, %v5972, %v5607
    %v5990 = vsel %vm5980, %v5973, %v5608
    %v5991 = vsel %vm5980, %v5974, %v5609
    %v5992 = vsel %vm5980, %v5975, %v5610
    %v5993 = vsel %vm5980, %v5976, %v5611
    %v5994 = vsel %vm5980, %v5977, %v5612
    %v5995 = vsel %vm5980, %v5978, %v5613
    %v5996 = vsel %vm5980, %v5979, %v5614
    %vm5997 = vcmask 523264
    %5998 = vst.msk [vmem:[#allocation4] sm:$0xff] %vm5997, %v5981
    %5999 = vst.msk [vmem:[#allocation4 + $0x8] sm:$0xff] %vm5997, %v5982
    %6000 = vst.msk [vmem:[#allocation4 + $0x10] sm:$0xff] %vm5997, %v5983
    %6001 = vst.msk [vmem:[#allocation4 + $0x18] sm:$0xff] %vm5997, %v5984
    %6002 = vst.msk [vmem:[#allocation4 + $0x20] sm:$0xff] %vm5997, %v5985
    %6003 = vst.msk [vmem:[#allocation4 + $0x28] sm:$0xff] %vm5997, %v5986
    %6004 = vst.msk [vmem:[#allocation4 + $0x30] sm:$0xff] %vm5997, %v5987
    %6005 = vst.msk [vmem:[#allocation4 + $0x38] sm:$0xff] %vm5997, %v5988
    %6006 = vst.msk [vmem:[#allocation4 + $0x40] sm:$0xff] %vm5997, %v5989
    %6007 = vst.msk [vmem:[#allocation4 + $0x48] sm:$0xff] %vm5997, %v5990
    %6008 = vst.msk [vmem:[#allocation4 + $0x50] sm:$0xff] %vm5997, %v5991
    %6009 = vst.msk [vmem:[#allocation4 + $0x58] sm:$0xff] %vm5997, %v5992
    %6010 = vst.msk [vmem:[#allocation4 + $0x60] sm:$0xff] %vm5997, %v5993
    %6011 = vst.msk [vmem:[#allocation4 + $0x68] sm:$0xff] %vm5997, %v5994
    %6012 = vst.msk [vmem:[#allocation4 + $0x70] sm:$0xff] %vm5997, %v5995
    %6013 = vst.msk [vmem:[#allocation4 + $0x78] sm:$0xff] %vm5997, %v5996
  $region29: #{gat_forward.5} parent=0 // pred_fallthru
    _
  // Predicated region
  $region30: #{gat_forward.5} parent=0 // pred_check
    %p6014 = pneg %p64
  $region31: #{gat_forward.5} parent=0 // pred_check_branch
    %6016 = sbr.rel (%p6014) target = $region33
  $region32: #{gat_forward.5} parent=0 // pred_region
    %v6017 = vld [vmem:[#allocation3] sm:$0xff]
    %v6018 = vld [vmem:[#allocation3 + $0x8] sm:$0xff]
    %v6019 = vld [vmem:[#allocation3 + $0x10] sm:$0xff]
    %v6020 = vld [vmem:[#allocation3 + $0x18] sm:$0xff]
    %v6021 = vld [vmem:[#allocation3 + $0x20] sm:$0xff]
    %v6022 = vld [vmem:[#allocation3 + $0x28] sm:$0xff]
    %v6023 = vld [vmem:[#allocation3 + $0x30] sm:$0xff]
    %v6024 = vld [vmem:[#allocation3 + $0x38] sm:$0xff]
    %v6025 = vld [vmem:[#allocation3 + $0x40] sm:$0xff]
    %v6026 = vld [vmem:[#allocation3 + $0x48] sm:$0xff]
    %v6027 = vld [vmem:[#allocation3 + $0x50] sm:$0xff]
    %v6028 = vld [vmem:[#allocation3 + $0x58] sm:$0xff]
    %v6029 = vld [vmem:[#allocation3 + $0x60] sm:$0xff]
    %v6030 = vld [vmem:[#allocation3 + $0x68] sm:$0xff]
    %v6031 = vld [vmem:[#allocation3 + $0x70] sm:$0xff]
    %v6032 = vld [vmem:[#allocation3 + $0x78] sm:$0xff]
    %v6033 = vrcp.pop %v6017
    %v6034 = vrcp.pop %v6018
    %v6035 = vrcp.pop %v6019
    %v6036 = vrcp.pop %v6020
    %v6037 = vrcp.pop %v6021
    %v6038 = vrcp.pop %v6022
    %v6039 = vrcp.pop %v6023
    %v6040 = vrcp.pop %v6024
    %v6041 = vrcp.pop %v6025
    %v6042 = vrcp.pop %v6026
    %v6043 = vrcp.pop %v6027
    %v6044 = vrcp.pop %v6028
    %v6045 = vrcp.pop %v6029
    %v6046 = vrcp.pop %v6030
    %v6047 = vrcp.pop %v6031
    %v6048 = vrcp.pop %v6032
    %v6049 = vld [vmem:[#allocation4] sm:$0xff]
    %v6050 = vld [vmem:[#allocation4 + $0x8] sm:$0xff]
    %v6051 = vld [vmem:[#allocation4 + $0x10] sm:$0xff]
    %v6052 = vld [vmem:[#allocation4 + $0x18] sm:$0xff]
    %v6053 = vld [vmem:[#allocation4 + $0x20] sm:$0xff]
    %v6054 = vld [vmem:[#allocation4 + $0x28] sm:$0xff]
    %v6055 = vld [vmem:[#allocation4 + $0x30] sm:$0xff]
    %v6056 = vld [vmem:[#allocation4 + $0x38] sm:$0xff]
    %v6057 = vld [vmem:[#allocation4 + $0x40] sm:$0xff]
    %v6058 = vld [vmem:[#allocation4 + $0x48] sm:$0xff]
    %v6059 = vld [vmem:[#allocation4 + $0x50] sm:$0xff]
    %v6060 = vld [vmem:[#allocation4 + $0x58] sm:$0xff]
    %v6061 = vld [vmem:[#allocation4 + $0x60] sm:$0xff]
    %v6062 = vld [vmem:[#allocation4 + $0x68] sm:$0xff]
    %v6063 = vld [vmem:[#allocation4 + $0x70] sm:$0xff]
    %v6064 = vld [vmem:[#allocation4 + $0x78] sm:$0xff]
    %6066 = vset.pattern.permute.xlu0 0
    %6067 = vperm.xlu0 %6066, %v6033
    %v6068 = vpop.permute.xlu0 %6067
    %6071 = vset.pattern.permute.xlu0 0
    %6072 = vperm.xlu0 %6071, %v6034
    %v6073 = vpop.permute.xlu0 %6072
    %6076 = vset.pattern.permute.xlu0 0
    %6077 = vperm.xlu0 %6076, %v6035
    %v6078 = vpop.permute.xlu0 %6077
    %6081 = vset.pattern.permute.xlu0 0
    %6082 = vperm.xlu0 %6081, %v6036
    %v6083 = vpop.permute.xlu0 %6082
    %6086 = vset.pattern.permute.xlu0 0
    %6087 = vperm.xlu0 %6086, %v6037
    %v6088 = vpop.permute.xlu0 %6087
    %6091 = vset.pattern.permute.xlu0 0
    %6092 = vperm.xlu0 %6091, %v6038
    %v6093 = vpop.permute.xlu0 %6092
    %6096 = vset.pattern.permute.xlu0 0
    %6097 = vperm.xlu0 %6096, %v6039
    %v6098 = vpop.permute.xlu0 %6097
    %6101 = vset.pattern.permute.xlu0 0
    %6102 = vperm.xlu0 %6101, %v6040
    %v6103 = vpop.permute.xlu0 %6102
    %6106 = vset.pattern.permute.xlu0 0
    %6107 = vperm.xlu0 %6106, %v6041
    %v6108 = vpop.permute.xlu0 %6107
    %6111 = vset.pattern.permute.xlu0 0
    %6112 = vperm.xlu0 %6111, %v6042
    %v6113 = vpop.permute.xlu0 %6112
    %6116 = vset.pattern.permute.xlu0 0
    %6117 = vperm.xlu0 %6116, %v6043
    %v6118 = vpop.permute.xlu0 %6117
    %6121 = vset.pattern.permute.xlu0 0
    %6122 = vperm.xlu0 %6121, %v6044
    %v6123 = vpop.permute.xlu0 %6122
    %6126 = vset.pattern.permute.xlu0 0
    %6127 = vperm.xlu0 %6126, %v6045
    %v6128 = vpop.permute.xlu0 %6127
    %6131 = vset.pattern.permute.xlu0 0
    %6132 = vperm.xlu0 %6131, %v6046
    %v6133 = vpop.permute.xlu0 %6132
    %6136 = vset.pattern.permute.xlu0 0
    %6137 = vperm.xlu0 %6136, %v6047
    %v6138 = vpop.permute.xlu0 %6137
    %6141 = vset.pattern.permute.xlu0 0
    %6142 = vperm.xlu0 %6141, %v6048
    %v6143 = vpop.permute.xlu0 %6142
    %v6145 = vmul.f32 %v6049, %v6068
    %v6146 = vmul.f32 %v6050, %v6073
    %v6147 = vmul.f32 %v6051, %v6078
    %v6148 = vmul.f32 %v6052, %v6083
    %v6149 = vmul.f32 %v6053, %v6088
    %v6150 = vmul.f32 %v6054, %v6093
    %v6151 = vmul.f32 %v6055, %v6098
    %v6152 = vmul.f32 %v6056, %v6103
    %v6153 = vmul.f32 %v6057, %v6108
    %v6154 = vmul.f32 %v6058, %v6113
    %v6155 = vmul.f32 %v6059, %v6118
    %v6156 = vmul.f32 %v6060, %v6123
    %v6157 = vmul.f32 %v6061, %v6128
    %v6158 = vmul.f32 %v6062, %v6133
    %v6159 = vmul.f32 %v6063, %v6138
    %v6160 = vmul.f32 %v6064, %v6143
    %6161 = vset.pattern.permute.xlu0 1
    %6162 = vperm.xlu0 %6161, %v6033
    %v6163 = vpop.permute.xlu0 %6162
    %6165 = vset.pattern.permute.xlu0 1
    %6166 = vperm.xlu0 %6165, %v6034
    %v6167 = vpop.permute.xlu0 %6166
    %6169 = vset.pattern.permute.xlu0 1
    %6170 = vperm.xlu0 %6169, %v6035
    %v6171 = vpop.permute.xlu0 %6170
    %6173 = vset.pattern.permute.xlu0 1
    %6174 = vperm.xlu0 %6173, %v6036
    %v6175 = vpop.permute.xlu0 %6174
    %6177 = vset.pattern.permute.xlu0 1
    %6178 = vperm.xlu0 %6177, %v6037
    %v6179 = vpop.permute.xlu0 %6178
    %6181 = vset.pattern.permute.xlu0 1
    %6182 = vperm.xlu0 %6181, %v6038
    %v6183 = vpop.permute.xlu0 %6182
    %6185 = vset.pattern.permute.xlu0 1
    %6186 = vperm.xlu0 %6185, %v6039
    %v6187 = vpop.permute.xlu0 %6186
    %6189 = vset.pattern.permute.xlu0 1
    %6190 = vperm.xlu0 %6189, %v6040
    %v6191 = vpop.permute.xlu0 %6190
    %6193 = vset.pattern.permute.xlu0 1
    %6194 = vperm.xlu0 %6193, %v6041
    %v6195 = vpop.permute.xlu0 %6194
    %6197 = vset.pattern.permute.xlu0 1
    %6198 = vperm.xlu0 %6197, %v6042
    %v6199 = vpop.permute.xlu0 %6198
    %6201 = vset.pattern.permute.xlu0 1
    %6202 = vperm.xlu0 %6201, %v6043
    %v6203 = vpop.permute.xlu0 %6202
    %6205 = vset.pattern.permute.xlu0 1
    %6206 = vperm.xlu0 %6205, %v6044
    %v6207 = vpop.permute.xlu0 %6206
    %6209 = vset.pattern.permute.xlu0 1
    %6210 = vperm.xlu0 %6209, %v6045
    %v6211 = vpop.permute.xlu0 %6210
    %6213 = vset.pattern.permute.xlu0 1
    %6214 = vperm.xlu0 %6213, %v6046
    %v6215 = vpop.permute.xlu0 %6214
    %6217 = vset.pattern.permute.xlu0 1
    %6218 = vperm.xlu0 %6217, %v6047
    %v6219 = vpop.permute.xlu0 %6218
    %6221 = vset.pattern.permute.xlu0 1
    %6222 = vperm.xlu0 %6221, %v6048
    %v6223 = vpop.permute.xlu0 %6222
    %v6225 = vmul.f32 %v6049, %v6163
    %v6226 = vmul.f32 %v6050, %v6167
    %v6227 = vmul.f32 %v6051, %v6171
    %v6228 = vmul.f32 %v6052, %v6175
    %v6229 = vmul.f32 %v6053, %v6179
    %v6230 = vmul.f32 %v6054, %v6183
    %v6231 = vmul.f32 %v6055, %v6187
    %v6232 = vmul.f32 %v6056, %v6191
    %v6233 = vmul.f32 %v6057, %v6195
    %v6234 = vmul.f32 %v6058, %v6199
    %v6235 = vmul.f32 %v6059, %v6203
    %v6236 = vmul.f32 %v6060, %v6207
    %v6237 = vmul.f32 %v6061, %v6211
    %v6238 = vmul.f32 %v6062, %v6215
    %v6239 = vmul.f32 %v6063, %v6219
    %v6240 = vmul.f32 %v6064, %v6223
    %6241 = vset.pattern.permute.xlu0 2
    %6242 = vperm.xlu0 %6241, %v6033
    %v6243 = vpop.permute.xlu0 %6242
    %6245 = vset.pattern.permute.xlu0 2
    %6246 = vperm.xlu0 %6245, %v6034
    %v6247 = vpop.permute.xlu0 %6246
    %6249 = vset.pattern.permute.xlu0 2
    %6250 = vperm.xlu0 %6249, %v6035
    %v6251 = vpop.permute.xlu0 %6250
    %6253 = vset.pattern.permute.xlu0 2
    %6254 = vperm.xlu0 %6253, %v6036
    %v6255 = vpop.permute.xlu0 %6254
    %6257 = vset.pattern.permute.xlu0 2
    %6258 = vperm.xlu0 %6257, %v6037
    %v6259 = vpop.permute.xlu0 %6258
    %6261 = vset.pattern.permute.xlu0 2
    %6262 = vperm.xlu0 %6261, %v6038
    %v6263 = vpop.permute.xlu0 %6262
    %6265 = vset.pattern.permute.xlu0 2
    %6266 = vperm.xlu0 %6265, %v6039
    %v6267 = vpop.permute.xlu0 %6266
    %6269 = vset.pattern.permute.xlu0 2
    %6270 = vperm.xlu0 %6269, %v6040
    %v6271 = vpop.permute.xlu0 %6270
    %6273 = vset.pattern.permute.xlu0 2
    %6274 = vperm.xlu0 %6273, %v6041
    %v6275 = vpop.permute.xlu0 %6274
    %6277 = vset.pattern.permute.xlu0 2
    %6278 = vperm.xlu0 %6277, %v6042
    %v6279 = vpop.permute.xlu0 %6278
    %6281 = vset.pattern.permute.xlu0 2
    %6282 = vperm.xlu0 %6281, %v6043
    %v6283 = vpop.permute.xlu0 %6282
    %6285 = vset.pattern.permute.xlu0 2
    %6286 = vperm.xlu0 %6285, %v6044
    %v6287 = vpop.permute.xlu0 %6286
    %6289 = vset.pattern.permute.xlu0 2
    %6290 = vperm.xlu0 %6289, %v6045
    %v6291 = vpop.permute.xlu0 %6290
    %6293 = vset.pattern.permute.xlu0 2
    %6294 = vperm.xlu0 %6293, %v6046
    %v6295 = vpop.permute.xlu0 %6294
    %6297 = vset.pattern.permute.xlu0 2
    %6298 = vperm.xlu0 %6297, %v6047
    %v6299 = vpop.permute.xlu0 %6298
    %6301 = vset.pattern.permute.xlu0 2
    %6302 = vperm.xlu0 %6301, %v6048
    %v6303 = vpop.permute.xlu0 %6302
    %v6305 = vmul.f32 %v6049, %v6243
    %v6306 = vmul.f32 %v6050, %v6247
    %v6307 = vmul.f32 %v6051, %v6251
    %v6308 = vmul.f32 %v6052, %v6255
    %v6309 = vmul.f32 %v6053, %v6259
    %v6310 = vmul.f32 %v6054, %v6263
    %v6311 = vmul.f32 %v6055, %v6267
    %v6312 = vmul.f32 %v6056, %v6271
    %v6313 = vmul.f32 %v6057, %v6275
    %v6314 = vmul.f32 %v6058, %v6279
    %v6315 = vmul.f32 %v6059, %v6283
    %v6316 = vmul.f32 %v6060, %v6287
    %v6317 = vmul.f32 %v6061, %v6291
    %v6318 = vmul.f32 %v6062, %v6295
    %v6319 = vmul.f32 %v6063, %v6299
    %v6320 = vmul.f32 %v6064, %v6303
    %6321 = vset.pattern.permute.xlu0 3
    %6322 = vperm.xlu0 %6321, %v6033
    %v6323 = vpop.permute.xlu0 %6322
    %6325 = vset.pattern.permute.xlu0 3
    %6326 = vperm.xlu0 %6325, %v6034
    %v6327 = vpop.permute.xlu0 %6326
    %6329 = vset.pattern.permute.xlu0 3
    %6330 = vperm.xlu0 %6329, %v6035
    %v6331 = vpop.permute.xlu0 %6330
    %6333 = vset.pattern.permute.xlu0 3
    %6334 = vperm.xlu0 %6333, %v6036
    %v6335 = vpop.permute.xlu0 %6334
    %6337 = vset.pattern.permute.xlu0 3
    %6338 = vperm.xlu0 %6337, %v6037
    %v6339 = vpop.permute.xlu0 %6338
    %6341 = vset.pattern.permute.xlu0 3
    %6342 = vperm.xlu0 %6341, %v6038
    %v6343 = vpop.permute.xlu0 %6342
    %6345 = vset.pattern.permute.xlu0 3
    %6346 = vperm.xlu0 %6345, %v6039
    %v6347 = vpop.permute.xlu0 %6346
    %6349 = vset.pattern.permute.xlu0 3
    %6350 = vperm.xlu0 %6349, %v6040
    %v6351 = vpop.permute.xlu0 %6350
    %6353 = vset.pattern.permute.xlu0 3
    %6354 = vperm.xlu0 %6353, %v6041
    %v6355 = vpop.permute.xlu0 %6354
    %6357 = vset.pattern.permute.xlu0 3
    %6358 = vperm.xlu0 %6357, %v6042
    %v6359 = vpop.permute.xlu0 %6358
    %6361 = vset.pattern.permute.xlu0 3
    %6362 = vperm.xlu0 %6361, %v6043
    %v6363 = vpop.permute.xlu0 %6362
    %6365 = vset.pattern.permute.xlu0 3
    %6366 = vperm.xlu0 %6365, %v6044
    %v6367 = vpop.permute.xlu0 %6366
    %6369 = vset.pattern.permute.xlu0 3
    %6370 = vperm.xlu0 %6369, %v6045
    %v6371 = vpop.permute.xlu0 %6370
    %6373 = vset.pattern.permute.xlu0 3
    %6374 = vperm.xlu0 %6373, %v6046
    %v6375 = vpop.permute.xlu0 %6374
    %6377 = vset.pattern.permute.xlu0 3
    %6378 = vperm.xlu0 %6377, %v6047
    %v6379 = vpop.permute.xlu0 %6378
    %6381 = vset.pattern.permute.xlu0 3
    %6382 = vperm.xlu0 %6381, %v6048
    %v6383 = vpop.permute.xlu0 %6382
    %v6385 = vmul.f32 %v6049, %v6323
    %v6386 = vmul.f32 %v6050, %v6327
    %v6387 = vmul.f32 %v6051, %v6331
    %v6388 = vmul.f32 %v6052, %v6335
    %v6389 = vmul.f32 %v6053, %v6339
    %v6390 = vmul.f32 %v6054, %v6343
    %v6391 = vmul.f32 %v6055, %v6347
    %v6392 = vmul.f32 %v6056, %v6351
    %v6393 = vmul.f32 %v6057, %v6355
    %v6394 = vmul.f32 %v6058, %v6359
    %v6395 = vmul.f32 %v6059, %v6363
    %v6396 = vmul.f32 %v6060, %v6367
    %v6397 = vmul.f32 %v6061, %v6371
    %v6398 = vmul.f32 %v6062, %v6375
    %v6399 = vmul.f32 %v6063, %v6379
    %v6400 = vmul.f32 %v6064, %v6383
    %6401 = vset.pattern.permute.xlu0 4
    %6402 = vperm.xlu0 %6401, %v6033
    %v6403 = vpop.permute.xlu0 %6402
    %6405 = vset.pattern.permute.xlu0 4
    %6406 = vperm.xlu0 %6405, %v6034
    %v6407 = vpop.permute.xlu0 %6406
    %6409 = vset.pattern.permute.xlu0 4
    %6410 = vperm.xlu0 %6409, %v6035
    %v6411 = vpop.permute.xlu0 %6410
    %6413 = vset.pattern.permute.xlu0 4
    %6414 = vperm.xlu0 %6413, %v6036
    %v6415 = vpop.permute.xlu0 %6414
    %6417 = vset.pattern.permute.xlu0 4
    %6418 = vperm.xlu0 %6417, %v6037
    %v6419 = vpop.permute.xlu0 %6418
    %6421 = vset.pattern.permute.xlu0 4
    %6422 = vperm.xlu0 %6421, %v6038
    %v6423 = vpop.permute.xlu0 %6422
    %6425 = vset.pattern.permute.xlu0 4
    %6426 = vperm.xlu0 %6425, %v6039
    %v6427 = vpop.permute.xlu0 %6426
    %6429 = vset.pattern.permute.xlu0 4
    %6430 = vperm.xlu0 %6429, %v6040
    %v6431 = vpop.permute.xlu0 %6430
    %6433 = vset.pattern.permute.xlu0 4
    %6434 = vperm.xlu0 %6433, %v6041
    %v6435 = vpop.permute.xlu0 %6434
    %6437 = vset.pattern.permute.xlu0 4
    %6438 = vperm.xlu0 %6437, %v6042
    %v6439 = vpop.permute.xlu0 %6438
    %6441 = vset.pattern.permute.xlu0 4
    %6442 = vperm.xlu0 %6441, %v6043
    %v6443 = vpop.permute.xlu0 %6442
    %6445 = vset.pattern.permute.xlu0 4
    %6446 = vperm.xlu0 %6445, %v6044
    %v6447 = vpop.permute.xlu0 %6446
    %6449 = vset.pattern.permute.xlu0 4
    %6450 = vperm.xlu0 %6449, %v6045
    %v6451 = vpop.permute.xlu0 %6450
    %6453 = vset.pattern.permute.xlu0 4
    %6454 = vperm.xlu0 %6453, %v6046
    %v6455 = vpop.permute.xlu0 %6454
    %6457 = vset.pattern.permute.xlu0 4
    %6458 = vperm.xlu0 %6457, %v6047
    %v6459 = vpop.permute.xlu0 %6458
    %6461 = vset.pattern.permute.xlu0 4
    %6462 = vperm.xlu0 %6461, %v6048
    %v6463 = vpop.permute.xlu0 %6462
    %v6465 = vmul.f32 %v6049, %v6403
    %v6466 = vmul.f32 %v6050, %v6407
    %v6467 = vmul.f32 %v6051, %v6411
    %v6468 = vmul.f32 %v6052, %v6415
    %v6469 = vmul.f32 %v6053, %v6419
    %v6470 = vmul.f32 %v6054, %v6423
    %v6471 = vmul.f32 %v6055, %v6427
    %v6472 = vmul.f32 %v6056, %v6431
    %v6473 = vmul.f32 %v6057, %v6435
    %v6474 = vmul.f32 %v6058, %v6439
    %v6475 = vmul.f32 %v6059, %v6443
    %v6476 = vmul.f32 %v6060, %v6447
    %v6477 = vmul.f32 %v6061, %v6451
    %v6478 = vmul.f32 %v6062, %v6455
    %v6479 = vmul.f32 %v6063, %v6459
    %v6480 = vmul.f32 %v6064, %v6463
    %6481 = vset.pattern.permute.xlu0 5
    %6482 = vperm.xlu0 %6481, %v6033
    %v6483 = vpop.permute.xlu0 %6482
    %6485 = vset.pattern.permute.xlu0 5
    %6486 = vperm.xlu0 %6485, %v6034
    %v6487 = vpop.permute.xlu0 %6486
    %6489 = vset.pattern.permute.xlu0 5
    %6490 = vperm.xlu0 %6489, %v6035
    %v6491 = vpop.permute.xlu0 %6490
    %6493 = vset.pattern.permute.xlu0 5
    %6494 = vperm.xlu0 %6493, %v6036
    %v6495 = vpop.permute.xlu0 %6494
    %6497 = vset.pattern.permute.xlu0 5
    %6498 = vperm.xlu0 %6497, %v6037
    %v6499 = vpop.permute.xlu0 %6498
    %6501 = vset.pattern.permute.xlu0 5
    %6502 = vperm.xlu0 %6501, %v6038
    %v6503 = vpop.permute.xlu0 %6502
    %6505 = vset.pattern.permute.xlu0 5
    %6506 = vperm.xlu0 %6505, %v6039
    %v6507 = vpop.permute.xlu0 %6506
    %6509 = vset.pattern.permute.xlu0 5
    %6510 = vperm.xlu0 %6509, %v6040
    %v6511 = vpop.permute.xlu0 %6510
    %6513 = vset.pattern.permute.xlu0 5
    %6514 = vperm.xlu0 %6513, %v6041
    %v6515 = vpop.permute.xlu0 %6514
    %6517 = vset.pattern.permute.xlu0 5
    %6518 = vperm.xlu0 %6517, %v6042
    %v6519 = vpop.permute.xlu0 %6518
    %6521 = vset.pattern.permute.xlu0 5
    %6522 = vperm.xlu0 %6521, %v6043
    %v6523 = vpop.permute.xlu0 %6522
    %6525 = vset.pattern.permute.xlu0 5
    %6526 = vperm.xlu0 %6525, %v6044
    %v6527 = vpop.permute.xlu0 %6526
    %6529 = vset.pattern.permute.xlu0 5
    %6530 = vperm.xlu0 %6529, %v6045
    %v6531 = vpop.permute.xlu0 %6530
    %6533 = vset.pattern.permute.xlu0 5
    %6534 = vperm.xlu0 %6533, %v6046
    %v6535 = vpop.permute.xlu0 %6534
    %6537 = vset.pattern.permute.xlu0 5
    %6538 = vperm.xlu0 %6537, %v6047
    %v6539 = vpop.permute.xlu0 %6538
    %6541 = vset.pattern.permute.xlu0 5
    %6542 = vperm.xlu0 %6541, %v6048
    %v6543 = vpop.permute.xlu0 %6542
    %v6545 = vmul.f32 %v6049, %v6483
    %v6546 = vmul.f32 %v6050, %v6487
    %v6547 = vmul.f32 %v6051, %v6491
    %v6548 = vmul.f32 %v6052, %v6495
    %v6549 = vmul.f32 %v6053, %v6499
    %v6550 = vmul.f32 %v6054, %v6503
    %v6551 = vmul.f32 %v6055, %v6507
    %v6552 = vmul.f32 %v6056, %v6511
    %v6553 = vmul.f32 %v6057, %v6515
    %v6554 = vmul.f32 %v6058, %v6519
    %v6555 = vmul.f32 %v6059, %v6523
    %v6556 = vmul.f32 %v6060, %v6527
    %v6557 = vmul.f32 %v6061, %v6531
    %v6558 = vmul.f32 %v6062, %v6535
    %v6559 = vmul.f32 %v6063, %v6539
    %v6560 = vmul.f32 %v6064, %v6543
    %6561 = vset.pattern.permute.xlu0 6
    %6562 = vperm.xlu0 %6561, %v6033
    %v6563 = vpop.permute.xlu0 %6562
    %6565 = vset.pattern.permute.xlu0 6
    %6566 = vperm.xlu0 %6565, %v6034
    %v6567 = vpop.permute.xlu0 %6566
    %6569 = vset.pattern.permute.xlu0 6
    %6570 = vperm.xlu0 %6569, %v6035
    %v6571 = vpop.permute.xlu0 %6570
    %6573 = vset.pattern.permute.xlu0 6
    %6574 = vperm.xlu0 %6573, %v6036
    %v6575 = vpop.permute.xlu0 %6574
    %6577 = vset.pattern.permute.xlu0 6
    %6578 = vperm.xlu0 %6577, %v6037
    %v6579 = vpop.permute.xlu0 %6578
    %6581 = vset.pattern.permute.xlu0 6
    %6582 = vperm.xlu0 %6581, %v6038
    %v6583 = vpop.permute.xlu0 %6582
    %6585 = vset.pattern.permute.xlu0 6
    %6586 = vperm.xlu0 %6585, %v6039
    %v6587 = vpop.permute.xlu0 %6586
    %6589 = vset.pattern.permute.xlu0 6
    %6590 = vperm.xlu0 %6589, %v6040
    %v6591 = vpop.permute.xlu0 %6590
    %6593 = vset.pattern.permute.xlu0 6
    %6594 = vperm.xlu0 %6593, %v6041
    %v6595 = vpop.permute.xlu0 %6594
    %6597 = vset.pattern.permute.xlu0 6
    %6598 = vperm.xlu0 %6597, %v6042
    %v6599 = vpop.permute.xlu0 %6598
    %6601 = vset.pattern.permute.xlu0 6
    %6602 = vperm.xlu0 %6601, %v6043
    %v6603 = vpop.permute.xlu0 %6602
    %6605 = vset.pattern.permute.xlu0 6
    %6606 = vperm.xlu0 %6605, %v6044
    %v6607 = vpop.permute.xlu0 %6606
    %6609 = vset.pattern.permute.xlu0 6
    %6610 = vperm.xlu0 %6609, %v6045
    %v6611 = vpop.permute.xlu0 %6610
    %6613 = vset.pattern.permute.xlu0 6
    %6614 = vperm.xlu0 %6613, %v6046
    %v6615 = vpop.permute.xlu0 %6614
    %6617 = vset.pattern.permute.xlu0 6
    %6618 = vperm.xlu0 %6617, %v6047
    %v6619 = vpop.permute.xlu0 %6618
    %6621 = vset.pattern.permute.xlu0 6
    %6622 = vperm.xlu0 %6621, %v6048
    %v6623 = vpop.permute.xlu0 %6622
    %v6625 = vmul.f32 %v6049, %v6563
    %v6626 = vmul.f32 %v6050, %v6567
    %v6627 = vmul.f32 %v6051, %v6571
    %v6628 = vmul.f32 %v6052, %v6575
    %v6629 = vmul.f32 %v6053, %v6579
    %v6630 = vmul.f32 %v6054, %v6583
    %v6631 = vmul.f32 %v6055, %v6587
    %v6632 = vmul.f32 %v6056, %v6591
    %v6633 = vmul.f32 %v6057, %v6595
    %v6634 = vmul.f32 %v6058, %v6599
    %v6635 = vmul.f32 %v6059, %v6603
    %v6636 = vmul.f32 %v6060, %v6607
    %v6637 = vmul.f32 %v6061, %v6611
    %v6638 = vmul.f32 %v6062, %v6615
    %v6639 = vmul.f32 %v6063, %v6619
    %v6640 = vmul.f32 %v6064, %v6623
    %6641 = vset.pattern.permute.xlu0 7
    %6642 = vperm.xlu0 %6641, %v6033
    %v6643 = vpop.permute.xlu0 %6642
    %6645 = vset.pattern.permute.xlu0 7
    %6646 = vperm.xlu0 %6645, %v6034
    %v6647 = vpop.permute.xlu0 %6646
    %6649 = vset.pattern.permute.xlu0 7
    %6650 = vperm.xlu0 %6649, %v6035
    %v6651 = vpop.permute.xlu0 %6650
    %6653 = vset.pattern.permute.xlu0 7
    %6654 = vperm.xlu0 %6653, %v6036
    %v6655 = vpop.permute.xlu0 %6654
    %6657 = vset.pattern.permute.xlu0 7
    %6658 = vperm.xlu0 %6657, %v6037
    %v6659 = vpop.permute.xlu0 %6658
    %6661 = vset.pattern.permute.xlu0 7
    %6662 = vperm.xlu0 %6661, %v6038
    %v6663 = vpop.permute.xlu0 %6662
    %6665 = vset.pattern.permute.xlu0 7
    %6666 = vperm.xlu0 %6665, %v6039
    %v6667 = vpop.permute.xlu0 %6666
    %6669 = vset.pattern.permute.xlu0 7
    %6670 = vperm.xlu0 %6669, %v6040
    %v6671 = vpop.permute.xlu0 %6670
    %6673 = vset.pattern.permute.xlu0 7
    %6674 = vperm.xlu0 %6673, %v6041
    %v6675 = vpop.permute.xlu0 %6674
    %6677 = vset.pattern.permute.xlu0 7
    %6678 = vperm.xlu0 %6677, %v6042
    %v6679 = vpop.permute.xlu0 %6678
    %6681 = vset.pattern.permute.xlu0 7
    %6682 = vperm.xlu0 %6681, %v6043
    %v6683 = vpop.permute.xlu0 %6682
    %6685 = vset.pattern.permute.xlu0 7
    %6686 = vperm.xlu0 %6685, %v6044
    %v6687 = vpop.permute.xlu0 %6686
    %6689 = vset.pattern.permute.xlu0 7
    %6690 = vperm.xlu0 %6689, %v6045
    %v6691 = vpop.permute.xlu0 %6690
    %6693 = vset.pattern.permute.xlu0 7
    %6694 = vperm.xlu0 %6693, %v6046
    %v6695 = vpop.permute.xlu0 %6694
    %6697 = vset.pattern.permute.xlu0 7
    %6698 = vperm.xlu0 %6697, %v6047
    %v6699 = vpop.permute.xlu0 %6698
    %6701 = vset.pattern.permute.xlu0 7
    %6702 = vperm.xlu0 %6701, %v6048
    %v6703 = vpop.permute.xlu0 %6702
    %v6705 = vmul.f32 %v6049, %v6643
    %v6706 = vmul.f32 %v6050, %v6647
    %v6707 = vmul.f32 %v6051, %v6651
    %v6708 = vmul.f32 %v6052, %v6655
    %v6709 = vmul.f32 %v6053, %v6659
    %v6710 = vmul.f32 %v6054, %v6663
    %v6711 = vmul.f32 %v6055, %v6667
    %v6712 = vmul.f32 %v6056, %v6671
    %v6713 = vmul.f32 %v6057, %v6675
    %v6714 = vmul.f32 %v6058, %v6679
    %v6715 = vmul.f32 %v6059, %v6683
    %v6716 = vmul.f32 %v6060, %v6687
    %v6717 = vmul.f32 %v6061, %v6691
    %v6718 = vmul.f32 %v6062, %v6695
    %v6719 = vmul.f32 %v6063, %v6699
    %v6720 = vmul.f32 %v6064, %v6703
    %vm6721 = vcmask 64512
    %v6722 = vsel %vm6721, %v6145, %v6225
    %v6723 = vsel %vm6721, %v6146, %v6226
    %v6724 = vsel %vm6721, %v6147, %v6227
    %v6725 = vsel %vm6721, %v6148, %v6228
    %v6726 = vsel %vm6721, %v6149, %v6229
    %v6727 = vsel %vm6721, %v6150, %v6230
    %v6728 = vsel %vm6721, %v6151, %v6231
    %v6729 = vsel %vm6721, %v6152, %v6232
    %v6730 = vsel %vm6721, %v6153, %v6233
    %v6731 = vsel %vm6721, %v6154, %v6234
    %v6732 = vsel %vm6721, %v6155, %v6235
    %v6733 = vsel %vm6721, %v6156, %v6236
    %v6734 = vsel %vm6721, %v6157, %v6237
    %v6735 = vsel %vm6721, %v6158, %v6238
    %v6736 = vsel %vm6721, %v6159, %v6239
    %v6737 = vsel %vm6721, %v6160, %v6240
    %vm6738 = vcmask 130048
    %v6739 = vsel %vm6738, %v6722, %v6305
    %v6740 = vsel %vm6738, %v6723, %v6306
    %v6741 = vsel %vm6738, %v6724, %v6307
    %v6742 = vsel %vm6738, %v6725, %v6308
    %v6743 = vsel %vm6738, %v6726, %v6309
    %v6744 = vsel %vm6738, %v6727, %v6310
    %v6745 = vsel %vm6738, %v6728, %v6311
    %v6746 = vsel %vm6738, %v6729, %v6312
    %v6747 = vsel %vm6738, %v6730, %v6313
    %v6748 = vsel %vm6738, %v6731, %v6314
    %v6749 = vsel %vm6738, %v6732, %v6315
    %v6750 = vsel %vm6738, %v6733, %v6316
    %v6751 = vsel %vm6738, %v6734, %v6317
    %v6752 = vsel %vm6738, %v6735, %v6318
    %v6753 = vsel %vm6738, %v6736, %v6319
    %v6754 = vsel %vm6738, %v6737, %v6320
    %vm6755 = vcmask 195584
    %v6756 = vsel %vm6755, %v6739, %v6385
    %v6757 = vsel %vm6755, %v6740, %v6386
    %v6758 = vsel %vm6755, %v6741, %v6387
    %v6759 = vsel %vm6755, %v6742, %v6388
    %v6760 = vsel %vm6755, %v6743, %v6389
    %v6761 = vsel %vm6755, %v6744, %v6390
    %v6762 = vsel %vm6755, %v6745, %v6391
    %v6763 = vsel %vm6755, %v6746, %v6392
    %v6764 = vsel %vm6755, %v6747, %v6393
    %v6765 = vsel %vm6755, %v6748, %v6394
    %v6766 = vsel %vm6755, %v6749, %v6395
    %v6767 = vsel %vm6755, %v6750, %v6396
    %v6768 = vsel %vm6755, %v6751, %v6397
    %v6769 = vsel %vm6755, %v6752, %v6398
    %v6770 = vsel %vm6755, %v6753, %v6399
    %v6771 = vsel %vm6755, %v6754, %v6400
    %vm6772 = vcmask 261120
    %v6773 = vsel %vm6772, %v6756, %v6465
    %v6774 = vsel %vm6772, %v6757, %v6466
    %v6775 = vsel %vm6772, %v6758, %v6467
    %v6776 = vsel %vm6772, %v6759, %v6468
    %v6777 = vsel %vm6772, %v6760, %v6469
    %v6778 = vsel %vm6772, %v6761, %v6470
    %v6779 = vsel %vm6772, %v6762, %v6471
    %v6780 = vsel %vm6772, %v6763, %v6472
    %v6781 = vsel %vm6772, %v6764, %v6473
    %v6782 = vsel %vm6772, %v6765, %v6474
    %v6783 = vsel %vm6772, %v6766, %v6475
    %v6784 = vsel %vm6772, %v6767, %v6476
    %v6785 = vsel %vm6772, %v6768, %v6477
    %v6786 = vsel %vm6772, %v6769, %v6478
    %v6787 = vsel %vm6772, %v6770, %v6479
    %v6788 = vsel %vm6772, %v6771, %v6480
    %vm6789 = vcmask 326656
    %v6790 = vsel %vm6789, %v6773, %v6545
    %v6791 = vsel %vm6789, %v6774, %v6546
    %v6792 = vsel %vm6789, %v6775, %v6547
    %v6793 = vsel %vm6789, %v6776, %v6548
    %v6794 = vsel %vm6789, %v6777, %v6549
    %v6795 = vsel %vm6789, %v6778, %v6550
    %v6796 = vsel %vm6789, %v6779, %v6551
    %v6797 = vsel %vm6789, %v6780, %v6552
    %v6798 = vsel %vm6789, %v6781, %v6553
    %v6799 = vsel %vm6789, %v6782, %v6554
    %v6800 = vsel %vm6789, %v6783, %v6555
    %v6801 = vsel %vm6789, %v6784, %v6556
    %v6802 = vsel %vm6789, %v6785, %v6557
    %v6803 = vsel %vm6789, %v6786, %v6558
    %v6804 = vsel %vm6789, %v6787, %v6559
    %v6805 = vsel %vm6789, %v6788, %v6560
    %vm6806 = vcmask 392192
    %v6807 = vsel %vm6806, %v6790, %v6625
    %v6808 = vsel %vm6806, %v6791, %v6626
    %v6809 = vsel %vm6806, %v6792, %v6627
    %v6810 = vsel %vm6806, %v6793, %v6628
    %v6811 = vsel %vm6806, %v6794, %v6629
    %v6812 = vsel %vm6806, %v6795, %v6630
    %v6813 = vsel %vm6806, %v6796, %v6631
    %v6814 = vsel %vm6806, %v6797, %v6632
    %v6815 = vsel %vm6806, %v6798, %v6633
    %v6816 = vsel %vm6806, %v6799, %v6634
    %v6817 = vsel %vm6806, %v6800, %v6635
    %v6818 = vsel %vm6806, %v6801, %v6636
    %v6819 = vsel %vm6806, %v6802, %v6637
    %v6820 = vsel %vm6806, %v6803, %v6638
    %v6821 = vsel %vm6806, %v6804, %v6639
    %v6822 = vsel %vm6806, %v6805, %v6640
    %vm6823 = vcmask 457728
    %v6824 = vsel %vm6823, %v6807, %v6705
    %v6825 = vsel %vm6823, %v6808, %v6706
    %v6826 = vsel %vm6823, %v6809, %v6707
    %v6827 = vsel %vm6823, %v6810, %v6708
    %v6828 = vsel %vm6823, %v6811, %v6709
    %v6829 = vsel %vm6823, %v6812, %v6710
    %v6830 = vsel %vm6823, %v6813, %v6711
    %v6831 = vsel %vm6823, %v6814, %v6712
    %v6832 = vsel %vm6823, %v6815, %v6713
    %v6833 = vsel %vm6823, %v6816, %v6714
    %v6834 = vsel %vm6823, %v6817, %v6715
    %v6835 = vsel %vm6823, %v6818, %v6716
    %v6836 = vsel %vm6823, %v6819, %v6717
    %v6837 = vsel %vm6823, %v6820, %v6718
    %v6838 = vsel %vm6823, %v6821, %v6719
    %v6839 = vsel %vm6823, %v6822, %v6720
    %v6840 = vld [vmem:[%s5] sm:$0x1]
    %v6842 = vperm.slane %v6840, 0
    %v6844 = vadd.f32 %v6824, %v6842
    %v6845 = vadd.f32 %v6825, %v6842
    %v6846 = vadd.f32 %v6826, %v6842
    %v6847 = vadd.f32 %v6827, %v6842
    %v6848 = vadd.f32 %v6828, %v6842
    %v6849 = vadd.f32 %v6829, %v6842
    %v6850 = vadd.f32 %v6830, %v6842
    %v6851 = vadd.f32 %v6831, %v6842
    %v6852 = vadd.f32 %v6832, %v6842
    %v6853 = vadd.f32 %v6833, %v6842
    %v6854 = vadd.f32 %v6834, %v6842
    %v6855 = vadd.f32 %v6835, %v6842
    %v6856 = vadd.f32 %v6836, %v6842
    %v6857 = vadd.f32 %v6837, %v6842
    %v6858 = vadd.f32 %v6838, %v6842
    %v6859 = vadd.f32 %v6839, %v6842
    %vm6860 = vcmp.gt.f32.partialorder %v6844, 0.0
    %vm6861 = vcmp.gt.f32.partialorder %v6845, 0.0
    %vm6862 = vcmp.gt.f32.partialorder %v6846, 0.0
    %vm6863 = vcmp.gt.f32.partialorder %v6847, 0.0
    %vm6864 = vcmp.gt.f32.partialorder %v6848, 0.0
    %vm6865 = vcmp.gt.f32.partialorder %v6849, 0.0
    %vm6866 = vcmp.gt.f32.partialorder %v6850, 0.0
    %vm6867 = vcmp.gt.f32.partialorder %v6851, 0.0
    %vm6868 = vcmp.gt.f32.partialorder %v6852, 0.0
    %vm6869 = vcmp.gt.f32.partialorder %v6853, 0.0
    %vm6870 = vcmp.gt.f32.partialorder %v6854, 0.0
    %vm6871 = vcmp.gt.f32.partialorder %v6855, 0.0
    %vm6872 = vcmp.gt.f32.partialorder %v6856, 0.0
    %vm6873 = vcmp.gt.f32.partialorder %v6857, 0.0
    %vm6874 = vcmp.gt.f32.partialorder %v6858, 0.0
    %vm6875 = vcmp.gt.f32.partialorder %v6859, 0.0
    %v6876 = vmul.f32 %v6844, 1.442695
    %v6877 = vpow.pop %v6876
    %v6878 = vmul.f32 %v6845, 1.442695
    %v6879 = vpow.pop %v6878
    %v6880 = vmul.f32 %v6846, 1.442695
    %v6881 = vpow.pop %v6880
    %v6882 = vmul.f32 %v6847, 1.442695
    %v6883 = vpow.pop %v6882
    %v6884 = vmul.f32 %v6848, 1.442695
    %v6885 = vpow.pop %v6884
    %v6886 = vmul.f32 %v6849, 1.442695
    %v6887 = vpow.pop %v6886
    %v6888 = vmul.f32 %v6850, 1.442695
    %v6889 = vpow.pop %v6888
    %v6890 = vmul.f32 %v6851, 1.442695
    %v6891 = vpow.pop %v6890
    %v6892 = vmul.f32 %v6852, 1.442695
    %v6893 = vpow.pop %v6892
    %v6894 = vmul.f32 %v6853, 1.442695
    %v6895 = vpow.pop %v6894
    %v6896 = vmul.f32 %v6854, 1.442695
    %v6897 = vpow.pop %v6896
    %v6898 = vmul.f32 %v6855, 1.442695
    %v6899 = vpow.pop %v6898
    %v6900 = vmul.f32 %v6856, 1.442695
    %v6901 = vpow.pop %v6900
    %v6902 = vmul.f32 %v6857, 1.442695
    %v6903 = vpow.pop %v6902
    %v6904 = vmul.f32 %v6858, 1.442695
    %v6905 = vpow.pop %v6904
    %v6906 = vmul.f32 %v6859, 1.442695
    %v6907 = vpow.pop %v6906
    %v6908 = vsub.f32 %v6877, 1.0
    %v6909 = vsub.f32 %v6879, 1.0
    %v6910 = vsub.f32 %v6881, 1.0
    %v6911 = vsub.f32 %v6883, 1.0
    %v6912 = vsub.f32 %v6885, 1.0
    %v6913 = vsub.f32 %v6887, 1.0
    %v6914 = vsub.f32 %v6889, 1.0
    %v6915 = vsub.f32 %v6891, 1.0
    %v6916 = vsub.f32 %v6893, 1.0
    %v6917 = vsub.f32 %v6895, 1.0
    %v6918 = vsub.f32 %v6897, 1.0
    %v6919 = vsub.f32 %v6899, 1.0
    %v6920 = vsub.f32 %v6901, 1.0
    %v6921 = vsub.f32 %v6903, 1.0
    %v6922 = vsub.f32 %v6905, 1.0
    %v6923 = vsub.f32 %v6907, 1.0
    %v6924 = vsel %vm6860, %v6844, %v6908
    %v6925 = vsel %vm6861, %v6845, %v6909
    %v6926 = vsel %vm6862, %v6846, %v6910
    %v6927 = vsel %vm6863, %v6847, %v6911
    %v6928 = vsel %vm6864, %v6848, %v6912
    %v6929 = vsel %vm6865, %v6849, %v6913
    %v6930 = vsel %vm6866, %v6850, %v6914
    %v6931 = vsel %vm6867, %v6851, %v6915
    %v6932 = vsel %vm6868, %v6852, %v6916
    %v6933 = vsel %vm6869, %v6853, %v6917
    %v6934 = vsel %vm6870, %v6854, %v6918
    %v6935 = vsel %vm6871, %v6855, %v6919
    %v6936 = vsel %vm6872, %v6856, %v6920
    %v6937 = vsel %vm6873, %v6857, %v6921
    %v6938 = vsel %vm6874, %v6858, %v6922
    %v6939 = vsel %vm6875, %v6859, %v6923
    %vm6940 = vcmask 523264
    %v6941 = vsel %vm6940, %v6924, 0.0
    %v6942 = vsel %vm6940, %v6925, 0.0
    %v6943 = vsel %vm6940, %v6926, 0.0
    %v6944 = vsel %vm6940, %v6927, 0.0
    %v6945 = vsel %vm6940, %v6928, 0.0
    %v6946 = vsel %vm6940, %v6929, 0.0
    %v6947 = vsel %vm6940, %v6930, 0.0
    %v6948 = vsel %vm6940, %v6931, 0.0
    %v6949 = vsel %vm6940, %v6932, 0.0
    %v6950 = vsel %vm6940, %v6933, 0.0
    %v6951 = vsel %vm6940, %v6934, 0.0
    %v6952 = vsel %vm6940, %v6935, 0.0
    %v6953 = vsel %vm6940, %v6936, 0.0
    %v6954 = vsel %vm6940, %v6937, 0.0
    %v6955 = vsel %vm6940, %v6938, 0.0
    %v6956 = vsel %vm6940, %v6939, 0.0
    %6957 = vst [vmem:[%s6] sm:$0xff] %v6941
    %6958 = vst [vmem:[%s6 + $0x8] sm:$0xff] %v6942
    %6959 = vst [vmem:[%s6 + $0x10] sm:$0xff] %v6943
    %6960 = vst [vmem:[%s6 + $0x18] sm:$0xff] %v6944
    %6961 = vst [vmem:[%s6 + $0x20] sm:$0xff] %v6945
    %6962 = vst [vmem:[%s6 + $0x28] sm:$0xff] %v6946
    %6963 = vst [vmem:[%s6 + $0x30] sm:$0xff] %v6947
    %6964 = vst [vmem:[%s6 + $0x38] sm:$0xff] %v6948
    %6965 = vst [vmem:[%s6 + $0x40] sm:$0xff] %v6949
    %6966 = vst [vmem:[%s6 + $0x48] sm:$0xff] %v6950
    %6967 = vst [vmem:[%s6 + $0x50] sm:$0xff] %v6951
    %6968 = vst [vmem:[%s6 + $0x58] sm:$0xff] %v6952
    %6969 = vst [vmem:[%s6 + $0x60] sm:$0xff] %v6953
    %6970 = vst [vmem:[%s6 + $0x68] sm:$0xff] %v6954
    %6971 = vst [vmem:[%s6 + $0x70] sm:$0xff] %v6955
    %6972 = vst [vmem:[%s6 + $0x78] sm:$0xff] %v6956
  $region33: #{gat_forward.5} parent=0 // pred_fallthru
    _
  // Predicated region
  $region34: #{gat_forward.5} parent=0 // pred_check
    _
  $region35: #{gat_forward.5} parent=0 // pred_check_branch
    %6974 = sbr.rel (0) target = $region37
  $region36: #{gat_forward.5} parent=0 // pred_region
    _
  $region37: #{gat_forward.5} parent=0 // pred_fallthru
    _
  // Predicated region
  $region38: #{gat_forward.5} parent=0 // pred_check
    _
  $region39: #{gat_forward.5} parent=0 // pred_check_branch
    %6976 = sbr.rel (0) target = $region41
  $region40: #{gat_forward.5} parent=0 // pred_region
    _
  $region41: #{gat_forward.5} parent=0 // pred_fallthru
    _

</llo_original>
